<compile_context>
chip_gen: v5e
topology: v5e:2x2
jax: 0.10.0
libtpu: 0.0.40
codegen_flags: <defaults>
</compile_context>

<pallas_src>
import functools
import math

import jax
import jax.numpy as jnp
from jax import lax
from jax.experimental import pallas as pl
from jax.experimental.pallas import tpu as pltpu

# bf16 operands feed the MXU at full rate; accumulation and all elementwise
# math stay f32.  Set to jnp.float32 to disable the quantization.
MATMUL_DTYPE = jnp.bfloat16
TIME_CHUNK = 64          # timesteps per hoisted input-projection chunk


def _round_up(x, m):
    return (x + m - 1) // m * m


def _encoder_lstm_kernel(x_ref, wih0_ref, b_ref, wih_ref, whh_ref,
                         hid_ref, cell_ref, act_sc, gx_sc):
    """One grid step == (batch chunk bc, LSTM layer l); grid = (n_bchunks, L).

    x_ref    : (T, Bc, Ep)       cdt  embedded input sequence (layer-0 input)
    wih0_ref : (Ep, 4Hp)         cdt  W_ih^T of layer 0 (gate order i,f,g,o)
    b_ref    : (1, 1, 4Hp)       f32  b_ih + b_hh of layer l
    wih_ref  : (1, Hp, 4Hp)      cdt  W_ih^T of layer max(l, 1)
    whh_ref  : (1, Hp, 4Hp)      cdt  W_hh^T of layer l
    hid_ref  : (1, Bc, Hp)       f32  final hidden state of layer l
    cell_ref : (1, Bc, Hp)       f32  final cell state  of layer l
    act_sc   : (T, Bc, Hp)       cdt  VMEM inter-layer activation sequence
    gx_sc    : (S, Tc, Bc, 4Hp)  f32  rotating chunked input-projection gates
    """
    layer = pl.program_id(1)
    T, Bc, Hp = act_sc.shape
    n_slots, Tc = gx_sc.shape[0], gx_sc.shape[1]
    Ep = x_ref.shape[-1]
    n_chunks = (T + Tc - 1) // Tc

    # ---- Hoisted input projection for one time chunk: ONE MXU matmul with
    #      M = size*Bc, stored into the rotating gate buffer. -----------------
    def project_chunk(ci, slot):
        start = ci * Tc
        size = min(Tc, T - start)
        dst = gx_sc.at[slot]

        @pl.when(layer == 0)
        def _():
            x2 = x_ref[pl.ds(start, size)].reshape(size * Bc, Ep)
            g = jnp.dot(x2, wih0_ref[...], preferred_element_type=jnp.float32)
            dst[0:size] = (g + b_ref[0]).reshape(size, Bc, 4 * Hp)

        @pl.when(layer > 0)
        def _():
            a2 = act_sc[pl.ds(start, size)].reshape(size * Bc, Hp)
            g = jnp.dot(a2, wih_ref[0], preferred_element_type=jnp.float32)
            dst[0:size] = (g + b_ref[0]).reshape(size, Bc, 4 * Hp)

    project_chunk(0, 0)

    # Carry a quantized (MXU-dtype) copy of h for the recurrence matmul LHS
    # alongside the f32 copy (only the f32 one is written to the output).
    h_q = jnp.zeros((Bc, Hp), act_sc.dtype)
    h_f = jnp.zeros((Bc, Hp), jnp.float32)
    c_f = jnp.zeros((Bc, Hp), jnp.float32)

    for ci in range(n_chunks):
        slot = ci % n_slots
        # Project the NEXT chunk before consuming the current one: it is
        # data-independent of the recurrence below, so its MXU work can
        # overlap the latency-bound serial loop.
        if ci + 1 < n_chunks:
            project_chunk(ci + 1, (ci + 1) % n_slots)

        base = ci * Tc
        size = min(Tc, T - base)
        gx_cur = gx_sc.at[slot]

        # ---- Serial recurrence: small h @ W_hh matmul + VPU/EUP gate math ----
        def step(t, carry, base=base, gx_cur=gx_cur):
            h_p, _, c_p = carry
            gates = gx_cur[t] + jnp.dot(h_p, whh_ref[0],
                                        preferred_element_type=jnp.float32)
            # sigmoid(x) == 0.5*(tanh(0.5*x) + 1) exactly; 1 EUP push vs 2.
            i_g = 0.5 * (jnp.tanh(0.5 * gates[:, 0 * Hp:1 * Hp]) + 1.0)
            f_g = 0.5 * (jnp.tanh(0.5 * gates[:, 1 * Hp:2 * Hp]) + 1.0)
            g_g = jnp.tanh(gates[:, 2 * Hp:3 * Hp])
            o_g = 0.5 * (jnp.tanh(0.5 * gates[:, 3 * Hp:4 * Hp]) + 1.0)
            c_new = f_g * c_p + i_g * g_g
            h_new = o_g * jnp.tanh(c_new)
            h_new_q = h_new.astype(act_sc.dtype)
            act_sc[base + t] = h_new_q     # next layer's input (VMEM only)
            return h_new_q, h_new, c_new

        h_q, h_f, c_f = lax.fori_loop(0, size, step, (h_q, h_f, c_f),
                                      unroll=min(size, 8))

    # Final states written exactly once per (layer, batch chunk).
    hid_ref[0] = h_f
    cell_ref[0] = c_f


class EncoderParams:
    """Deterministic synthetic parameters mirroring the PyTorch Encoder.__init__,
    pre-padded / pre-transposed / gate-aligned for the TPU kernel."""

    def __init__(self, key, vocab_size, emb_dim, hid_dim, n_layers,
                 compute_dtype=MATMUL_DTYPE):
        self.emb_dim = emb_dim
        self.hid_dim = hid_dim
        self.n_layers = n_layers
        self.compute_dtype = compute_dtype
        self.Ep = _round_up(emb_dim, 128)   # lane-pad embedding dim
        self.Hp = _round_up(hid_dim, 128)   # lane-pad hidden dim

        E, H, Ep, Hp = emb_dim, hid_dim, self.Ep, self.Hp
        k_emb, k_rnn = jax.random.split(key)

        # nn.Embedding.from_pretrained(normalize(track_embeddings, axis=0)):
        # sklearn normalize(axis=0) == L2-normalize each column.
        emb = jax.random.normal(k_emb, (vocab_size, emb_dim), dtype=jnp.float32)
        emb = emb / jnp.linalg.norm(emb, axis=0, keepdims=True)
        self.embedding = emb

        def pad_gate_matrix(w_t, rows_p):
            # w_t: (in_dim, 4H) -> (rows_p, 4Hp), each gate block lane-aligned.
            in_dim = w_t.shape[0]
            out = jnp.zeros((rows_p, 4 * Hp), jnp.float32)
            for g in range(4):
                out = out.at[:in_dim, g * Hp:g * Hp + H].set(w_t[:, g * H:(g + 1) * H])
            return out

        def pad_gate_bias(b):
            # Padded gate columns keep bias 0 => padded h/c lanes stay exactly 0.
            out = jnp.zeros((4 * Hp,), jnp.float32)
            for g in range(4):
                out = out.at[g * Hp:g * Hp + H].set(b[g * H:(g + 1) * H])
            return out

        # nn.LSTM init: U(-1/sqrt(H), 1/sqrt(H)) for all weights/biases.
        bound = 1.0 / math.sqrt(hid_dim)
        keys = jax.random.split(k_rnn, n_layers * 4)

        wih_p, whh_p, b_p = [], [], []
        self.ref_layers = []   # unpadded f32 copies for the pure-JAX reference
        for layer in range(n_layers):
            in_dim = emb_dim if layer == 0 else hid_dim
            k0, k1, k2, k3 = keys[layer * 4:(layer + 1) * 4]
            w_ih = jax.random.uniform(k0, (4 * H, in_dim), minval=-bound, maxval=bound)
            w_hh = jax.random.uniform(k1, (4 * H, H), minval=-bound, maxval=bound)
            b_ih = jax.random.uniform(k2, (4 * H,), minval=-bound, maxval=bound)
            b_hh = jax.random.uniform(k3, (4 * H,), minval=-bound, maxval=bound)

            rows_p = Ep if layer == 0 else Hp
            wih_p.append(pad_gate_matrix(w_ih.T, rows_p))
            whh_p.append(pad_gate_matrix(w_hh.T, Hp))
            b_p.append(pad_gate_bias(b_ih + b_hh))
            self.ref_layers.append((w_ih.T, w_hh.T, b_ih + b_hh))

        # Layer-0 input projection weights (input dim = Ep).
        self.w_ih0_p = wih_p[0].astype(compute_dtype)                  # (Ep, 4Hp)
        # Biases of ALL layers stacked (same shape per layer) -> single input.
        self.b_all_p = jnp.stack(b_p).reshape(n_layers, 1, 4 * Hp)     # f32
        # Layers >= 1 input weights, no dummy slot (index is clamped max(l-1,0)).
        rest = wih_p[1:] if n_layers > 1 else [jnp.zeros((Hp, 4 * Hp), jnp.float32)]
        self.w_ih_rest_p = jnp.stack(rest).astype(compute_dtype)       # (max(L-1,1),Hp,4Hp)
        self.w_hh_p = jnp.stack(whh_p).astype(compute_dtype)           # (L, Hp, 4Hp)


def encoder_forward(params: EncoderParams, src, single_buffer_constants=True):
    """src: (seq_len, batch) int32  ->  (hidden, cell): each (n_layers, B, H) f32."""
    T, B = src.shape
    E, H = params.emb_dim, params.hid_dim
    Ep, Hp = params.Ep, params.Hp
    L = params.n_layers
    cdt = params.compute_dtype

    # Sublane padding: native bf16 tile is (16,128), f32 is (8,128).
    sub = 16 if jnp.dtype(cdt).itemsize < 4 else 8
    # Batch chunking: dependency-free "parallel" axis for a 2nd TensorCore (v7x).
    if B > sub:
        n_bchunks = 2
        Bp = _round_up(B, 2 * sub)
    else:
        n_bchunks = 1
        Bp = _round_up(B, sub)
    Bc = Bp // n_bchunks

    # Time chunking of the hoisted input projection.
    Tc = min(T, TIME_CHUNK)
    n_chunks = (T + Tc - 1) // Tc
    n_slots = 2 if n_chunks > 1 else 1

    # Embedding lookup (plain-JAX gather glue).  Dropout == identity (eval mode).
    # TODO(synk): PyTorch does the lookup in float64 then casts; TPU has no f64,
    # so this path is f32 and the MXU operand copy is MATMUL_DTYPE.
    emb = params.embedding[src]                                        # (T, B, E)
    x = jnp.zeros((T, Bp, Ep), cdt).at[:, :B, :E].set(emb.astype(cdt))

    def const_spec(block_shape, index_map):
        # Grid-constant inputs are never re-fetched along the layer axis ->
        # single-buffer them to halve their VMEM footprint.
        if single_buffer_constants:
            return pl.BlockSpec(block_shape, index_map,
                                pipeline_mode=pl.Buffered(1))
        return pl.BlockSpec(block_shape, index_map)

    in_specs = [
        const_spec((T, Bc, Ep), lambda bc, l: (0, bc, 0)),             # embedded seq
        const_spec((Ep, 4 * Hp), lambda bc, l: (0, 0)),                # W_ih layer 0
        pl.BlockSpec((1, 1, 4 * Hp), lambda bc, l: (l, 0, 0)),         # bias layer l
        # Layer>=1 input weights; clamped index so layer 0 prefetches exactly
        # the block layer 1 needs (no dummy slot, no wasted DMA).
        pl.BlockSpec((1, Hp, 4 * Hp),
                     lambda bc, l: (jnp.maximum(l - 1, 0), 0, 0)),
        pl.BlockSpec((1, Hp, 4 * Hp), lambda bc, l: (l, 0, 0)),        # W_hh layer l
    ]
    out_specs = [
        pl.BlockSpec((1, Bc, Hp), lambda bc, l: (l, bc, 0)),           # hidden[l]
        pl.BlockSpec((1, Bc, Hp), lambda bc, l: (l, bc, 0)),           # cell[l]
    ]
    scratch_shapes = [
        pltpu.VMEM((T, Bc, Hp), cdt),                         # inter-layer acts
        pltpu.VMEM((n_slots, Tc, Bc, 4 * Hp), jnp.float32),   # rotating gate chunks
    ]

    # Explicit VMEM budget (binding on v7x's 64 MiB / v5e's 16 MiB scoped default).
    def _nbytes(shape, dtype):
        return math.prod(shape) * jnp.dtype(dtype).itemsize

    bufs = 1 if single_buffer_constants else 2
    vmem_needed = (
        bufs * _nbytes((T, Bc, Ep), cdt)
        + bufs * _nbytes((Ep, 4 * Hp), cdt)
        + 2 * _nbytes((1, 1, 4 * Hp), jnp.float32)
        + 4 * _nbytes((1, Hp, 4 * Hp), cdt)
        + 4 * _nbytes((1, Bc, Hp), jnp.float32)
        + _nbytes((T, Bc, Hp), cdt)
        + _nbytes((n_slots, Tc, Bc, 4 * Hp), jnp.float32))
    vmem_limit = int(min(max(2 * vmem_needed, 32 * 1024 * 1024),
                         64 * 1024 * 1024))

    hidden_p, cell_p = pl.pallas_call(
        _encoder_lstm_kernel,
        out_shape=(
            jax.ShapeDtypeStruct((L, Bp, Hp), jnp.float32),
            jax.ShapeDtypeStruct((L, Bp, Hp), jnp.float32),
        ),
        grid_spec=pltpu.PrefetchScalarGridSpec(
            num_scalar_prefetch=0,
            grid=(n_bchunks, L),
            in_specs=in_specs,
            out_specs=out_specs,
            scratch_shapes=scratch_shapes,
        ),
        compiler_params=pltpu.CompilerParams(
            dimension_semantics=("parallel", "arbitrary"),   # layers sequential
            vmem_limit_bytes=vmem_limit),
    )(x, params.w_ih0_p, params.b_all_p, params.w_ih_rest_p, params.w_hh_p)

    return hidden_p[:, :B, :H], cell_p[:, :B, :H]


def encoder_reference(params: EncoderParams, src):
    """Pure-JAX f32 reference (unpadded weights) for correctness checking."""
    H = params.hid_dim
    x = params.embedding[src]                                # (T, B, E)
    B = x.shape[1]
    hiddens, cells = [], []
    for (wih_t, whh_t, b) in params.ref_layers:
        def cell_fn(carry, xt, wih_t=wih_t, whh_t=whh_t, b=b):
            h, c = carry
            gates = xt @ wih_t + h @ whh_t + b
            i = jax.nn.sigmoid(gates[:, 0 * H:1 * H])
            f = jax.nn.sigmoid(gates[:, 1 * H:2 * H])
            g = jnp.tanh(gates[:, 2 * H:3 * H])
            o = jax.nn.sigmoid(gates[:, 3 * H:4 * H])
            c2 = f * c + i * g
            h2 = o * jnp.tanh(c2)
            return (h2, c2), h2
        init = (jnp.zeros((B, H), jnp.float32), jnp.zeros((B, H), jnp.float32))
        (h_n, c_n), ys = lax.scan(cell_fn, init, x)
        hiddens.append(h_n)
        cells.append(c_n)
        x = ys
    return jnp.stack(hiddens, axis=0), jnp.stack(cells, axis=0)


if __name__ == "__main__":
    # Small shapes consistent with the module's forward.
    VOCAB = 16
    EMB_DIM = 32
    HID_DIM = 32
    N_LAYERS = 2
    SEQ_LEN = 8
    BATCH = 2

    key = jax.random.PRNGKey(0)
    k_params, k_src = jax.random.split(key)

    params = EncoderParams(k_params, VOCAB, EMB_DIM, HID_DIM, N_LAYERS)
    src = jax.random.randint(k_src, (SEQ_LEN, BATCH), 0, VOCAB, dtype=jnp.int32)

    # Pure-JAX f32 reference (loose tolerance: the kernel uses bf16 MXU operands
    # with f32 accumulation).
    h_ref, c_ref = encoder_reference(params, src)

    def run_and_check(single_buffer):
        fwd = jax.jit(functools.partial(encoder_forward, params,
                                        single_buffer_constants=single_buffer))
        hidden, cell = fwd(src)
        jax.block_until_ready((hidden, cell))
        assert hidden.shape == (N_LAYERS, BATCH, HID_DIM)
        assert cell.shape == (N_LAYERS, BATCH, HID_DIM)
        assert hidden.dtype == jnp.float32 and cell.dtype == jnp.float32
        assert jnp.allclose(hidden, h_ref, atol=3e-2, rtol=0.0), \
            float(jnp.abs(hidden - h_ref).max())
        assert jnp.allclose(cell, c_ref, atol=3e-2, rtol=0.0), \
            float(jnp.abs(cell - c_ref).max())
        return hidden, cell

    try:
        run_and_check(single_buffer=True)
    except Exception:
        # Graceful fallback if this JAX build rejects pl.Buffered(1)
        # single-buffering; everything else is identical.
        run_and_check(single_buffer=False)

    print("KERNEL_OK")
</pallas_src>

<mosaic_0001>
module attributes {stable_mosaic.version = 11 : i64} {
  func.func @_encoder_lstm_kernel(%arg0: i32, %arg1: i32, %arg2: memref<8x16x128xbf16, #tpu.memory_space<vmem>>, %arg3: memref<128x512xbf16, #tpu.memory_space<vmem>>, %arg4: memref<1x1x512xf32, #tpu.memory_space<vmem>>, %arg5: memref<1x128x512xbf16, #tpu.memory_space<vmem>>, %arg6: memref<1x128x512xbf16, #tpu.memory_space<vmem>>, %arg7: memref<1x16x128xf32, #tpu.memory_space<vmem>>, %arg8: memref<1x16x128xf32, #tpu.memory_space<vmem>>, %arg9: memref<8x16x128xbf16, #tpu.memory_space<vmem>>, %arg10: memref<1x8x16x512xf32, #tpu.memory_space<vmem>>) attributes {dimension_semantics = [#tpu.dimension_semantics<parallel>, #tpu.dimension_semantics<arbitrary>], iteration_bounds = array<i64: 1, 2>, scalar_prefetch = 0 : i64, scratch_operands = 2 : i64, tpu.core_type = #tpu.core_type<tc>, window_params = [{pipeline_mode = #tpu.pipeline_mode<synchronous>, transform_indices = @transform_0, window_bounds = array<i64: 8, 16, 128>}, {pipeline_mode = #tpu.pipeline_mode<synchronous>, transform_indices = @transform_1, window_bounds = array<i64: 128, 512>}, {transform_indices = @transform_2, window_bounds = array<i64: 1, 1, 512>}, {transform_indices = @transform_3, window_bounds = array<i64: 1, 128, 512>}, {transform_indices = @transform_4, window_bounds = array<i64: 1, 128, 512>}, {transform_indices = @transform_5, window_bounds = array<i64: 1, 16, 128>}, {transform_indices = @transform_6, window_bounds = array<i64: 1, 16, 128>}]} {
    %c0_i32 = arith.constant 0 : i32
    %0 = arith.cmpi eq, %arg1, %c0_i32 : i32
    %1 = arith.extui %0 : i1 to i32
    %c0_i32_0 = arith.constant 0 : i32
    %c0_i32_1 = arith.constant 0 : i32
    %2 = arith.cmpi ne, %1, %c0_i32_1 : i32
    scf.if %2 {
      %c0_182 = arith.constant 0 : index
      %c0_183 = arith.constant 0 : index
      %c0_184 = arith.constant 0 : index
      %383 = vector.load %arg2[%c0_182, %c0_183, %c0_184] : memref<8x16x128xbf16, #tpu.memory_space<vmem>>, vector<8x16x128xbf16>
      %384 = vector.shape_cast %383 : vector<8x16x128xbf16> to vector<128x128xbf16>
      %c0_185 = arith.constant 0 : index
      %c0_186 = arith.constant 0 : index
      %385 = vector.load %arg3[%c0_185, %c0_186] : memref<128x512xbf16, #tpu.memory_space<vmem>>, vector<128x512xbf16>
      %cst_187 = arith.constant dense<0.000000e+00> : vector<128x512xf32>
      %386 = tpu.matmul %384, %385, %cst_187 {dimension_numbers = #tpu.dot_dimension_numbers<[1], [0], [0], [1], [0, 0, 1, 1], [], []>} : vector<128x128xbf16>, vector<128x512xbf16>, vector<128x512xf32> -> vector<128x512xf32>
      %c0_188 = arith.constant 0 : index
      %c0_189 = arith.constant 0 : index
      %c0_190 = arith.constant 0 : index
      %387 = vector.load %arg4[%c0_188, %c0_189, %c0_190] : memref<1x1x512xf32, #tpu.memory_space<vmem>>, vector<1x1x512xf32>
      %388 = vector.shape_cast %387 : vector<1x1x512xf32> to vector<1x512xf32>
      %389 = vector.broadcast %388 : vector<1x512xf32> to vector<128x512xf32>
      %390 = arith.addf %386, %389 : vector<128x512xf32>
      %391 = vector.shape_cast %390 : vector<128x512xf32> to vector<8x16x512xf32>
      %c0_i32_191 = arith.constant 0 : i32
      %c0_i32_192 = arith.constant 0 : i32
      %c0_i32_193 = arith.constant 0 : i32
      %392 = tpu.memref_slice %arg10[%c0_i32_0, %c0_i32_191, %c0_i32_192, %c0_i32_193] : memref<1x8x16x512xf32, #tpu.memory_space<vmem>> -> memref<1x8x16x512xf32, #tpu.memory_space<vmem>>
      %393 = tpu.memref_squeeze %392 : memref<1x8x16x512xf32, #tpu.memory_space<vmem>> -> memref<8x16x512xf32, #tpu.memory_space<vmem>>
      %c0_194 = arith.constant 0 : index
      %c0_195 = arith.constant 0 : index
      %c0_196 = arith.constant 0 : index
      %394 = vector.load %393[%c0_194, %c0_195, %c0_196] : memref<8x16x512xf32, #tpu.memory_space<vmem>>, vector<8x16x512xf32>
      tpu.vector_store %393[%c0_194, %c0_195, %c0_196], %391 {strides = array<i32>} : memref<8x16x512xf32, #tpu.memory_space<vmem>>, vector<8x16x512xf32>,
    } else {
    }
    %c0_i32_2 = arith.constant 0 : i32
    %3 = arith.cmpi sgt, %arg1, %c0_i32_2 : i32
    %4 = arith.extui %3 : i1 to i32
    %c0_i32_3 = arith.constant 0 : i32
    %c0_i32_4 = arith.constant 0 : i32
    %5 = arith.cmpi ne, %4, %c0_i32_4 : i32
    scf.if %5 {
      %c0_182 = arith.constant 0 : index
      %c0_183 = arith.constant 0 : index
      %c0_184 = arith.constant 0 : index
      %383 = vector.load %arg9[%c0_182, %c0_183, %c0_184] : memref<8x16x128xbf16, #tpu.memory_space<vmem>>, vector<8x16x128xbf16>
      %384 = vector.shape_cast %383 : vector<8x16x128xbf16> to vector<128x128xbf16>
      %c0_185 = arith.constant 0 : index
      %c0_186 = arith.constant 0 : index
      %c0_187 = arith.constant 0 : index
      %385 = vector.load %arg5[%c0_185, %c0_186, %c0_187] : memref<1x128x512xbf16, #tpu.memory_space<vmem>>, vector<1x128x512xbf16>
      %386 = vector.shape_cast %385 : vector<1x128x512xbf16> to vector<128x512xbf16>
      %cst_188 = arith.constant dense<0.000000e+00> : vector<128x512xf32>
      %387 = tpu.matmul %384, %386, %cst_188 {dimension_numbers = #tpu.dot_dimension_numbers<[1], [0], [0], [1], [0, 0, 1, 1], [], []>} : vector<128x128xbf16>, vector<128x512xbf16>, vector<128x512xf32> -> vector<128x512xf32>
      %c0_189 = arith.constant 0 : index
      %c0_190 = arith.constant 0 : index
      %c0_191 = arith.constant 0 : index
      %388 = vector.load %arg4[%c0_189, %c0_190, %c0_191] : memref<1x1x512xf32, #tpu.memory_space<vmem>>, vector<1x1x512xf32>
      %389 = vector.shape_cast %388 : vector<1x1x512xf32> to vector<1x512xf32>
      %390 = vector.broadcast %389 : vector<1x512xf32> to vector<128x512xf32>
      %391 = arith.addf %387, %390 : vector<128x512xf32>
      %392 = vector.shape_cast %391 : vector<128x512xf32> to vector<8x16x512xf32>
      %c0_i32_192 = arith.constant 0 : i32
      %c0_i32_193 = arith.constant 0 : i32
      %c0_i32_194 = arith.constant 0 : i32
      %393 = tpu.memref_slice %arg10[%c0_i32_3, %c0_i32_192, %c0_i32_193, %c0_i32_194] : memref<1x8x16x512xf32, #tpu.memory_space<vmem>> -> memref<1x8x16x512xf32, #tpu.memory_space<vmem>>
      %394 = tpu.memref_squeeze %393 : memref<1x8x16x512xf32, #tpu.memory_space<vmem>> -> memref<8x16x512xf32, #tpu.memory_space<vmem>>
      %c0_195 = arith.constant 0 : index
      %c0_196 = arith.constant 0 : index
      %c0_197 = arith.constant 0 : index
      %395 = vector.load %394[%c0_195, %c0_196, %c0_197] : memref<8x16x512xf32, #tpu.memory_space<vmem>>, vector<8x16x512xf32>
      tpu.vector_store %394[%c0_195, %c0_196, %c0_197], %392 {strides = array<i32>} : memref<8x16x512xf32, #tpu.memory_space<vmem>>, vector<8x16x512xf32>,
    } else {
    }
    %cst = arith.constant 0.000000e+00 : bf16
    %6 = vector.broadcast %cst : bf16 to vector<16x128xbf16>
    %cst_5 = arith.constant 0.000000e+00 : f32
    %7 = vector.broadcast %cst_5 : f32 to vector<16x128xf32>
    %cst_6 = arith.constant 0.000000e+00 : f32
    %8 = vector.broadcast %cst_6 : f32 to vector<16x128xf32>
    %c0_i32_7 = arith.constant 0 : i32
    %c0_i32_8 = arith.constant 0 : i32
    %c0_i32_9 = arith.constant 0 : i32
    %c0_i32_10 = arith.constant 0 : i32
    %c0_i32_11 = arith.constant 0 : i32
    %9 = tpu.memref_slice %arg10[%c0_i32_7, %c0_i32_9, %c0_i32_10, %c0_i32_11] : memref<1x8x16x512xf32, #tpu.memory_space<vmem>> -> memref<1x8x16x512xf32, #tpu.memory_space<vmem>>
    %10 = tpu.memref_squeeze %9 : memref<1x8x16x512xf32, #tpu.memory_space<vmem>> -> memref<8x16x512xf32, #tpu.memory_space<vmem>>
    %11 = arith.index_cast %c0_i32_8 : i32 to index
    %c0 = arith.constant 0 : index
    %c0_12 = arith.constant 0 : index
    %12 = vector.load %10[%11, %c0, %c0_12] : memref<8x16x512xf32, #tpu.memory_space<vmem>>, vector<1x16x512xf32>
    %13 = vector.shape_cast %12 : vector<1x16x512xf32> to vector<16x512xf32>
    %c0_13 = arith.constant 0 : index
    %c0_14 = arith.constant 0 : index
    %c0_15 = arith.constant 0 : index
    %14 = vector.load %arg6[%c0_13, %c0_14, %c0_15] : memref<1x128x512xbf16, #tpu.memory_space<vmem>>, vector<1x128x512xbf16>
    %15 = vector.shape_cast %14 : vector<1x128x512xbf16> to vector<128x512xbf16>
    %cst_16 = arith.constant dense<0.000000e+00> : vector<16x512xf32>
    %16 = tpu.matmul %6, %15, %cst_16 {dimension_numbers = #tpu.dot_dimension_numbers<[1], [0], [0], [1], [0, 0, 1, 1], [], []>} : vector<16x128xbf16>, vector<128x512xbf16>, vector<16x512xf32> -> vector<16x512xf32>
    %17 = arith.addf %13, %16 : vector<16x512xf32>
    %18 = vector.extract_strided_slice %17 {offsets = [0, 0], sizes = [16, 128], strides = [1, 1]} : vector<16x512xf32> to vector<16x128xf32>
    %cst_17 = arith.constant 5.000000e-01 : f32
    %19 = vector.broadcast %cst_17 : f32 to vector<16x128xf32>
    %20 = arith.mulf %19, %18 : vector<16x128xf32>
    %21 = math.tanh %20 : vector<16x128xf32>
    %cst_18 = arith.constant 1.000000e+00 : f32
    %22 = vector.broadcast %cst_18 : f32 to vector<16x128xf32>
    %23 = arith.addf %21, %22 : vector<16x128xf32>
    %cst_19 = arith.constant 5.000000e-01 : f32
    %24 = vector.broadcast %cst_19 : f32 to vector<16x128xf32>
    %25 = arith.mulf %24, %23 : vector<16x128xf32>
    %26 = vector.extract_strided_slice %17 {offsets = [0, 128], sizes = [16, 128], strides = [1, 1]} : vector<16x512xf32> to vector<16x128xf32>
    %cst_20 = arith.constant 5.000000e-01 : f32
    %27 = vector.broadcast %cst_20 : f32 to vector<16x128xf32>
    %28 = arith.mulf %27, %26 : vector<16x128xf32>
    %29 = math.tanh %28 : vector<16x128xf32>
    %cst_21 = arith.constant 1.000000e+00 : f32
    %30 = vector.broadcast %cst_21 : f32 to vector<16x128xf32>
    %31 = arith.addf %29, %30 : vector<16x128xf32>
    %cst_22 = arith.constant 5.000000e-01 : f32
    %32 = vector.broadcast %cst_22 : f32 to vector<16x128xf32>
    %33 = arith.mulf %32, %31 : vector<16x128xf32>
    %34 = vector.extract_strided_slice %17 {offsets = [0, 256], sizes = [16, 128], strides = [1, 1]} : vector<16x512xf32> to vector<16x128xf32>
    %35 = math.tanh %34 : vector<16x128xf32>
    %36 = vector.extract_strided_slice %17 {offsets = [0, 384], sizes = [16, 128], strides = [1, 1]} : vector<16x512xf32> to vector<16x128xf32>
    %cst_23 = arith.constant 5.000000e-01 : f32
    %37 = vector.broadcast %cst_23 : f32 to vector<16x128xf32>
    %38 = arith.mulf %37, %36 : vector<16x128xf32>
    %39 = math.tanh %38 : vector<16x128xf32>
    %cst_24 = arith.constant 1.000000e+00 : f32
    %40 = vector.broadcast %cst_24 : f32 to vector<16x128xf32>
    %41 = arith.addf %39, %40 : vector<16x128xf32>
    %cst_25 = arith.constant 5.000000e-01 : f32
    %42 = vector.broadcast %cst_25 : f32 to vector<16x128xf32>
    %43 = arith.mulf %42, %41 : vector<16x128xf32>
    %44 = arith.mulf %33, %8 : vector<16x128xf32>
    %45 = arith.mulf %25, %35 : vector<16x128xf32>
    %46 = arith.addf %44, %45 : vector<16x128xf32>
    %47 = math.tanh %46 : vector<16x128xf32>
    %48 = arith.mulf %43, %47 : vector<16x128xf32>
    %49 = arith.truncf %48 : vector<16x128xf32> to vector<16x128xbf16>
    %c0_i32_26 = arith.constant 0 : i32
    %50 = arith.addi %c0_i32_26, %c0_i32_8 : i32
    %51 = arith.index_cast %50 : i32 to index
    %c0_27 = arith.constant 0 : index
    %c0_28 = arith.constant 0 : index
    %52 = vector.load %arg9[%51, %c0_27, %c0_28] : memref<8x16x128xbf16, #tpu.memory_space<vmem>>, vector<1x16x128xbf16>
    %53 = vector.shape_cast %52 : vector<1x16x128xbf16> to vector<16x128xbf16>
    %54 = vector.shape_cast %49 : vector<16x128xbf16> to vector<1x16x128xbf16>
    tpu.vector_store %arg9[%51, %c0_27, %c0_28], %54 {strides = array<i32>} : memref<8x16x128xbf16, #tpu.memory_space<vmem>>, vector<1x16x128xbf16>,
    %c1_i32 = arith.constant 1 : i32
    %c0_i32_29 = arith.constant 0 : i32
    %c0_i32_30 = arith.constant 0 : i32
    %c0_i32_31 = arith.constant 0 : i32
    %55 = tpu.memref_slice %arg10[%c0_i32_7, %c0_i32_29, %c0_i32_30, %c0_i32_31] : memref<1x8x16x512xf32, #tpu.memory_space<vmem>> -> memref<1x8x16x512xf32, #tpu.memory_space<vmem>>
    %56 = tpu.memref_squeeze %55 : memref<1x8x16x512xf32, #tpu.memory_space<vmem>> -> memref<8x16x512xf32, #tpu.memory_space<vmem>>
    %57 = arith.index_cast %c1_i32 : i32 to index
    %c0_32 = arith.constant 0 : index
    %c0_33 = arith.constant 0 : index
    %58 = vector.load %56[%57, %c0_32, %c0_33] : memref<8x16x512xf32, #tpu.memory_space<vmem>>, vector<1x16x512xf32>
    %59 = vector.shape_cast %58 : vector<1x16x512xf32> to vector<16x512xf32>
    %c0_34 = arith.constant 0 : index
    %c0_35 = arith.constant 0 : index
    %c0_36 = arith.constant 0 : index
    %60 = vector.load %arg6[%c0_34, %c0_35, %c0_36] : memref<1x128x512xbf16, #tpu.memory_space<vmem>>, vector<1x128x512xbf16>
    %61 = vector.shape_cast %60 : vector<1x128x512xbf16> to vector<128x512xbf16>
    %cst_37 = arith.constant dense<0.000000e+00> : vector<16x512xf32>
    %62 = tpu.matmul %49, %61, %cst_37 {dimension_numbers = #tpu.dot_dimension_numbers<[1], [0], [0], [1], [0, 0, 1, 1], [], []>} : vector<16x128xbf16>, vector<128x512xbf16>, vector<16x512xf32> -> vector<16x512xf32>
    %63 = arith.addf %59, %62 : vector<16x512xf32>
    %64 = vector.extract_strided_slice %63 {offsets = [0, 0], sizes = [16, 128], strides = [1, 1]} : vector<16x512xf32> to vector<16x128xf32>
    %cst_38 = arith.constant 5.000000e-01 : f32
    %65 = vector.broadcast %cst_38 : f32 to vector<16x128xf32>
    %66 = arith.mulf %65, %64 : vector<16x128xf32>
    %67 = math.tanh %66 : vector<16x128xf32>
    %cst_39 = arith.constant 1.000000e+00 : f32
    %68 = vector.broadcast %cst_39 : f32 to vector<16x128xf32>
    %69 = arith.addf %67, %68 : vector<16x128xf32>
    %cst_40 = arith.constant 5.000000e-01 : f32
    %70 = vector.broadcast %cst_40 : f32 to vector<16x128xf32>
    %71 = arith.mulf %70, %69 : vector<16x128xf32>
    %72 = vector.extract_strided_slice %63 {offsets = [0, 128], sizes = [16, 128], strides = [1, 1]} : vector<16x512xf32> to vector<16x128xf32>
    %cst_41 = arith.constant 5.000000e-01 : f32
    %73 = vector.broadcast %cst_41 : f32 to vector<16x128xf32>
    %74 = arith.mulf %73, %72 : vector<16x128xf32>
    %75 = math.tanh %74 : vector<16x128xf32>
    %cst_42 = arith.constant 1.000000e+00 : f32
    %76 = vector.broadcast %cst_42 : f32 to vector<16x128xf32>
    %77 = arith.addf %75, %76 : vector<16x128xf32>
    %cst_43 = arith.constant 5.000000e-01 : f32
    %78 = vector.broadcast %cst_43 : f32 to vector<16x128xf32>
    %79 = arith.mulf %78, %77 : vector<16x128xf32>
    %80 = vector.extract_strided_slice %63 {offsets = [0, 256], sizes = [16, 128], strides = [1, 1]} : vector<16x512xf32> to vector<16x128xf32>
    %81 = math.tanh %80 : vector<16x128xf32>
    %82 = vector.extract_strided_slice %63 {offsets = [0, 384], sizes = [16, 128], strides = [1, 1]} : vector<16x512xf32> to vector<16x128xf32>
    %cst_44 = arith.constant 5.000000e-01 : f32
    %83 = vector.broadcast %cst_44 : f32 to vector<16x128xf32>
    %84 = arith.mulf %83, %82 : vector<16x128xf32>
    %85 = math.tanh %84 : vector<16x128xf32>
    %cst_45 = arith.constant 1.000000e+00 : f32
    %86 = vector.broadcast %cst_45 : f32 to vector<16x128xf32>
    %87 = arith.addf %85, %86 : vector<16x128xf32>
    %cst_46 = arith.constant 5.000000e-01 : f32
    %88 = vector.broadcast %cst_46 : f32 to vector<16x128xf32>
    %89 = arith.mulf %88, %87 : vector<16x128xf32>
    %90 = arith.mulf %79, %46 : vector<16x128xf32>
    %91 = arith.mulf %71, %81 : vector<16x128xf32>
    %92 = arith.addf %90, %91 : vector<16x128xf32>
    %93 = math.tanh %92 : vector<16x128xf32>
    %94 = arith.mulf %89, %93 : vector<16x128xf32>
    %95 = arith.truncf %94 : vector<16x128xf32> to vector<16x128xbf16>
    %c0_i32_47 = arith.constant 0 : i32
    %96 = arith.addi %c0_i32_47, %c1_i32 : i32
    %97 = arith.index_cast %96 : i32 to index
    %c0_48 = arith.constant 0 : index
    %c0_49 = arith.constant 0 : index
    %98 = vector.load %arg9[%97, %c0_48, %c0_49] : memref<8x16x128xbf16, #tpu.memory_space<vmem>>, vector<1x16x128xbf16>
    %99 = vector.shape_cast %98 : vector<1x16x128xbf16> to vector<16x128xbf16>
    %100 = vector.shape_cast %95 : vector<16x128xbf16> to vector<1x16x128xbf16>
    tpu.vector_store %arg9[%97, %c0_48, %c0_49], %100 {strides = array<i32>} : memref<8x16x128xbf16, #tpu.memory_space<vmem>>, vector<1x16x128xbf16>,
    %c2_i32 = arith.constant 2 : i32
    %c0_i32_50 = arith.constant 0 : i32
    %c0_i32_51 = arith.constant 0 : i32
    %c0_i32_52 = arith.constant 0 : i32
    %101 = tpu.memref_slice %arg10[%c0_i32_7, %c0_i32_50, %c0_i32_51, %c0_i32_52] : memref<1x8x16x512xf32, #tpu.memory_space<vmem>> -> memref<1x8x16x512xf32, #tpu.memory_space<vmem>>
    %102 = tpu.memref_squeeze %101 : memref<1x8x16x512xf32, #tpu.memory_space<vmem>> -> memref<8x16x512xf32, #tpu.memory_space<vmem>>
    %103 = arith.index_cast %c2_i32 : i32 to index
    %c0_53 = arith.constant 0 : index
    %c0_54 = arith.constant 0 : index
    %104 = vector.load %102[%103, %c0_53, %c0_54] : memref<8x16x512xf32, #tpu.memory_space<vmem>>, vector<1x16x512xf32>
    %105 = vector.shape_cast %104 : vector<1x16x512xf32> to vector<16x512xf32>
    %c0_55 = arith.constant 0 : index
    %c0_56 = arith.constant 0 : index
    %c0_57 = arith.constant 0 : index
    %106 = vector.load %arg6[%c0_55, %c0_56, %c0_57] : memref<1x128x512xbf16, #tpu.memory_space<vmem>>, vector<1x128x512xbf16>
    %107 = vector.shape_cast %106 : vector<1x128x512xbf16> to vector<128x512xbf16>
    %cst_58 = arith.constant dense<0.000000e+00> : vector<16x512xf32>
    %108 = tpu.matmul %95, %107, %cst_58 {dimension_numbers = #tpu.dot_dimension_numbers<[1], [0], [0], [1], [0, 0, 1, 1], [], []>} : vector<16x128xbf16>, vector<128x512xbf16>, vector<16x512xf32> -> vector<16x512xf32>
    %109 = arith.addf %105, %108 : vector<16x512xf32>
    %110 = vector.extract_strided_slice %109 {offsets = [0, 0], sizes = [16, 128], strides = [1, 1]} : vector<16x512xf32> to vector<16x128xf32>
    %cst_59 = arith.constant 5.000000e-01 : f32
    %111 = vector.broadcast %cst_59 : f32 to vector<16x128xf32>
    %112 = arith.mulf %111, %110 : vector<16x128xf32>
    %113 = math.tanh %112 : vector<16x128xf32>
    %cst_60 = arith.constant 1.000000e+00 : f32
    %114 = vector.broadcast %cst_60 : f32 to vector<16x128xf32>
    %115 = arith.addf %113, %114 : vector<16x128xf32>
    %cst_61 = arith.constant 5.000000e-01 : f32
    %116 = vector.broadcast %cst_61 : f32 to vector<16x128xf32>
    %117 = arith.mulf %116, %115 : vector<16x128xf32>
    %118 = vector.extract_strided_slice %109 {offsets = [0, 128], sizes = [16, 128], strides = [1, 1]} : vector<16x512xf32> to vector<16x128xf32>
    %cst_62 = arith.constant 5.000000e-01 : f32
    %119 = vector.broadcast %cst_62 : f32 to vector<16x128xf32>
    %120 = arith.mulf %119, %118 : vector<16x128xf32>
    %121 = math.tanh %120 : vector<16x128xf32>
    %cst_63 = arith.constant 1.000000e+00 : f32
    %122 = vector.broadcast %cst_63 : f32 to vector<16x128xf32>
    %123 = arith.addf %121, %122 : vector<16x128xf32>
    %cst_64 = arith.constant 5.000000e-01 : f32
    %124 = vector.broadcast %cst_64 : f32 to vector<16x128xf32>
    %125 = arith.mulf %124, %123 : vector<16x128xf32>
    %126 = vector.extract_strided_slice %109 {offsets = [0, 256], sizes = [16, 128], strides = [1, 1]} : vector<16x512xf32> to vector<16x128xf32>
    %127 = math.tanh %126 : vector<16x128xf32>
    %128 = vector.extract_strided_slice %109 {offsets = [0, 384], sizes = [16, 128], strides = [1, 1]} : vector<16x512xf32> to vector<16x128xf32>
    %cst_65 = arith.constant 5.000000e-01 : f32
    %129 = vector.broadcast %cst_65 : f32 to vector<16x128xf32>
    %130 = arith.mulf %129, %128 : vector<16x128xf32>
    %131 = math.tanh %130 : vector<16x128xf32>
    %cst_66 = arith.constant 1.000000e+00 : f32
    %132 = vector.broadcast %cst_66 : f32 to vector<16x128xf32>
    %133 = arith.addf %131, %132 : vector<16x128xf32>
    %cst_67 = arith.constant 5.000000e-01 : f32
    %134 = vector.broadcast %cst_67 : f32 to vector<16x128xf32>
    %135 = arith.mulf %134, %133 : vector<16x128xf32>
    %136 = arith.mulf %125, %92 : vector<16x128xf32>
    %137 = arith.mulf %117, %127 : vector<16x128xf32>
    %138 = arith.addf %136, %137 : vector<16x128xf32>
    %139 = math.tanh %138 : vector<16x128xf32>
    %140 = arith.mulf %135, %139 : vector<16x128xf32>
    %141 = arith.truncf %140 : vector<16x128xf32> to vector<16x128xbf16>
    %c0_i32_68 = arith.constant 0 : i32
    %142 = arith.addi %c0_i32_68, %c2_i32 : i32
    %143 = arith.index_cast %142 : i32 to index
    %c0_69 = arith.constant 0 : index
    %c0_70 = arith.constant 0 : index
    %144 = vector.load %arg9[%143, %c0_69, %c0_70] : memref<8x16x128xbf16, #tpu.memory_space<vmem>>, vector<1x16x128xbf16>
    %145 = vector.shape_cast %144 : vector<1x16x128xbf16> to vector<16x128xbf16>
    %146 = vector.shape_cast %141 : vector<16x128xbf16> to vector<1x16x128xbf16>
    tpu.vector_store %arg9[%143, %c0_69, %c0_70], %146 {strides = array<i32>} : memref<8x16x128xbf16, #tpu.memory_space<vmem>>, vector<1x16x128xbf16>,
    %c3_i32 = arith.constant 3 : i32
    %c0_i32_71 = arith.constant 0 : i32
    %c0_i32_72 = arith.constant 0 : i32
    %c0_i32_73 = arith.constant 0 : i32
    %147 = tpu.memref_slice %arg10[%c0_i32_7, %c0_i32_71, %c0_i32_72, %c0_i32_73] : memref<1x8x16x512xf32, #tpu.memory_space<vmem>> -> memref<1x8x16x512xf32, #tpu.memory_space<vmem>>
    %148 = tpu.memref_squeeze %147 : memref<1x8x16x512xf32, #tpu.memory_space<vmem>> -> memref<8x16x512xf32, #tpu.memory_space<vmem>>
    %149 = arith.index_cast %c3_i32 : i32 to index
    %c0_74 = arith.constant 0 : index
    %c0_75 = arith.constant 0 : index
    %150 = vector.load %148[%149, %c0_74, %c0_75] : memref<8x16x512xf32, #tpu.memory_space<vmem>>, vector<1x16x512xf32>
    %151 = vector.shape_cast %150 : vector<1x16x512xf32> to vector<16x512xf32>
    %c0_76 = arith.constant 0 : index
    %c0_77 = arith.constant 0 : index
    %c0_78 = arith.constant 0 : index
    %152 = vector.load %arg6[%c0_76, %c0_77, %c0_78] : memref<1x128x512xbf16, #tpu.memory_space<vmem>>, vector<1x128x512xbf16>
    %153 = vector.shape_cast %152 : vector<1x128x512xbf16> to vector<128x512xbf16>
    %cst_79 = arith.constant dense<0.000000e+00> : vector<16x512xf32>
    %154 = tpu.matmul %141, %153, %cst_79 {dimension_numbers = #tpu.dot_dimension_numbers<[1], [0], [0], [1], [0, 0, 1, 1], [], []>} : vector<16x128xbf16>, vector<128x512xbf16>, vector<16x512xf32> -> vector<16x512xf32>
    %155 = arith.addf %151, %154 : vector<16x512xf32>
    %156 = vector.extract_strided_slice %155 {offsets = [0, 0], sizes = [16, 128], strides = [1, 1]} : vector<16x512xf32> to vector<16x128xf32>
    %cst_80 = arith.constant 5.000000e-01 : f32
    %157 = vector.broadcast %cst_80 : f32 to vector<16x128xf32>
    %158 = arith.mulf %157, %156 : vector<16x128xf32>
    %159 = math.tanh %158 : vector<16x128xf32>
    %cst_81 = arith.constant 1.000000e+00 : f32
    %160 = vector.broadcast %cst_81 : f32 to vector<16x128xf32>
    %161 = arith.addf %159, %160 : vector<16x128xf32>
    %cst_82 = arith.constant 5.000000e-01 : f32
    %162 = vector.broadcast %cst_82 : f32 to vector<16x128xf32>
    %163 = arith.mulf %162, %161 : vector<16x128xf32>
    %164 = vector.extract_strided_slice %155 {offsets = [0, 128], sizes = [16, 128], strides = [1, 1]} : vector<16x512xf32> to vector<16x128xf32>
    %cst_83 = arith.constant 5.000000e-01 : f32
    %165 = vector.broadcast %cst_83 : f32 to vector<16x128xf32>
    %166 = arith.mulf %165, %164 : vector<16x128xf32>
    %167 = math.tanh %166 : vector<16x128xf32>
    %cst_84 = arith.constant 1.000000e+00 : f32
    %168 = vector.broadcast %cst_84 : f32 to vector<16x128xf32>
    %169 = arith.addf %167, %168 : vector<16x128xf32>
    %cst_85 = arith.constant 5.000000e-01 : f32
    %170 = vector.broadcast %cst_85 : f32 to vector<16x128xf32>
    %171 = arith.mulf %170, %169 : vector<16x128xf32>
    %172 = vector.extract_strided_slice %155 {offsets = [0, 256], sizes = [16, 128], strides = [1, 1]} : vector<16x512xf32> to vector<16x128xf32>
    %173 = math.tanh %172 : vector<16x128xf32>
    %174 = vector.extract_strided_slice %155 {offsets = [0, 384], sizes = [16, 128], strides = [1, 1]} : vector<16x512xf32> to vector<16x128xf32>
    %cst_86 = arith.constant 5.000000e-01 : f32
    %175 = vector.broadcast %cst_86 : f32 to vector<16x128xf32>
    %176 = arith.mulf %175, %174 : vector<16x128xf32>
    %177 = math.tanh %176 : vector<16x128xf32>
    %cst_87 = arith.constant 1.000000e+00 : f32
    %178 = vector.broadcast %cst_87 : f32 to vector<16x128xf32>
    %179 = arith.addf %177, %178 : vector<16x128xf32>
    %cst_88 = arith.constant 5.000000e-01 : f32
    %180 = vector.broadcast %cst_88 : f32 to vector<16x128xf32>
    %181 = arith.mulf %180, %179 : vector<16x128xf32>
    %182 = arith.mulf %171, %138 : vector<16x128xf32>
    %183 = arith.mulf %163, %173 : vector<16x128xf32>
    %184 = arith.addf %182, %183 : vector<16x128xf32>
    %185 = math.tanh %184 : vector<16x128xf32>
    %186 = arith.mulf %181, %185 : vector<16x128xf32>
    %187 = arith.truncf %186 : vector<16x128xf32> to vector<16x128xbf16>
    %c0_i32_89 = arith.constant 0 : i32
    %188 = arith.addi %c0_i32_89, %c3_i32 : i32
    %189 = arith.index_cast %188 : i32 to index
    %c0_90 = arith.constant 0 : index
    %c0_91 = arith.constant 0 : index
    %190 = vector.load %arg9[%189, %c0_90, %c0_91] : memref<8x16x128xbf16, #tpu.memory_space<vmem>>, vector<1x16x128xbf16>
    %191 = vector.shape_cast %190 : vector<1x16x128xbf16> to vector<16x128xbf16>
    %192 = vector.shape_cast %187 : vector<16x128xbf16> to vector<1x16x128xbf16>
    tpu.vector_store %arg9[%189, %c0_90, %c0_91], %192 {strides = array<i32>} : memref<8x16x128xbf16, #tpu.memory_space<vmem>>, vector<1x16x128xbf16>,
    %c4_i32 = arith.constant 4 : i32
    %c0_i32_92 = arith.constant 0 : i32
    %c0_i32_93 = arith.constant 0 : i32
    %c0_i32_94 = arith.constant 0 : i32
    %193 = tpu.memref_slice %arg10[%c0_i32_7, %c0_i32_92, %c0_i32_93, %c0_i32_94] : memref<1x8x16x512xf32, #tpu.memory_space<vmem>> -> memref<1x8x16x512xf32, #tpu.memory_space<vmem>>
    %194 = tpu.memref_squeeze %193 : memref<1x8x16x512xf32, #tpu.memory_space<vmem>> -> memref<8x16x512xf32, #tpu.memory_space<vmem>>
    %195 = arith.index_cast %c4_i32 : i32 to index
    %c0_95 = arith.constant 0 : index
    %c0_96 = arith.constant 0 : index
    %196 = vector.load %194[%195, %c0_95, %c0_96] : memref<8x16x512xf32, #tpu.memory_space<vmem>>, vector<1x16x512xf32>
    %197 = vector.shape_cast %196 : vector<1x16x512xf32> to vector<16x512xf32>
    %c0_97 = arith.constant 0 : index
    %c0_98 = arith.constant 0 : index
    %c0_99 = arith.constant 0 : index
    %198 = vector.load %arg6[%c0_97, %c0_98, %c0_99] : memref<1x128x512xbf16, #tpu.memory_space<vmem>>, vector<1x128x512xbf16>
    %199 = vector.shape_cast %198 : vector<1x128x512xbf16> to vector<128x512xbf16>
    %cst_100 = arith.constant dense<0.000000e+00> : vector<16x512xf32>
    %200 = tpu.matmul %187, %199, %cst_100 {dimension_numbers = #tpu.dot_dimension_numbers<[1], [0], [0], [1], [0, 0, 1, 1], [], []>} : vector<16x128xbf16>, vector<128x512xbf16>, vector<16x512xf32> -> vector<16x512xf32>
    %201 = arith.addf %197, %200 : vector<16x512xf32>
    %202 = vector.extract_strided_slice %201 {offsets = [0, 0], sizes = [16, 128], strides = [1, 1]} : vector<16x512xf32> to vector<16x128xf32>
    %cst_101 = arith.constant 5.000000e-01 : f32
    %203 = vector.broadcast %cst_101 : f32 to vector<16x128xf32>
    %204 = arith.mulf %203, %202 : vector<16x128xf32>
    %205 = math.tanh %204 : vector<16x128xf32>
    %cst_102 = arith.constant 1.000000e+00 : f32
    %206 = vector.broadcast %cst_102 : f32 to vector<16x128xf32>
    %207 = arith.addf %205, %206 : vector<16x128xf32>
    %cst_103 = arith.constant 5.000000e-01 : f32
    %208 = vector.broadcast %cst_103 : f32 to vector<16x128xf32>
    %209 = arith.mulf %208, %207 : vector<16x128xf32>
    %210 = vector.extract_strided_slice %201 {offsets = [0, 128], sizes = [16, 128], strides = [1, 1]} : vector<16x512xf32> to vector<16x128xf32>
    %cst_104 = arith.constant 5.000000e-01 : f32
    %211 = vector.broadcast %cst_104 : f32 to vector<16x128xf32>
    %212 = arith.mulf %211, %210 : vector<16x128xf32>
    %213 = math.tanh %212 : vector<16x128xf32>
    %cst_105 = arith.constant 1.000000e+00 : f32
    %214 = vector.broadcast %cst_105 : f32 to vector<16x128xf32>
    %215 = arith.addf %213, %214 : vector<16x128xf32>
    %cst_106 = arith.constant 5.000000e-01 : f32
    %216 = vector.broadcast %cst_106 : f32 to vector<16x128xf32>
    %217 = arith.mulf %216, %215 : vector<16x128xf32>
    %218 = vector.extract_strided_slice %201 {offsets = [0, 256], sizes = [16, 128], strides = [1, 1]} : vector<16x512xf32> to vector<16x128xf32>
    %219 = math.tanh %218 : vector<16x128xf32>
    %220 = vector.extract_strided_slice %201 {offsets = [0, 384], sizes = [16, 128], strides = [1, 1]} : vector<16x512xf32> to vector<16x128xf32>
    %cst_107 = arith.constant 5.000000e-01 : f32
    %221 = vector.broadcast %cst_107 : f32 to vector<16x128xf32>
    %222 = arith.mulf %221, %220 : vector<16x128xf32>
    %223 = math.tanh %222 : vector<16x128xf32>
    %cst_108 = arith.constant 1.000000e+00 : f32
    %224 = vector.broadcast %cst_108 : f32 to vector<16x128xf32>
    %225 = arith.addf %223, %224 : vector<16x128xf32>
    %cst_109 = arith.constant 5.000000e-01 : f32
    %226 = vector.broadcast %cst_109 : f32 to vector<16x128xf32>
    %227 = arith.mulf %226, %225 : vector<16x128xf32>
    %228 = arith.mulf %217, %184 : vector<16x128xf32>
    %229 = arith.mulf %209, %219 : vector<16x128xf32>
    %230 = arith.addf %228, %229 : vector<16x128xf32>
    %231 = math.tanh %230 : vector<16x128xf32>
    %232 = arith.mulf %227, %231 : vector<16x128xf32>
    %233 = arith.truncf %232 : vector<16x128xf32> to vector<16x128xbf16>
    %c0_i32_110 = arith.constant 0 : i32
    %234 = arith.addi %c0_i32_110, %c4_i32 : i32
    %235 = arith.index_cast %234 : i32 to index
    %c0_111 = arith.constant 0 : index
    %c0_112 = arith.constant 0 : index
    %236 = vector.load %arg9[%235, %c0_111, %c0_112] : memref<8x16x128xbf16, #tpu.memory_space<vmem>>, vector<1x16x128xbf16>
    %237 = vector.shape_cast %236 : vector<1x16x128xbf16> to vector<16x128xbf16>
    %238 = vector.shape_cast %233 : vector<16x128xbf16> to vector<1x16x128xbf16>
    tpu.vector_store %arg9[%235, %c0_111, %c0_112], %238 {strides = array<i32>} : memref<8x16x128xbf16, #tpu.memory_space<vmem>>, vector<1x16x128xbf16>,
    %c5_i32 = arith.constant 5 : i32
    %c0_i32_113 = arith.constant 0 : i32
    %c0_i32_114 = arith.constant 0 : i32
    %c0_i32_115 = arith.constant 0 : i32
    %239 = tpu.memref_slice %arg10[%c0_i32_7, %c0_i32_113, %c0_i32_114, %c0_i32_115] : memref<1x8x16x512xf32, #tpu.memory_space<vmem>> -> memref<1x8x16x512xf32, #tpu.memory_space<vmem>>
    %240 = tpu.memref_squeeze %239 : memref<1x8x16x512xf32, #tpu.memory_space<vmem>> -> memref<8x16x512xf32, #tpu.memory_space<vmem>>
    %241 = arith.index_cast %c5_i32 : i32 to index
    %c0_116 = arith.constant 0 : index
    %c0_117 = arith.constant 0 : index
    %242 = vector.load %240[%241, %c0_116, %c0_117] : memref<8x16x512xf32, #tpu.memory_space<vmem>>, vector<1x16x512xf32>
    %243 = vector.shape_cast %242 : vector<1x16x512xf32> to vector<16x512xf32>
    %c0_118 = arith.constant 0 : index
    %c0_119 = arith.constant 0 : index
    %c0_120 = arith.constant 0 : index
    %244 = vector.load %arg6[%c0_118, %c0_119, %c0_120] : memref<1x128x512xbf16, #tpu.memory_space<vmem>>, vector<1x128x512xbf16>
    %245 = vector.shape_cast %244 : vector<1x128x512xbf16> to vector<128x512xbf16>
    %cst_121 = arith.constant dense<0.000000e+00> : vector<16x512xf32>
    %246 = tpu.matmul %233, %245, %cst_121 {dimension_numbers = #tpu.dot_dimension_numbers<[1], [0], [0], [1], [0, 0, 1, 1], [], []>} : vector<16x128xbf16>, vector<128x512xbf16>, vector<16x512xf32> -> vector<16x512xf32>
    %247 = arith.addf %243, %246 : vector<16x512xf32>
    %248 = vector.extract_strided_slice %247 {offsets = [0, 0], sizes = [16, 128], strides = [1, 1]} : vector<16x512xf32> to vector<16x128xf32>
    %cst_122 = arith.constant 5.000000e-01 : f32
    %249 = vector.broadcast %cst_122 : f32 to vector<16x128xf32>
    %250 = arith.mulf %249, %248 : vector<16x128xf32>
    %251 = math.tanh %250 : vector<16x128xf32>
    %cst_123 = arith.constant 1.000000e+00 : f32
    %252 = vector.broadcast %cst_123 : f32 to vector<16x128xf32>
    %253 = arith.addf %251, %252 : vector<16x128xf32>
    %cst_124 = arith.constant 5.000000e-01 : f32
    %254 = vector.broadcast %cst_124 : f32 to vector<16x128xf32>
    %255 = arith.mulf %254, %253 : vector<16x128xf32>
    %256 = vector.extract_strided_slice %247 {offsets = [0, 128], sizes = [16, 128], strides = [1, 1]} : vector<16x512xf32> to vector<16x128xf32>
    %cst_125 = arith.constant 5.000000e-01 : f32
    %257 = vector.broadcast %cst_125 : f32 to vector<16x128xf32>
    %258 = arith.mulf %257, %256 : vector<16x128xf32>
    %259 = math.tanh %258 : vector<16x128xf32>
    %cst_126 = arith.constant 1.000000e+00 : f32
    %260 = vector.broadcast %cst_126 : f32 to vector<16x128xf32>
    %261 = arith.addf %259, %260 : vector<16x128xf32>
    %cst_127 = arith.constant 5.000000e-01 : f32
    %262 = vector.broadcast %cst_127 : f32 to vector<16x128xf32>
    %263 = arith.mulf %262, %261 : vector<16x128xf32>
    %264 = vector.extract_strided_slice %247 {offsets = [0, 256], sizes = [16, 128], strides = [1, 1]} : vector<16x512xf32> to vector<16x128xf32>
    %265 = math.tanh %264 : vector<16x128xf32>
    %266 = vector.extract_strided_slice %247 {offsets = [0, 384], sizes = [16, 128], strides = [1, 1]} : vector<16x512xf32> to vector<16x128xf32>
    %cst_128 = arith.constant 5.000000e-01 : f32
    %267 = vector.broadcast %cst_128 : f32 to vector<16x128xf32>
    %268 = arith.mulf %267, %266 : vector<16x128xf32>
    %269 = math.tanh %268 : vector<16x128xf32>
    %cst_129 = arith.constant 1.000000e+00 : f32
    %270 = vector.broadcast %cst_129 : f32 to vector<16x128xf32>
    %271 = arith.addf %269, %270 : vector<16x128xf32>
    %cst_130 = arith.constant 5.000000e-01 : f32
    %272 = vector.broadcast %cst_130 : f32 to vector<16x128xf32>
    %273 = arith.mulf %272, %271 : vector<16x128xf32>
    %274 = arith.mulf %263, %230 : vector<16x128xf32>
    %275 = arith.mulf %255, %265 : vector<16x128xf32>
    %276 = arith.addf %274, %275 : vector<16x128xf32>
    %277 = math.tanh %276 : vector<16x128xf32>
    %278 = arith.mulf %273, %277 : vector<16x128xf32>
    %279 = arith.truncf %278 : vector<16x128xf32> to vector<16x128xbf16>
    %c0_i32_131 = arith.constant 0 : i32
    %280 = arith.addi %c0_i32_131, %c5_i32 : i32
    %281 = arith.index_cast %280 : i32 to index
    %c0_132 = arith.constant 0 : index
    %c0_133 = arith.constant 0 : index
    %282 = vector.load %arg9[%281, %c0_132, %c0_133] : memref<8x16x128xbf16, #tpu.memory_space<vmem>>, vector<1x16x128xbf16>
    %283 = vector.shape_cast %282 : vector<1x16x128xbf16> to vector<16x128xbf16>
    %284 = vector.shape_cast %279 : vector<16x128xbf16> to vector<1x16x128xbf16>
    tpu.vector_store %arg9[%281, %c0_132, %c0_133], %284 {strides = array<i32>} : memref<8x16x128xbf16, #tpu.memory_space<vmem>>, vector<1x16x128xbf16>,
    %c6_i32 = arith.constant 6 : i32
    %c0_i32_134 = arith.constant 0 : i32
    %c0_i32_135 = arith.constant 0 : i32
    %c0_i32_136 = arith.constant 0 : i32
    %285 = tpu.memref_slice %arg10[%c0_i32_7, %c0_i32_134, %c0_i32_135, %c0_i32_136] : memref<1x8x16x512xf32, #tpu.memory_space<vmem>> -> memref<1x8x16x512xf32, #tpu.memory_space<vmem>>
    %286 = tpu.memref_squeeze %285 : memref<1x8x16x512xf32, #tpu.memory_space<vmem>> -> memref<8x16x512xf32, #tpu.memory_space<vmem>>
    %287 = arith.index_cast %c6_i32 : i32 to index
    %c0_137 = arith.constant 0 : index
    %c0_138 = arith.constant 0 : index
    %288 = vector.load %286[%287, %c0_137, %c0_138] : memref<8x16x512xf32, #tpu.memory_space<vmem>>, vector<1x16x512xf32>
    %289 = vector.shape_cast %288 : vector<1x16x512xf32> to vector<16x512xf32>
    %c0_139 = arith.constant 0 : index
    %c0_140 = arith.constant 0 : index
    %c0_141 = arith.constant 0 : index
    %290 = vector.load %arg6[%c0_139, %c0_140, %c0_141] : memref<1x128x512xbf16, #tpu.memory_space<vmem>>, vector<1x128x512xbf16>
    %291 = vector.shape_cast %290 : vector<1x128x512xbf16> to vector<128x512xbf16>
    %cst_142 = arith.constant dense<0.000000e+00> : vector<16x512xf32>
    %292 = tpu.matmul %279, %291, %cst_142 {dimension_numbers = #tpu.dot_dimension_numbers<[1], [0], [0], [1], [0, 0, 1, 1], [], []>} : vector<16x128xbf16>, vector<128x512xbf16>, vector<16x512xf32> -> vector<16x512xf32>
    %293 = arith.addf %289, %292 : vector<16x512xf32>
    %294 = vector.extract_strided_slice %293 {offsets = [0, 0], sizes = [16, 128], strides = [1, 1]} : vector<16x512xf32> to vector<16x128xf32>
    %cst_143 = arith.constant 5.000000e-01 : f32
    %295 = vector.broadcast %cst_143 : f32 to vector<16x128xf32>
    %296 = arith.mulf %295, %294 : vector<16x128xf32>
    %297 = math.tanh %296 : vector<16x128xf32>
    %cst_144 = arith.constant 1.000000e+00 : f32
    %298 = vector.broadcast %cst_144 : f32 to vector<16x128xf32>
    %299 = arith.addf %297, %298 : vector<16x128xf32>
    %cst_145 = arith.constant 5.000000e-01 : f32
    %300 = vector.broadcast %cst_145 : f32 to vector<16x128xf32>
    %301 = arith.mulf %300, %299 : vector<16x128xf32>
    %302 = vector.extract_strided_slice %293 {offsets = [0, 128], sizes = [16, 128], strides = [1, 1]} : vector<16x512xf32> to vector<16x128xf32>
    %cst_146 = arith.constant 5.000000e-01 : f32
    %303 = vector.broadcast %cst_146 : f32 to vector<16x128xf32>
    %304 = arith.mulf %303, %302 : vector<16x128xf32>
    %305 = math.tanh %304 : vector<16x128xf32>
    %cst_147 = arith.constant 1.000000e+00 : f32
    %306 = vector.broadcast %cst_147 : f32 to vector<16x128xf32>
    %307 = arith.addf %305, %306 : vector<16x128xf32>
    %cst_148 = arith.constant 5.000000e-01 : f32
    %308 = vector.broadcast %cst_148 : f32 to vector<16x128xf32>
    %309 = arith.mulf %308, %307 : vector<16x128xf32>
    %310 = vector.extract_strided_slice %293 {offsets = [0, 256], sizes = [16, 128], strides = [1, 1]} : vector<16x512xf32> to vector<16x128xf32>
    %311 = math.tanh %310 : vector<16x128xf32>
    %312 = vector.extract_strided_slice %293 {offsets = [0, 384], sizes = [16, 128], strides = [1, 1]} : vector<16x512xf32> to vector<16x128xf32>
    %cst_149 = arith.constant 5.000000e-01 : f32
    %313 = vector.broadcast %cst_149 : f32 to vector<16x128xf32>
    %314 = arith.mulf %313, %312 : vector<16x128xf32>
    %315 = math.tanh %314 : vector<16x128xf32>
    %cst_150 = arith.constant 1.000000e+00 : f32
    %316 = vector.broadcast %cst_150 : f32 to vector<16x128xf32>
    %317 = arith.addf %315, %316 : vector<16x128xf32>
    %cst_151 = arith.constant 5.000000e-01 : f32
    %318 = vector.broadcast %cst_151 : f32 to vector<16x128xf32>
    %319 = arith.mulf %318, %317 : vector<16x128xf32>
    %320 = arith.mulf %309, %276 : vector<16x128xf32>
    %321 = arith.mulf %301, %311 : vector<16x128xf32>
    %322 = arith.addf %320, %321 : vector<16x128xf32>
    %323 = math.tanh %322 : vector<16x128xf32>
    %324 = arith.mulf %319, %323 : vector<16x128xf32>
    %325 = arith.truncf %324 : vector<16x128xf32> to vector<16x128xbf16>
    %c0_i32_152 = arith.constant 0 : i32
    %326 = arith.addi %c0_i32_152, %c6_i32 : i32
    %327 = arith.index_cast %326 : i32 to index
    %c0_153 = arith.constant 0 : index
    %c0_154 = arith.constant 0 : index
    %328 = vector.load %arg9[%327, %c0_153, %c0_154] : memref<8x16x128xbf16, #tpu.memory_space<vmem>>, vector<1x16x128xbf16>
    %329 = vector.shape_cast %328 : vector<1x16x128xbf16> to vector<16x128xbf16>
    %330 = vector.shape_cast %325 : vector<16x128xbf16> to vector<1x16x128xbf16>
    tpu.vector_store %arg9[%327, %c0_153, %c0_154], %330 {strides = array<i32>} : memref<8x16x128xbf16, #tpu.memory_space<vmem>>, vector<1x16x128xbf16>,
    %c7_i32 = arith.constant 7 : i32
    %c0_i32_155 = arith.constant 0 : i32
    %c0_i32_156 = arith.constant 0 : i32
    %c0_i32_157 = arith.constant 0 : i32
    %331 = tpu.memref_slice %arg10[%c0_i32_7, %c0_i32_155, %c0_i32_156, %c0_i32_157] : memref<1x8x16x512xf32, #tpu.memory_space<vmem>> -> memref<1x8x16x512xf32, #tpu.memory_space<vmem>>
    %332 = tpu.memref_squeeze %331 : memref<1x8x16x512xf32, #tpu.memory_space<vmem>> -> memref<8x16x512xf32, #tpu.memory_space<vmem>>
    %333 = arith.index_cast %c7_i32 : i32 to index
    %c0_158 = arith.constant 0 : index
    %c0_159 = arith.constant 0 : index
    %334 = vector.load %332[%333, %c0_158, %c0_159] : memref<8x16x512xf32, #tpu.memory_space<vmem>>, vector<1x16x512xf32>
    %335 = vector.shape_cast %334 : vector<1x16x512xf32> to vector<16x512xf32>
    %c0_160 = arith.constant 0 : index
    %c0_161 = arith.constant 0 : index
    %c0_162 = arith.constant 0 : index
    %336 = vector.load %arg6[%c0_160, %c0_161, %c0_162] : memref<1x128x512xbf16, #tpu.memory_space<vmem>>, vector<1x128x512xbf16>
    %337 = vector.shape_cast %336 : vector<1x128x512xbf16> to vector<128x512xbf16>
    %cst_163 = arith.constant dense<0.000000e+00> : vector<16x512xf32>
    %338 = tpu.matmul %325, %337, %cst_163 {dimension_numbers = #tpu.dot_dimension_numbers<[1], [0], [0], [1], [0, 0, 1, 1], [], []>} : vector<16x128xbf16>, vector<128x512xbf16>, vector<16x512xf32> -> vector<16x512xf32>
    %339 = arith.addf %335, %338 : vector<16x512xf32>
    %340 = vector.extract_strided_slice %339 {offsets = [0, 0], sizes = [16, 128], strides = [1, 1]} : vector<16x512xf32> to vector<16x128xf32>
    %cst_164 = arith.constant 5.000000e-01 : f32
    %341 = vector.broadcast %cst_164 : f32 to vector<16x128xf32>
    %342 = arith.mulf %341, %340 : vector<16x128xf32>
    %343 = math.tanh %342 : vector<16x128xf32>
    %cst_165 = arith.constant 1.000000e+00 : f32
    %344 = vector.broadcast %cst_165 : f32 to vector<16x128xf32>
    %345 = arith.addf %343, %344 : vector<16x128xf32>
    %cst_166 = arith.constant 5.000000e-01 : f32
    %346 = vector.broadcast %cst_166 : f32 to vector<16x128xf32>
    %347 = arith.mulf %346, %345 : vector<16x128xf32>
    %348 = vector.extract_strided_slice %339 {offsets = [0, 128], sizes = [16, 128], strides = [1, 1]} : vector<16x512xf32> to vector<16x128xf32>
    %cst_167 = arith.constant 5.000000e-01 : f32
    %349 = vector.broadcast %cst_167 : f32 to vector<16x128xf32>
    %350 = arith.mulf %349, %348 : vector<16x128xf32>
    %351 = math.tanh %350 : vector<16x128xf32>
    %cst_168 = arith.constant 1.000000e+00 : f32
    %352 = vector.broadcast %cst_168 : f32 to vector<16x128xf32>
    %353 = arith.addf %351, %352 : vector<16x128xf32>
    %cst_169 = arith.constant 5.000000e-01 : f32
    %354 = vector.broadcast %cst_169 : f32 to vector<16x128xf32>
    %355 = arith.mulf %354, %353 : vector<16x128xf32>
    %356 = vector.extract_strided_slice %339 {offsets = [0, 256], sizes = [16, 128], strides = [1, 1]} : vector<16x512xf32> to vector<16x128xf32>
    %357 = math.tanh %356 : vector<16x128xf32>
    %358 = vector.extract_strided_slice %339 {offsets = [0, 384], sizes = [16, 128], strides = [1, 1]} : vector<16x512xf32> to vector<16x128xf32>
    %cst_170 = arith.constant 5.000000e-01 : f32
    %359 = vector.broadcast %cst_170 : f32 to vector<16x128xf32>
    %360 = arith.mulf %359, %358 : vector<16x128xf32>
    %361 = math.tanh %360 : vector<16x128xf32>
    %cst_171 = arith.constant 1.000000e+00 : f32
    %362 = vector.broadcast %cst_171 : f32 to vector<16x128xf32>
    %363 = arith.addf %361, %362 : vector<16x128xf32>
    %cst_172 = arith.constant 5.000000e-01 : f32
    %364 = vector.broadcast %cst_172 : f32 to vector<16x128xf32>
    %365 = arith.mulf %364, %363 : vector<16x128xf32>
    %366 = arith.mulf %355, %322 : vector<16x128xf32>
    %367 = arith.mulf %347, %357 : vector<16x128xf32>
    %368 = arith.addf %366, %367 : vector<16x128xf32>
    %369 = math.tanh %368 : vector<16x128xf32>
    %370 = arith.mulf %365, %369 : vector<16x128xf32>
    %371 = arith.truncf %370 : vector<16x128xf32> to vector<16x128xbf16>
    %c0_i32_173 = arith.constant 0 : i32
    %372 = arith.addi %c0_i32_173, %c7_i32 : i32
    %373 = arith.index_cast %372 : i32 to index
    %c0_174 = arith.constant 0 : index
    %c0_175 = arith.constant 0 : index
    %374 = vector.load %arg9[%373, %c0_174, %c0_175] : memref<8x16x128xbf16, #tpu.memory_space<vmem>>, vector<1x16x128xbf16>
    %375 = vector.shape_cast %374 : vector<1x16x128xbf16> to vector<16x128xbf16>
    %376 = vector.shape_cast %371 : vector<16x128xbf16> to vector<1x16x128xbf16>
    tpu.vector_store %arg9[%373, %c0_174, %c0_175], %376 {strides = array<i32>} : memref<8x16x128xbf16, #tpu.memory_space<vmem>>, vector<1x16x128xbf16>,
    %c8_i32 = arith.constant 8 : i32
    %c0_176 = arith.constant 0 : index
    %c0_177 = arith.constant 0 : index
    %c0_178 = arith.constant 0 : index
    %377 = vector.load %arg7[%c0_176, %c0_177, %c0_178] : memref<1x16x128xf32, #tpu.memory_space<vmem>>, vector<1x16x128xf32>
    %378 = vector.shape_cast %377 : vector<1x16x128xf32> to vector<16x128xf32>
    %379 = vector.shape_cast %370 : vector<16x128xf32> to vector<1x16x128xf32>
    tpu.vector_store %arg7[%c0_176, %c0_177, %c0_178], %379 {strides = array<i32>} : memref<1x16x128xf32, #tpu.memory_space<vmem>>, vector<1x16x128xf32>,
    %c0_179 = arith.constant 0 : index
    %c0_180 = arith.constant 0 : index
    %c0_181 = arith.constant 0 : index
    %380 = vector.load %arg8[%c0_179, %c0_180, %c0_181] : memref<1x16x128xf32, #tpu.memory_space<vmem>>, vector<1x16x128xf32>
    %381 = vector.shape_cast %380 : vector<1x16x128xf32> to vector<16x128xf32>
    %382 = vector.shape_cast %368 : vector<16x128xf32> to vector<1x16x128xf32>
    tpu.vector_store %arg8[%c0_179, %c0_180, %c0_181], %382 {strides = array<i32>} : memref<1x16x128xf32, #tpu.memory_space<vmem>>, vector<1x16x128xf32>,
    return
  }
  func.func @transform_0(%arg0: i32, %arg1: i32) -> (i32, i32, i32) {
    %c0_i32 = arith.constant 0 : i32
    %c0_i32_0 = arith.constant 0 : i32
    %c0_i32_1 = arith.constant 0 : i32
    return %c0_i32, %arg0, %c0_i32_0 : i32, i32, i32
  }
  func.func @transform_1(%arg0: i32, %arg1: i32) -> (i32, i32) {
    %c0_i32 = arith.constant 0 : i32
    %c0_i32_0 = arith.constant 0 : i32
    %c0_i32_1 = arith.constant 0 : i32
    return %c0_i32, %c0_i32_0 : i32, i32
  }
  func.func @transform_2(%arg0: i32, %arg1: i32) -> (i32, i32, i32) {
    %c0_i32 = arith.constant 0 : i32
    %c0_i32_0 = arith.constant 0 : i32
    %c0_i32_1 = arith.constant 0 : i32
    return %arg1, %c0_i32, %c0_i32_0 : i32, i32, i32
  }
  func.func @transform_3(%arg0: i32, %arg1: i32) -> (i32, i32, i32) {
    %c1_i32 = arith.constant 1 : i32
    %0 = arith.subi %arg1, %c1_i32 : i32
    %c0_i32 = arith.constant 0 : i32
    %1 = arith.maxsi %0, %c0_i32 : i32
    %c0_i32_0 = arith.constant 0 : i32
    %c0_i32_1 = arith.constant 0 : i32
    %c0_i32_2 = arith.constant 0 : i32
    return %1, %c0_i32_0, %c0_i32_1 : i32, i32, i32
  }
  func.func @transform_4(%arg0: i32, %arg1: i32) -> (i32, i32, i32) {
    %c0_i32 = arith.constant 0 : i32
    %c0_i32_0 = arith.constant 0 : i32
    %c0_i32_1 = arith.constant 0 : i32
    return %arg1, %c0_i32, %c0_i32_0 : i32, i32, i32
  }
  func.func @transform_5(%arg0: i32, %arg1: i32) -> (i32, i32, i32) {
    %c0_i32 = arith.constant 0 : i32
    %c0_i32_0 = arith.constant 0 : i32
    return %arg1, %arg0, %c0_i32 : i32, i32, i32
  }
  func.func @transform_6(%arg0: i32, %arg1: i32) -> (i32, i32, i32) {
    %c0_i32 = arith.constant 0 : i32
    %c0_i32_0 = arith.constant 0 : i32
    return %arg1, %arg0, %c0_i32 : i32, i32, i32
  }
}

module attributes {stable_mosaic.version = 11 : i64} {
  func.func @_encoder_lstm_kernel(%arg0: i32, %arg1: i32, %arg2: memref<8x16x128xbf16, #tpu.memory_space<vmem>>, %arg3: memref<128x512xbf16, #tpu.memory_space<vmem>>, %arg4: memref<1x1x512xf32, #tpu.memory_space<vmem>>, %arg5: memref<1x128x512xbf16, #tpu.memory_space<vmem>>, %arg6: memref<1x128x512xbf16, #tpu.memory_space<vmem>>, %arg7: memref<1x16x128xf32, #tpu.memory_space<vmem>>, %arg8: memref<1x16x128xf32, #tpu.memory_space<vmem>>, %arg9: memref<8x16x128xbf16, #tpu.memory_space<vmem>>, %arg10: memref<1x8x16x512xf32, #tpu.memory_space<vmem>>) attributes {dimension_semantics = [#tpu.dimension_semantics<parallel>, #tpu.dimension_semantics<arbitrary>], iteration_bounds = array<i64: 1, 2>, scalar_prefetch = 0 : i64, scratch_operands = 2 : i64, tpu.core_type = #tpu.core_type<tc>, window_params = [{transform_indices = @transform_0, window_bounds = array<i64: 8, 16, 128>}, {pipeline_mode = #tpu.pipeline_mode<synchronous>, transform_indices = @transform_1, window_bounds = array<i64: 128, 512>}, {transform_indices = @transform_2, window_bounds = array<i64: 1, 1, 512>}, {transform_indices = @transform_3, window_bounds = array<i64: 1, 128, 512>}, {transform_indices = @transform_4, window_bounds = array<i64: 1, 128, 512>}, {transform_indices = @transform_5, window_bounds = array<i64: 1, 16, 128>}, {transform_indices = @transform_6, window_bounds = array<i64: 1, 16, 128>}]} {
    %c0_i32 = arith.constant 0 : i32
    %0 = arith.cmpi eq, %arg1, %c0_i32 : i32
    %1 = arith.extui %0 : i1 to i32
    %c0_i32_0 = arith.constant 0 : i32
    %c0_i32_1 = arith.constant 0 : i32
    %2 = arith.cmpi ne, %1, %c0_i32_1 : i32
    scf.if %2 {
      %c0_182 = arith.constant 0 : index
      %c0_183 = arith.constant 0 : index
      %c0_184 = arith.constant 0 : index
      %383 = vector.load %arg2[%c0_182, %c0_183, %c0_184] : memref<8x16x128xbf16, #tpu.memory_space<vmem>>, vector<8x16x128xbf16>
      %384 = vector.shape_cast %383 : vector<8x16x128xbf16> to vector<128x128xbf16>
      %c0_185 = arith.constant 0 : index
      %c0_186 = arith.constant 0 : index
      %385 = vector.load %arg3[%c0_185, %c0_186] : memref<128x512xbf16, #tpu.memory_space<vmem>>, vector<128x512xbf16>
      %cst_187 = arith.constant dense<0.000000e+00> : vector<128x512xf32>
      %386 = tpu.matmul %384, %385, %cst_187 {dimension_numbers = #tpu.dot_dimension_numbers<[1], [0], [0], [1], [0, 0, 1, 1], [], []>} : vector<128x128xbf16>, vector<128x512xbf16>, vector<128x512xf32> -> vector<128x512xf32>
      %c0_188 = arith.constant 0 : index
      %c0_189 = arith.constant 0 : index
      %c0_190 = arith.constant 0 : index
      %387 = vector.load %arg4[%c0_188, %c0_189, %c0_190] : memref<1x1x512xf32, #tpu.memory_space<vmem>>, vector<1x1x512xf32>
      %388 = vector.shape_cast %387 : vector<1x1x512xf32> to vector<1x512xf32>
      %389 = vector.broadcast %388 : vector<1x512xf32> to vector<128x512xf32>
      %390 = arith.addf %386, %389 : vector<128x512xf32>
      %391 = vector.shape_cast %390 : vector<128x512xf32> to vector<8x16x512xf32>
      %c0_i32_191 = arith.constant 0 : i32
      %c0_i32_192 = arith.constant 0 : i32
      %c0_i32_193 = arith.constant 0 : i32
      %392 = tpu.memref_slice %arg10[%c0_i32_0, %c0_i32_191, %c0_i32_192, %c0_i32_193] : memref<1x8x16x512xf32, #tpu.memory_space<vmem>> -> memref<1x8x16x512xf32, #tpu.memory_space<vmem>>
      %393 = tpu.memref_squeeze %392 : memref<1x8x16x512xf32, #tpu.memory_space<vmem>> -> memref<8x16x512xf32, #tpu.memory_space<vmem>>
      %c0_194 = arith.constant 0 : index
      %c0_195 = arith.constant 0 : index
      %c0_196 = arith.constant 0 : index
      %394 = vector.load %393[%c0_194, %c0_195, %c0_196] : memref<8x16x512xf32, #tpu.memory_space<vmem>>, vector<8x16x512xf32>
      tpu.vector_store %393[%c0_194, %c0_195, %c0_196], %391 {strides = array<i32>} : memref<8x16x512xf32, #tpu.memory_space<vmem>>, vector<8x16x512xf32>,
    } else {
    }
    %c0_i32_2 = arith.constant 0 : i32
    %3 = arith.cmpi sgt, %arg1, %c0_i32_2 : i32
    %4 = arith.extui %3 : i1 to i32
    %c0_i32_3 = arith.constant 0 : i32
    %c0_i32_4 = arith.constant 0 : i32
    %5 = arith.cmpi ne, %4, %c0_i32_4 : i32
    scf.if %5 {
      %c0_182 = arith.constant 0 : index
      %c0_183 = arith.constant 0 : index
      %c0_184 = arith.constant 0 : index
      %383 = vector.load %arg9[%c0_182, %c0_183, %c0_184] : memref<8x16x128xbf16, #tpu.memory_space<vmem>>, vector<8x16x128xbf16>
      %384 = vector.shape_cast %383 : vector<8x16x128xbf16> to vector<128x128xbf16>
      %c0_185 = arith.constant 0 : index
      %c0_186 = arith.constant 0 : index
      %c0_187 = arith.constant 0 : index
      %385 = vector.load %arg5[%c0_185, %c0_186, %c0_187] : memref<1x128x512xbf16, #tpu.memory_space<vmem>>, vector<1x128x512xbf16>
      %386 = vector.shape_cast %385 : vector<1x128x512xbf16> to vector<128x512xbf16>
      %cst_188 = arith.constant dense<0.000000e+00> : vector<128x512xf32>
      %387 = tpu.matmul %384, %386, %cst_188 {dimension_numbers = #tpu.dot_dimension_numbers<[1], [0], [0], [1], [0, 0, 1, 1], [], []>} : vector<128x128xbf16>, vector<128x512xbf16>, vector<128x512xf32> -> vector<128x512xf32>
      %c0_189 = arith.constant 0 : index
      %c0_190 = arith.constant 0 : index
      %c0_191 = arith.constant 0 : index
      %388 = vector.load %arg4[%c0_189, %c0_190, %c0_191] : memref<1x1x512xf32, #tpu.memory_space<vmem>>, vector<1x1x512xf32>
      %389 = vector.shape_cast %388 : vector<1x1x512xf32> to vector<1x512xf32>
      %390 = vector.broadcast %389 : vector<1x512xf32> to vector<128x512xf32>
      %391 = arith.addf %387, %390 : vector<128x512xf32>
      %392 = vector.shape_cast %391 : vector<128x512xf32> to vector<8x16x512xf32>
      %c0_i32_192 = arith.constant 0 : i32
      %c0_i32_193 = arith.constant 0 : i32
      %c0_i32_194 = arith.constant 0 : i32
      %393 = tpu.memref_slice %arg10[%c0_i32_3, %c0_i32_192, %c0_i32_193, %c0_i32_194] : memref<1x8x16x512xf32, #tpu.memory_space<vmem>> -> memref<1x8x16x512xf32, #tpu.memory_space<vmem>>
      %394 = tpu.memref_squeeze %393 : memref<1x8x16x512xf32, #tpu.memory_space<vmem>> -> memref<8x16x512xf32, #tpu.memory_space<vmem>>
      %c0_195 = arith.constant 0 : index
      %c0_196 = arith.constant 0 : index
      %c0_197 = arith.constant 0 : index
      %395 = vector.load %394[%c0_195, %c0_196, %c0_197] : memref<8x16x512xf32, #tpu.memory_space<vmem>>, vector<8x16x512xf32>
      tpu.vector_store %394[%c0_195, %c0_196, %c0_197], %392 {strides = array<i32>} : memref<8x16x512xf32, #tpu.memory_space<vmem>>, vector<8x16x512xf32>,
    } else {
    }
    %cst = arith.constant 0.000000e+00 : bf16
    %6 = vector.broadcast %cst : bf16 to vector<16x128xbf16>
    %cst_5 = arith.constant 0.000000e+00 : f32
    %7 = vector.broadcast %cst_5 : f32 to vector<16x128xf32>
    %cst_6 = arith.constant 0.000000e+00 : f32
    %8 = vector.broadcast %cst_6 : f32 to vector<16x128xf32>
    %c0_i32_7 = arith.constant 0 : i32
    %c0_i32_8 = arith.constant 0 : i32
    %c0_i32_9 = arith.constant 0 : i32
    %c0_i32_10 = arith.constant 0 : i32
    %c0_i32_11 = arith.constant 0 : i32
    %9 = tpu.memref_slice %arg10[%c0_i32_7, %c0_i32_9, %c0_i32_10, %c0_i32_11] : memref<1x8x16x512xf32, #tpu.memory_space<vmem>> -> memref<1x8x16x512xf32, #tpu.memory_space<vmem>>
    %10 = tpu.memref_squeeze %9 : memref<1x8x16x512xf32, #tpu.memory_space<vmem>> -> memref<8x16x512xf32, #tpu.memory_space<vmem>>
    %11 = arith.index_cast %c0_i32_8 : i32 to index
    %c0 = arith.constant 0 : index
    %c0_12 = arith.constant 0 : index
    %12 = vector.load %10[%11, %c0, %c0_12] : memref<8x16x512xf32, #tpu.memory_space<vmem>>, vector<1x16x512xf32>
    %13 = vector.shape_cast %12 : vector<1x16x512xf32> to vector<16x512xf32>
    %c0_13 = arith.constant 0 : index
    %c0_14 = arith.constant 0 : index
    %c0_15 = arith.constant 0 : index
    %14 = vector.load %arg6[%c0_13, %c0_14, %c0_15] : memref<1x128x512xbf16, #tpu.memory_space<vmem>>, vector<1x128x512xbf16>
    %15 = vector.shape_cast %14 : vector<1x128x512xbf16> to vector<128x512xbf16>
    %cst_16 = arith.constant dense<0.000000e+00> : vector<16x512xf32>
    %16 = tpu.matmul %6, %15, %cst_16 {dimension_numbers = #tpu.dot_dimension_numbers<[1], [0], [0], [1], [0, 0, 1, 1], [], []>} : vector<16x128xbf16>, vector<128x512xbf16>, vector<16x512xf32> -> vector<16x512xf32>
    %17 = arith.addf %13, %16 : vector<16x512xf32>
    %18 = vector.extract_strided_slice %17 {offsets = [0, 0], sizes = [16, 128], strides = [1, 1]} : vector<16x512xf32> to vector<16x128xf32>
    %cst_17 = arith.constant 5.000000e-01 : f32
    %19 = vector.broadcast %cst_17 : f32 to vector<16x128xf32>
    %20 = arith.mulf %19, %18 : vector<16x128xf32>
    %21 = math.tanh %20 : vector<16x128xf32>
    %cst_18 = arith.constant 1.000000e+00 : f32
    %22 = vector.broadcast %cst_18 : f32 to vector<16x128xf32>
    %23 = arith.addf %21, %22 : vector<16x128xf32>
    %cst_19 = arith.constant 5.000000e-01 : f32
    %24 = vector.broadcast %cst_19 : f32 to vector<16x128xf32>
    %25 = arith.mulf %24, %23 : vector<16x128xf32>
    %26 = vector.extract_strided_slice %17 {offsets = [0, 128], sizes = [16, 128], strides = [1, 1]} : vector<16x512xf32> to vector<16x128xf32>
    %cst_20 = arith.constant 5.000000e-01 : f32
    %27 = vector.broadcast %cst_20 : f32 to vector<16x128xf32>
    %28 = arith.mulf %27, %26 : vector<16x128xf32>
    %29 = math.tanh %28 : vector<16x128xf32>
    %cst_21 = arith.constant 1.000000e+00 : f32
    %30 = vector.broadcast %cst_21 : f32 to vector<16x128xf32>
    %31 = arith.addf %29, %30 : vector<16x128xf32>
    %cst_22 = arith.constant 5.000000e-01 : f32
    %32 = vector.broadcast %cst_22 : f32 to vector<16x128xf32>
    %33 = arith.mulf %32, %31 : vector<16x128xf32>
    %34 = vector.extract_strided_slice %17 {offsets = [0, 256], sizes = [16, 128], strides = [1, 1]} : vector<16x512xf32> to vector<16x128xf32>
    %35 = math.tanh %34 : vector<16x128xf32>
    %36 = vector.extract_strided_slice %17 {offsets = [0, 384], sizes = [16, 128], strides = [1, 1]} : vector<16x512xf32> to vector<16x128xf32>
    %cst_23 = arith.constant 5.000000e-01 : f32
    %37 = vector.broadcast %cst_23 : f32 to vector<16x128xf32>
    %38 = arith.mulf %37, %36 : vector<16x128xf32>
    %39 = math.tanh %38 : vector<16x128xf32>
    %cst_24 = arith.constant 1.000000e+00 : f32
    %40 = vector.broadcast %cst_24 : f32 to vector<16x128xf32>
    %41 = arith.addf %39, %40 : vector<16x128xf32>
    %cst_25 = arith.constant 5.000000e-01 : f32
    %42 = vector.broadcast %cst_25 : f32 to vector<16x128xf32>
    %43 = arith.mulf %42, %41 : vector<16x128xf32>
    %44 = arith.mulf %33, %8 : vector<16x128xf32>
    %45 = arith.mulf %25, %35 : vector<16x128xf32>
    %46 = arith.addf %44, %45 : vector<16x128xf32>
    %47 = math.tanh %46 : vector<16x128xf32>
    %48 = arith.mulf %43, %47 : vector<16x128xf32>
    %49 = arith.truncf %48 : vector<16x128xf32> to vector<16x128xbf16>
    %c0_i32_26 = arith.constant 0 : i32
    %50 = arith.addi %c0_i32_26, %c0_i32_8 : i32
    %51 = arith.index_cast %50 : i32 to index
    %c0_27 = arith.constant 0 : index
    %c0_28 = arith.constant 0 : index
    %52 = vector.load %arg9[%51, %c0_27, %c0_28] : memref<8x16x128xbf16, #tpu.memory_space<vmem>>, vector<1x16x128xbf16>
    %53 = vector.shape_cast %52 : vector<1x16x128xbf16> to vector<16x128xbf16>
    %54 = vector.shape_cast %49 : vector<16x128xbf16> to vector<1x16x128xbf16>
    tpu.vector_store %arg9[%51, %c0_27, %c0_28], %54 {strides = array<i32>} : memref<8x16x128xbf16, #tpu.memory_space<vmem>>, vector<1x16x128xbf16>,
    %c1_i32 = arith.constant 1 : i32
    %c0_i32_29 = arith.constant 0 : i32
    %c0_i32_30 = arith.constant 0 : i32
    %c0_i32_31 = arith.constant 0 : i32
    %55 = tpu.memref_slice %arg10[%c0_i32_7, %c0_i32_29, %c0_i32_30, %c0_i32_31] : memref<1x8x16x512xf32, #tpu.memory_space<vmem>> -> memref<1x8x16x512xf32, #tpu.memory_space<vmem>>
    %56 = tpu.memref_squeeze %55 : memref<1x8x16x512xf32, #tpu.memory_space<vmem>> -> memref<8x16x512xf32, #tpu.memory_space<vmem>>
    %57 = arith.index_cast %c1_i32 : i32 to index
    %c0_32 = arith.constant 0 : index
    %c0_33 = arith.constant 0 : index
    %58 = vector.load %56[%57, %c0_32, %c0_33] : memref<8x16x512xf32, #tpu.memory_space<vmem>>, vector<1x16x512xf32>
    %59 = vector.shape_cast %58 : vector<1x16x512xf32> to vector<16x512xf32>
    %c0_34 = arith.constant 0 : index
    %c0_35 = arith.constant 0 : index
    %c0_36 = arith.constant 0 : index
    %60 = vector.load %arg6[%c0_34, %c0_35, %c0_36] : memref<1x128x512xbf16, #tpu.memory_space<vmem>>, vector<1x128x512xbf16>
    %61 = vector.shape_cast %60 : vector<1x128x512xbf16> to vector<128x512xbf16>
    %cst_37 = arith.constant dense<0.000000e+00> : vector<16x512xf32>
    %62 = tpu.matmul %49, %61, %cst_37 {dimension_numbers = #tpu.dot_dimension_numbers<[1], [0], [0], [1], [0, 0, 1, 1], [], []>} : vector<16x128xbf16>, vector<128x512xbf16>, vector<16x512xf32> -> vector<16x512xf32>
    %63 = arith.addf %59, %62 : vector<16x512xf32>
    %64 = vector.extract_strided_slice %63 {offsets = [0, 0], sizes = [16, 128], strides = [1, 1]} : vector<16x512xf32> to vector<16x128xf32>
    %cst_38 = arith.constant 5.000000e-01 : f32
    %65 = vector.broadcast %cst_38 : f32 to vector<16x128xf32>
    %66 = arith.mulf %65, %64 : vector<16x128xf32>
    %67 = math.tanh %66 : vector<16x128xf32>
    %cst_39 = arith.constant 1.000000e+00 : f32
    %68 = vector.broadcast %cst_39 : f32 to vector<16x128xf32>
    %69 = arith.addf %67, %68 : vector<16x128xf32>
    %cst_40 = arith.constant 5.000000e-01 : f32
    %70 = vector.broadcast %cst_40 : f32 to vector<16x128xf32>
    %71 = arith.mulf %70, %69 : vector<16x128xf32>
    %72 = vector.extract_strided_slice %63 {offsets = [0, 128], sizes = [16, 128], strides = [1, 1]} : vector<16x512xf32> to vector<16x128xf32>
    %cst_41 = arith.constant 5.000000e-01 : f32
    %73 = vector.broadcast %cst_41 : f32 to vector<16x128xf32>
    %74 = arith.mulf %73, %72 : vector<16x128xf32>
    %75 = math.tanh %74 : vector<16x128xf32>
    %cst_42 = arith.constant 1.000000e+00 : f32
    %76 = vector.broadcast %cst_42 : f32 to vector<16x128xf32>
    %77 = arith.addf %75, %76 : vector<16x128xf32>
    %cst_43 = arith.constant 5.000000e-01 : f32
    %78 = vector.broadcast %cst_43 : f32 to vector<16x128xf32>
    %79 = arith.mulf %78, %77 : vector<16x128xf32>
    %80 = vector.extract_strided_slice %63 {offsets = [0, 256], sizes = [16, 128], strides = [1, 1]} : vector<16x512xf32> to vector<16x128xf32>
    %81 = math.tanh %80 : vector<16x128xf32>
    %82 = vector.extract_strided_slice %63 {offsets = [0, 384], sizes = [16, 128], strides = [1, 1]} : vector<16x512xf32> to vector<16x128xf32>
    %cst_44 = arith.constant 5.000000e-01 : f32
    %83 = vector.broadcast %cst_44 : f32 to vector<16x128xf32>
    %84 = arith.mulf %83, %82 : vector<16x128xf32>
    %85 = math.tanh %84 : vector<16x128xf32>
    %cst_45 = arith.constant 1.000000e+00 : f32
    %86 = vector.broadcast %cst_45 : f32 to vector<16x128xf32>
    %87 = arith.addf %85, %86 : vector<16x128xf32>
    %cst_46 = arith.constant 5.000000e-01 : f32
    %88 = vector.broadcast %cst_46 : f32 to vector<16x128xf32>
    %89 = arith.mulf %88, %87 : vector<16x128xf32>
    %90 = arith.mulf %79, %46 : vector<16x128xf32>
    %91 = arith.mulf %71, %81 : vector<16x128xf32>
    %92 = arith.addf %90, %91 : vector<16x128xf32>
    %93 = math.tanh %92 : vector<16x128xf32>
    %94 = arith.mulf %89, %93 : vector<16x128xf32>
    %95 = arith.truncf %94 : vector<16x128xf32> to vector<16x128xbf16>
    %c0_i32_47 = arith.constant 0 : i32
    %96 = arith.addi %c0_i32_47, %c1_i32 : i32
    %97 = arith.index_cast %96 : i32 to index
    %c0_48 = arith.constant 0 : index
    %c0_49 = arith.constant 0 : index
    %98 = vector.load %arg9[%97, %c0_48, %c0_49] : memref<8x16x128xbf16, #tpu.memory_space<vmem>>, vector<1x16x128xbf16>
    %99 = vector.shape_cast %98 : vector<1x16x128xbf16> to vector<16x128xbf16>
    %100 = vector.shape_cast %95 : vector<16x128xbf16> to vector<1x16x128xbf16>
    tpu.vector_store %arg9[%97, %c0_48, %c0_49], %100 {strides = array<i32>} : memref<8x16x128xbf16, #tpu.memory_space<vmem>>, vector<1x16x128xbf16>,
    %c2_i32 = arith.constant 2 : i32
    %c0_i32_50 = arith.constant 0 : i32
    %c0_i32_51 = arith.constant 0 : i32
    %c0_i32_52 = arith.constant 0 : i32
    %101 = tpu.memref_slice %arg10[%c0_i32_7, %c0_i32_50, %c0_i32_51, %c0_i32_52] : memref<1x8x16x512xf32, #tpu.memory_space<vmem>> -> memref<1x8x16x512xf32, #tpu.memory_space<vmem>>
    %102 = tpu.memref_squeeze %101 : memref<1x8x16x512xf32, #tpu.memory_space<vmem>> -> memref<8x16x512xf32, #tpu.memory_space<vmem>>
    %103 = arith.index_cast %c2_i32 : i32 to index
    %c0_53 = arith.constant 0 : index
    %c0_54 = arith.constant 0 : index
    %104 = vector.load %102[%103, %c0_53, %c0_54] : memref<8x16x512xf32, #tpu.memory_space<vmem>>, vector<1x16x512xf32>
    %105 = vector.shape_cast %104 : vector<1x16x512xf32> to vector<16x512xf32>
    %c0_55 = arith.constant 0 : index
    %c0_56 = arith.constant 0 : index
    %c0_57 = arith.constant 0 : index
    %106 = vector.load %arg6[%c0_55, %c0_56, %c0_57] : memref<1x128x512xbf16, #tpu.memory_space<vmem>>, vector<1x128x512xbf16>
    %107 = vector.shape_cast %106 : vector<1x128x512xbf16> to vector<128x512xbf16>
    %cst_58 = arith.constant dense<0.000000e+00> : vector<16x512xf32>
    %108 = tpu.matmul %95, %107, %cst_58 {dimension_numbers = #tpu.dot_dimension_numbers<[1], [0], [0], [1], [0, 0, 1, 1], [], []>} : vector<16x128xbf16>, vector<128x512xbf16>, vector<16x512xf32> -> vector<16x512xf32>
    %109 = arith.addf %105, %108 : vector<16x512xf32>
    %110 = vector.extract_strided_slice %109 {offsets = [0, 0], sizes = [16, 128], strides = [1, 1]} : vector<16x512xf32> to vector<16x128xf32>
    %cst_59 = arith.constant 5.000000e-01 : f32
    %111 = vector.broadcast %cst_59 : f32 to vector<16x128xf32>
    %112 = arith.mulf %111, %110 : vector<16x128xf32>
    %113 = math.tanh %112 : vector<16x128xf32>
    %cst_60 = arith.constant 1.000000e+00 : f32
    %114 = vector.broadcast %cst_60 : f32 to vector<16x128xf32>
    %115 = arith.addf %113, %114 : vector<16x128xf32>
    %cst_61 = arith.constant 5.000000e-01 : f32
    %116 = vector.broadcast %cst_61 : f32 to vector<16x128xf32>
    %117 = arith.mulf %116, %115 : vector<16x128xf32>
    %118 = vector.extract_strided_slice %109 {offsets = [0, 128], sizes = [16, 128], strides = [1, 1]} : vector<16x512xf32> to vector<16x128xf32>
    %cst_62 = arith.constant 5.000000e-01 : f32
    %119 = vector.broadcast %cst_62 : f32 to vector<16x128xf32>
    %120 = arith.mulf %119, %118 : vector<16x128xf32>
    %121 = math.tanh %120 : vector<16x128xf32>
    %cst_63 = arith.constant 1.000000e+00 : f32
    %122 = vector.broadcast %cst_63 : f32 to vector<16x128xf32>
    %123 = arith.addf %121, %122 : vector<16x128xf32>
    %cst_64 = arith.constant 5.000000e-01 : f32
    %124 = vector.broadcast %cst_64 : f32 to vector<16x128xf32>
    %125 = arith.mulf %124, %123 : vector<16x128xf32>
    %126 = vector.extract_strided_slice %109 {offsets = [0, 256], sizes = [16, 128], strides = [1, 1]} : vector<16x512xf32> to vector<16x128xf32>
    %127 = math.tanh %126 : vector<16x128xf32>
    %128 = vector.extract_strided_slice %109 {offsets = [0, 384], sizes = [16, 128], strides = [1, 1]} : vector<16x512xf32> to vector<16x128xf32>
    %cst_65 = arith.constant 5.000000e-01 : f32
    %129 = vector.broadcast %cst_65 : f32 to vector<16x128xf32>
    %130 = arith.mulf %129, %128 : vector<16x128xf32>
    %131 = math.tanh %130 : vector<16x128xf32>
    %cst_66 = arith.constant 1.000000e+00 : f32
    %132 = vector.broadcast %cst_66 : f32 to vector<16x128xf32>
    %133 = arith.addf %131, %132 : vector<16x128xf32>
    %cst_67 = arith.constant 5.000000e-01 : f32
    %134 = vector.broadcast %cst_67 : f32 to vector<16x128xf32>
    %135 = arith.mulf %134, %133 : vector<16x128xf32>
    %136 = arith.mulf %125, %92 : vector<16x128xf32>
    %137 = arith.mulf %117, %127 : vector<16x128xf32>
    %138 = arith.addf %136, %137 : vector<16x128xf32>
    %139 = math.tanh %138 : vector<16x128xf32>
    %140 = arith.mulf %135, %139 : vector<16x128xf32>
    %141 = arith.truncf %140 : vector<16x128xf32> to vector<16x128xbf16>
    %c0_i32_68 = arith.constant 0 : i32
    %142 = arith.addi %c0_i32_68, %c2_i32 : i32
    %143 = arith.index_cast %142 : i32 to index
    %c0_69 = arith.constant 0 : index
    %c0_70 = arith.constant 0 : index
    %144 = vector.load %arg9[%143, %c0_69, %c0_70] : memref<8x16x128xbf16, #tpu.memory_space<vmem>>, vector<1x16x128xbf16>
    %145 = vector.shape_cast %144 : vector<1x16x128xbf16> to vector<16x128xbf16>
    %146 = vector.shape_cast %141 : vector<16x128xbf16> to vector<1x16x128xbf16>
    tpu.vector_store %arg9[%143, %c0_69, %c0_70], %146 {strides = array<i32>} : memref<8x16x128xbf16, #tpu.memory_space<vmem>>, vector<1x16x128xbf16>,
    %c3_i32 = arith.constant 3 : i32
    %c0_i32_71 = arith.constant 0 : i32
    %c0_i32_72 = arith.constant 0 : i32
    %c0_i32_73 = arith.constant 0 : i32
    %147 = tpu.memref_slice %arg10[%c0_i32_7, %c0_i32_71, %c0_i32_72, %c0_i32_73] : memref<1x8x16x512xf32, #tpu.memory_space<vmem>> -> memref<1x8x16x512xf32, #tpu.memory_space<vmem>>
    %148 = tpu.memref_squeeze %147 : memref<1x8x16x512xf32, #tpu.memory_space<vmem>> -> memref<8x16x512xf32, #tpu.memory_space<vmem>>
    %149 = arith.index_cast %c3_i32 : i32 to index
    %c0_74 = arith.constant 0 : index
    %c0_75 = arith.constant 0 : index
    %150 = vector.load %148[%149, %c0_74, %c0_75] : memref<8x16x512xf32, #tpu.memory_space<vmem>>, vector<1x16x512xf32>
    %151 = vector.shape_cast %150 : vector<1x16x512xf32> to vector<16x512xf32>
    %c0_76 = arith.constant 0 : index
    %c0_77 = arith.constant 0 : index
    %c0_78 = arith.constant 0 : index
    %152 = vector.load %arg6[%c0_76, %c0_77, %c0_78] : memref<1x128x512xbf16, #tpu.memory_space<vmem>>, vector<1x128x512xbf16>
    %153 = vector.shape_cast %152 : vector<1x128x512xbf16> to vector<128x512xbf16>
    %cst_79 = arith.constant dense<0.000000e+00> : vector<16x512xf32>
    %154 = tpu.matmul %141, %153, %cst_79 {dimension_numbers = #tpu.dot_dimension_numbers<[1], [0], [0], [1], [0, 0, 1, 1], [], []>} : vector<16x128xbf16>, vector<128x512xbf16>, vector<16x512xf32> -> vector<16x512xf32>
    %155 = arith.addf %151, %154 : vector<16x512xf32>
    %156 = vector.extract_strided_slice %155 {offsets = [0, 0], sizes = [16, 128], strides = [1, 1]} : vector<16x512xf32> to vector<16x128xf32>
    %cst_80 = arith.constant 5.000000e-01 : f32
    %157 = vector.broadcast %cst_80 : f32 to vector<16x128xf32>
    %158 = arith.mulf %157, %156 : vector<16x128xf32>
    %159 = math.tanh %158 : vector<16x128xf32>
    %cst_81 = arith.constant 1.000000e+00 : f32
    %160 = vector.broadcast %cst_81 : f32 to vector<16x128xf32>
    %161 = arith.addf %159, %160 : vector<16x128xf32>
    %cst_82 = arith.constant 5.000000e-01 : f32
    %162 = vector.broadcast %cst_82 : f32 to vector<16x128xf32>
    %163 = arith.mulf %162, %161 : vector<16x128xf32>
    %164 = vector.extract_strided_slice %155 {offsets = [0, 128], sizes = [16, 128], strides = [1, 1]} : vector<16x512xf32> to vector<16x128xf32>
    %cst_83 = arith.constant 5.000000e-01 : f32
    %165 = vector.broadcast %cst_83 : f32 to vector<16x128xf32>
    %166 = arith.mulf %165, %164 : vector<16x128xf32>
    %167 = math.tanh %166 : vector<16x128xf32>
    %cst_84 = arith.constant 1.000000e+00 : f32
    %168 = vector.broadcast %cst_84 : f32 to vector<16x128xf32>
    %169 = arith.addf %167, %168 : vector<16x128xf32>
    %cst_85 = arith.constant 5.000000e-01 : f32
    %170 = vector.broadcast %cst_85 : f32 to vector<16x128xf32>
    %171 = arith.mulf %170, %169 : vector<16x128xf32>
    %172 = vector.extract_strided_slice %155 {offsets = [0, 256], sizes = [16, 128], strides = [1, 1]} : vector<16x512xf32> to vector<16x128xf32>
    %173 = math.tanh %172 : vector<16x128xf32>
    %174 = vector.extract_strided_slice %155 {offsets = [0, 384], sizes = [16, 128], strides = [1, 1]} : vector<16x512xf32> to vector<16x128xf32>
    %cst_86 = arith.constant 5.000000e-01 : f32
    %175 = vector.broadcast %cst_86 : f32 to vector<16x128xf32>
    %176 = arith.mulf %175, %174 : vector<16x128xf32>
    %177 = math.tanh %176 : vector<16x128xf32>
    %cst_87 = arith.constant 1.000000e+00 : f32
    %178 = vector.broadcast %cst_87 : f32 to vector<16x128xf32>
    %179 = arith.addf %177, %178 : vector<16x128xf32>
    %cst_88 = arith.constant 5.000000e-01 : f32
    %180 = vector.broadcast %cst_88 : f32 to vector<16x128xf32>
    %181 = arith.mulf %180, %179 : vector<16x128xf32>
    %182 = arith.mulf %171, %138 : vector<16x128xf32>
    %183 = arith.mulf %163, %173 : vector<16x128xf32>
    %184 = arith.addf %182, %183 : vector<16x128xf32>
    %185 = math.tanh %184 : vector<16x128xf32>
    %186 = arith.mulf %181, %185 : vector<16x128xf32>
    %187 = arith.truncf %186 : vector<16x128xf32> to vector<16x128xbf16>
    %c0_i32_89 = arith.constant 0 : i32
    %188 = arith.addi %c0_i32_89, %c3_i32 : i32
    %189 = arith.index_cast %188 : i32 to index
    %c0_90 = arith.constant 0 : index
    %c0_91 = arith.constant 0 : index
    %190 = vector.load %arg9[%189, %c0_90, %c0_91] : memref<8x16x128xbf16, #tpu.memory_space<vmem>>, vector<1x16x128xbf16>
    %191 = vector.shape_cast %190 : vector<1x16x128xbf16> to vector<16x128xbf16>
    %192 = vector.shape_cast %187 : vector<16x128xbf16> to vector<1x16x128xbf16>
    tpu.vector_store %arg9[%189, %c0_90, %c0_91], %192 {strides = array<i32>} : memref<8x16x128xbf16, #tpu.memory_space<vmem>>, vector<1x16x128xbf16>,
    %c4_i32 = arith.constant 4 : i32
    %c0_i32_92 = arith.constant 0 : i32
    %c0_i32_93 = arith.constant 0 : i32
    %c0_i32_94 = arith.constant 0 : i32
    %193 = tpu.memref_slice %arg10[%c0_i32_7, %c0_i32_92, %c0_i32_93, %c0_i32_94] : memref<1x8x16x512xf32, #tpu.memory_space<vmem>> -> memref<1x8x16x512xf32, #tpu.memory_space<vmem>>
    %194 = tpu.memref_squeeze %193 : memref<1x8x16x512xf32, #tpu.memory_space<vmem>> -> memref<8x16x512xf32, #tpu.memory_space<vmem>>
    %195 = arith.index_cast %c4_i32 : i32 to index
    %c0_95 = arith.constant 0 : index
    %c0_96 = arith.constant 0 : index
    %196 = vector.load %194[%195, %c0_95, %c0_96] : memref<8x16x512xf32, #tpu.memory_space<vmem>>, vector<1x16x512xf32>
    %197 = vector.shape_cast %196 : vector<1x16x512xf32> to vector<16x512xf32>
    %c0_97 = arith.constant 0 : index
    %c0_98 = arith.constant 0 : index
    %c0_99 = arith.constant 0 : index
    %198 = vector.load %arg6[%c0_97, %c0_98, %c0_99] : memref<1x128x512xbf16, #tpu.memory_space<vmem>>, vector<1x128x512xbf16>
    %199 = vector.shape_cast %198 : vector<1x128x512xbf16> to vector<128x512xbf16>
    %cst_100 = arith.constant dense<0.000000e+00> : vector<16x512xf32>
    %200 = tpu.matmul %187, %199, %cst_100 {dimension_numbers = #tpu.dot_dimension_numbers<[1], [0], [0], [1], [0, 0, 1, 1], [], []>} : vector<16x128xbf16>, vector<128x512xbf16>, vector<16x512xf32> -> vector<16x512xf32>
    %201 = arith.addf %197, %200 : vector<16x512xf32>
    %202 = vector.extract_strided_slice %201 {offsets = [0, 0], sizes = [16, 128], strides = [1, 1]} : vector<16x512xf32> to vector<16x128xf32>
    %cst_101 = arith.constant 5.000000e-01 : f32
    %203 = vector.broadcast %cst_101 : f32 to vector<16x128xf32>
    %204 = arith.mulf %203, %202 : vector<16x128xf32>
    %205 = math.tanh %204 : vector<16x128xf32>
    %cst_102 = arith.constant 1.000000e+00 : f32
    %206 = vector.broadcast %cst_102 : f32 to vector<16x128xf32>
    %207 = arith.addf %205, %206 : vector<16x128xf32>
    %cst_103 = arith.constant 5.000000e-01 : f32
    %208 = vector.broadcast %cst_103 : f32 to vector<16x128xf32>
    %209 = arith.mulf %208, %207 : vector<16x128xf32>
    %210 = vector.extract_strided_slice %201 {offsets = [0, 128], sizes = [16, 128], strides = [1, 1]} : vector<16x512xf32> to vector<16x128xf32>
    %cst_104 = arith.constant 5.000000e-01 : f32
    %211 = vector.broadcast %cst_104 : f32 to vector<16x128xf32>
    %212 = arith.mulf %211, %210 : vector<16x128xf32>
    %213 = math.tanh %212 : vector<16x128xf32>
    %cst_105 = arith.constant 1.000000e+00 : f32
    %214 = vector.broadcast %cst_105 : f32 to vector<16x128xf32>
    %215 = arith.addf %213, %214 : vector<16x128xf32>
    %cst_106 = arith.constant 5.000000e-01 : f32
    %216 = vector.broadcast %cst_106 : f32 to vector<16x128xf32>
    %217 = arith.mulf %216, %215 : vector<16x128xf32>
    %218 = vector.extract_strided_slice %201 {offsets = [0, 256], sizes = [16, 128], strides = [1, 1]} : vector<16x512xf32> to vector<16x128xf32>
    %219 = math.tanh %218 : vector<16x128xf32>
    %220 = vector.extract_strided_slice %201 {offsets = [0, 384], sizes = [16, 128], strides = [1, 1]} : vector<16x512xf32> to vector<16x128xf32>
    %cst_107 = arith.constant 5.000000e-01 : f32
    %221 = vector.broadcast %cst_107 : f32 to vector<16x128xf32>
    %222 = arith.mulf %221, %220 : vector<16x128xf32>
    %223 = math.tanh %222 : vector<16x128xf32>
    %cst_108 = arith.constant 1.000000e+00 : f32
    %224 = vector.broadcast %cst_108 : f32 to vector<16x128xf32>
    %225 = arith.addf %223, %224 : vector<16x128xf32>
    %cst_109 = arith.constant 5.000000e-01 : f32
    %226 = vector.broadcast %cst_109 : f32 to vector<16x128xf32>
    %227 = arith.mulf %226, %225 : vector<16x128xf32>
    %228 = arith.mulf %217, %184 : vector<16x128xf32>
    %229 = arith.mulf %209, %219 : vector<16x128xf32>
    %230 = arith.addf %228, %229 : vector<16x128xf32>
    %231 = math.tanh %230 : vector<16x128xf32>
    %232 = arith.mulf %227, %231 : vector<16x128xf32>
    %233 = arith.truncf %232 : vector<16x128xf32> to vector<16x128xbf16>
    %c0_i32_110 = arith.constant 0 : i32
    %234 = arith.addi %c0_i32_110, %c4_i32 : i32
    %235 = arith.index_cast %234 : i32 to index
    %c0_111 = arith.constant 0 : index
    %c0_112 = arith.constant 0 : index
    %236 = vector.load %arg9[%235, %c0_111, %c0_112] : memref<8x16x128xbf16, #tpu.memory_space<vmem>>, vector<1x16x128xbf16>
    %237 = vector.shape_cast %236 : vector<1x16x128xbf16> to vector<16x128xbf16>
    %238 = vector.shape_cast %233 : vector<16x128xbf16> to vector<1x16x128xbf16>
    tpu.vector_store %arg9[%235, %c0_111, %c0_112], %238 {strides = array<i32>} : memref<8x16x128xbf16, #tpu.memory_space<vmem>>, vector<1x16x128xbf16>,
    %c5_i32 = arith.constant 5 : i32
    %c0_i32_113 = arith.constant 0 : i32
    %c0_i32_114 = arith.constant 0 : i32
    %c0_i32_115 = arith.constant 0 : i32
    %239 = tpu.memref_slice %arg10[%c0_i32_7, %c0_i32_113, %c0_i32_114, %c0_i32_115] : memref<1x8x16x512xf32, #tpu.memory_space<vmem>> -> memref<1x8x16x512xf32, #tpu.memory_space<vmem>>
    %240 = tpu.memref_squeeze %239 : memref<1x8x16x512xf32, #tpu.memory_space<vmem>> -> memref<8x16x512xf32, #tpu.memory_space<vmem>>
    %241 = arith.index_cast %c5_i32 : i32 to index
    %c0_116 = arith.constant 0 : index
    %c0_117 = arith.constant 0 : index
    %242 = vector.load %240[%241, %c0_116, %c0_117] : memref<8x16x512xf32, #tpu.memory_space<vmem>>, vector<1x16x512xf32>
    %243 = vector.shape_cast %242 : vector<1x16x512xf32> to vector<16x512xf32>
    %c0_118 = arith.constant 0 : index
    %c0_119 = arith.constant 0 : index
    %c0_120 = arith.constant 0 : index
    %244 = vector.load %arg6[%c0_118, %c0_119, %c0_120] : memref<1x128x512xbf16, #tpu.memory_space<vmem>>, vector<1x128x512xbf16>
    %245 = vector.shape_cast %244 : vector<1x128x512xbf16> to vector<128x512xbf16>
    %cst_121 = arith.constant dense<0.000000e+00> : vector<16x512xf32>
    %246 = tpu.matmul %233, %245, %cst_121 {dimension_numbers = #tpu.dot_dimension_numbers<[1], [0], [0], [1], [0, 0, 1, 1], [], []>} : vector<16x128xbf16>, vector<128x512xbf16>, vector<16x512xf32> -> vector<16x512xf32>
    %247 = arith.addf %243, %246 : vector<16x512xf32>
    %248 = vector.extract_strided_slice %247 {offsets = [0, 0], sizes = [16, 128], strides = [1, 1]} : vector<16x512xf32> to vector<16x128xf32>
    %cst_122 = arith.constant 5.000000e-01 : f32
    %249 = vector.broadcast %cst_122 : f32 to vector<16x128xf32>
    %250 = arith.mulf %249, %248 : vector<16x128xf32>
    %251 = math.tanh %250 : vector<16x128xf32>
    %cst_123 = arith.constant 1.000000e+00 : f32
    %252 = vector.broadcast %cst_123 : f32 to vector<16x128xf32>
    %253 = arith.addf %251, %252 : vector<16x128xf32>
    %cst_124 = arith.constant 5.000000e-01 : f32
    %254 = vector.broadcast %cst_124 : f32 to vector<16x128xf32>
    %255 = arith.mulf %254, %253 : vector<16x128xf32>
    %256 = vector.extract_strided_slice %247 {offsets = [0, 128], sizes = [16, 128], strides = [1, 1]} : vector<16x512xf32> to vector<16x128xf32>
    %cst_125 = arith.constant 5.000000e-01 : f32
    %257 = vector.broadcast %cst_125 : f32 to vector<16x128xf32>
    %258 = arith.mulf %257, %256 : vector<16x128xf32>
    %259 = math.tanh %258 : vector<16x128xf32>
    %cst_126 = arith.constant 1.000000e+00 : f32
    %260 = vector.broadcast %cst_126 : f32 to vector<16x128xf32>
    %261 = arith.addf %259, %260 : vector<16x128xf32>
    %cst_127 = arith.constant 5.000000e-01 : f32
    %262 = vector.broadcast %cst_127 : f32 to vector<16x128xf32>
    %263 = arith.mulf %262, %261 : vector<16x128xf32>
    %264 = vector.extract_strided_slice %247 {offsets = [0, 256], sizes = [16, 128], strides = [1, 1]} : vector<16x512xf32> to vector<16x128xf32>
    %265 = math.tanh %264 : vector<16x128xf32>
    %266 = vector.extract_strided_slice %247 {offsets = [0, 384], sizes = [16, 128], strides = [1, 1]} : vector<16x512xf32> to vector<16x128xf32>
    %cst_128 = arith.constant 5.000000e-01 : f32
    %267 = vector.broadcast %cst_128 : f32 to vector<16x128xf32>
    %268 = arith.mulf %267, %266 : vector<16x128xf32>
    %269 = math.tanh %268 : vector<16x128xf32>
    %cst_129 = arith.constant 1.000000e+00 : f32
    %270 = vector.broadcast %cst_129 : f32 to vector<16x128xf32>
    %271 = arith.addf %269, %270 : vector<16x128xf32>
    %cst_130 = arith.constant 5.000000e-01 : f32
    %272 = vector.broadcast %cst_130 : f32 to vector<16x128xf32>
    %273 = arith.mulf %272, %271 : vector<16x128xf32>
    %274 = arith.mulf %263, %230 : vector<16x128xf32>
    %275 = arith.mulf %255, %265 : vector<16x128xf32>
    %276 = arith.addf %274, %275 : vector<16x128xf32>
    %277 = math.tanh %276 : vector<16x128xf32>
    %278 = arith.mulf %273, %277 : vector<16x128xf32>
    %279 = arith.truncf %278 : vector<16x128xf32> to vector<16x128xbf16>
    %c0_i32_131 = arith.constant 0 : i32
    %280 = arith.addi %c0_i32_131, %c5_i32 : i32
    %281 = arith.index_cast %280 : i32 to index
    %c0_132 = arith.constant 0 : index
    %c0_133 = arith.constant 0 : index
    %282 = vector.load %arg9[%281, %c0_132, %c0_133] : memref<8x16x128xbf16, #tpu.memory_space<vmem>>, vector<1x16x128xbf16>
    %283 = vector.shape_cast %282 : vector<1x16x128xbf16> to vector<16x128xbf16>
    %284 = vector.shape_cast %279 : vector<16x128xbf16> to vector<1x16x128xbf16>
    tpu.vector_store %arg9[%281, %c0_132, %c0_133], %284 {strides = array<i32>} : memref<8x16x128xbf16, #tpu.memory_space<vmem>>, vector<1x16x128xbf16>,
    %c6_i32 = arith.constant 6 : i32
    %c0_i32_134 = arith.constant 0 : i32
    %c0_i32_135 = arith.constant 0 : i32
    %c0_i32_136 = arith.constant 0 : i32
    %285 = tpu.memref_slice %arg10[%c0_i32_7, %c0_i32_134, %c0_i32_135, %c0_i32_136] : memref<1x8x16x512xf32, #tpu.memory_space<vmem>> -> memref<1x8x16x512xf32, #tpu.memory_space<vmem>>
    %286 = tpu.memref_squeeze %285 : memref<1x8x16x512xf32, #tpu.memory_space<vmem>> -> memref<8x16x512xf32, #tpu.memory_space<vmem>>
    %287 = arith.index_cast %c6_i32 : i32 to index
    %c0_137 = arith.constant 0 : index
    %c0_138 = arith.constant 0 : index
    %288 = vector.load %286[%287, %c0_137, %c0_138] : memref<8x16x512xf32, #tpu.memory_space<vmem>>, vector<1x16x512xf32>
    %289 = vector.shape_cast %288 : vector<1x16x512xf32> to vector<16x512xf32>
    %c0_139 = arith.constant 0 : index
    %c0_140 = arith.constant 0 : index
    %c0_141 = arith.constant 0 : index
    %290 = vector.load %arg6[%c0_139, %c0_140, %c0_141] : memref<1x128x512xbf16, #tpu.memory_space<vmem>>, vector<1x128x512xbf16>
    %291 = vector.shape_cast %290 : vector<1x128x512xbf16> to vector<128x512xbf16>
    %cst_142 = arith.constant dense<0.000000e+00> : vector<16x512xf32>
    %292 = tpu.matmul %279, %291, %cst_142 {dimension_numbers = #tpu.dot_dimension_numbers<[1], [0], [0], [1], [0, 0, 1, 1], [], []>} : vector<16x128xbf16>, vector<128x512xbf16>, vector<16x512xf32> -> vector<16x512xf32>
    %293 = arith.addf %289, %292 : vector<16x512xf32>
    %294 = vector.extract_strided_slice %293 {offsets = [0, 0], sizes = [16, 128], strides = [1, 1]} : vector<16x512xf32> to vector<16x128xf32>
    %cst_143 = arith.constant 5.000000e-01 : f32
    %295 = vector.broadcast %cst_143 : f32 to vector<16x128xf32>
    %296 = arith.mulf %295, %294 : vector<16x128xf32>
    %297 = math.tanh %296 : vector<16x128xf32>
    %cst_144 = arith.constant 1.000000e+00 : f32
    %298 = vector.broadcast %cst_144 : f32 to vector<16x128xf32>
    %299 = arith.addf %297, %298 : vector<16x128xf32>
    %cst_145 = arith.constant 5.000000e-01 : f32
    %300 = vector.broadcast %cst_145 : f32 to vector<16x128xf32>
    %301 = arith.mulf %300, %299 : vector<16x128xf32>
    %302 = vector.extract_strided_slice %293 {offsets = [0, 128], sizes = [16, 128], strides = [1, 1]} : vector<16x512xf32> to vector<16x128xf32>
    %cst_146 = arith.constant 5.000000e-01 : f32
    %303 = vector.broadcast %cst_146 : f32 to vector<16x128xf32>
    %304 = arith.mulf %303, %302 : vector<16x128xf32>
    %305 = math.tanh %304 : vector<16x128xf32>
    %cst_147 = arith.constant 1.000000e+00 : f32
    %306 = vector.broadcast %cst_147 : f32 to vector<16x128xf32>
    %307 = arith.addf %305, %306 : vector<16x128xf32>
    %cst_148 = arith.constant 5.000000e-01 : f32
    %308 = vector.broadcast %cst_148 : f32 to vector<16x128xf32>
    %309 = arith.mulf %308, %307 : vector<16x128xf32>
    %310 = vector.extract_strided_slice %293 {offsets = [0, 256], sizes = [16, 128], strides = [1, 1]} : vector<16x512xf32> to vector<16x128xf32>
    %311 = math.tanh %310 : vector<16x128xf32>
    %312 = vector.extract_strided_slice %293 {offsets = [0, 384], sizes = [16, 128], strides = [1, 1]} : vector<16x512xf32> to vector<16x128xf32>
    %cst_149 = arith.constant 5.000000e-01 : f32
    %313 = vector.broadcast %cst_149 : f32 to vector<16x128xf32>
    %314 = arith.mulf %313, %312 : vector<16x128xf32>
    %315 = math.tanh %314 : vector<16x128xf32>
    %cst_150 = arith.constant 1.000000e+00 : f32
    %316 = vector.broadcast %cst_150 : f32 to vector<16x128xf32>
    %317 = arith.addf %315, %316 : vector<16x128xf32>
    %cst_151 = arith.constant 5.000000e-01 : f32
    %318 = vector.broadcast %cst_151 : f32 to vector<16x128xf32>
    %319 = arith.mulf %318, %317 : vector<16x128xf32>
    %320 = arith.mulf %309, %276 : vector<16x128xf32>
    %321 = arith.mulf %301, %311 : vector<16x128xf32>
    %322 = arith.addf %320, %321 : vector<16x128xf32>
    %323 = math.tanh %322 : vector<16x128xf32>
    %324 = arith.mulf %319, %323 : vector<16x128xf32>
    %325 = arith.truncf %324 : vector<16x128xf32> to vector<16x128xbf16>
    %c0_i32_152 = arith.constant 0 : i32
    %326 = arith.addi %c0_i32_152, %c6_i32 : i32
    %327 = arith.index_cast %326 : i32 to index
    %c0_153 = arith.constant 0 : index
    %c0_154 = arith.constant 0 : index
    %328 = vector.load %arg9[%327, %c0_153, %c0_154] : memref<8x16x128xbf16, #tpu.memory_space<vmem>>, vector<1x16x128xbf16>
    %329 = vector.shape_cast %328 : vector<1x16x128xbf16> to vector<16x128xbf16>
    %330 = vector.shape_cast %325 : vector<16x128xbf16> to vector<1x16x128xbf16>
    tpu.vector_store %arg9[%327, %c0_153, %c0_154], %330 {strides = array<i32>} : memref<8x16x128xbf16, #tpu.memory_space<vmem>>, vector<1x16x128xbf16>,
    %c7_i32 = arith.constant 7 : i32
    %c0_i32_155 = arith.constant 0 : i32
    %c0_i32_156 = arith.constant 0 : i32
    %c0_i32_157 = arith.constant 0 : i32
    %331 = tpu.memref_slice %arg10[%c0_i32_7, %c0_i32_155, %c0_i32_156, %c0_i32_157] : memref<1x8x16x512xf32, #tpu.memory_space<vmem>> -> memref<1x8x16x512xf32, #tpu.memory_space<vmem>>
    %332 = tpu.memref_squeeze %331 : memref<1x8x16x512xf32, #tpu.memory_space<vmem>> -> memref<8x16x512xf32, #tpu.memory_space<vmem>>
    %333 = arith.index_cast %c7_i32 : i32 to index
    %c0_158 = arith.constant 0 : index
    %c0_159 = arith.constant 0 : index
    %334 = vector.load %332[%333, %c0_158, %c0_159] : memref<8x16x512xf32, #tpu.memory_space<vmem>>, vector<1x16x512xf32>
    %335 = vector.shape_cast %334 : vector<1x16x512xf32> to vector<16x512xf32>
    %c0_160 = arith.constant 0 : index
    %c0_161 = arith.constant 0 : index
    %c0_162 = arith.constant 0 : index
    %336 = vector.load %arg6[%c0_160, %c0_161, %c0_162] : memref<1x128x512xbf16, #tpu.memory_space<vmem>>, vector<1x128x512xbf16>
    %337 = vector.shape_cast %336 : vector<1x128x512xbf16> to vector<128x512xbf16>
    %cst_163 = arith.constant dense<0.000000e+00> : vector<16x512xf32>
    %338 = tpu.matmul %325, %337, %cst_163 {dimension_numbers = #tpu.dot_dimension_numbers<[1], [0], [0], [1], [0, 0, 1, 1], [], []>} : vector<16x128xbf16>, vector<128x512xbf16>, vector<16x512xf32> -> vector<16x512xf32>
    %339 = arith.addf %335, %338 : vector<16x512xf32>
    %340 = vector.extract_strided_slice %339 {offsets = [0, 0], sizes = [16, 128], strides = [1, 1]} : vector<16x512xf32> to vector<16x128xf32>
    %cst_164 = arith.constant 5.000000e-01 : f32
    %341 = vector.broadcast %cst_164 : f32 to vector<16x128xf32>
    %342 = arith.mulf %341, %340 : vector<16x128xf32>
    %343 = math.tanh %342 : vector<16x128xf32>
    %cst_165 = arith.constant 1.000000e+00 : f32
    %344 = vector.broadcast %cst_165 : f32 to vector<16x128xf32>
    %345 = arith.addf %343, %344 : vector<16x128xf32>
    %cst_166 = arith.constant 5.000000e-01 : f32
    %346 = vector.broadcast %cst_166 : f32 to vector<16x128xf32>
    %347 = arith.mulf %346, %345 : vector<16x128xf32>
    %348 = vector.extract_strided_slice %339 {offsets = [0, 128], sizes = [16, 128], strides = [1, 1]} : vector<16x512xf32> to vector<16x128xf32>
    %cst_167 = arith.constant 5.000000e-01 : f32
    %349 = vector.broadcast %cst_167 : f32 to vector<16x128xf32>
    %350 = arith.mulf %349, %348 : vector<16x128xf32>
    %351 = math.tanh %350 : vector<16x128xf32>
    %cst_168 = arith.constant 1.000000e+00 : f32
    %352 = vector.broadcast %cst_168 : f32 to vector<16x128xf32>
    %353 = arith.addf %351, %352 : vector<16x128xf32>
    %cst_169 = arith.constant 5.000000e-01 : f32
    %354 = vector.broadcast %cst_169 : f32 to vector<16x128xf32>
    %355 = arith.mulf %354, %353 : vector<16x128xf32>
    %356 = vector.extract_strided_slice %339 {offsets = [0, 256], sizes = [16, 128], strides = [1, 1]} : vector<16x512xf32> to vector<16x128xf32>
    %357 = math.tanh %356 : vector<16x128xf32>
    %358 = vector.extract_strided_slice %339 {offsets = [0, 384], sizes = [16, 128], strides = [1, 1]} : vector<16x512xf32> to vector<16x128xf32>
    %cst_170 = arith.constant 5.000000e-01 : f32
    %359 = vector.broadcast %cst_170 : f32 to vector<16x128xf32>
    %360 = arith.mulf %359, %358 : vector<16x128xf32>
    %361 = math.tanh %360 : vector<16x128xf32>
    %cst_171 = arith.constant 1.000000e+00 : f32
    %362 = vector.broadcast %cst_171 : f32 to vector<16x128xf32>
    %363 = arith.addf %361, %362 : vector<16x128xf32>
    %cst_172 = arith.constant 5.000000e-01 : f32
    %364 = vector.broadcast %cst_172 : f32 to vector<16x128xf32>
    %365 = arith.mulf %364, %363 : vector<16x128xf32>
    %366 = arith.mulf %355, %322 : vector<16x128xf32>
    %367 = arith.mulf %347, %357 : vector<16x128xf32>
    %368 = arith.addf %366, %367 : vector<16x128xf32>
    %369 = math.tanh %368 : vector<16x128xf32>
    %370 = arith.mulf %365, %369 : vector<16x128xf32>
    %371 = arith.truncf %370 : vector<16x128xf32> to vector<16x128xbf16>
    %c0_i32_173 = arith.constant 0 : i32
    %372 = arith.addi %c0_i32_173, %c7_i32 : i32
    %373 = arith.index_cast %372 : i32 to index
    %c0_174 = arith.constant 0 : index
    %c0_175 = arith.constant 0 : index
    %374 = vector.load %arg9[%373, %c0_174, %c0_175] : memref<8x16x128xbf16, #tpu.memory_space<vmem>>, vector<1x16x128xbf16>
    %375 = vector.shape_cast %374 : vector<1x16x128xbf16> to vector<16x128xbf16>
    %376 = vector.shape_cast %371 : vector<16x128xbf16> to vector<1x16x128xbf16>
    tpu.vector_store %arg9[%373, %c0_174, %c0_175], %376 {strides = array<i32>} : memref<8x16x128xbf16, #tpu.memory_space<vmem>>, vector<1x16x128xbf16>,
    %c8_i32 = arith.constant 8 : i32
    %c0_176 = arith.constant 0 : index
    %c0_177 = arith.constant 0 : index
    %c0_178 = arith.constant 0 : index
    %377 = vector.load %arg7[%c0_176, %c0_177, %c0_178] : memref<1x16x128xf32, #tpu.memory_space<vmem>>, vector<1x16x128xf32>
    %378 = vector.shape_cast %377 : vector<1x16x128xf32> to vector<16x128xf32>
    %379 = vector.shape_cast %370 : vector<16x128xf32> to vector<1x16x128xf32>
    tpu.vector_store %arg7[%c0_176, %c0_177, %c0_178], %379 {strides = array<i32>} : memref<1x16x128xf32, #tpu.memory_space<vmem>>, vector<1x16x128xf32>,
    %c0_179 = arith.constant 0 : index
    %c0_180 = arith.constant 0 : index
    %c0_181 = arith.constant 0 : index
    %380 = vector.load %arg8[%c0_179, %c0_180, %c0_181] : memref<1x16x128xf32, #tpu.memory_space<vmem>>, vector<1x16x128xf32>
    %381 = vector.shape_cast %380 : vector<1x16x128xf32> to vector<16x128xf32>
    %382 = vector.shape_cast %368 : vector<16x128xf32> to vector<1x16x128xf32>
    tpu.vector_store %arg8[%c0_179, %c0_180, %c0_181], %382 {strides = array<i32>} : memref<1x16x128xf32, #tpu.memory_space<vmem>>, vector<1x16x128xf32>,
    return
  }
  func.func @transform_0(%arg0: i32, %arg1: i32) -> (i32, i32, i32) {
    %c0_i32 = arith.constant 0 : i32
    %c0_i32_0 = arith.constant 0 : i32
    %c0_i32_1 = arith.constant 0 : i32
    return %c0_i32, %arg0, %c0_i32_0 : i32, i32, i32
  }
  func.func @transform_1(%arg0: i32, %arg1: i32) -> (i32, i32) {
    %c0_i32 = arith.constant 0 : i32
    %c0_i32_0 = arith.constant 0 : i32
    %c0_i32_1 = arith.constant 0 : i32
    return %c0_i32, %c0_i32_0 : i32, i32
  }
  func.func @transform_2(%arg0: i32, %arg1: i32) -> (i32, i32, i32) {
    %c0_i32 = arith.constant 0 : i32
    %c0_i32_0 = arith.constant 0 : i32
    %c0_i32_1 = arith.constant 0 : i32
    return %arg1, %c0_i32, %c0_i32_0 : i32, i32, i32
  }
  func.func @transform_3(%arg0: i32, %arg1: i32) -> (i32, i32, i32) {
    %c1_i32 = arith.constant 1 : i32
    %0 = arith.subi %arg1, %c1_i32 : i32
    %c0_i32 = arith.constant 0 : i32
    %1 = arith.maxsi %0, %c0_i32 : i32
    %c0_i32_0 = arith.constant 0 : i32
    %c0_i32_1 = arith.constant 0 : i32
    %c0_i32_2 = arith.constant 0 : i32
    return %1, %c0_i32_0, %c0_i32_1 : i32, i32, i32
  }
  func.func @transform_4(%arg0: i32, %arg1: i32) -> (i32, i32, i32) {
    %c0_i32 = arith.constant 0 : i32
    %c0_i32_0 = arith.constant 0 : i32
    %c0_i32_1 = arith.constant 0 : i32
    return %arg1, %c0_i32, %c0_i32_0 : i32, i32, i32
  }
  func.func @transform_5(%arg0: i32, %arg1: i32) -> (i32, i32, i32) {
    %c0_i32 = arith.constant 0 : i32
    %c0_i32_0 = arith.constant 0 : i32
    return %arg1, %arg0, %c0_i32 : i32, i32, i32
  }
  func.func @transform_6(%arg0: i32, %arg1: i32) -> (i32, i32, i32) {
    %c0_i32 = arith.constant 0 : i32
    %c0_i32_0 = arith.constant 0 : i32
    return %arg1, %arg0, %c0_i32 : i32, i32, i32
  }
}

</mosaic_0001>

<llo_original>
// kernel: encoder_forward.1
$region0: #{encoder_forward.1}
  #allocation0 [shape = 'u32[]', space=smem, size = 0x4, offset = 0x4, fixed_abs, tag = 'smem constant byte address 0x4 - core index']
  #allocation1 [shape = 'u32[72,128]{1,0:T(1,128)}', space=vmem, size = 0x9000, scoped, tag = 'internal scratch']
  #allocation2 [shape = 'bf16[8,16,128]{2,1,0:T(8,128)(2,1)}', space=vmem, size = 0x8000, scoped, tag = 'scratch operand']
  #allocation3 [shape = 'f32[1,8,16,512]{3,2,1,0:T(8,128)}', space=vmem, size = 0x40000, scoped, tag = 'scratch operand']
  %s0 = inlined_call_operand.vmem [shape: bf16[8,16,128], index: 0, kind: input, shape index: {}]
  %s1 = inlined_call_operand.hbm [shape: bf16[128,512], index: 1, kind: input, shape index: {}]
  %s2 = inlined_call_operand.vmem [shape: f32[2,1,512], index: 2, kind: input, shape index: {}]
  %s3 = inlined_call_operand.hbm [shape: bf16[1,128,512], index: 3, kind: input, shape index: {}]
  %s4 = inlined_call_operand.hbm [shape: bf16[2,128,512], index: 4, kind: input, shape index: {}]
  %s5 = inlined_call_operand.vmem [shape: f32[2,16,128], index: 5, kind: output, shape index: {0}]
  %s6 = inlined_call_operand.vmem [shape: f32[2,16,128], index: 6, kind: output, shape index: {1}]
  %7 = xla_tuple %s5, %s6
  %s8 = sld [smem:[#allocation0]]
  $region81: #{encoder_forward.1} parent=0
    _
  %s10 = ssub.s32 1, %s8
  %s11 = scalar_select 0, %s10, %s8
  $region1: #{encoder_forward.1} parent=0
    #allocation4 [shape = 'u8[131072]{0}', space=vmem, size = 0x20000, scoped, tag = 'input window, operand 1, single buffered']
    #allocation5 [shape = 's32[2]{0}', space=sflag, size = 0x8, scoped, tag = 'scoped memory for encoder_forward.1']
    #allocation6 [shape = 'u8[262144]{0}', space=vmem, size = 0x40000, scoped, tag = 'input window, operand 3']
    #allocation7 [shape = 's32[2]{0}', space=sflag, size = 0x8, scoped, tag = 'scoped memory for encoder_forward.1']
    #allocation8 [shape = 'u8[262144]{0}', space=vmem, size = 0x40000, scoped, tag = 'input window, operand 4']
    %12 = vsyncpa [#allocation5], 0
    %13 = vsyncpa [#allocation7], 0
    %s14 = scalar_lea.sflag [#allocation7], 1
    %15 = vsyncpa %s14, 0
    loop: start=0, step=1, limit=4
    $region2: #{encoder_forward.1} parent=1 // loop_pre_header
      _
    $region3: #{encoder_forward.1} parent=1 // loop_header
      %s17 = sphi 0, %s21
      %p18 = scmp.ge.s32.totalorder %s17, 4
      %s24 = sphi 0, %s36
      %s25 = sphi 0, %s32
      %s26 = sphi 0, %s24
      %s27 = sphi 0, %s25
      %s28 = sphi 0, %s26
      %s29 = sphi 0, %s27
      %s39 = sphi 0, %s41
      %s42 = sphi 0, %s39
      %s43 = sphi 0, %s42
      %s59 = sphi 0, %s43
      %s63 = sphi 0, %s63
      %s65 = sphi 0, %s63
      %s66 = sphi 0, %s65
      %s80 = sphi 0, %s66
      %s86 = sphi 0, %s88
      %s89 = sphi 0, %s86
      %s90 = sphi 0, %s89
      %s106 = sphi 0, %s90
      %s118 = sphi 0, %s120
      %s121 = sphi 0, %s118
      %s122 = sphi 0, %s121
      %s138 = sphi 0, %s122
      %s144 = sphi 0, %s146
      %s147 = sphi 0, %s144
      %s148 = sphi 0, %s147
      %s164 = sphi 0, %s148
      %s172 = sphi 0, %s174
      %s175 = sphi 0, %s172
      %s176 = sphi 0, %s175
      %s192 = sphi 0, %s176
      %s200 = sphi 0, %s202
      %s203 = sphi 0, %s200
      %s204 = sphi 0, %s203
      %s220 = sphi 0, %s204
    $region4: #{encoder_forward.1} parent=1 // loop_header_branch
      %20 = sbr.rel (%p18) target = $region8
    $region5: #{encoder_forward.1} parent=1 // loop_body
      %s22 = ssub.s32 %s17, 1
      %s23 = ssub.s32 %s17, 2
      %s30 = sadd.s32 1, %s25
      %p31 = scmp.ge.s32.totalorder %s30, 2
      %s32 = scalar_select %p31, 0, %s30
      %s33 = sadd.s32 1, %s24
      %s34 = scalar_select %p31, %s33, %s24
      %p35 = scmp.ge.s32.totalorder %s34, 1
      %s36 = scalar_select %p35, 0, %s34
      %s37 = ssub.s32 %s24, %s36
      %p38 = scmp.eq.s32.totalorder %s37, 0
      %s40 = sadd.s32 %s39, 1
      %s41 = scalar_select %p38, %s39, %s40
      %p44 = pneg %p38
      %p45 = scmp.eq.s32.totalorder %s17, 1
      %p46 = por %p44, %p45
      %p47 = scmp.ne.s32.totalorder %s39, %s42
      %p48 = scmp.eq.s32.totalorder %s17, 0
      %p49 = por %p47, %p48
      %p50 = scmp.ne.s32.totalorder %s39, %s42
      %p51 = scmp.eq.s32.totalorder %s22, 1
      %p52 = por %p50, %p51
      %p53 = scmp.ne.s32.totalorder %s42, %s43
      %p54 = scmp.eq.s32.totalorder %s22, 0
      %p55 = por %p53, %p54
      %p56 = scmp.ne.s32.totalorder %s42, %s43
      %p57 = scmp.eq.s32.totalorder %s23, 1
      %p58 = por %p56, %p57
      %p60 = scmp.ne.s32.totalorder %s43, %s59
      %p61 = scmp.eq.s32.totalorder %s23, 0
      %p62 = por %p60, %p61
      %s64 = sadd.s32 %s63, 1
      %p67 = scmp.eq.s32.totalorder %s17, 1
      %p68 = scmp.ne.s32.totalorder %s63, %s65
      %p69 = scmp.eq.s32.totalorder %s17, 0
      %p70 = por %p68, %p69
      %p71 = scmp.ne.s32.totalorder %s63, %s65
      %p72 = scmp.eq.s32.totalorder %s22, 1
      %p73 = por %p71, %p72
      %p74 = scmp.ne.s32.totalorder %s65, %s66
      %p75 = scmp.eq.s32.totalorder %s22, 0
      %p76 = por %p74, %p75
      %p77 = scmp.ne.s32.totalorder %s65, %s66
      %p78 = scmp.eq.s32.totalorder %s23, 1
      %p79 = por %p77, %p78
      %p81 = scmp.ne.s32.totalorder %s66, %s80
      %p82 = scmp.eq.s32.totalorder %s23, 0
      %p83 = por %p81, %p82
      %s84 = ssub.s32 %s25, %s32
      %p85 = scmp.eq.s32.totalorder %s84, 0
      %s87 = sadd.s32 %s86, 1
      %s88 = scalar_select %p85, %s86, %s87
      %p91 = pneg %p85
      %p92 = scmp.eq.s32.totalorder %s17, 1
      %p93 = por %p91, %p92
      %p94 = scmp.ne.s32.totalorder %s86, %s89
      %p95 = scmp.eq.s32.totalorder %s17, 0
      %p96 = por %p94, %p95
      %p97 = scmp.ne.s32.totalorder %s86, %s89
      %p98 = scmp.eq.s32.totalorder %s22, 1
      %p99 = por %p97, %p98
      %p100 = scmp.ne.s32.totalorder %s89, %s90
      %p101 = scmp.eq.s32.totalorder %s22, 0
      %p102 = por %p100, %p101
      %p103 = scmp.ne.s32.totalorder %s89, %s90
      %p104 = scmp.eq.s32.totalorder %s23, 1
      %p105 = por %p103, %p104
      %p107 = scmp.ne.s32.totalorder %s90, %s106
      %p108 = scmp.eq.s32.totalorder %s23, 0
      %p109 = por %p107, %p108
      %s110 = ssub.s32 %s25, 1
      %p111 = scmp.gt.s32.totalorder %s110, 0
      %s112 = scalar_select %p111, %s110, 0
      %s113 = ssub.s32 %s32, 1
      %p114 = scmp.gt.s32.totalorder %s113, 0
      %s115 = scalar_select %p114, %s113, 0
      %s116 = ssub.s32 %s112, %s115
      %p117 = scmp.eq.s32.totalorder %s116, 0
      %s119 = sadd.s32 %s118, 1
      %s120 = scalar_select %p117, %s118, %s119
      %p123 = pneg %p117
      %p124 = scmp.eq.s32.totalorder %s17, 1
      %p125 = por %p123, %p124
      %p126 = scmp.ne.s32.totalorder %s118, %s121
      %p127 = scmp.eq.s32.totalorder %s17, 0
      %p128 = por %p126, %p127
      %p129 = scmp.ne.s32.totalorder %s118, %s121
      %p130 = scmp.eq.s32.totalorder %s22, 1
      %p131 = por %p129, %p130
      %p132 = scmp.ne.s32.totalorder %s121, %s122
      %p133 = scmp.eq.s32.totalorder %s22, 0
      %p134 = por %p132, %p133
      %p135 = scmp.ne.s32.totalorder %s121, %s122
      %p136 = scmp.eq.s32.totalorder %s23, 1
      %p137 = por %p135, %p136
      %p139 = scmp.ne.s32.totalorder %s122, %s138
      %p140 = scmp.eq.s32.totalorder %s23, 0
      %p141 = por %p139, %p140
      %s142 = ssub.s32 %s25, %s32
      %p143 = scmp.eq.s32.totalorder %s142, 0
      %s145 = sadd.s32 %s144, 1
      %s146 = scalar_select %p143, %s144, %s145
      %p149 = pneg %p143
      %p150 = scmp.eq.s32.totalorder %s17, 1
      %p151 = por %p149, %p150
      %p152 = scmp.ne.s32.totalorder %s144, %s147
      %p153 = scmp.eq.s32.totalorder %s17, 0
      %p154 = por %p152, %p153
      %p155 = scmp.ne.s32.totalorder %s144, %s147
      %p156 = scmp.eq.s32.totalorder %s22, 1
      %p157 = por %p155, %p156
      %p158 = scmp.ne.s32.totalorder %s147, %s148
      %p159 = scmp.eq.s32.totalorder %s22, 0
      %p160 = por %p158, %p159
      %p161 = scmp.ne.s32.totalorder %s147, %s148
      %p162 = scmp.eq.s32.totalorder %s23, 1
      %p163 = por %p161, %p162
      %p165 = scmp.ne.s32.totalorder %s148, %s164
      %p166 = scmp.eq.s32.totalorder %s23, 0
      %p167 = por %p165, %p166
      %s168 = ssub.s32 %s25, %s32
      %s169 = ssub.s32 %s24, %s36
      %s170 = sor.u32 %s168, %s169
      %p171 = scmp.eq.s32.totalorder %s170, 0
      %s173 = sadd.s32 %s172, 1
      %s174 = scalar_select %p171, %s172, %s173
      %p177 = pneg %p171
      %p178 = scmp.eq.s32.totalorder %s17, 1
      %p179 = por %p177, %p178
      %p180 = scmp.ne.s32.totalorder %s172, %s175
      %p181 = scmp.eq.s32.totalorder %s17, 0
      %p182 = por %p180, %p181
      %p183 = scmp.ne.s32.totalorder %s172, %s175
      %p184 = scmp.eq.s32.totalorder %s22, 1
      %p185 = por %p183, %p184
      %p186 = scmp.ne.s32.totalorder %s175, %s176
      %p187 = scmp.eq.s32.totalorder %s22, 0
      %p188 = por %p186, %p187
      %p189 = scmp.ne.s32.totalorder %s175, %s176
      %p190 = scmp.eq.s32.totalorder %s23, 1
      %p191 = por %p189, %p190
      %p193 = scmp.ne.s32.totalorder %s176, %s192
      %p194 = scmp.eq.s32.totalorder %s23, 0
      %p195 = por %p193, %p194
      %s196 = ssub.s32 %s25, %s32
      %s197 = ssub.s32 %s24, %s36
      %s198 = sor.u32 %s196, %s197
      %p199 = scmp.eq.s32.totalorder %s198, 0
      %s201 = sadd.s32 %s200, 1
      %s202 = scalar_select %p199, %s200, %s201
      %p205 = pneg %p199
      %p206 = scmp.eq.s32.totalorder %s17, 1
      %p207 = por %p205, %p206
      %p208 = scmp.ne.s32.totalorder %s200, %s203
      %p209 = scmp.eq.s32.totalorder %s17, 0
      %p210 = por %p208, %p209
      %p211 = scmp.ne.s32.totalorder %s200, %s203
      %p212 = scmp.eq.s32.totalorder %s22, 1
      %p213 = por %p211, %p212
      %p214 = scmp.ne.s32.totalorder %s203, %s204
      %p215 = scmp.eq.s32.totalorder %s22, 0
      %p216 = por %p214, %p215
      %p217 = scmp.ne.s32.totalorder %s203, %s204
      %p218 = scmp.eq.s32.totalorder %s23, 1
      %p219 = por %p217, %p218
      %p221 = scmp.ne.s32.totalorder %s204, %s220
      %p222 = scmp.eq.s32.totalorder %s23, 0
      %p223 = por %p221, %p222
      %p224 = scmp.le.s32.totalorder 1, %s17
      %p225 = scmp.lt.s32.totalorder %s17, 3
      %p226 = pnand %p224, %p225
      %p227 = pneg %p226
      // Predicated region
      $region9: #{encoder_forward.1} parent=5 // pred_check
        _
      $region10: #{encoder_forward.1} parent=5 // pred_check_branch
        %229 = sbr.rel (%p226) target = $region12
      $region11: #{encoder_forward.1} parent=5 // pred_region
        %s230 = ssub.s32 %s17, 1
        // Predicated region
        $region13: #{encoder_forward.1} parent=11 // pred_check
          %p231 = pneg %p55
        $region14: #{encoder_forward.1} parent=11 // pred_check_branch
          %233 = sbr.rel (%p231) target = $region16
        $region15: #{encoder_forward.1} parent=11 // pred_region
          %s234 = smul.u32 2, %s26
          %p235 = scmp.lt.s32.totalorder %s234, 1
          %s236 = scalar_select %p235, %s234, 1
          %s237 = smul.addr %s236, 4
          %s238 = scalar_lea.vmem %s0, %s237
          %s239 = smul.u32 2, %s26
        $region16: #{encoder_forward.1} parent=11 // pred_fallthru
          _
        // Predicated region
        $region17: #{encoder_forward.1} parent=11 // pred_check
          %p240 = pneg %p76
        $region18: #{encoder_forward.1} parent=11 // pred_check_branch
          %242 = sbr.rel (%p240) target = $region20
        $region19: #{encoder_forward.1} parent=11 // pred_region
          %244 = vsyncadd [#allocation5], 0
          %s245 = sshll.u32 %s1, 4
          %s246 = int_to_ptr.hbm [resolvable:$true] %s245
          %s247 = sshll.u32 [#allocation4], 4
          %s248 = int_to_ptr.vmem [resolvable:$true] %s247
          %253 = dma.hbm_to_vmem [thread:$0]  %s246, 4096, %s248, [#allocation5], 256, 256, 16
        $region20: #{encoder_forward.1} parent=11 // pred_fallthru
          _
      $region12: #{encoder_forward.1} parent=5 // pred_fallthru
        _
      %p254 = scmp.lt.s32.totalorder %s17, 2
      // Predicated region
      $region21: #{encoder_forward.1} parent=5 // pred_check
        %p255 = pneg %p254
      $region22: #{encoder_forward.1} parent=5 // pred_check_branch
        %257 = sbr.rel (%p255) target = $region24
      $region23: #{encoder_forward.1} parent=5 // pred_region
        // Predicated region
        $region25: #{encoder_forward.1} parent=23 // pred_check
          %p258 = pneg %p96
        $region26: #{encoder_forward.1} parent=23 // pred_check_branch
          %260 = sbr.rel (%p258) target = $region28
        $region27: #{encoder_forward.1} parent=23 // pred_region
          %p261 = scmp.lt.s32.totalorder %s25, 1
          %s262 = scalar_select %p261, %s25, 1
          %s263 = smul.addr %s262, 4
          %s264 = scalar_lea.vmem %s2, %s263
        $region28: #{encoder_forward.1} parent=23 // pred_fallthru
          _
        // Predicated region
        $region29: #{encoder_forward.1} parent=23 // pred_check
          %p265 = pneg %p128
        $region30: #{encoder_forward.1} parent=23 // pred_check_branch
          %267 = sbr.rel (%p265) target = $region32
        $region31: #{encoder_forward.1} parent=23 // pred_region
          %s268 = sand.u32 %s17, 1
          %s269 = scalar_lea.sflag [#allocation7], %s268
          %s270 = sand.u32 %s118, 1
          %s271 = smul.addr %s270, 256
          %s272 = scalar_lea.vmem [#allocation6], %s271
          %s273 = ssub.s32 %s25, 1
          %p274 = scmp.gt.s32.totalorder %s273, 0
          %s275 = scalar_select %p274, %s273, 0
          %277 = vsyncadd %s269, 0
          %s278 = smul.addr %s275, 64
          %s279 = smul.addr %s278, 4
          %s280 = scalar_lea.hbm %s3, %s279
          %s281 = sshll.u32 %s280, 4
          %s282 = int_to_ptr.hbm [resolvable:$true] %s281
          %s283 = sshll.u32 %s272, 4
          %s284 = int_to_ptr.vmem [resolvable:$true] %s283
          %289 = dma.hbm_to_vmem [thread:$0]  %s282, 4096, %s284, %s269, 256, 256, 16
        $region32: #{encoder_forward.1} parent=23 // pred_fallthru
          _
        // Predicated region
        $region33: #{encoder_forward.1} parent=23 // pred_check
          %p290 = pneg %p154
        $region34: #{encoder_forward.1} parent=23 // pred_check_branch
          %292 = sbr.rel (%p290) target = $region36
        $region35: #{encoder_forward.1} parent=23 // pred_region
          %s293 = sand.u32 %s17, 1
          %s294 = scalar_lea.sflag [#allocation7], %s293
          %s295 = sand.u32 %s144, 1
          %s296 = smul.addr %s295, 256
          %s297 = scalar_lea.vmem [#allocation8], %s296
          %299 = vsyncadd %s294, 0
          %s300 = smul.addr %s25, 64
          %s301 = smul.addr %s300, 4
          %s302 = scalar_lea.hbm %s4, %s301
          %s303 = sshll.u32 %s302, 4
          %s304 = int_to_ptr.hbm [resolvable:$true] %s303
          %s305 = sshll.u32 %s297, 4
          %s306 = int_to_ptr.vmem [resolvable:$true] %s305
          %311 = dma.hbm_to_vmem [thread:$0]  %s304, 4096, %s306, %s294, 256, 256, 16
        $region36: #{encoder_forward.1} parent=23 // pred_fallthru
          _
      $region24: #{encoder_forward.1} parent=5 // pred_fallthru
        _
      %p312 = scmp.le.s32.totalorder 1, %s17
      %p313 = scmp.lt.s32.totalorder %s17, 3
      %p314 = pnand %p312, %p313
      %p315 = pneg %p314
      // Predicated region
      $region37: #{encoder_forward.1} parent=5 // pred_check
        _
      $region38: #{encoder_forward.1} parent=5 // pred_check_branch
        %317 = sbr.rel (%p314) target = $region40
      $region39: #{encoder_forward.1} parent=5 // pred_region
        %s318 = ssub.s32 %s17, 1
        // Predicated region
        $region41: #{encoder_forward.1} parent=39 // pred_check
          %p319 = pneg %p76
        $region42: #{encoder_forward.1} parent=39 // pred_check_branch
          %321 = sbr.rel (%p319) target = $region44
        $region43: #{encoder_forward.1} parent=39 // pred_region
          %323 = dma.done [#allocation5], 4096
        $region44: #{encoder_forward.1} parent=39 // pred_fallthru
          _
        %s324 = sand.u32 %s22, 1
        %s325 = scalar_lea.sflag [#allocation7], %s324
        %s326 = sand.u32 %s121, 1
        %s327 = smul.addr %s326, 256
        %s328 = scalar_lea.vmem [#allocation6], %s327
        // Predicated region
        $region45: #{encoder_forward.1} parent=39 // pred_check
          %p329 = pneg %p134
        $region46: #{encoder_forward.1} parent=39 // pred_check_branch
          %331 = sbr.rel (%p329) target = $region48
        $region47: #{encoder_forward.1} parent=39 // pred_region
          %333 = dma.done %s325, 4096
        $region48: #{encoder_forward.1} parent=39 // pred_fallthru
          _
        %s334 = sand.u32 %s22, 1
        %s335 = scalar_lea.sflag [#allocation7], %s334
        %s336 = sand.u32 %s147, 1
        %s337 = smul.addr %s336, 256
        %s338 = scalar_lea.vmem [#allocation8], %s337
        // Predicated region
        $region49: #{encoder_forward.1} parent=39 // pred_check
          %p339 = pneg %p160
        $region50: #{encoder_forward.1} parent=39 // pred_check_branch
          %341 = sbr.rel (%p339) target = $region52
        $region51: #{encoder_forward.1} parent=39 // pred_region
          %343 = dma.done %s335, 4096
        $region52: #{encoder_forward.1} parent=39 // pred_fallthru
          _
        %s344 = smul.u32 2, %s26
        %p345 = scmp.lt.s32.totalorder %s344, 1
        %s346 = scalar_select %p345, %s344, 1
        %s347 = smul.addr %s346, 4
        %s348 = scalar_lea.vmem %s0, %s347
        %p349 = pneg %p55
        %p350 = pneg %p52
        %p351 = pneg %p76
        %p352 = pneg %p73
        %p353 = scmp.lt.s32.totalorder %s27, 1
        %s354 = scalar_select %p353, %s27, 1
        %s355 = smul.addr %s354, 4
        %s356 = scalar_lea.vmem %s2, %s355
        %p357 = pneg %p102
        %p358 = pneg %p99
        %s359 = sand.u32 %s22, 1
        %s360 = scalar_lea.sflag [#allocation7], %s359
        %s361 = sand.u32 %s121, 1
        %s362 = smul.addr %s361, 256
        %s363 = scalar_lea.vmem [#allocation6], %s362
        %p364 = pneg %p134
        %p365 = pneg %p131
        %s366 = sand.u32 %s22, 1
        %s367 = scalar_lea.sflag [#allocation7], %s366
        %s368 = sand.u32 %s147, 1
        %s369 = smul.addr %s368, 256
        %s370 = scalar_lea.vmem [#allocation8], %s369
        %p371 = pneg %p160
        %p372 = pneg %p157
        %p373 = pneg %p188
        %p374 = pneg %p185
        %s375 = smul.u32 2, %s26
        %p376 = scmp.lt.s32.totalorder %s27, 1
        %s377 = scalar_select %p376, %s27, 1
        %p378 = scmp.lt.s32.totalorder %s375, 1
        %s379 = scalar_select %p378, %s375, 1
        %s380 = smul.addr %s377, 2
        %s381 = sadd.s32 %s379, %s380
        %s382 = smul.addr %s381, 8
        %s383 = scalar_lea.vmem %s5, %s382
        %p384 = pneg %p216
        %p385 = pneg %p213
        %s386 = smul.u32 2, %s26
        %p387 = scmp.lt.s32.totalorder %s27, 1
        %s388 = scalar_select %p387, %s27, 1
        %p389 = scmp.lt.s32.totalorder %s386, 1
        %s390 = scalar_select %p389, %s386, 1
        %s391 = smul.addr %s388, 2
        %s392 = sadd.s32 %s390, %s391
        %s393 = smul.addr %s392, 8
        %s394 = scalar_lea.vmem %s6, %s393
        %s395 = smul.u32 2, %s26
        %p396 = scmp.lt.s32.totalorder %s395, 1
        %s397 = scalar_select %p396, %s395, 1
        %s398 = smul.addr %s397, 4
        %s399 = scalar_lea.vmem %s0, %s398
        %s400 = smul.u32 2, %s26
        %p401 = scmp.lt.s32.totalorder %s27, 1
        %s402 = scalar_select %p401, %s27, 1
        %s403 = smul.addr %s402, 4
        %s404 = scalar_lea.vmem %s2, %s403
        %s405 = ssub.s32 %s27, 1
        %p406 = scmp.gt.s32.totalorder %s405, 0
        %s407 = scalar_select %p406, %s405, 0
        %s408 = smul.u32 2, %s26
        %p409 = scmp.lt.s32.totalorder %s27, 1
        %s410 = scalar_select %p409, %s27, 1
        %p411 = scmp.lt.s32.totalorder %s408, 1
        %s412 = scalar_select %p411, %s408, 1
        %s413 = smul.addr %s410, 2
        %s414 = sadd.s32 %s412, %s413
        %s415 = smul.addr %s414, 8
        %s416 = scalar_lea.vmem %s5, %s415
        %s417 = smul.u32 2, %s26
        %s418 = smul.u32 2, %s26
        %p419 = scmp.lt.s32.totalorder %s27, 1
        %s420 = scalar_select %p419, %s27, 1
        %p421 = scmp.lt.s32.totalorder %s418, 1
        %s422 = scalar_select %p421, %s418, 1
        %s423 = smul.addr %s420, 2
        %s424 = sadd.s32 %s422, %s423
        %s425 = smul.addr %s424, 8
        %s426 = scalar_lea.vmem %s6, %s425
        %s427 = smul.u32 2, %s26
        %p429 = scmp.eq.s32.totalorder %s27, 0
        // Predicated region
        $region53: #{encoder_forward.1} parent=39 // pred_check
          %p430 = pneg %p429
        $region54: #{encoder_forward.1} parent=39 // pred_check_branch
          %432 = sbr.rel (%p430) target = $region56
        $region55: #{encoder_forward.1} parent=39 // pred_region
          %v433 = vld [vmem:[%s399] sm:$0xf]
          %v434 = vld [vmem:[%s399 + $0x4] sm:$0xf]
          %v435 = vld [vmem:[%s399 + $0x8] sm:$0xf]
          %v436 = vld [vmem:[%s399 + $0xc] sm:$0xf]
          %v437 = vld [vmem:[%s399 + $0x10] sm:$0xf]
          %v438 = vld [vmem:[%s399 + $0x14] sm:$0xf]
          %v439 = vld [vmem:[%s399 + $0x18] sm:$0xf]
          %v440 = vld [vmem:[%s399 + $0x1c] sm:$0xf]
          %v441 = vld [vmem:[%s399 + $0x20] sm:$0xf]
          %v442 = vld [vmem:[%s399 + $0x24] sm:$0xf]
          %v443 = vld [vmem:[%s399 + $0x28] sm:$0xf]
          %v444 = vld [vmem:[%s399 + $0x2c] sm:$0xf]
          %v445 = vld [vmem:[%s399 + $0x30] sm:$0xf]
          %v446 = vld [vmem:[%s399 + $0x34] sm:$0xf]
          %v447 = vld [vmem:[%s399 + $0x38] sm:$0xf]
          %v448 = vld [vmem:[%s399 + $0x3c] sm:$0xf]
          %v449 = vld [vmem:[#allocation4] sm:$0xff]
          %v450 = vld [vmem:[#allocation4 + $0x8] sm:$0xff]
          %v451 = vld [vmem:[#allocation4 + $0x10] sm:$0xff]
          %v452 = vld [vmem:[#allocation4 + $0x18] sm:$0xff]
          %v453 = vld [vmem:[#allocation4 + $0x20] sm:$0xff]
          %v454 = vld [vmem:[#allocation4 + $0x28] sm:$0xff]
          %v455 = vld [vmem:[#allocation4 + $0x30] sm:$0xff]
          %v456 = vld [vmem:[#allocation4 + $0x38] sm:$0xff]
          %v457 = vld [vmem:[#allocation4 + $0x40] sm:$0xff]
          %v458 = vld [vmem:[#allocation4 + $0x48] sm:$0xff]
          %v459 = vld [vmem:[#allocation4 + $0x50] sm:$0xff]
          %v460 = vld [vmem:[#allocation4 + $0x58] sm:$0xff]
          %v461 = vld [vmem:[#allocation4 + $0x60] sm:$0xff]
          %v462 = vld [vmem:[#allocation4 + $0x68] sm:$0xff]
          %v463 = vld [vmem:[#allocation4 + $0x70] sm:$0xff]
          %v464 = vld [vmem:[#allocation4 + $0x78] sm:$0xff]
          %v465 = vld [vmem:[#allocation4 + $0x80] sm:$0xff]
          %v466 = vld [vmem:[#allocation4 + $0x88] sm:$0xff]
          %v467 = vld [vmem:[#allocation4 + $0x90] sm:$0xff]
          %v468 = vld [vmem:[#allocation4 + $0x98] sm:$0xff]
          %v469 = vld [vmem:[#allocation4 + $0xa0] sm:$0xff]
          %v470 = vld [vmem:[#allocation4 + $0xa8] sm:$0xff]
          %v471 = vld [vmem:[#allocation4 + $0xb0] sm:$0xff]
          %v472 = vld [vmem:[#allocation4 + $0xb8] sm:$0xff]
          %v473 = vld [vmem:[#allocation4 + $0xc0] sm:$0xff]
          %v474 = vld [vmem:[#allocation4 + $0xc8] sm:$0xff]
          %v475 = vld [vmem:[#allocation4 + $0xd0] sm:$0xff]
          %v476 = vld [vmem:[#allocation4 + $0xd8] sm:$0xff]
          %v477 = vld [vmem:[#allocation4 + $0xe0] sm:$0xff]
          %v478 = vld [vmem:[#allocation4 + $0xe8] sm:$0xff]
          %v479 = vld [vmem:[#allocation4 + $0xf0] sm:$0xff]
          %v480 = vld [vmem:[#allocation4 + $0xf8] sm:$0xff]
          %v481 = vld [vmem:[%s404] sm:$0xf]
          %v483 = vperm.slane %v481, 0
          %v484 = vperm.slane %v481, 1
          %v485 = vperm.slane %v481, 2
          %v486 = vperm.slane %v481, 3
          %v507 = vunpack.c.l.b16 %v433
          %v508 = vunpack.c.l.b16 %v434
          %v509 = vunpack.c.l.b16 %v435
          %v510 = vunpack.c.l.b16 %v436
          %v511 = vunpack.c.l.b16 %v437
          %v512 = vunpack.c.l.b16 %v438
          %v513 = vunpack.c.l.b16 %v439
          %v514 = vunpack.c.l.b16 %v440
          %v515 = vunpack.c.l.b16 %v441
          %v516 = vunpack.c.l.b16 %v442
          %v517 = vunpack.c.l.b16 %v443
          %v518 = vunpack.c.l.b16 %v444
          %v519 = vunpack.c.l.b16 %v445
          %v520 = vunpack.c.l.b16 %v446
          %v521 = vunpack.c.l.b16 %v447
          %v522 = vunpack.c.l.b16 %v448
          %v523 = vpack.c.b16 %v508, %v507
          %v524 = vpack.c.b16 %v510, %v509
          %v525 = vpack.c.b16 %v512, %v511
          %v526 = vpack.c.b16 %v514, %v513
          %v527 = vpack.c.b16 %v516, %v515
          %v528 = vpack.c.b16 %v518, %v517
          %v529 = vpack.c.b16 %v520, %v519
          %v530 = vpack.c.b16 %v522, %v521
          %v571 = vunpack.c.l.b16 %v449
          %v572 = vunpack.c.h.b16 %v449
          %v573 = vunpack.c.l.b16 %v450
          %v574 = vunpack.c.h.b16 %v450
          %v575 = vunpack.c.l.b16 %v451
          %v576 = vunpack.c.h.b16 %v451
          %v577 = vunpack.c.l.b16 %v452
          %v578 = vunpack.c.h.b16 %v452
          %v579 = vunpack.c.l.b16 %v453
          %v580 = vunpack.c.h.b16 %v453
          %v581 = vunpack.c.l.b16 %v454
          %v582 = vunpack.c.h.b16 %v454
          %v583 = vunpack.c.l.b16 %v455
          %v584 = vunpack.c.h.b16 %v455
          %v585 = vunpack.c.l.b16 %v456
          %v586 = vunpack.c.h.b16 %v456
          %v587 = vunpack.c.l.b16 %v457
          %v588 = vunpack.c.h.b16 %v457
          %v589 = vunpack.c.l.b16 %v458
          %v590 = vunpack.c.h.b16 %v458
          %v591 = vunpack.c.l.b16 %v459
          %v592 = vunpack.c.h.b16 %v459
          %v593 = vunpack.c.l.b16 %v460
          %v594 = vunpack.c.h.b16 %v460
          %v595 = vunpack.c.l.b16 %v461
          %v596 = vunpack.c.h.b16 %v461
          %v597 = vunpack.c.l.b16 %v462
          %v598 = vunpack.c.h.b16 %v462
          %v599 = vunpack.c.l.b16 %v463
          %v600 = vunpack.c.h.b16 %v463
          %v601 = vunpack.c.l.b16 %v464
          %v602 = vunpack.c.h.b16 %v464
          %v603 = vunpack.c.l.b16 %v465
          %v604 = vunpack.c.h.b16 %v465
          %v605 = vunpack.c.l.b16 %v466
          %v606 = vunpack.c.h.b16 %v466
          %v607 = vunpack.c.l.b16 %v467
          %v608 = vunpack.c.h.b16 %v467
          %v609 = vunpack.c.l.b16 %v468
          %v610 = vunpack.c.h.b16 %v468
          %v611 = vunpack.c.l.b16 %v469
          %v612 = vunpack.c.h.b16 %v469
          %v613 = vunpack.c.l.b16 %v470
          %v614 = vunpack.c.h.b16 %v470
          %v615 = vunpack.c.l.b16 %v471
          %v616 = vunpack.c.h.b16 %v471
          %v617 = vunpack.c.l.b16 %v472
          %v618 = vunpack.c.h.b16 %v472
          %v619 = vunpack.c.l.b16 %v473
          %v620 = vunpack.c.h.b16 %v473
          %v621 = vunpack.c.l.b16 %v474
          %v622 = vunpack.c.h.b16 %v474
          %v623 = vunpack.c.l.b16 %v475
          %v624 = vunpack.c.h.b16 %v475
          %v625 = vunpack.c.l.b16 %v476
          %v626 = vunpack.c.h.b16 %v476
          %v627 = vunpack.c.l.b16 %v477
          %v628 = vunpack.c.h.b16 %v477
          %v629 = vunpack.c.l.b16 %v478
          %v630 = vunpack.c.h.b16 %v478
          %v631 = vunpack.c.l.b16 %v479
          %v632 = vunpack.c.h.b16 %v479
          %v633 = vunpack.c.l.b16 %v480
          %v634 = vunpack.c.h.b16 %v480
          %v635 = vpack.c.b16 %v575, %v571
          %v636 = vpack.c.b16 %v576, %v572
          %v637 = vpack.c.b16 %v577, %v573
          %v638 = vpack.c.b16 %v578, %v574
          %v639 = vpack.c.b16 %v583, %v579
          %v640 = vpack.c.b16 %v584, %v580
          %v641 = vpack.c.b16 %v585, %v581
          %v642 = vpack.c.b16 %v586, %v582
          %v643 = vpack.c.b16 %v591, %v587
          %v644 = vpack.c.b16 %v592, %v588
          %v645 = vpack.c.b16 %v593, %v589
          %v646 = vpack.c.b16 %v594, %v590
          %v647 = vpack.c.b16 %v599, %v595
          %v648 = vpack.c.b16 %v600, %v596
          %v649 = vpack.c.b16 %v601, %v597
          %v650 = vpack.c.b16 %v602, %v598
          %v651 = vpack.c.b16 %v607, %v603
          %v652 = vpack.c.b16 %v608, %v604
          %v653 = vpack.c.b16 %v609, %v605
          %v654 = vpack.c.b16 %v610, %v606
          %v655 = vpack.c.b16 %v615, %v611
          %v656 = vpack.c.b16 %v616, %v612
          %v657 = vpack.c.b16 %v617, %v613
          %v658 = vpack.c.b16 %v618, %v614
          %v659 = vpack.c.b16 %v623, %v619
          %v660 = vpack.c.b16 %v624, %v620
          %v661 = vpack.c.b16 %v625, %v621
          %v662 = vpack.c.b16 %v626, %v622
          %v663 = vpack.c.b16 %v631, %v627
          %v664 = vpack.c.b16 %v632, %v628
          %v665 = vpack.c.b16 %v633, %v629
          %v666 = vpack.c.b16 %v634, %v630
          %699 = vmatpush.bf16.msra.mxu0 %v663
          %700 = vmatpush.bf16.msra.mxu0 %v659
          %701 = vmatpush.bf16.msra.mxu0 %v655
          %702 = vmatpush.bf16.msra.mxu0 %v651
          %703 = vmatpush.bf16.msra.mxu0 %v647
          %704 = vmatpush.bf16.msra.mxu0 %v643
          %705 = vmatpush.bf16.msra.mxu0 %v639
          %706 = vmatpush.bf16.msra.mxu0 %v635
          %707 = vmatmul.bf16.gmra.mxu0 %v523
          %v708 = vpop.f32.mrf.mxu0
          %v709 = vadd.f32 %v483, %v708
          %v710 = vpop.f32.mrf.mxu0
          %v711 = vadd.f32 %v483, %v710
          %712 = vmatmul.bf16.gmra.mxu0 %v524
          %v713 = vpop.f32.mrf.mxu0
          %v714 = vadd.f32 %v483, %v713
          %v715 = vpop.f32.mrf.mxu0
          %v716 = vadd.f32 %v483, %v715
          %717 = vmatmul.bf16.gmra.mxu0 %v525
          %v718 = vpop.f32.mrf.mxu0
          %v719 = vadd.f32 %v483, %v718
          %v720 = vpop.f32.mrf.mxu0
          %v721 = vadd.f32 %v483, %v720
          %722 = vmatmul.bf16.gmra.mxu0 %v526
          %v723 = vpop.f32.mrf.mxu0
          %v724 = vadd.f32 %v483, %v723
          %v725 = vpop.f32.mrf.mxu0
          %v726 = vadd.f32 %v483, %v725
          %727 = vmatmul.bf16.gmra.mxu0 %v527
          %v728 = vpop.f32.mrf.mxu0
          %v729 = vadd.f32 %v483, %v728
          %v730 = vpop.f32.mrf.mxu0
          %v731 = vadd.f32 %v483, %v730
          %732 = vmatmul.bf16.gmra.mxu0 %v528
          %v733 = vpop.f32.mrf.mxu0
          %v734 = vadd.f32 %v483, %v733
          %v735 = vpop.f32.mrf.mxu0
          %v736 = vadd.f32 %v483, %v735
          %737 = vmatmul.bf16.gmra.mxu0 %v529
          %v738 = vpop.f32.mrf.mxu0
          %v739 = vadd.f32 %v483, %v738
          %v740 = vpop.f32.mrf.mxu0
          %v741 = vadd.f32 %v483, %v740
          %742 = vmatmul.bf16.gmra.mxu0 %v530
          %v743 = vpop.f32.mrf.mxu0
          %v744 = vadd.f32 %v483, %v743
          %v745 = vpop.f32.mrf.mxu0
          %v746 = vadd.f32 %v483, %v745
          %747 = vdwg.mxu0
          %748 = vmatpush.bf16.msra.mxu0 %v664
          %749 = vmatpush.bf16.msra.mxu0 %v660
          %750 = vmatpush.bf16.msra.mxu0 %v656
          %751 = vmatpush.bf16.msra.mxu0 %v652
          %752 = vmatpush.bf16.msra.mxu0 %v648
          %753 = vmatpush.bf16.msra.mxu0 %v644
          %754 = vmatpush.bf16.msra.mxu0 %v640
          %755 = vmatpush.bf16.msra.mxu0 %v636
          %756 = vmatmul.bf16.gmra.mxu0 %v523
          %v757 = vpop.f32.mrf.mxu0
          %v758 = vadd.f32 %v484, %v757
          %v759 = vpop.f32.mrf.mxu0
          %v760 = vadd.f32 %v484, %v759
          %761 = vmatmul.bf16.gmra.mxu0 %v524
          %v762 = vpop.f32.mrf.mxu0
          %v763 = vadd.f32 %v484, %v762
          %v764 = vpop.f32.mrf.mxu0
          %v765 = vadd.f32 %v484, %v764
          %766 = vmatmul.bf16.gmra.mxu0 %v525
          %v767 = vpop.f32.mrf.mxu0
          %v768 = vadd.f32 %v484, %v767
          %v769 = vpop.f32.mrf.mxu0
          %v770 = vadd.f32 %v484, %v769
          %771 = vmatmul.bf16.gmra.mxu0 %v526
          %v772 = vpop.f32.mrf.mxu0
          %v773 = vadd.f32 %v484, %v772
          %v774 = vpop.f32.mrf.mxu0
          %v775 = vadd.f32 %v484, %v774
          %776 = vmatmul.bf16.gmra.mxu0 %v527
          %v777 = vpop.f32.mrf.mxu0
          %v778 = vadd.f32 %v484, %v777
          %v779 = vpop.f32.mrf.mxu0
          %v780 = vadd.f32 %v484, %v779
          %781 = vmatmul.bf16.gmra.mxu0 %v528
          %v782 = vpop.f32.mrf.mxu0
          %v783 = vadd.f32 %v484, %v782
          %v784 = vpop.f32.mrf.mxu0
          %v785 = vadd.f32 %v484, %v784
          %786 = vmatmul.bf16.gmra.mxu0 %v529
          %v787 = vpop.f32.mrf.mxu0
          %v788 = vadd.f32 %v484, %v787
          %v789 = vpop.f32.mrf.mxu0
          %v790 = vadd.f32 %v484, %v789
          %791 = vmatmul.bf16.gmra.mxu0 %v530
          %v792 = vpop.f32.mrf.mxu0
          %v793 = vadd.f32 %v484, %v792
          %v794 = vpop.f32.mrf.mxu0
          %v795 = vadd.f32 %v484, %v794
          %796 = vdwg.mxu0
          %797 = vmatpush.bf16.msra.mxu0 %v665
          %798 = vmatpush.bf16.msra.mxu0 %v661
          %799 = vmatpush.bf16.msra.mxu0 %v657
          %800 = vmatpush.bf16.msra.mxu0 %v653
          %801 = vmatpush.bf16.msra.mxu0 %v649
          %802 = vmatpush.bf16.msra.mxu0 %v645
          %803 = vmatpush.bf16.msra.mxu0 %v641
          %804 = vmatpush.bf16.msra.mxu0 %v637
          %805 = vmatmul.bf16.gmra.mxu0 %v523
          %v806 = vpop.f32.mrf.mxu0
          %v807 = vadd.f32 %v485, %v806
          %v808 = vpop.f32.mrf.mxu0
          %v809 = vadd.f32 %v485, %v808
          %810 = vmatmul.bf16.gmra.mxu0 %v524
          %v811 = vpop.f32.mrf.mxu0
          %v812 = vadd.f32 %v485, %v811
          %v813 = vpop.f32.mrf.mxu0
          %v814 = vadd.f32 %v485, %v813
          %815 = vmatmul.bf16.gmra.mxu0 %v525
          %v816 = vpop.f32.mrf.mxu0
          %v817 = vadd.f32 %v485, %v816
          %v818 = vpop.f32.mrf.mxu0
          %v819 = vadd.f32 %v485, %v818
          %820 = vmatmul.bf16.gmra.mxu0 %v526
          %v821 = vpop.f32.mrf.mxu0
          %v822 = vadd.f32 %v485, %v821
          %v823 = vpop.f32.mrf.mxu0
          %v824 = vadd.f32 %v485, %v823
          %825 = vmatmul.bf16.gmra.mxu0 %v527
          %v826 = vpop.f32.mrf.mxu0
          %v827 = vadd.f32 %v485, %v826
          %v828 = vpop.f32.mrf.mxu0
          %v829 = vadd.f32 %v485, %v828
          %830 = vmatmul.bf16.gmra.mxu0 %v528
          %v831 = vpop.f32.mrf.mxu0
          %v832 = vadd.f32 %v485, %v831
          %v833 = vpop.f32.mrf.mxu0
          %v834 = vadd.f32 %v485, %v833
          %835 = vmatmul.bf16.gmra.mxu0 %v529
          %v836 = vpop.f32.mrf.mxu0
          %v837 = vadd.f32 %v485, %v836
          %v838 = vpop.f32.mrf.mxu0
          %v839 = vadd.f32 %v485, %v838
          %840 = vmatmul.bf16.gmra.mxu0 %v530
          %v841 = vpop.f32.mrf.mxu0
          %v842 = vadd.f32 %v485, %v841
          %v843 = vpop.f32.mrf.mxu0
          %v844 = vadd.f32 %v485, %v843
          %845 = vdwg.mxu0
          %846 = vmatpush.bf16.msra.mxu0 %v666
          %847 = vmatpush.bf16.msra.mxu0 %v662
          %848 = vmatpush.bf16.msra.mxu0 %v658
          %849 = vmatpush.bf16.msra.mxu0 %v654
          %850 = vmatpush.bf16.msra.mxu0 %v650
          %851 = vmatpush.bf16.msra.mxu0 %v646
          %852 = vmatpush.bf16.msra.mxu0 %v642
          %853 = vmatpush.bf16.msra.mxu0 %v638
          %854 = vmatmul.bf16.gmra.mxu0 %v523
          %v855 = vpop.f32.mrf.mxu0
          %v856 = vadd.f32 %v486, %v855
          %v857 = vpop.f32.mrf.mxu0
          %v858 = vadd.f32 %v486, %v857
          %859 = vmatmul.bf16.gmra.mxu0 %v524
          %v860 = vpop.f32.mrf.mxu0
          %v861 = vadd.f32 %v486, %v860
          %v862 = vpop.f32.mrf.mxu0
          %v863 = vadd.f32 %v486, %v862
          %864 = vmatmul.bf16.gmra.mxu0 %v525
          %v865 = vpop.f32.mrf.mxu0
          %v866 = vadd.f32 %v486, %v865
          %v867 = vpop.f32.mrf.mxu0
          %v868 = vadd.f32 %v486, %v867
          %869 = vmatmul.bf16.gmra.mxu0 %v526
          %v870 = vpop.f32.mrf.mxu0
          %v871 = vadd.f32 %v486, %v870
          %v872 = vpop.f32.mrf.mxu0
          %v873 = vadd.f32 %v486, %v872
          %874 = vmatmul.bf16.gmra.mxu0 %v527
          %v875 = vpop.f32.mrf.mxu0
          %v876 = vadd.f32 %v486, %v875
          %v877 = vpop.f32.mrf.mxu0
          %v878 = vadd.f32 %v486, %v877
          %879 = vmatmul.bf16.gmra.mxu0 %v528
          %v880 = vpop.f32.mrf.mxu0
          %v881 = vadd.f32 %v486, %v880
          %v882 = vpop.f32.mrf.mxu0
          %v883 = vadd.f32 %v486, %v882
          %884 = vmatmul.bf16.gmra.mxu0 %v529
          %v885 = vpop.f32.mrf.mxu0
          %v886 = vadd.f32 %v486, %v885
          %v887 = vpop.f32.mrf.mxu0
          %v888 = vadd.f32 %v486, %v887
          %889 = vmatmul.bf16.gmra.mxu0 %v530
          %v890 = vpop.f32.mrf.mxu0
          %v891 = vadd.f32 %v486, %v890
          %v892 = vpop.f32.mrf.mxu0
          %v893 = vadd.f32 %v486, %v892
          %894 = vdwg.mxu0
          %895 = vst [vmem:[#allocation3] sm:$0xff] %v709
          %896 = vst [vmem:[#allocation3 + $0x8] sm:$0xff] %v758
          %897 = vst [vmem:[#allocation3 + $0x10] sm:$0xff] %v807
          %898 = vst [vmem:[#allocation3 + $0x18] sm:$0xff] %v856
          %899 = vst [vmem:[#allocation3 + $0x20] sm:$0xff] %v711
          %900 = vst [vmem:[#allocation3 + $0x28] sm:$0xff] %v760
          %901 = vst [vmem:[#allocation3 + $0x30] sm:$0xff] %v809
          %902 = vst [vmem:[#allocation3 + $0x38] sm:$0xff] %v858
          %903 = vst [vmem:[#allocation3 + $0x40] sm:$0xff] %v714
          %904 = vst [vmem:[#allocation3 + $0x48] sm:$0xff] %v763
          %905 = vst [vmem:[#allocation3 + $0x50] sm:$0xff] %v812
          %906 = vst [vmem:[#allocation3 + $0x58] sm:$0xff] %v861
          %907 = vst [vmem:[#allocation3 + $0x60] sm:$0xff] %v716
          %908 = vst [vmem:[#allocation3 + $0x68] sm:$0xff] %v765
          %909 = vst [vmem:[#allocation3 + $0x70] sm:$0xff] %v814
          %910 = vst [vmem:[#allocation3 + $0x78] sm:$0xff] %v863
          %911 = vst [vmem:[#allocation3 + $0x80] sm:$0xff] %v719
          %912 = vst [vmem:[#allocation3 + $0x88] sm:$0xff] %v768
          %913 = vst [vmem:[#allocation3 + $0x90] sm:$0xff] %v817
          %914 = vst [vmem:[#allocation3 + $0x98] sm:$0xff] %v866
          %915 = vst [vmem:[#allocation3 + $0xa0] sm:$0xff] %v721
          %916 = vst [vmem:[#allocation3 + $0xa8] sm:$0xff] %v770
          %917 = vst [vmem:[#allocation3 + $0xb0] sm:$0xff] %v819
          %918 = vst [vmem:[#allocation3 + $0xb8] sm:$0xff] %v868
          %919 = vst [vmem:[#allocation3 + $0xc0] sm:$0xff] %v724
          %920 = vst [vmem:[#allocation3 + $0xc8] sm:$0xff] %v773
          %921 = vst [vmem:[#allocation3 + $0xd0] sm:$0xff] %v822
          %922 = vst [vmem:[#allocation3 + $0xd8] sm:$0xff] %v871
          %923 = vst [vmem:[#allocation3 + $0xe0] sm:$0xff] %v726
          %924 = vst [vmem:[#allocation3 + $0xe8] sm:$0xff] %v775
          %925 = vst [vmem:[#allocation3 + $0xf0] sm:$0xff] %v824
          %926 = vst [vmem:[#allocation3 + $0xf8] sm:$0xff] %v873
          %927 = vst [vmem:[#allocation3 + $0x100] sm:$0xff] %v729
          %928 = vst [vmem:[#allocation3 + $0x108] sm:$0xff] %v778
          %929 = vst [vmem:[#allocation3 + $0x110] sm:$0xff] %v827
          %930 = vst [vmem:[#allocation3 + $0x118] sm:$0xff] %v876
          %931 = vst [vmem:[#allocation3 + $0x120] sm:$0xff] %v731
          %932 = vst [vmem:[#allocation3 + $0x128] sm:$0xff] %v780
          %933 = vst [vmem:[#allocation3 + $0x130] sm:$0xff] %v829
          %934 = vst [vmem:[#allocation3 + $0x138] sm:$0xff] %v878
          %935 = vst [vmem:[#allocation3 + $0x140] sm:$0xff] %v734
          %936 = vst [vmem:[#allocation3 + $0x148] sm:$0xff] %v783
          %937 = vst [vmem:[#allocation3 + $0x150] sm:$0xff] %v832
          %938 = vst [vmem:[#allocation3 + $0x158] sm:$0xff] %v881
          %939 = vst [vmem:[#allocation3 + $0x160] sm:$0xff] %v736
          %940 = vst [vmem:[#allocation3 + $0x168] sm:$0xff] %v785
          %941 = vst [vmem:[#allocation3 + $0x170] sm:$0xff] %v834
          %942 = vst [vmem:[#allocation3 + $0x178] sm:$0xff] %v883
          %943 = vst [vmem:[#allocation3 + $0x180] sm:$0xff] %v739
          %944 = vst [vmem:[#allocation3 + $0x188] sm:$0xff] %v788
          %945 = vst [vmem:[#allocation3 + $0x190] sm:$0xff] %v837
          %946 = vst [vmem:[#allocation3 + $0x198] sm:$0xff] %v886
          %947 = vst [vmem:[#allocation3 + $0x1a0] sm:$0xff] %v741
          %948 = vst [vmem:[#allocation3 + $0x1a8] sm:$0xff] %v790
          %949 = vst [vmem:[#allocation3 + $0x1b0] sm:$0xff] %v839
          %950 = vst [vmem:[#allocation3 + $0x1b8] sm:$0xff] %v888
          %951 = vst [vmem:[#allocation3 + $0x1c0] sm:$0xff] %v744
          %952 = vst [vmem:[#allocation3 + $0x1c8] sm:$0xff] %v793
          %953 = vst [vmem:[#allocation3 + $0x1d0] sm:$0xff] %v842
          %954 = vst [vmem:[#allocation3 + $0x1d8] sm:$0xff] %v891
          %955 = vst [vmem:[#allocation3 + $0x1e0] sm:$0xff] %v746
          %956 = vst [vmem:[#allocation3 + $0x1e8] sm:$0xff] %v795
          %957 = vst [vmem:[#allocation3 + $0x1f0] sm:$0xff] %v844
          %958 = vst [vmem:[#allocation3 + $0x1f8] sm:$0xff] %v893
        $region56: #{encoder_forward.1} parent=39 // pred_fallthru
          _
        %p959 = scmp.gt.s32.totalorder %s27, 0
        // Predicated region
        $region57: #{encoder_forward.1} parent=39 // pred_check
          %p960 = pneg %p959
        $region58: #{encoder_forward.1} parent=39 // pred_check_branch
          %962 = sbr.rel (%p960) target = $region60
        $region59: #{encoder_forward.1} parent=39 // pred_region
          %v963 = vld [vmem:[#allocation2] sm:$0xf]
          %v964 = vld [vmem:[#allocation2 + $0x4] sm:$0xf]
          %v965 = vld [vmem:[#allocation2 + $0x8] sm:$0xf]
          %v966 = vld [vmem:[#allocation2 + $0xc] sm:$0xf]
          %v967 = vld [vmem:[#allocation2 + $0x10] sm:$0xf]
          %v968 = vld [vmem:[#allocation2 + $0x14] sm:$0xf]
          %v969 = vld [vmem:[#allocation2 + $0x18] sm:$0xf]
          %v970 = vld [vmem:[#allocation2 + $0x1c] sm:$0xf]
          %v971 = vld [vmem:[#allocation2 + $0x20] sm:$0xf]
          %v972 = vld [vmem:[#allocation2 + $0x24] sm:$0xf]
          %v973 = vld [vmem:[#allocation2 + $0x28] sm:$0xf]
          %v974 = vld [vmem:[#allocation2 + $0x2c] sm:$0xf]
          %v975 = vld [vmem:[#allocation2 + $0x30] sm:$0xf]
          %v976 = vld [vmem:[#allocation2 + $0x34] sm:$0xf]
          %v977 = vld [vmem:[#allocation2 + $0x38] sm:$0xf]
          %v978 = vld [vmem:[#allocation2 + $0x3c] sm:$0xf]
          %v979 = vld [vmem:[%s328] sm:$0xff]
          %v980 = vld [vmem:[%s328 + $0x8] sm:$0xff]
          %v981 = vld [vmem:[%s328 + $0x10] sm:$0xff]
          %v982 = vld [vmem:[%s328 + $0x18] sm:$0xff]
          %v983 = vld [vmem:[%s328 + $0x20] sm:$0xff]
          %v984 = vld [vmem:[%s328 + $0x28] sm:$0xff]
          %v985 = vld [vmem:[%s328 + $0x30] sm:$0xff]
          %v986 = vld [vmem:[%s328 + $0x38] sm:$0xff]
          %v987 = vld [vmem:[%s328 + $0x40] sm:$0xff]
          %v988 = vld [vmem:[%s328 + $0x48] sm:$0xff]
          %v989 = vld [vmem:[%s328 + $0x50] sm:$0xff]
          %v990 = vld [vmem:[%s328 + $0x58] sm:$0xff]
          %v991 = vld [vmem:[%s328 + $0x60] sm:$0xff]
          %v992 = vld [vmem:[%s328 + $0x68] sm:$0xff]
          %v993 = vld [vmem:[%s328 + $0x70] sm:$0xff]
          %v994 = vld [vmem:[%s328 + $0x78] sm:$0xff]
          %v995 = vld [vmem:[%s328 + $0x80] sm:$0xff]
          %v996 = vld [vmem:[%s328 + $0x88] sm:$0xff]
          %v997 = vld [vmem:[%s328 + $0x90] sm:$0xff]
          %v998 = vld [vmem:[%s328 + $0x98] sm:$0xff]
          %v999 = vld [vmem:[%s328 + $0xa0] sm:$0xff]
          %v1000 = vld [vmem:[%s328 + $0xa8] sm:$0xff]
          %v1001 = vld [vmem:[%s328 + $0xb0] sm:$0xff]
          %v1002 = vld [vmem:[%s328 + $0xb8] sm:$0xff]
          %v1003 = vld [vmem:[%s328 + $0xc0] sm:$0xff]
          %v1004 = vld [vmem:[%s328 + $0xc8] sm:$0xff]
          %v1005 = vld [vmem:[%s328 + $0xd0] sm:$0xff]
          %v1006 = vld [vmem:[%s328 + $0xd8] sm:$0xff]
          %v1007 = vld [vmem:[%s328 + $0xe0] sm:$0xff]
          %v1008 = vld [vmem:[%s328 + $0xe8] sm:$0xff]
          %v1009 = vld [vmem:[%s328 + $0xf0] sm:$0xff]
          %v1010 = vld [vmem:[%s328 + $0xf8] sm:$0xff]
          %v1011 = vld [vmem:[%s404] sm:$0xf]
          %v1013 = vperm.slane %v1011, 0
          %v1014 = vperm.slane %v1011, 1
          %v1015 = vperm.slane %v1011, 2
          %v1016 = vperm.slane %v1011, 3
          %v1037 = vunpack.c.l.b16 %v963
          %v1038 = vunpack.c.l.b16 %v964
          %v1039 = vunpack.c.l.b16 %v965
          %v1040 = vunpack.c.l.b16 %v966
          %v1041 = vunpack.c.l.b16 %v967
          %v1042 = vunpack.c.l.b16 %v968
          %v1043 = vunpack.c.l.b16 %v969
          %v1044 = vunpack.c.l.b16 %v970
          %v1045 = vunpack.c.l.b16 %v971
          %v1046 = vunpack.c.l.b16 %v972
          %v1047 = vunpack.c.l.b16 %v973
          %v1048 = vunpack.c.l.b16 %v974
          %v1049 = vunpack.c.l.b16 %v975
          %v1050 = vunpack.c.l.b16 %v976
          %v1051 = vunpack.c.l.b16 %v977
          %v1052 = vunpack.c.l.b16 %v978
          %v1053 = vpack.c.b16 %v1038, %v1037
          %v1054 = vpack.c.b16 %v1040, %v1039
          %v1055 = vpack.c.b16 %v1042, %v1041
          %v1056 = vpack.c.b16 %v1044, %v1043
          %v1057 = vpack.c.b16 %v1046, %v1045
          %v1058 = vpack.c.b16 %v1048, %v1047
          %v1059 = vpack.c.b16 %v1050, %v1049
          %v1060 = vpack.c.b16 %v1052, %v1051
          %v1101 = vunpack.c.l.b16 %v979
          %v1102 = vunpack.c.h.b16 %v979
          %v1103 = vunpack.c.l.b16 %v980
          %v1104 = vunpack.c.h.b16 %v980
          %v1105 = vunpack.c.l.b16 %v981
          %v1106 = vunpack.c.h.b16 %v981
          %v1107 = vunpack.c.l.b16 %v982
          %v1108 = vunpack.c.h.b16 %v982
          %v1109 = vunpack.c.l.b16 %v983
          %v1110 = vunpack.c.h.b16 %v983
          %v1111 = vunpack.c.l.b16 %v984
          %v1112 = vunpack.c.h.b16 %v984
          %v1113 = vunpack.c.l.b16 %v985
          %v1114 = vunpack.c.h.b16 %v985
          %v1115 = vunpack.c.l.b16 %v986
          %v1116 = vunpack.c.h.b16 %v986
          %v1117 = vunpack.c.l.b16 %v987
          %v1118 = vunpack.c.h.b16 %v987
          %v1119 = vunpack.c.l.b16 %v988
          %v1120 = vunpack.c.h.b16 %v988
          %v1121 = vunpack.c.l.b16 %v989
          %v1122 = vunpack.c.h.b16 %v989
          %v1123 = vunpack.c.l.b16 %v990
          %v1124 = vunpack.c.h.b16 %v990
          %v1125 = vunpack.c.l.b16 %v991
          %v1126 = vunpack.c.h.b16 %v991
          %v1127 = vunpack.c.l.b16 %v992
          %v1128 = vunpack.c.h.b16 %v992
          %v1129 = vunpack.c.l.b16 %v993
          %v1130 = vunpack.c.h.b16 %v993
          %v1131 = vunpack.c.l.b16 %v994
          %v1132 = vunpack.c.h.b16 %v994
          %v1133 = vunpack.c.l.b16 %v995
          %v1134 = vunpack.c.h.b16 %v995
          %v1135 = vunpack.c.l.b16 %v996
          %v1136 = vunpack.c.h.b16 %v996
          %v1137 = vunpack.c.l.b16 %v997
          %v1138 = vunpack.c.h.b16 %v997
          %v1139 = vunpack.c.l.b16 %v998
          %v1140 = vunpack.c.h.b16 %v998
          %v1141 = vunpack.c.l.b16 %v999
          %v1142 = vunpack.c.h.b16 %v999
          %v1143 = vunpack.c.l.b16 %v1000
          %v1144 = vunpack.c.h.b16 %v1000
          %v1145 = vunpack.c.l.b16 %v1001
          %v1146 = vunpack.c.h.b16 %v1001
          %v1147 = vunpack.c.l.b16 %v1002
          %v1148 = vunpack.c.h.b16 %v1002
          %v1149 = vunpack.c.l.b16 %v1003
          %v1150 = vunpack.c.h.b16 %v1003
          %v1151 = vunpack.c.l.b16 %v1004
          %v1152 = vunpack.c.h.b16 %v1004
          %v1153 = vunpack.c.l.b16 %v1005
          %v1154 = vunpack.c.h.b16 %v1005
          %v1155 = vunpack.c.l.b16 %v1006
          %v1156 = vunpack.c.h.b16 %v1006
          %v1157 = vunpack.c.l.b16 %v1007
          %v1158 = vunpack.c.h.b16 %v1007
          %v1159 = vunpack.c.l.b16 %v1008
          %v1160 = vunpack.c.h.b16 %v1008
          %v1161 = vunpack.c.l.b16 %v1009
          %v1162 = vunpack.c.h.b16 %v1009
          %v1163 = vunpack.c.l.b16 %v1010
          %v1164 = vunpack.c.h.b16 %v1010
          %v1165 = vpack.c.b16 %v1105, %v1101
          %v1166 = vpack.c.b16 %v1106, %v1102
          %v1167 = vpack.c.b16 %v1107, %v1103
          %v1168 = vpack.c.b16 %v1108, %v1104
          %v1169 = vpack.c.b16 %v1113, %v1109
          %v1170 = vpack.c.b16 %v1114, %v1110
          %v1171 = vpack.c.b16 %v1115, %v1111
          %v1172 = vpack.c.b16 %v1116, %v1112
          %v1173 = vpack.c.b16 %v1121, %v1117
          %v1174 = vpack.c.b16 %v1122, %v1118
          %v1175 = vpack.c.b16 %v1123, %v1119
          %v1176 = vpack.c.b16 %v1124, %v1120
          %v1177 = vpack.c.b16 %v1129, %v1125
          %v1178 = vpack.c.b16 %v1130, %v1126
          %v1179 = vpack.c.b16 %v1131, %v1127
          %v1180 = vpack.c.b16 %v1132, %v1128
          %v1181 = vpack.c.b16 %v1137, %v1133
          %v1182 = vpack.c.b16 %v1138, %v1134
          %v1183 = vpack.c.b16 %v1139, %v1135
          %v1184 = vpack.c.b16 %v1140, %v1136
          %v1185 = vpack.c.b16 %v1145, %v1141
          %v1186 = vpack.c.b16 %v1146, %v1142
          %v1187 = vpack.c.b16 %v1147, %v1143
          %v1188 = vpack.c.b16 %v1148, %v1144
          %v1189 = vpack.c.b16 %v1153, %v1149
          %v1190 = vpack.c.b16 %v1154, %v1150
          %v1191 = vpack.c.b16 %v1155, %v1151
          %v1192 = vpack.c.b16 %v1156, %v1152
          %v1193 = vpack.c.b16 %v1161, %v1157
          %v1194 = vpack.c.b16 %v1162, %v1158
          %v1195 = vpack.c.b16 %v1163, %v1159
          %v1196 = vpack.c.b16 %v1164, %v1160
          %1229 = vmatpush.bf16.msra.mxu0 %v1193
          %1230 = vmatpush.bf16.msra.mxu0 %v1189
          %1231 = vmatpush.bf16.msra.mxu0 %v1185
          %1232 = vmatpush.bf16.msra.mxu0 %v1181
          %1233 = vmatpush.bf16.msra.mxu0 %v1177
          %1234 = vmatpush.bf16.msra.mxu0 %v1173
          %1235 = vmatpush.bf16.msra.mxu0 %v1169
          %1236 = vmatpush.bf16.msra.mxu0 %v1165
          %1237 = vmatmul.bf16.gmra.mxu0 %v1053
          %v1238 = vpop.f32.mrf.mxu0
          %v1239 = vadd.f32 %v1013, %v1238
          %v1240 = vpop.f32.mrf.mxu0
          %v1241 = vadd.f32 %v1013, %v1240
          %1242 = vmatmul.bf16.gmra.mxu0 %v1054
          %v1243 = vpop.f32.mrf.mxu0
          %v1244 = vadd.f32 %v1013, %v1243
          %v1245 = vpop.f32.mrf.mxu0
          %v1246 = vadd.f32 %v1013, %v1245
          %1247 = vmatmul.bf16.gmra.mxu0 %v1055
          %v1248 = vpop.f32.mrf.mxu0
          %v1249 = vadd.f32 %v1013, %v1248
          %v1250 = vpop.f32.mrf.mxu0
          %v1251 = vadd.f32 %v1013, %v1250
          %1252 = vmatmul.bf16.gmra.mxu0 %v1056
          %v1253 = vpop.f32.mrf.mxu0
          %v1254 = vadd.f32 %v1013, %v1253
          %v1255 = vpop.f32.mrf.mxu0
          %v1256 = vadd.f32 %v1013, %v1255
          %1257 = vmatmul.bf16.gmra.mxu0 %v1057
          %v1258 = vpop.f32.mrf.mxu0
          %v1259 = vadd.f32 %v1013, %v1258
          %v1260 = vpop.f32.mrf.mxu0
          %v1261 = vadd.f32 %v1013, %v1260
          %1262 = vmatmul.bf16.gmra.mxu0 %v1058
          %v1263 = vpop.f32.mrf.mxu0
          %v1264 = vadd.f32 %v1013, %v1263
          %v1265 = vpop.f32.mrf.mxu0
          %v1266 = vadd.f32 %v1013, %v1265
          %1267 = vmatmul.bf16.gmra.mxu0 %v1059
          %v1268 = vpop.f32.mrf.mxu0
          %v1269 = vadd.f32 %v1013, %v1268
          %v1270 = vpop.f32.mrf.mxu0
          %v1271 = vadd.f32 %v1013, %v1270
          %1272 = vmatmul.bf16.gmra.mxu0 %v1060
          %v1273 = vpop.f32.mrf.mxu0
          %v1274 = vadd.f32 %v1013, %v1273
          %v1275 = vpop.f32.mrf.mxu0
          %v1276 = vadd.f32 %v1013, %v1275
          %1277 = vdwg.mxu0
          %1278 = vmatpush.bf16.msra.mxu0 %v1194
          %1279 = vmatpush.bf16.msra.mxu0 %v1190
          %1280 = vmatpush.bf16.msra.mxu0 %v1186
          %1281 = vmatpush.bf16.msra.mxu0 %v1182
          %1282 = vmatpush.bf16.msra.mxu0 %v1178
          %1283 = vmatpush.bf16.msra.mxu0 %v1174
          %1284 = vmatpush.bf16.msra.mxu0 %v1170
          %1285 = vmatpush.bf16.msra.mxu0 %v1166
          %1286 = vmatmul.bf16.gmra.mxu0 %v1053
          %v1287 = vpop.f32.mrf.mxu0
          %v1288 = vadd.f32 %v1014, %v1287
          %v1289 = vpop.f32.mrf.mxu0
          %v1290 = vadd.f32 %v1014, %v1289
          %1291 = vmatmul.bf16.gmra.mxu0 %v1054
          %v1292 = vpop.f32.mrf.mxu0
          %v1293 = vadd.f32 %v1014, %v1292
          %v1294 = vpop.f32.mrf.mxu0
          %v1295 = vadd.f32 %v1014, %v1294
          %1296 = vmatmul.bf16.gmra.mxu0 %v1055
          %v1297 = vpop.f32.mrf.mxu0
          %v1298 = vadd.f32 %v1014, %v1297
          %v1299 = vpop.f32.mrf.mxu0
          %v1300 = vadd.f32 %v1014, %v1299
          %1301 = vmatmul.bf16.gmra.mxu0 %v1056
          %v1302 = vpop.f32.mrf.mxu0
          %v1303 = vadd.f32 %v1014, %v1302
          %v1304 = vpop.f32.mrf.mxu0
          %v1305 = vadd.f32 %v1014, %v1304
          %1306 = vmatmul.bf16.gmra.mxu0 %v1057
          %v1307 = vpop.f32.mrf.mxu0
          %v1308 = vadd.f32 %v1014, %v1307
          %v1309 = vpop.f32.mrf.mxu0
          %v1310 = vadd.f32 %v1014, %v1309
          %1311 = vmatmul.bf16.gmra.mxu0 %v1058
          %v1312 = vpop.f32.mrf.mxu0
          %v1313 = vadd.f32 %v1014, %v1312
          %v1314 = vpop.f32.mrf.mxu0
          %v1315 = vadd.f32 %v1014, %v1314
          %1316 = vmatmul.bf16.gmra.mxu0 %v1059
          %v1317 = vpop.f32.mrf.mxu0
          %v1318 = vadd.f32 %v1014, %v1317
          %v1319 = vpop.f32.mrf.mxu0
          %v1320 = vadd.f32 %v1014, %v1319
          %1321 = vmatmul.bf16.gmra.mxu0 %v1060
          %v1322 = vpop.f32.mrf.mxu0
          %v1323 = vadd.f32 %v1014, %v1322
          %v1324 = vpop.f32.mrf.mxu0
          %v1325 = vadd.f32 %v1014, %v1324
          %1326 = vdwg.mxu0
          %1327 = vmatpush.bf16.msra.mxu0 %v1195
          %1328 = vmatpush.bf16.msra.mxu0 %v1191
          %1329 = vmatpush.bf16.msra.mxu0 %v1187
          %1330 = vmatpush.bf16.msra.mxu0 %v1183
          %1331 = vmatpush.bf16.msra.mxu0 %v1179
          %1332 = vmatpush.bf16.msra.mxu0 %v1175
          %1333 = vmatpush.bf16.msra.mxu0 %v1171
          %1334 = vmatpush.bf16.msra.mxu0 %v1167
          %1335 = vmatmul.bf16.gmra.mxu0 %v1053
          %v1336 = vpop.f32.mrf.mxu0
          %v1337 = vadd.f32 %v1015, %v1336
          %v1338 = vpop.f32.mrf.mxu0
          %v1339 = vadd.f32 %v1015, %v1338
          %1340 = vmatmul.bf16.gmra.mxu0 %v1054
          %v1341 = vpop.f32.mrf.mxu0
          %v1342 = vadd.f32 %v1015, %v1341
          %v1343 = vpop.f32.mrf.mxu0
          %v1344 = vadd.f32 %v1015, %v1343
          %1345 = vmatmul.bf16.gmra.mxu0 %v1055
          %v1346 = vpop.f32.mrf.mxu0
          %v1347 = vadd.f32 %v1015, %v1346
          %v1348 = vpop.f32.mrf.mxu0
          %v1349 = vadd.f32 %v1015, %v1348
          %1350 = vmatmul.bf16.gmra.mxu0 %v1056
          %v1351 = vpop.f32.mrf.mxu0
          %v1352 = vadd.f32 %v1015, %v1351
          %v1353 = vpop.f32.mrf.mxu0
          %v1354 = vadd.f32 %v1015, %v1353
          %1355 = vmatmul.bf16.gmra.mxu0 %v1057
          %v1356 = vpop.f32.mrf.mxu0
          %v1357 = vadd.f32 %v1015, %v1356
          %v1358 = vpop.f32.mrf.mxu0
          %v1359 = vadd.f32 %v1015, %v1358
          %1360 = vmatmul.bf16.gmra.mxu0 %v1058
          %v1361 = vpop.f32.mrf.mxu0
          %v1362 = vadd.f32 %v1015, %v1361
          %v1363 = vpop.f32.mrf.mxu0
          %v1364 = vadd.f32 %v1015, %v1363
          %1365 = vmatmul.bf16.gmra.mxu0 %v1059
          %v1366 = vpop.f32.mrf.mxu0
          %v1367 = vadd.f32 %v1015, %v1366
          %v1368 = vpop.f32.mrf.mxu0
          %v1369 = vadd.f32 %v1015, %v1368
          %1370 = vmatmul.bf16.gmra.mxu0 %v1060
          %v1371 = vpop.f32.mrf.mxu0
          %v1372 = vadd.f32 %v1015, %v1371
          %v1373 = vpop.f32.mrf.mxu0
          %v1374 = vadd.f32 %v1015, %v1373
          %1375 = vdwg.mxu0
          %1376 = vmatpush.bf16.msra.mxu0 %v1196
          %1377 = vmatpush.bf16.msra.mxu0 %v1192
          %1378 = vmatpush.bf16.msra.mxu0 %v1188
          %1379 = vmatpush.bf16.msra.mxu0 %v1184
          %1380 = vmatpush.bf16.msra.mxu0 %v1180
          %1381 = vmatpush.bf16.msra.mxu0 %v1176
          %1382 = vmatpush.bf16.msra.mxu0 %v1172
          %1383 = vmatpush.bf16.msra.mxu0 %v1168
          %1384 = vmatmul.bf16.gmra.mxu0 %v1053
          %v1385 = vpop.f32.mrf.mxu0
          %v1386 = vadd.f32 %v1016, %v1385
          %v1387 = vpop.f32.mrf.mxu0
          %v1388 = vadd.f32 %v1016, %v1387
          %1389 = vmatmul.bf16.gmra.mxu0 %v1054
          %v1390 = vpop.f32.mrf.mxu0
          %v1391 = vadd.f32 %v1016, %v1390
          %v1392 = vpop.f32.mrf.mxu0
          %v1393 = vadd.f32 %v1016, %v1392
          %1394 = vmatmul.bf16.gmra.mxu0 %v1055
          %v1395 = vpop.f32.mrf.mxu0
          %v1396 = vadd.f32 %v1016, %v1395
          %v1397 = vpop.f32.mrf.mxu0
          %v1398 = vadd.f32 %v1016, %v1397
          %1399 = vmatmul.bf16.gmra.mxu0 %v1056
          %v1400 = vpop.f32.mrf.mxu0
          %v1401 = vadd.f32 %v1016, %v1400
          %v1402 = vpop.f32.mrf.mxu0
          %v1403 = vadd.f32 %v1016, %v1402
          %1404 = vmatmul.bf16.gmra.mxu0 %v1057
          %v1405 = vpop.f32.mrf.mxu0
          %v1406 = vadd.f32 %v1016, %v1405
          %v1407 = vpop.f32.mrf.mxu0
          %v1408 = vadd.f32 %v1016, %v1407
          %1409 = vmatmul.bf16.gmra.mxu0 %v1058
          %v1410 = vpop.f32.mrf.mxu0
          %v1411 = vadd.f32 %v1016, %v1410
          %v1412 = vpop.f32.mrf.mxu0
          %v1413 = vadd.f32 %v1016, %v1412
          %1414 = vmatmul.bf16.gmra.mxu0 %v1059
          %v1415 = vpop.f32.mrf.mxu0
          %v1416 = vadd.f32 %v1016, %v1415
          %v1417 = vpop.f32.mrf.mxu0
          %v1418 = vadd.f32 %v1016, %v1417
          %1419 = vmatmul.bf16.gmra.mxu0 %v1060
          %v1420 = vpop.f32.mrf.mxu0
          %v1421 = vadd.f32 %v1016, %v1420
          %v1422 = vpop.f32.mrf.mxu0
          %v1423 = vadd.f32 %v1016, %v1422
          %1424 = vdwg.mxu0
          %1425 = vst [vmem:[#allocation3] sm:$0xff] %v1239
          %1426 = vst [vmem:[#allocation3 + $0x8] sm:$0xff] %v1288
          %1427 = vst [vmem:[#allocation3 + $0x10] sm:$0xff] %v1337
          %1428 = vst [vmem:[#allocation3 + $0x18] sm:$0xff] %v1386
          %1429 = vst [vmem:[#allocation3 + $0x20] sm:$0xff] %v1241
          %1430 = vst [vmem:[#allocation3 + $0x28] sm:$0xff] %v1290
          %1431 = vst [vmem:[#allocation3 + $0x30] sm:$0xff] %v1339
          %1432 = vst [vmem:[#allocation3 + $0x38] sm:$0xff] %v1388
          %1433 = vst [vmem:[#allocation3 + $0x40] sm:$0xff] %v1244
          %1434 = vst [vmem:[#allocation3 + $0x48] sm:$0xff] %v1293
          %1435 = vst [vmem:[#allocation3 + $0x50] sm:$0xff] %v1342
          %1436 = vst [vmem:[#allocation3 + $0x58] sm:$0xff] %v1391
          %1437 = vst [vmem:[#allocation3 + $0x60] sm:$0xff] %v1246
          %1438 = vst [vmem:[#allocation3 + $0x68] sm:$0xff] %v1295
          %1439 = vst [vmem:[#allocation3 + $0x70] sm:$0xff] %v1344
          %1440 = vst [vmem:[#allocation3 + $0x78] sm:$0xff] %v1393
          %1441 = vst [vmem:[#allocation3 + $0x80] sm:$0xff] %v1249
          %1442 = vst [vmem:[#allocation3 + $0x88] sm:$0xff] %v1298
          %1443 = vst [vmem:[#allocation3 + $0x90] sm:$0xff] %v1347
          %1444 = vst [vmem:[#allocation3 + $0x98] sm:$0xff] %v1396
          %1445 = vst [vmem:[#allocation3 + $0xa0] sm:$0xff] %v1251
          %1446 = vst [vmem:[#allocation3 + $0xa8] sm:$0xff] %v1300
          %1447 = vst [vmem:[#allocation3 + $0xb0] sm:$0xff] %v1349
          %1448 = vst [vmem:[#allocation3 + $0xb8] sm:$0xff] %v1398
          %1449 = vst [vmem:[#allocation3 + $0xc0] sm:$0xff] %v1254
          %1450 = vst [vmem:[#allocation3 + $0xc8] sm:$0xff] %v1303
          %1451 = vst [vmem:[#allocation3 + $0xd0] sm:$0xff] %v1352
          %1452 = vst [vmem:[#allocation3 + $0xd8] sm:$0xff] %v1401
          %1453 = vst [vmem:[#allocation3 + $0xe0] sm:$0xff] %v1256
          %1454 = vst [vmem:[#allocation3 + $0xe8] sm:$0xff] %v1305
          %1455 = vst [vmem:[#allocation3 + $0xf0] sm:$0xff] %v1354
          %1456 = vst [vmem:[#allocation3 + $0xf8] sm:$0xff] %v1403
          %1457 = vst [vmem:[#allocation3 + $0x100] sm:$0xff] %v1259
          %1458 = vst [vmem:[#allocation3 + $0x108] sm:$0xff] %v1308
          %1459 = vst [vmem:[#allocation3 + $0x110] sm:$0xff] %v1357
          %1460 = vst [vmem:[#allocation3 + $0x118] sm:$0xff] %v1406
          %1461 = vst [vmem:[#allocation3 + $0x120] sm:$0xff] %v1261
          %1462 = vst [vmem:[#allocation3 + $0x128] sm:$0xff] %v1310
          %1463 = vst [vmem:[#allocation3 + $0x130] sm:$0xff] %v1359
          %1464 = vst [vmem:[#allocation3 + $0x138] sm:$0xff] %v1408
          %1465 = vst [vmem:[#allocation3 + $0x140] sm:$0xff] %v1264
          %1466 = vst [vmem:[#allocation3 + $0x148] sm:$0xff] %v1313
          %1467 = vst [vmem:[#allocation3 + $0x150] sm:$0xff] %v1362
          %1468 = vst [vmem:[#allocation3 + $0x158] sm:$0xff] %v1411
          %1469 = vst [vmem:[#allocation3 + $0x160] sm:$0xff] %v1266
          %1470 = vst [vmem:[#allocation3 + $0x168] sm:$0xff] %v1315
          %1471 = vst [vmem:[#allocation3 + $0x170] sm:$0xff] %v1364
          %1472 = vst [vmem:[#allocation3 + $0x178] sm:$0xff] %v1413
          %1473 = vst [vmem:[#allocation3 + $0x180] sm:$0xff] %v1269
          %1474 = vst [vmem:[#allocation3 + $0x188] sm:$0xff] %v1318
          %1475 = vst [vmem:[#allocation3 + $0x190] sm:$0xff] %v1367
          %1476 = vst [vmem:[#allocation3 + $0x198] sm:$0xff] %v1416
          %1477 = vst [vmem:[#allocation3 + $0x1a0] sm:$0xff] %v1271
          %1478 = vst [vmem:[#allocation3 + $0x1a8] sm:$0xff] %v1320
          %1479 = vst [vmem:[#allocation3 + $0x1b0] sm:$0xff] %v1369
          %1480 = vst [vmem:[#allocation3 + $0x1b8] sm:$0xff] %v1418
          %1481 = vst [vmem:[#allocation3 + $0x1c0] sm:$0xff] %v1274
          %1482 = vst [vmem:[#allocation3 + $0x1c8] sm:$0xff] %v1323
          %1483 = vst [vmem:[#allocation3 + $0x1d0] sm:$0xff] %v1372
          %1484 = vst [vmem:[#allocation3 + $0x1d8] sm:$0xff] %v1421
          %1485 = vst [vmem:[#allocation3 + $0x1e0] sm:$0xff] %v1276
          %1486 = vst [vmem:[#allocation3 + $0x1e8] sm:$0xff] %v1325
          %1487 = vst [vmem:[#allocation3 + $0x1f0] sm:$0xff] %v1374
          %1488 = vst [vmem:[#allocation3 + $0x1f8] sm:$0xff] %v1423
        $region60: #{encoder_forward.1} parent=39 // pred_fallthru
          _
        %v1489 = vld [vmem:[#allocation3] sm:$0xff]
        %v1490 = vld [vmem:[#allocation3 + $0x8] sm:$0xff]
        %v1491 = vld [vmem:[#allocation3 + $0x10] sm:$0xff]
        %v1492 = vld [vmem:[#allocation3 + $0x18] sm:$0xff]
        %v1493 = vld [vmem:[#allocation3 + $0x20] sm:$0xff]
        %v1494 = vld [vmem:[#allocation3 + $0x28] sm:$0xff]
        %v1495 = vld [vmem:[#allocation3 + $0x30] sm:$0xff]
        %v1496 = vld [vmem:[#allocation3 + $0x38] sm:$0xff]
        %v1497 = vld [vmem:[%s338] sm:$0xff]
        %v1498 = vld [vmem:[%s338 + $0x8] sm:$0xff]
        %v1499 = vld [vmem:[%s338 + $0x10] sm:$0xff]
        %v1500 = vld [vmem:[%s338 + $0x18] sm:$0xff]
        %v1501 = vld [vmem:[%s338 + $0x20] sm:$0xff]
        %v1502 = vld [vmem:[%s338 + $0x28] sm:$0xff]
        %v1503 = vld [vmem:[%s338 + $0x30] sm:$0xff]
        %v1504 = vld [vmem:[%s338 + $0x38] sm:$0xff]
        %v1505 = vld [vmem:[%s338 + $0x40] sm:$0xff]
        %v1506 = vld [vmem:[%s338 + $0x48] sm:$0xff]
        %v1507 = vld [vmem:[%s338 + $0x50] sm:$0xff]
        %v1508 = vld [vmem:[%s338 + $0x58] sm:$0xff]
        %v1509 = vld [vmem:[%s338 + $0x60] sm:$0xff]
        %v1510 = vld [vmem:[%s338 + $0x68] sm:$0xff]
        %v1511 = vld [vmem:[%s338 + $0x70] sm:$0xff]
        %v1512 = vld [vmem:[%s338 + $0x78] sm:$0xff]
        %v1513 = vld [vmem:[%s338 + $0x80] sm:$0xff]
        %v1514 = vld [vmem:[%s338 + $0x88] sm:$0xff]
        %v1515 = vld [vmem:[%s338 + $0x90] sm:$0xff]
        %v1516 = vld [vmem:[%s338 + $0x98] sm:$0xff]
        %v1517 = vld [vmem:[%s338 + $0xa0] sm:$0xff]
        %v1518 = vld [vmem:[%s338 + $0xa8] sm:$0xff]
        %v1519 = vld [vmem:[%s338 + $0xb0] sm:$0xff]
        %v1520 = vld [vmem:[%s338 + $0xb8] sm:$0xff]
        %v1521 = vld [vmem:[%s338 + $0xc0] sm:$0xff]
        %v1522 = vld [vmem:[%s338 + $0xc8] sm:$0xff]
        %v1523 = vld [vmem:[%s338 + $0xd0] sm:$0xff]
        %v1524 = vld [vmem:[%s338 + $0xd8] sm:$0xff]
        %v1525 = vld [vmem:[%s338 + $0xe0] sm:$0xff]
        %v1526 = vld [vmem:[%s338 + $0xe8] sm:$0xff]
        %v1527 = vld [vmem:[%s338 + $0xf0] sm:$0xff]
        %v1528 = vld [vmem:[%s338 + $0xf8] sm:$0xff]
        %v1561 = vunpack.c.l.b16 %v1497
        %v1562 = vunpack.c.h.b16 %v1497
        %v1563 = vunpack.c.l.b16 %v1498
        %v1564 = vunpack.c.h.b16 %v1498
        %v1565 = vunpack.c.l.b16 %v1499
        %v1566 = vunpack.c.h.b16 %v1499
        %v1567 = vunpack.c.l.b16 %v1500
        %v1568 = vunpack.c.h.b16 %v1500
        %v1569 = vunpack.c.l.b16 %v1501
        %v1570 = vunpack.c.h.b16 %v1501
        %v1571 = vunpack.c.l.b16 %v1502
        %v1572 = vunpack.c.h.b16 %v1502
        %v1573 = vunpack.c.l.b16 %v1503
        %v1574 = vunpack.c.h.b16 %v1503
        %v1575 = vunpack.c.l.b16 %v1504
        %v1576 = vunpack.c.h.b16 %v1504
        %v1577 = vunpack.c.l.b16 %v1505
        %v1578 = vunpack.c.h.b16 %v1505
        %v1579 = vunpack.c.l.b16 %v1506
        %v1580 = vunpack.c.h.b16 %v1506
        %v1581 = vunpack.c.l.b16 %v1507
        %v1582 = vunpack.c.h.b16 %v1507
        %v1583 = vunpack.c.l.b16 %v1508
        %v1584 = vunpack.c.h.b16 %v1508
        %v1585 = vunpack.c.l.b16 %v1509
        %v1586 = vunpack.c.h.b16 %v1509
        %v1587 = vunpack.c.l.b16 %v1510
        %v1588 = vunpack.c.h.b16 %v1510
        %v1589 = vunpack.c.l.b16 %v1511
        %v1590 = vunpack.c.h.b16 %v1511
        %v1591 = vunpack.c.l.b16 %v1512
        %v1592 = vunpack.c.h.b16 %v1512
        %v1593 = vunpack.c.l.b16 %v1513
        %v1594 = vunpack.c.h.b16 %v1513
        %v1595 = vunpack.c.l.b16 %v1514
        %v1596 = vunpack.c.h.b16 %v1514
        %v1597 = vunpack.c.l.b16 %v1515
        %v1598 = vunpack.c.h.b16 %v1515
        %v1599 = vunpack.c.l.b16 %v1516
        %v1600 = vunpack.c.h.b16 %v1516
        %v1601 = vunpack.c.l.b16 %v1517
        %v1602 = vunpack.c.h.b16 %v1517
        %v1603 = vunpack.c.l.b16 %v1518
        %v1604 = vunpack.c.h.b16 %v1518
        %v1605 = vunpack.c.l.b16 %v1519
        %v1606 = vunpack.c.h.b16 %v1519
        %v1607 = vunpack.c.l.b16 %v1520
        %v1608 = vunpack.c.h.b16 %v1520
        %v1609 = vunpack.c.l.b16 %v1521
        %v1610 = vunpack.c.h.b16 %v1521
        %v1611 = vunpack.c.l.b16 %v1522
        %v1612 = vunpack.c.h.b16 %v1522
        %v1613 = vunpack.c.l.b16 %v1523
        %v1614 = vunpack.c.h.b16 %v1523
        %v1615 = vunpack.c.l.b16 %v1524
        %v1616 = vunpack.c.h.b16 %v1524
        %v1617 = vunpack.c.l.b16 %v1525
        %v1618 = vunpack.c.h.b16 %v1525
        %v1619 = vunpack.c.l.b16 %v1526
        %v1620 = vunpack.c.h.b16 %v1526
        %v1621 = vunpack.c.l.b16 %v1527
        %v1622 = vunpack.c.h.b16 %v1527
        %v1623 = vunpack.c.l.b16 %v1528
        %v1624 = vunpack.c.h.b16 %v1528
        %v1625 = vpack.c.b16 %v1565, %v1561
        %v1626 = vpack.c.b16 %v1566, %v1562
        %v1627 = vpack.c.b16 %v1567, %v1563
        %v1628 = vpack.c.b16 %v1568, %v1564
        %v1629 = vpack.c.b16 %v1573, %v1569
        %v1630 = vpack.c.b16 %v1574, %v1570
        %v1631 = vpack.c.b16 %v1575, %v1571
        %v1632 = vpack.c.b16 %v1576, %v1572
        %v1633 = vpack.c.b16 %v1581, %v1577
        %v1634 = vpack.c.b16 %v1582, %v1578
        %v1635 = vpack.c.b16 %v1583, %v1579
        %v1636 = vpack.c.b16 %v1584, %v1580
        %v1637 = vpack.c.b16 %v1589, %v1585
        %v1638 = vpack.c.b16 %v1590, %v1586
        %v1639 = vpack.c.b16 %v1591, %v1587
        %v1640 = vpack.c.b16 %v1592, %v1588
        %v1641 = vpack.c.b16 %v1597, %v1593
        %v1642 = vpack.c.b16 %v1598, %v1594
        %v1643 = vpack.c.b16 %v1599, %v1595
        %v1644 = vpack.c.b16 %v1600, %v1596
        %v1645 = vpack.c.b16 %v1605, %v1601
        %v1646 = vpack.c.b16 %v1606, %v1602
        %v1647 = vpack.c.b16 %v1607, %v1603
        %v1648 = vpack.c.b16 %v1608, %v1604
        %v1649 = vpack.c.b16 %v1613, %v1609
        %v1650 = vpack.c.b16 %v1614, %v1610
        %v1651 = vpack.c.b16 %v1615, %v1611
        %v1652 = vpack.c.b16 %v1616, %v1612
        %v1653 = vpack.c.b16 %v1621, %v1617
        %v1654 = vpack.c.b16 %v1622, %v1618
        %v1655 = vpack.c.b16 %v1623, %v1619
        %v1656 = vpack.c.b16 %v1624, %v1620
        %1689 = vmatpush.bf16.msra.mxu0 %v1653
        %1690 = vmatpush.bf16.msra.mxu0 %v1649
        %1691 = vmatpush.bf16.msra.mxu0 %v1645
        %1692 = vmatpush.bf16.msra.mxu0 %v1641
        %1693 = vmatpush.bf16.msra.mxu0 %v1637
        %1694 = vmatpush.bf16.msra.mxu0 %v1633
        %1695 = vmatpush.bf16.msra.mxu0 %v1629
        %1696 = vmatpush.bf16.msra.mxu0 %v1625
        %1697 = vmatmul.bf16.gmra.mxu0 0
        %v1698 = vpop.f32.mrf.mxu0
        %v1699 = vadd.f32 0.0, %v1698
        %v1700 = vpop.f32.mrf.mxu0
        %v1701 = vadd.f32 0.0, %v1700
        %1702 = vdwg.mxu0
        %1703 = vmatpush.bf16.msra.mxu0 %v1654
        %1704 = vmatpush.bf16.msra.mxu0 %v1650
        %1705 = vmatpush.bf16.msra.mxu0 %v1646
        %1706 = vmatpush.bf16.msra.mxu0 %v1642
        %1707 = vmatpush.bf16.msra.mxu0 %v1638
        %1708 = vmatpush.bf16.msra.mxu0 %v1634
        %1709 = vmatpush.bf16.msra.mxu0 %v1630
        %1710 = vmatpush.bf16.msra.mxu0 %v1626
        %1711 = vmatmul.bf16.gmra.mxu0 0
        %v1712 = vpop.f32.mrf.mxu0
        %v1713 = vadd.f32 0.0, %v1712
        %v1714 = vpop.f32.mrf.mxu0
        %v1715 = vadd.f32 0.0, %v1714
        %1716 = vdwg.mxu0
        %1717 = vmatpush.bf16.msra.mxu0 %v1655
        %1718 = vmatpush.bf16.msra.mxu0 %v1651
        %1719 = vmatpush.bf16.msra.mxu0 %v1647
        %1720 = vmatpush.bf16.msra.mxu0 %v1643
        %1721 = vmatpush.bf16.msra.mxu0 %v1639
        %1722 = vmatpush.bf16.msra.mxu0 %v1635
        %1723 = vmatpush.bf16.msra.mxu0 %v1631
        %1724 = vmatpush.bf16.msra.mxu0 %v1627
        %1725 = vmatmul.bf16.gmra.mxu0 0
        %v1726 = vpop.f32.mrf.mxu0
        %v1727 = vadd.f32 0.0, %v1726
        %v1728 = vpop.f32.mrf.mxu0
        %v1729 = vadd.f32 0.0, %v1728
        %1730 = vdwg.mxu0
        %1731 = vmatpush.bf16.msra.mxu0 %v1656
        %1732 = vmatpush.bf16.msra.mxu0 %v1652
        %1733 = vmatpush.bf16.msra.mxu0 %v1648
        %1734 = vmatpush.bf16.msra.mxu0 %v1644
        %1735 = vmatpush.bf16.msra.mxu0 %v1640
        %1736 = vmatpush.bf16.msra.mxu0 %v1636
        %1737 = vmatpush.bf16.msra.mxu0 %v1632
        %1738 = vmatpush.bf16.msra.mxu0 %v1628
        %1739 = vmatmul.bf16.gmra.mxu0 0
        %v1740 = vpop.f32.mrf.mxu0
        %v1741 = vadd.f32 0.0, %v1740
        %v1742 = vpop.f32.mrf.mxu0
        %v1743 = vadd.f32 0.0, %v1742
        %1744 = vdwg.mxu0
        %v1745 = vadd.f32 %v1489, %v1699
        %v1746 = vadd.f32 %v1490, %v1713
        %v1747 = vadd.f32 %v1491, %v1727
        %v1748 = vadd.f32 %v1492, %v1741
        %v1749 = vadd.f32 %v1493, %v1701
        %v1750 = vadd.f32 %v1494, %v1715
        %v1751 = vadd.f32 %v1495, %v1729
        %v1752 = vadd.f32 %v1496, %v1743
        %v1753 = vmul.f32 %v1745, 0.5
        %v1754 = vmul.f32 %v1749, 0.5
        %v1755 = vtanh.pop %v1753
        %v1756 = vtanh.pop %v1754
        %v1757 = vadd.f32 %v1755, 1.0
        %v1758 = vadd.f32 %v1756, 1.0
        %v1759 = vmul.f32 %v1757, 0.5
        %v1760 = vmul.f32 %v1758, 0.5
        %v1761 = vmul.f32 %v1746, 0.5
        %v1762 = vmul.f32 %v1750, 0.5
        %v1763 = vtanh.pop %v1761
        %v1764 = vtanh.pop %v1762
        %v1765 = vadd.f32 %v1763, 1.0
        %v1766 = vadd.f32 %v1764, 1.0
        %v1767 = vmul.f32 %v1765, 0.5
        %v1768 = vmul.f32 %v1766, 0.5
        %v1769 = vtanh.pop %v1747
        %v1770 = vtanh.pop %v1751
        %v1771 = vmul.f32 %v1748, 0.5
        %v1772 = vmul.f32 %v1752, 0.5
        %v1773 = vtanh.pop %v1771
        %v1774 = vtanh.pop %v1772
        %v1775 = vadd.f32 %v1773, 1.0
        %v1776 = vadd.f32 %v1774, 1.0
        %v1777 = vmul.f32 %v1775, 0.5
        %v1778 = vmul.f32 %v1776, 0.5
        %v1779 = vmul.f32 %v1767, 0.0
        %v1780 = vmul.f32 %v1768, 0.0
        %v1781 = vmul.f32 %v1759, %v1769
        %v1782 = vmul.f32 %v1760, %v1770
        %v1783 = vadd.f32 %v1779, %v1781
        %v1784 = vadd.f32 %v1780, %v1782
        %v1785 = vtanh.pop %v1783
        %v1786 = vtanh.pop %v1784
        %v1787 = vmul.f32 %v1777, %v1785
        %v1788 = vmul.f32 %v1778, %v1786
        %v1789 = vpack.c.bf16 %v1787, %v1787
        %v1790 = vpack.c.bf16 %v1788, %v1788
        %1791 = vst [vmem:[#allocation2] sm:$0xf] %v1789
        %1792 = vst [vmem:[#allocation2 + $0x4] sm:$0xf] %v1790
        %s1793 = scalar_lea.vmem [#allocation3], 64
        %v1794 = vld [vmem:[%s1793] sm:$0xff]
        %v1795 = vld [vmem:[%s1793 + $0x8] sm:$0xff]
        %v1796 = vld [vmem:[%s1793 + $0x10] sm:$0xff]
        %v1797 = vld [vmem:[%s1793 + $0x18] sm:$0xff]
        %v1798 = vld [vmem:[%s1793 + $0x20] sm:$0xff]
        %v1799 = vld [vmem:[%s1793 + $0x28] sm:$0xff]
        %v1800 = vld [vmem:[%s1793 + $0x30] sm:$0xff]
        %v1801 = vld [vmem:[%s1793 + $0x38] sm:$0xff]
        %v1802 = vld [vmem:[%s338] sm:$0xff]
        %v1803 = vld [vmem:[%s338 + $0x8] sm:$0xff]
        %v1804 = vld [vmem:[%s338 + $0x10] sm:$0xff]
        %v1805 = vld [vmem:[%s338 + $0x18] sm:$0xff]
        %v1806 = vld [vmem:[%s338 + $0x20] sm:$0xff]
        %v1807 = vld [vmem:[%s338 + $0x28] sm:$0xff]
        %v1808 = vld [vmem:[%s338 + $0x30] sm:$0xff]
        %v1809 = vld [vmem:[%s338 + $0x38] sm:$0xff]
        %v1810 = vld [vmem:[%s338 + $0x40] sm:$0xff]
        %v1811 = vld [vmem:[%s338 + $0x48] sm:$0xff]
        %v1812 = vld [vmem:[%s338 + $0x50] sm:$0xff]
        %v1813 = vld [vmem:[%s338 + $0x58] sm:$0xff]
        %v1814 = vld [vmem:[%s338 + $0x60] sm:$0xff]
        %v1815 = vld [vmem:[%s338 + $0x68] sm:$0xff]
        %v1816 = vld [vmem:[%s338 + $0x70] sm:$0xff]
        %v1817 = vld [vmem:[%s338 + $0x78] sm:$0xff]
        %v1818 = vld [vmem:[%s338 + $0x80] sm:$0xff]
        %v1819 = vld [vmem:[%s338 + $0x88] sm:$0xff]
        %v1820 = vld [vmem:[%s338 + $0x90] sm:$0xff]
        %v1821 = vld [vmem:[%s338 + $0x98] sm:$0xff]
        %v1822 = vld [vmem:[%s338 + $0xa0] sm:$0xff]
        %v1823 = vld [vmem:[%s338 + $0xa8] sm:$0xff]
        %v1824 = vld [vmem:[%s338 + $0xb0] sm:$0xff]
        %v1825 = vld [vmem:[%s338 + $0xb8] sm:$0xff]
        %v1826 = vld [vmem:[%s338 + $0xc0] sm:$0xff]
        %v1827 = vld [vmem:[%s338 + $0xc8] sm:$0xff]
        %v1828 = vld [vmem:[%s338 + $0xd0] sm:$0xff]
        %v1829 = vld [vmem:[%s338 + $0xd8] sm:$0xff]
        %v1830 = vld [vmem:[%s338 + $0xe0] sm:$0xff]
        %v1831 = vld [vmem:[%s338 + $0xe8] sm:$0xff]
        %v1832 = vld [vmem:[%s338 + $0xf0] sm:$0xff]
        %v1833 = vld [vmem:[%s338 + $0xf8] sm:$0xff]
        %v1836 = vunpack.c.l.b16 %v1789
        %v1837 = vunpack.c.l.b16 %v1790
        %v1838 = vpack.c.b16 %v1837, %v1836
        %v1872 = vunpack.c.l.b16 %v1802
        %v1873 = vunpack.c.h.b16 %v1802
        %v1874 = vunpack.c.l.b16 %v1803
        %v1875 = vunpack.c.h.b16 %v1803
        %v1876 = vunpack.c.l.b16 %v1804
        %v1877 = vunpack.c.h.b16 %v1804
        %v1878 = vunpack.c.l.b16 %v1805
        %v1879 = vunpack.c.h.b16 %v1805
        %v1880 = vunpack.c.l.b16 %v1806
        %v1881 = vunpack.c.h.b16 %v1806
        %v1882 = vunpack.c.l.b16 %v1807
        %v1883 = vunpack.c.h.b16 %v1807
        %v1884 = vunpack.c.l.b16 %v1808
        %v1885 = vunpack.c.h.b16 %v1808
        %v1886 = vunpack.c.l.b16 %v1809
        %v1887 = vunpack.c.h.b16 %v1809
        %v1888 = vunpack.c.l.b16 %v1810
        %v1889 = vunpack.c.h.b16 %v1810
        %v1890 = vunpack.c.l.b16 %v1811
        %v1891 = vunpack.c.h.b16 %v1811
        %v1892 = vunpack.c.l.b16 %v1812
        %v1893 = vunpack.c.h.b16 %v1812
        %v1894 = vunpack.c.l.b16 %v1813
        %v1895 = vunpack.c.h.b16 %v1813
        %v1896 = vunpack.c.l.b16 %v1814
        %v1897 = vunpack.c.h.b16 %v1814
        %v1898 = vunpack.c.l.b16 %v1815
        %v1899 = vunpack.c.h.b16 %v1815
        %v1900 = vunpack.c.l.b16 %v1816
        %v1901 = vunpack.c.h.b16 %v1816
        %v1902 = vunpack.c.l.b16 %v1817
        %v1903 = vunpack.c.h.b16 %v1817
        %v1904 = vunpack.c.l.b16 %v1818
        %v1905 = vunpack.c.h.b16 %v1818
        %v1906 = vunpack.c.l.b16 %v1819
        %v1907 = vunpack.c.h.b16 %v1819
        %v1908 = vunpack.c.l.b16 %v1820
        %v1909 = vunpack.c.h.b16 %v1820
        %v1910 = vunpack.c.l.b16 %v1821
        %v1911 = vunpack.c.h.b16 %v1821
        %v1912 = vunpack.c.l.b16 %v1822
        %v1913 = vunpack.c.h.b16 %v1822
        %v1914 = vunpack.c.l.b16 %v1823
        %v1915 = vunpack.c.h.b16 %v1823
        %v1916 = vunpack.c.l.b16 %v1824
        %v1917 = vunpack.c.h.b16 %v1824
        %v1918 = vunpack.c.l.b16 %v1825
        %v1919 = vunpack.c.h.b16 %v1825
        %v1920 = vunpack.c.l.b16 %v1826
        %v1921 = vunpack.c.h.b16 %v1826
        %v1922 = vunpack.c.l.b16 %v1827
        %v1923 = vunpack.c.h.b16 %v1827
        %v1924 = vunpack.c.l.b16 %v1828
        %v1925 = vunpack.c.h.b16 %v1828
        %v1926 = vunpack.c.l.b16 %v1829
        %v1927 = vunpack.c.h.b16 %v1829
        %v1928 = vunpack.c.l.b16 %v1830
        %v1929 = vunpack.c.h.b16 %v1830
        %v1930 = vunpack.c.l.b16 %v1831
        %v1931 = vunpack.c.h.b16 %v1831
        %v1932 = vunpack.c.l.b16 %v1832
        %v1933 = vunpack.c.h.b16 %v1832
        %v1934 = vunpack.c.l.b16 %v1833
        %v1935 = vunpack.c.h.b16 %v1833
        %v1936 = vpack.c.b16 %v1876, %v1872
        %v1937 = vpack.c.b16 %v1877, %v1873
        %v1938 = vpack.c.b16 %v1878, %v1874
        %v1939 = vpack.c.b16 %v1879, %v1875
        %v1940 = vpack.c.b16 %v1884, %v1880
        %v1941 = vpack.c.b16 %v1885, %v1881
        %v1942 = vpack.c.b16 %v1886, %v1882
        %v1943 = vpack.c.b16 %v1887, %v1883
        %v1944 = vpack.c.b16 %v1892, %v1888
        %v1945 = vpack.c.b16 %v1893, %v1889
        %v1946 = vpack.c.b16 %v1894, %v1890
        %v1947 = vpack.c.b16 %v1895, %v1891
        %v1948 = vpack.c.b16 %v1900, %v1896
        %v1949 = vpack.c.b16 %v1901, %v1897
        %v1950 = vpack.c.b16 %v1902, %v1898
        %v1951 = vpack.c.b16 %v1903, %v1899
        %v1952 = vpack.c.b16 %v1908, %v1904
        %v1953 = vpack.c.b16 %v1909, %v1905
        %v1954 = vpack.c.b16 %v1910, %v1906
        %v1955 = vpack.c.b16 %v1911, %v1907
        %v1956 = vpack.c.b16 %v1916, %v1912
        %v1957 = vpack.c.b16 %v1917, %v1913
        %v1958 = vpack.c.b16 %v1918, %v1914
        %v1959 = vpack.c.b16 %v1919, %v1915
        %v1960 = vpack.c.b16 %v1924, %v1920
        %v1961 = vpack.c.b16 %v1925, %v1921
        %v1962 = vpack.c.b16 %v1926, %v1922
        %v1963 = vpack.c.b16 %v1927, %v1923
        %v1964 = vpack.c.b16 %v1932, %v1928
        %v1965 = vpack.c.b16 %v1933, %v1929
        %v1966 = vpack.c.b16 %v1934, %v1930
        %v1967 = vpack.c.b16 %v1935, %v1931
        %2000 = vmatpush.bf16.msra.mxu0 %v1964
        %2001 = vmatpush.bf16.msra.mxu0 %v1960
        %2002 = vmatpush.bf16.msra.mxu0 %v1956
        %2003 = vmatpush.bf16.msra.mxu0 %v1952
        %2004 = vmatpush.bf16.msra.mxu0 %v1948
        %2005 = vmatpush.bf16.msra.mxu0 %v1944
        %2006 = vmatpush.bf16.msra.mxu0 %v1940
        %2007 = vmatpush.bf16.msra.mxu0 %v1936
        %2008 = vmatmul.bf16.gmra.mxu0 %v1838
        %v2009 = vpop.f32.mrf.mxu0
        %v2010 = vadd.f32 0.0, %v2009
        %v2011 = vpop.f32.mrf.mxu0
        %v2012 = vadd.f32 0.0, %v2011
        %2013 = vdwg.mxu0
        %2014 = vmatpush.bf16.msra.mxu0 %v1965
        %2015 = vmatpush.bf16.msra.mxu0 %v1961
        %2016 = vmatpush.bf16.msra.mxu0 %v1957
        %2017 = vmatpush.bf16.msra.mxu0 %v1953
        %2018 = vmatpush.bf16.msra.mxu0 %v1949
        %2019 = vmatpush.bf16.msra.mxu0 %v1945
        %2020 = vmatpush.bf16.msra.mxu0 %v1941
        %2021 = vmatpush.bf16.msra.mxu0 %v1937
        %2022 = vmatmul.bf16.gmra.mxu0 %v1838
        %v2023 = vpop.f32.mrf.mxu0
        %v2024 = vadd.f32 0.0, %v2023
        %v2025 = vpop.f32.mrf.mxu0
        %v2026 = vadd.f32 0.0, %v2025
        %2027 = vdwg.mxu0
        %2028 = vmatpush.bf16.msra.mxu0 %v1966
        %2029 = vmatpush.bf16.msra.mxu0 %v1962
        %2030 = vmatpush.bf16.msra.mxu0 %v1958
        %2031 = vmatpush.bf16.msra.mxu0 %v1954
        %2032 = vmatpush.bf16.msra.mxu0 %v1950
        %2033 = vmatpush.bf16.msra.mxu0 %v1946
        %2034 = vmatpush.bf16.msra.mxu0 %v1942
        %2035 = vmatpush.bf16.msra.mxu0 %v1938
        %2036 = vmatmul.bf16.gmra.mxu0 %v1838
        %v2037 = vpop.f32.mrf.mxu0
        %v2038 = vadd.f32 0.0, %v2037
        %v2039 = vpop.f32.mrf.mxu0
        %v2040 = vadd.f32 0.0, %v2039
        %2041 = vdwg.mxu0
        %2042 = vmatpush.bf16.msra.mxu0 %v1967
        %2043 = vmatpush.bf16.msra.mxu0 %v1963
        %2044 = vmatpush.bf16.msra.mxu0 %v1959
        %2045 = vmatpush.bf16.msra.mxu0 %v1955
        %2046 = vmatpush.bf16.msra.mxu0 %v1951
        %2047 = vmatpush.bf16.msra.mxu0 %v1947
        %2048 = vmatpush.bf16.msra.mxu0 %v1943
        %2049 = vmatpush.bf16.msra.mxu0 %v1939
        %2050 = vmatmul.bf16.gmra.mxu0 %v1838
        %v2051 = vpop.f32.mrf.mxu0
        %v2052 = vadd.f32 0.0, %v2051
        %v2053 = vpop.f32.mrf.mxu0
        %v2054 = vadd.f32 0.0, %v2053
        %2055 = vdwg.mxu0
        %v2056 = vadd.f32 %v1794, %v2010
        %v2057 = vadd.f32 %v1795, %v2024
        %v2058 = vadd.f32 %v1796, %v2038
        %v2059 = vadd.f32 %v1797, %v2052
        %v2060 = vadd.f32 %v1798, %v2012
        %v2061 = vadd.f32 %v1799, %v2026
        %v2062 = vadd.f32 %v1800, %v2040
        %v2063 = vadd.f32 %v1801, %v2054
        %v2064 = vmul.f32 %v2056, 0.5
        %v2065 = vmul.f32 %v2060, 0.5
        %v2066 = vtanh.pop %v2064
        %v2067 = vtanh.pop %v2065
        %v2068 = vadd.f32 %v2066, 1.0
        %v2069 = vadd.f32 %v2067, 1.0
        %v2070 = vmul.f32 %v2068, 0.5
        %v2071 = vmul.f32 %v2069, 0.5
        %v2072 = vmul.f32 %v2057, 0.5
        %v2073 = vmul.f32 %v2061, 0.5
        %v2074 = vtanh.pop %v2072
        %v2075 = vtanh.pop %v2073
        %v2076 = vadd.f32 %v2074, 1.0
        %v2077 = vadd.f32 %v2075, 1.0
        %v2078 = vmul.f32 %v2076, 0.5
        %v2079 = vmul.f32 %v2077, 0.5
        %v2080 = vtanh.pop %v2058
        %v2081 = vtanh.pop %v2062
        %v2082 = vmul.f32 %v2059, 0.5
        %v2083 = vmul.f32 %v2063, 0.5
        %v2084 = vtanh.pop %v2082
        %v2085 = vtanh.pop %v2083
        %v2086 = vadd.f32 %v2084, 1.0
        %v2087 = vadd.f32 %v2085, 1.0
        %v2088 = vmul.f32 %v2086, 0.5
        %v2089 = vmul.f32 %v2087, 0.5
        %v2090 = vmul.f32 %v2078, %v1783
        %v2091 = vmul.f32 %v2079, %v1784
        %v2092 = vmul.f32 %v2070, %v2080
        %v2093 = vmul.f32 %v2071, %v2081
        %v2094 = vadd.f32 %v2090, %v2092
        %v2095 = vadd.f32 %v2091, %v2093
        %v2096 = vtanh.pop %v2094
        %v2097 = vtanh.pop %v2095
        %v2098 = vmul.f32 %v2088, %v2096
        %v2099 = vmul.f32 %v2089, %v2097
        %v2100 = vpack.c.bf16 %v2098, %v2098
        %v2101 = vpack.c.bf16 %v2099, %v2099
        %s2102 = scalar_lea.vmem [#allocation2], 8
        %2103 = vst [vmem:[%s2102] sm:$0xf] %v2100
        %2104 = vst [vmem:[%s2102 + $0x4] sm:$0xf] %v2101
        %s2105 = scalar_lea.vmem [#allocation3], 128
        %v2106 = vld [vmem:[%s2105] sm:$0xff]
        %v2107 = vld [vmem:[%s2105 + $0x8] sm:$0xff]
        %v2108 = vld [vmem:[%s2105 + $0x10] sm:$0xff]
        %v2109 = vld [vmem:[%s2105 + $0x18] sm:$0xff]
        %v2110 = vld [vmem:[%s2105 + $0x20] sm:$0xff]
        %v2111 = vld [vmem:[%s2105 + $0x28] sm:$0xff]
        %v2112 = vld [vmem:[%s2105 + $0x30] sm:$0xff]
        %v2113 = vld [vmem:[%s2105 + $0x38] sm:$0xff]
        %v2114 = vld [vmem:[%s338] sm:$0xff]
        %v2115 = vld [vmem:[%s338 + $0x8] sm:$0xff]
        %v2116 = vld [vmem:[%s338 + $0x10] sm:$0xff]
        %v2117 = vld [vmem:[%s338 + $0x18] sm:$0xff]
        %v2118 = vld [vmem:[%s338 + $0x20] sm:$0xff]
        %v2119 = vld [vmem:[%s338 + $0x28] sm:$0xff]
        %v2120 = vld [vmem:[%s338 + $0x30] sm:$0xff]
        %v2121 = vld [vmem:[%s338 + $0x38] sm:$0xff]
        %v2122 = vld [vmem:[%s338 + $0x40] sm:$0xff]
        %v2123 = vld [vmem:[%s338 + $0x48] sm:$0xff]
        %v2124 = vld [vmem:[%s338 + $0x50] sm:$0xff]
        %v2125 = vld [vmem:[%s338 + $0x58] sm:$0xff]
        %v2126 = vld [vmem:[%s338 + $0x60] sm:$0xff]
        %v2127 = vld [vmem:[%s338 + $0x68] sm:$0xff]
        %v2128 = vld [vmem:[%s338 + $0x70] sm:$0xff]
        %v2129 = vld [vmem:[%s338 + $0x78] sm:$0xff]
        %v2130 = vld [vmem:[%s338 + $0x80] sm:$0xff]
        %v2131 = vld [vmem:[%s338 + $0x88] sm:$0xff]
        %v2132 = vld [vmem:[%s338 + $0x90] sm:$0xff]
        %v2133 = vld [vmem:[%s338 + $0x98] sm:$0xff]
        %v2134 = vld [vmem:[%s338 + $0xa0] sm:$0xff]
        %v2135 = vld [vmem:[%s338 + $0xa8] sm:$0xff]
        %v2136 = vld [vmem:[%s338 + $0xb0] sm:$0xff]
        %v2137 = vld [vmem:[%s338 + $0xb8] sm:$0xff]
        %v2138 = vld [vmem:[%s338 + $0xc0] sm:$0xff]
        %v2139 = vld [vmem:[%s338 + $0xc8] sm:$0xff]
        %v2140 = vld [vmem:[%s338 + $0xd0] sm:$0xff]
        %v2141 = vld [vmem:[%s338 + $0xd8] sm:$0xff]
        %v2142 = vld [vmem:[%s338 + $0xe0] sm:$0xff]
        %v2143 = vld [vmem:[%s338 + $0xe8] sm:$0xff]
        %v2144 = vld [vmem:[%s338 + $0xf0] sm:$0xff]
        %v2145 = vld [vmem:[%s338 + $0xf8] sm:$0xff]
        %v2148 = vunpack.c.l.b16 %v2100
        %v2149 = vunpack.c.l.b16 %v2101
        %v2150 = vpack.c.b16 %v2149, %v2148
        %v2184 = vunpack.c.l.b16 %v2114
        %v2185 = vunpack.c.h.b16 %v2114
        %v2186 = vunpack.c.l.b16 %v2115
        %v2187 = vunpack.c.h.b16 %v2115
        %v2188 = vunpack.c.l.b16 %v2116
        %v2189 = vunpack.c.h.b16 %v2116
        %v2190 = vunpack.c.l.b16 %v2117
        %v2191 = vunpack.c.h.b16 %v2117
        %v2192 = vunpack.c.l.b16 %v2118
        %v2193 = vunpack.c.h.b16 %v2118
        %v2194 = vunpack.c.l.b16 %v2119
        %v2195 = vunpack.c.h.b16 %v2119
        %v2196 = vunpack.c.l.b16 %v2120
        %v2197 = vunpack.c.h.b16 %v2120
        %v2198 = vunpack.c.l.b16 %v2121
        %v2199 = vunpack.c.h.b16 %v2121
        %v2200 = vunpack.c.l.b16 %v2122
        %v2201 = vunpack.c.h.b16 %v2122
        %v2202 = vunpack.c.l.b16 %v2123
        %v2203 = vunpack.c.h.b16 %v2123
        %v2204 = vunpack.c.l.b16 %v2124
        %v2205 = vunpack.c.h.b16 %v2124
        %v2206 = vunpack.c.l.b16 %v2125
        %v2207 = vunpack.c.h.b16 %v2125
        %v2208 = vunpack.c.l.b16 %v2126
        %v2209 = vunpack.c.h.b16 %v2126
        %v2210 = vunpack.c.l.b16 %v2127
        %v2211 = vunpack.c.h.b16 %v2127
        %v2212 = vunpack.c.l.b16 %v2128
        %v2213 = vunpack.c.h.b16 %v2128
        %v2214 = vunpack.c.l.b16 %v2129
        %v2215 = vunpack.c.h.b16 %v2129
        %v2216 = vunpack.c.l.b16 %v2130
        %v2217 = vunpack.c.h.b16 %v2130
        %v2218 = vunpack.c.l.b16 %v2131
        %v2219 = vunpack.c.h.b16 %v2131
        %v2220 = vunpack.c.l.b16 %v2132
        %v2221 = vunpack.c.h.b16 %v2132
        %v2222 = vunpack.c.l.b16 %v2133
        %v2223 = vunpack.c.h.b16 %v2133
        %v2224 = vunpack.c.l.b16 %v2134
        %v2225 = vunpack.c.h.b16 %v2134
        %v2226 = vunpack.c.l.b16 %v2135
        %v2227 = vunpack.c.h.b16 %v2135
        %v2228 = vunpack.c.l.b16 %v2136
        %v2229 = vunpack.c.h.b16 %v2136
        %v2230 = vunpack.c.l.b16 %v2137
        %v2231 = vunpack.c.h.b16 %v2137
        %v2232 = vunpack.c.l.b16 %v2138
        %v2233 = vunpack.c.h.b16 %v2138
        %v2234 = vunpack.c.l.b16 %v2139
        %v2235 = vunpack.c.h.b16 %v2139
        %v2236 = vunpack.c.l.b16 %v2140
        %v2237 = vunpack.c.h.b16 %v2140
        %v2238 = vunpack.c.l.b16 %v2141
        %v2239 = vunpack.c.h.b16 %v2141
        %v2240 = vunpack.c.l.b16 %v2142
        %v2241 = vunpack.c.h.b16 %v2142
        %v2242 = vunpack.c.l.b16 %v2143
        %v2243 = vunpack.c.h.b16 %v2143
        %v2244 = vunpack.c.l.b16 %v2144
        %v2245 = vunpack.c.h.b16 %v2144
        %v2246 = vunpack.c.l.b16 %v2145
        %v2247 = vunpack.c.h.b16 %v2145
        %v2248 = vpack.c.b16 %v2188, %v2184
        %v2249 = vpack.c.b16 %v2189, %v2185
        %v2250 = vpack.c.b16 %v2190, %v2186
        %v2251 = vpack.c.b16 %v2191, %v2187
        %v2252 = vpack.c.b16 %v2196, %v2192
        %v2253 = vpack.c.b16 %v2197, %v2193
        %v2254 = vpack.c.b16 %v2198, %v2194
        %v2255 = vpack.c.b16 %v2199, %v2195
        %v2256 = vpack.c.b16 %v2204, %v2200
        %v2257 = vpack.c.b16 %v2205, %v2201
        %v2258 = vpack.c.b16 %v2206, %v2202
        %v2259 = vpack.c.b16 %v2207, %v2203
        %v2260 = vpack.c.b16 %v2212, %v2208
        %v2261 = vpack.c.b16 %v2213, %v2209
        %v2262 = vpack.c.b16 %v2214, %v2210
        %v2263 = vpack.c.b16 %v2215, %v2211
        %v2264 = vpack.c.b16 %v2220, %v2216
        %v2265 = vpack.c.b16 %v2221, %v2217
        %v2266 = vpack.c.b16 %v2222, %v2218
        %v2267 = vpack.c.b16 %v2223, %v2219
        %v2268 = vpack.c.b16 %v2228, %v2224
        %v2269 = vpack.c.b16 %v2229, %v2225
        %v2270 = vpack.c.b16 %v2230, %v2226
        %v2271 = vpack.c.b16 %v2231, %v2227
        %v2272 = vpack.c.b16 %v2236, %v2232
        %v2273 = vpack.c.b16 %v2237, %v2233
        %v2274 = vpack.c.b16 %v2238, %v2234
        %v2275 = vpack.c.b16 %v2239, %v2235
        %v2276 = vpack.c.b16 %v2244, %v2240
        %v2277 = vpack.c.b16 %v2245, %v2241
        %v2278 = vpack.c.b16 %v2246, %v2242
        %v2279 = vpack.c.b16 %v2247, %v2243
        %2312 = vmatpush.bf16.msra.mxu0 %v2276
        %2313 = vmatpush.bf16.msra.mxu0 %v2272
        %2314 = vmatpush.bf16.msra.mxu0 %v2268
        %2315 = vmatpush.bf16.msra.mxu0 %v2264
        %2316 = vmatpush.bf16.msra.mxu0 %v2260
        %2317 = vmatpush.bf16.msra.mxu0 %v2256
        %2318 = vmatpush.bf16.msra.mxu0 %v2252
        %2319 = vmatpush.bf16.msra.mxu0 %v2248
        %2320 = vmatmul.bf16.gmra.mxu0 %v2150
        %v2321 = vpop.f32.mrf.mxu0
        %v2322 = vadd.f32 0.0, %v2321
        %v2323 = vpop.f32.mrf.mxu0
        %v2324 = vadd.f32 0.0, %v2323
        %2325 = vdwg.mxu0
        %2326 = vmatpush.bf16.msra.mxu0 %v2277
        %2327 = vmatpush.bf16.msra.mxu0 %v2273
        %2328 = vmatpush.bf16.msra.mxu0 %v2269
        %2329 = vmatpush.bf16.msra.mxu0 %v2265
        %2330 = vmatpush.bf16.msra.mxu0 %v2261
        %2331 = vmatpush.bf16.msra.mxu0 %v2257
        %2332 = vmatpush.bf16.msra.mxu0 %v2253
        %2333 = vmatpush.bf16.msra.mxu0 %v2249
        %2334 = vmatmul.bf16.gmra.mxu0 %v2150
        %v2335 = vpop.f32.mrf.mxu0
        %v2336 = vadd.f32 0.0, %v2335
        %v2337 = vpop.f32.mrf.mxu0
        %v2338 = vadd.f32 0.0, %v2337
        %2339 = vdwg.mxu0
        %2340 = vmatpush.bf16.msra.mxu0 %v2278
        %2341 = vmatpush.bf16.msra.mxu0 %v2274
        %2342 = vmatpush.bf16.msra.mxu0 %v2270
        %2343 = vmatpush.bf16.msra.mxu0 %v2266
        %2344 = vmatpush.bf16.msra.mxu0 %v2262
        %2345 = vmatpush.bf16.msra.mxu0 %v2258
        %2346 = vmatpush.bf16.msra.mxu0 %v2254
        %2347 = vmatpush.bf16.msra.mxu0 %v2250
        %2348 = vmatmul.bf16.gmra.mxu0 %v2150
        %v2349 = vpop.f32.mrf.mxu0
        %v2350 = vadd.f32 0.0, %v2349
        %v2351 = vpop.f32.mrf.mxu0
        %v2352 = vadd.f32 0.0, %v2351
        %2353 = vdwg.mxu0
        %2354 = vmatpush.bf16.msra.mxu0 %v2279
        %2355 = vmatpush.bf16.msra.mxu0 %v2275
        %2356 = vmatpush.bf16.msra.mxu0 %v2271
        %2357 = vmatpush.bf16.msra.mxu0 %v2267
        %2358 = vmatpush.bf16.msra.mxu0 %v2263
        %2359 = vmatpush.bf16.msra.mxu0 %v2259
        %2360 = vmatpush.bf16.msra.mxu0 %v2255
        %2361 = vmatpush.bf16.msra.mxu0 %v2251
        %2362 = vmatmul.bf16.gmra.mxu0 %v2150
        %v2363 = vpop.f32.mrf.mxu0
        %v2364 = vadd.f32 0.0, %v2363
        %v2365 = vpop.f32.mrf.mxu0
        %v2366 = vadd.f32 0.0, %v2365
        %2367 = vdwg.mxu0
        %v2368 = vadd.f32 %v2106, %v2322
        %v2369 = vadd.f32 %v2107, %v2336
        %v2370 = vadd.f32 %v2108, %v2350
        %v2371 = vadd.f32 %v2109, %v2364
        %v2372 = vadd.f32 %v2110, %v2324
        %v2373 = vadd.f32 %v2111, %v2338
        %v2374 = vadd.f32 %v2112, %v2352
        %v2375 = vadd.f32 %v2113, %v2366
        %v2376 = vmul.f32 %v2368, 0.5
        %v2377 = vmul.f32 %v2372, 0.5
        %v2378 = vtanh.pop %v2376
        %v2379 = vtanh.pop %v2377
        %v2380 = vadd.f32 %v2378, 1.0
        %v2381 = vadd.f32 %v2379, 1.0
        %v2382 = vmul.f32 %v2380, 0.5
        %v2383 = vmul.f32 %v2381, 0.5
        %v2384 = vmul.f32 %v2369, 0.5
        %v2385 = vmul.f32 %v2373, 0.5
        %v2386 = vtanh.pop %v2384
        %v2387 = vtanh.pop %v2385
        %v2388 = vadd.f32 %v2386, 1.0
        %v2389 = vadd.f32 %v2387, 1.0
        %v2390 = vmul.f32 %v2388, 0.5
        %v2391 = vmul.f32 %v2389, 0.5
        %v2392 = vtanh.pop %v2370
        %v2393 = vtanh.pop %v2374
        %v2394 = vmul.f32 %v2371, 0.5
        %v2395 = vmul.f32 %v2375, 0.5
        %v2396 = vtanh.pop %v2394
        %v2397 = vtanh.pop %v2395
        %v2398 = vadd.f32 %v2396, 1.0
        %v2399 = vadd.f32 %v2397, 1.0
        %v2400 = vmul.f32 %v2398, 0.5
        %v2401 = vmul.f32 %v2399, 0.5
        %v2402 = vmul.f32 %v2390, %v2094
        %v2403 = vmul.f32 %v2391, %v2095
        %v2404 = vmul.f32 %v2382, %v2392
        %v2405 = vmul.f32 %v2383, %v2393
        %v2406 = vadd.f32 %v2402, %v2404
        %v2407 = vadd.f32 %v2403, %v2405
        %v2408 = vtanh.pop %v2406
        %v2409 = vtanh.pop %v2407
        %v2410 = vmul.f32 %v2400, %v2408
        %v2411 = vmul.f32 %v2401, %v2409
        %v2412 = vpack.c.bf16 %v2410, %v2410
        %v2413 = vpack.c.bf16 %v2411, %v2411
        %s2414 = scalar_lea.vmem [#allocation2], 16
        %2415 = vst [vmem:[%s2414] sm:$0xf] %v2412
        %2416 = vst [vmem:[%s2414 + $0x4] sm:$0xf] %v2413
        %s2417 = scalar_lea.vmem [#allocation3], 192
        %v2418 = vld [vmem:[%s2417] sm:$0xff]
        %v2419 = vld [vmem:[%s2417 + $0x8] sm:$0xff]
        %v2420 = vld [vmem:[%s2417 + $0x10] sm:$0xff]
        %v2421 = vld [vmem:[%s2417 + $0x18] sm:$0xff]
        %v2422 = vld [vmem:[%s2417 + $0x20] sm:$0xff]
        %v2423 = vld [vmem:[%s2417 + $0x28] sm:$0xff]
        %v2424 = vld [vmem:[%s2417 + $0x30] sm:$0xff]
        %v2425 = vld [vmem:[%s2417 + $0x38] sm:$0xff]
        %v2426 = vld [vmem:[%s338] sm:$0xff]
        %v2427 = vld [vmem:[%s338 + $0x8] sm:$0xff]
        %v2428 = vld [vmem:[%s338 + $0x10] sm:$0xff]
        %v2429 = vld [vmem:[%s338 + $0x18] sm:$0xff]
        %v2430 = vld [vmem:[%s338 + $0x20] sm:$0xff]
        %v2431 = vld [vmem:[%s338 + $0x28] sm:$0xff]
        %v2432 = vld [vmem:[%s338 + $0x30] sm:$0xff]
        %v2433 = vld [vmem:[%s338 + $0x38] sm:$0xff]
        %v2434 = vld [vmem:[%s338 + $0x40] sm:$0xff]
        %v2435 = vld [vmem:[%s338 + $0x48] sm:$0xff]
        %v2436 = vld [vmem:[%s338 + $0x50] sm:$0xff]
        %v2437 = vld [vmem:[%s338 + $0x58] sm:$0xff]
        %v2438 = vld [vmem:[%s338 + $0x60] sm:$0xff]
        %v2439 = vld [vmem:[%s338 + $0x68] sm:$0xff]
        %v2440 = vld [vmem:[%s338 + $0x70] sm:$0xff]
        %v2441 = vld [vmem:[%s338 + $0x78] sm:$0xff]
        %v2442 = vld [vmem:[%s338 + $0x80] sm:$0xff]
        %v2443 = vld [vmem:[%s338 + $0x88] sm:$0xff]
        %v2444 = vld [vmem:[%s338 + $0x90] sm:$0xff]
        %v2445 = vld [vmem:[%s338 + $0x98] sm:$0xff]
        %v2446 = vld [vmem:[%s338 + $0xa0] sm:$0xff]
        %v2447 = vld [vmem:[%s338 + $0xa8] sm:$0xff]
        %v2448 = vld [vmem:[%s338 + $0xb0] sm:$0xff]
        %v2449 = vld [vmem:[%s338 + $0xb8] sm:$0xff]
        %v2450 = vld [vmem:[%s338 + $0xc0] sm:$0xff]
        %v2451 = vld [vmem:[%s338 + $0xc8] sm:$0xff]
        %v2452 = vld [vmem:[%s338 + $0xd0] sm:$0xff]
        %v2453 = vld [vmem:[%s338 + $0xd8] sm:$0xff]
        %v2454 = vld [vmem:[%s338 + $0xe0] sm:$0xff]
        %v2455 = vld [vmem:[%s338 + $0xe8] sm:$0xff]
        %v2456 = vld [vmem:[%s338 + $0xf0] sm:$0xff]
        %v2457 = vld [vmem:[%s338 + $0xf8] sm:$0xff]
        %v2460 = vunpack.c.l.b16 %v2412
        %v2461 = vunpack.c.l.b16 %v2413
        %v2462 = vpack.c.b16 %v2461, %v2460
        %v2496 = vunpack.c.l.b16 %v2426
        %v2497 = vunpack.c.h.b16 %v2426
        %v2498 = vunpack.c.l.b16 %v2427
        %v2499 = vunpack.c.h.b16 %v2427
        %v2500 = vunpack.c.l.b16 %v2428
        %v2501 = vunpack.c.h.b16 %v2428
        %v2502 = vunpack.c.l.b16 %v2429
        %v2503 = vunpack.c.h.b16 %v2429
        %v2504 = vunpack.c.l.b16 %v2430
        %v2505 = vunpack.c.h.b16 %v2430
        %v2506 = vunpack.c.l.b16 %v2431
        %v2507 = vunpack.c.h.b16 %v2431
        %v2508 = vunpack.c.l.b16 %v2432
        %v2509 = vunpack.c.h.b16 %v2432
        %v2510 = vunpack.c.l.b16 %v2433
        %v2511 = vunpack.c.h.b16 %v2433
        %v2512 = vunpack.c.l.b16 %v2434
        %v2513 = vunpack.c.h.b16 %v2434
        %v2514 = vunpack.c.l.b16 %v2435
        %v2515 = vunpack.c.h.b16 %v2435
        %v2516 = vunpack.c.l.b16 %v2436
        %v2517 = vunpack.c.h.b16 %v2436
        %v2518 = vunpack.c.l.b16 %v2437
        %v2519 = vunpack.c.h.b16 %v2437
        %v2520 = vunpack.c.l.b16 %v2438
        %v2521 = vunpack.c.h.b16 %v2438
        %v2522 = vunpack.c.l.b16 %v2439
        %v2523 = vunpack.c.h.b16 %v2439
        %v2524 = vunpack.c.l.b16 %v2440
        %v2525 = vunpack.c.h.b16 %v2440
        %v2526 = vunpack.c.l.b16 %v2441
        %v2527 = vunpack.c.h.b16 %v2441
        %v2528 = vunpack.c.l.b16 %v2442
        %v2529 = vunpack.c.h.b16 %v2442
        %v2530 = vunpack.c.l.b16 %v2443
        %v2531 = vunpack.c.h.b16 %v2443
        %v2532 = vunpack.c.l.b16 %v2444
        %v2533 = vunpack.c.h.b16 %v2444
        %v2534 = vunpack.c.l.b16 %v2445
        %v2535 = vunpack.c.h.b16 %v2445
        %v2536 = vunpack.c.l.b16 %v2446
        %v2537 = vunpack.c.h.b16 %v2446
        %v2538 = vunpack.c.l.b16 %v2447
        %v2539 = vunpack.c.h.b16 %v2447
        %v2540 = vunpack.c.l.b16 %v2448
        %v2541 = vunpack.c.h.b16 %v2448
        %v2542 = vunpack.c.l.b16 %v2449
        %v2543 = vunpack.c.h.b16 %v2449
        %v2544 = vunpack.c.l.b16 %v2450
        %v2545 = vunpack.c.h.b16 %v2450
        %v2546 = vunpack.c.l.b16 %v2451
        %v2547 = vunpack.c.h.b16 %v2451
        %v2548 = vunpack.c.l.b16 %v2452
        %v2549 = vunpack.c.h.b16 %v2452
        %v2550 = vunpack.c.l.b16 %v2453
        %v2551 = vunpack.c.h.b16 %v2453
        %v2552 = vunpack.c.l.b16 %v2454
        %v2553 = vunpack.c.h.b16 %v2454
        %v2554 = vunpack.c.l.b16 %v2455
        %v2555 = vunpack.c.h.b16 %v2455
        %v2556 = vunpack.c.l.b16 %v2456
        %v2557 = vunpack.c.h.b16 %v2456
        %v2558 = vunpack.c.l.b16 %v2457
        %v2559 = vunpack.c.h.b16 %v2457
        %v2560 = vpack.c.b16 %v2500, %v2496
        %v2561 = vpack.c.b16 %v2501, %v2497
        %v2562 = vpack.c.b16 %v2502, %v2498
        %v2563 = vpack.c.b16 %v2503, %v2499
        %v2564 = vpack.c.b16 %v2508, %v2504
        %v2565 = vpack.c.b16 %v2509, %v2505
        %v2566 = vpack.c.b16 %v2510, %v2506
        %v2567 = vpack.c.b16 %v2511, %v2507
        %v2568 = vpack.c.b16 %v2516, %v2512
        %v2569 = vpack.c.b16 %v2517, %v2513
        %v2570 = vpack.c.b16 %v2518, %v2514
        %v2571 = vpack.c.b16 %v2519, %v2515
        %v2572 = vpack.c.b16 %v2524, %v2520
        %v2573 = vpack.c.b16 %v2525, %v2521
        %v2574 = vpack.c.b16 %v2526, %v2522
        %v2575 = vpack.c.b16 %v2527, %v2523
        %v2576 = vpack.c.b16 %v2532, %v2528
        %v2577 = vpack.c.b16 %v2533, %v2529
        %v2578 = vpack.c.b16 %v2534, %v2530
        %v2579 = vpack.c.b16 %v2535, %v2531
        %v2580 = vpack.c.b16 %v2540, %v2536
        %v2581 = vpack.c.b16 %v2541, %v2537
        %v2582 = vpack.c.b16 %v2542, %v2538
        %v2583 = vpack.c.b16 %v2543, %v2539
        %v2584 = vpack.c.b16 %v2548, %v2544
        %v2585 = vpack.c.b16 %v2549, %v2545
        %v2586 = vpack.c.b16 %v2550, %v2546
        %v2587 = vpack.c.b16 %v2551, %v2547
        %v2588 = vpack.c.b16 %v2556, %v2552
        %v2589 = vpack.c.b16 %v2557, %v2553
        %v2590 = vpack.c.b16 %v2558, %v2554
        %v2591 = vpack.c.b16 %v2559, %v2555
        %2624 = vmatpush.bf16.msra.mxu0 %v2588
        %2625 = vmatpush.bf16.msra.mxu0 %v2584
        %2626 = vmatpush.bf16.msra.mxu0 %v2580
        %2627 = vmatpush.bf16.msra.mxu0 %v2576
        %2628 = vmatpush.bf16.msra.mxu0 %v2572
        %2629 = vmatpush.bf16.msra.mxu0 %v2568
        %2630 = vmatpush.bf16.msra.mxu0 %v2564
        %2631 = vmatpush.bf16.msra.mxu0 %v2560
        %2632 = vmatmul.bf16.gmra.mxu0 %v2462
        %v2633 = vpop.f32.mrf.mxu0
        %v2634 = vadd.f32 0.0, %v2633
        %v2635 = vpop.f32.mrf.mxu0
        %v2636 = vadd.f32 0.0, %v2635
        %2637 = vdwg.mxu0
        %2638 = vmatpush.bf16.msra.mxu0 %v2589
        %2639 = vmatpush.bf16.msra.mxu0 %v2585
        %2640 = vmatpush.bf16.msra.mxu0 %v2581
        %2641 = vmatpush.bf16.msra.mxu0 %v2577
        %2642 = vmatpush.bf16.msra.mxu0 %v2573
        %2643 = vmatpush.bf16.msra.mxu0 %v2569
        %2644 = vmatpush.bf16.msra.mxu0 %v2565
        %2645 = vmatpush.bf16.msra.mxu0 %v2561
        %2646 = vmatmul.bf16.gmra.mxu0 %v2462
        %v2647 = vpop.f32.mrf.mxu0
        %v2648 = vadd.f32 0.0, %v2647
        %v2649 = vpop.f32.mrf.mxu0
        %v2650 = vadd.f32 0.0, %v2649
        %2651 = vdwg.mxu0
        %2652 = vmatpush.bf16.msra.mxu0 %v2590
        %2653 = vmatpush.bf16.msra.mxu0 %v2586
        %2654 = vmatpush.bf16.msra.mxu0 %v2582
        %2655 = vmatpush.bf16.msra.mxu0 %v2578
        %2656 = vmatpush.bf16.msra.mxu0 %v2574
        %2657 = vmatpush.bf16.msra.mxu0 %v2570
        %2658 = vmatpush.bf16.msra.mxu0 %v2566
        %2659 = vmatpush.bf16.msra.mxu0 %v2562
        %2660 = vmatmul.bf16.gmra.mxu0 %v2462
        %v2661 = vpop.f32.mrf.mxu0
        %v2662 = vadd.f32 0.0, %v2661
        %v2663 = vpop.f32.mrf.mxu0
        %v2664 = vadd.f32 0.0, %v2663
        %2665 = vdwg.mxu0
        %2666 = vmatpush.bf16.msra.mxu0 %v2591
        %2667 = vmatpush.bf16.msra.mxu0 %v2587
        %2668 = vmatpush.bf16.msra.mxu0 %v2583
        %2669 = vmatpush.bf16.msra.mxu0 %v2579
        %2670 = vmatpush.bf16.msra.mxu0 %v2575
        %2671 = vmatpush.bf16.msra.mxu0 %v2571
        %2672 = vmatpush.bf16.msra.mxu0 %v2567
        %2673 = vmatpush.bf16.msra.mxu0 %v2563
        %2674 = vmatmul.bf16.gmra.mxu0 %v2462
        %v2675 = vpop.f32.mrf.mxu0
        %v2676 = vadd.f32 0.0, %v2675
        %v2677 = vpop.f32.mrf.mxu0
        %v2678 = vadd.f32 0.0, %v2677
        %2679 = vdwg.mxu0
        %v2680 = vadd.f32 %v2418, %v2634
        %v2681 = vadd.f32 %v2419, %v2648
        %v2682 = vadd.f32 %v2420, %v2662
        %v2683 = vadd.f32 %v2421, %v2676
        %v2684 = vadd.f32 %v2422, %v2636
        %v2685 = vadd.f32 %v2423, %v2650
        %v2686 = vadd.f32 %v2424, %v2664
        %v2687 = vadd.f32 %v2425, %v2678
        %v2688 = vmul.f32 %v2680, 0.5
        %v2689 = vmul.f32 %v2684, 0.5
        %v2690 = vtanh.pop %v2688
        %v2691 = vtanh.pop %v2689
        %v2692 = vadd.f32 %v2690, 1.0
        %v2693 = vadd.f32 %v2691, 1.0
        %v2694 = vmul.f32 %v2692, 0.5
        %v2695 = vmul.f32 %v2693, 0.5
        %v2696 = vmul.f32 %v2681, 0.5
        %v2697 = vmul.f32 %v2685, 0.5
        %v2698 = vtanh.pop %v2696
        %v2699 = vtanh.pop %v2697
        %v2700 = vadd.f32 %v2698, 1.0
        %v2701 = vadd.f32 %v2699, 1.0
        %v2702 = vmul.f32 %v2700, 0.5
        %v2703 = vmul.f32 %v2701, 0.5
        %v2704 = vtanh.pop %v2682
        %v2705 = vtanh.pop %v2686
        %v2706 = vmul.f32 %v2683, 0.5
        %v2707 = vmul.f32 %v2687, 0.5
        %v2708 = vtanh.pop %v2706
        %v2709 = vtanh.pop %v2707
        %v2710 = vadd.f32 %v2708, 1.0
        %v2711 = vadd.f32 %v2709, 1.0
        %v2712 = vmul.f32 %v2710, 0.5
        %v2713 = vmul.f32 %v2711, 0.5
        %v2714 = vmul.f32 %v2702, %v2406
        %v2715 = vmul.f32 %v2703, %v2407
        %v2716 = vmul.f32 %v2694, %v2704
        %v2717 = vmul.f32 %v2695, %v2705
        %v2718 = vadd.f32 %v2714, %v2716
        %v2719 = vadd.f32 %v2715, %v2717
        %v2720 = vtanh.pop %v2718
        %v2721 = vtanh.pop %v2719
        %v2722 = vmul.f32 %v2712, %v2720
        %v2723 = vmul.f32 %v2713, %v2721
        %v2724 = vpack.c.bf16 %v2722, %v2722
        %v2725 = vpack.c.bf16 %v2723, %v2723
        %s2726 = scalar_lea.vmem [#allocation2], 24
        %2727 = vst [vmem:[%s2726] sm:$0xf] %v2724
        %2728 = vst [vmem:[%s2726 + $0x4] sm:$0xf] %v2725
        %s2729 = scalar_lea.vmem [#allocation3], 256
        %v2730 = vld [vmem:[%s2729] sm:$0xff]
        %v2731 = vld [vmem:[%s2729 + $0x8] sm:$0xff]
        %v2732 = vld [vmem:[%s2729 + $0x10] sm:$0xff]
        %v2733 = vld [vmem:[%s2729 + $0x18] sm:$0xff]
        %v2734 = vld [vmem:[%s2729 + $0x20] sm:$0xff]
        %v2735 = vld [vmem:[%s2729 + $0x28] sm:$0xff]
        %v2736 = vld [vmem:[%s2729 + $0x30] sm:$0xff]
        %v2737 = vld [vmem:[%s2729 + $0x38] sm:$0xff]
        %v2738 = vld [vmem:[%s338] sm:$0xff]
        %v2739 = vld [vmem:[%s338 + $0x8] sm:$0xff]
        %v2740 = vld [vmem:[%s338 + $0x10] sm:$0xff]
        %v2741 = vld [vmem:[%s338 + $0x18] sm:$0xff]
        %v2742 = vld [vmem:[%s338 + $0x20] sm:$0xff]
        %v2743 = vld [vmem:[%s338 + $0x28] sm:$0xff]
        %v2744 = vld [vmem:[%s338 + $0x30] sm:$0xff]
        %v2745 = vld [vmem:[%s338 + $0x38] sm:$0xff]
        %v2746 = vld [vmem:[%s338 + $0x40] sm:$0xff]
        %v2747 = vld [vmem:[%s338 + $0x48] sm:$0xff]
        %v2748 = vld [vmem:[%s338 + $0x50] sm:$0xff]
        %v2749 = vld [vmem:[%s338 + $0x58] sm:$0xff]
        %v2750 = vld [vmem:[%s338 + $0x60] sm:$0xff]
        %v2751 = vld [vmem:[%s338 + $0x68] sm:$0xff]
        %v2752 = vld [vmem:[%s338 + $0x70] sm:$0xff]
        %v2753 = vld [vmem:[%s338 + $0x78] sm:$0xff]
        %v2754 = vld [vmem:[%s338 + $0x80] sm:$0xff]
        %v2755 = vld [vmem:[%s338 + $0x88] sm:$0xff]
        %v2756 = vld [vmem:[%s338 + $0x90] sm:$0xff]
        %v2757 = vld [vmem:[%s338 + $0x98] sm:$0xff]
        %v2758 = vld [vmem:[%s338 + $0xa0] sm:$0xff]
        %v2759 = vld [vmem:[%s338 + $0xa8] sm:$0xff]
        %v2760 = vld [vmem:[%s338 + $0xb0] sm:$0xff]
        %v2761 = vld [vmem:[%s338 + $0xb8] sm:$0xff]
        %v2762 = vld [vmem:[%s338 + $0xc0] sm:$0xff]
        %v2763 = vld [vmem:[%s338 + $0xc8] sm:$0xff]
        %v2764 = vld [vmem:[%s338 + $0xd0] sm:$0xff]
        %v2765 = vld [vmem:[%s338 + $0xd8] sm:$0xff]
        %v2766 = vld [vmem:[%s338 + $0xe0] sm:$0xff]
        %v2767 = vld [vmem:[%s338 + $0xe8] sm:$0xff]
        %v2768 = vld [vmem:[%s338 + $0xf0] sm:$0xff]
        %v2769 = vld [vmem:[%s338 + $0xf8] sm:$0xff]
        %v2772 = vunpack.c.l.b16 %v2724
        %v2773 = vunpack.c.l.b16 %v2725
        %v2774 = vpack.c.b16 %v2773, %v2772
        %v2808 = vunpack.c.l.b16 %v2738
        %v2809 = vunpack.c.h.b16 %v2738
        %v2810 = vunpack.c.l.b16 %v2739
        %v2811 = vunpack.c.h.b16 %v2739
        %v2812 = vunpack.c.l.b16 %v2740
        %v2813 = vunpack.c.h.b16 %v2740
        %v2814 = vunpack.c.l.b16 %v2741
        %v2815 = vunpack.c.h.b16 %v2741
        %v2816 = vunpack.c.l.b16 %v2742
        %v2817 = vunpack.c.h.b16 %v2742
        %v2818 = vunpack.c.l.b16 %v2743
        %v2819 = vunpack.c.h.b16 %v2743
        %v2820 = vunpack.c.l.b16 %v2744
        %v2821 = vunpack.c.h.b16 %v2744
        %v2822 = vunpack.c.l.b16 %v2745
        %v2823 = vunpack.c.h.b16 %v2745
        %v2824 = vunpack.c.l.b16 %v2746
        %v2825 = vunpack.c.h.b16 %v2746
        %v2826 = vunpack.c.l.b16 %v2747
        %v2827 = vunpack.c.h.b16 %v2747
        %v2828 = vunpack.c.l.b16 %v2748
        %v2829 = vunpack.c.h.b16 %v2748
        %v2830 = vunpack.c.l.b16 %v2749
        %v2831 = vunpack.c.h.b16 %v2749
        %v2832 = vunpack.c.l.b16 %v2750
        %v2833 = vunpack.c.h.b16 %v2750
        %v2834 = vunpack.c.l.b16 %v2751
        %v2835 = vunpack.c.h.b16 %v2751
        %v2836 = vunpack.c.l.b16 %v2752
        %v2837 = vunpack.c.h.b16 %v2752
        %v2838 = vunpack.c.l.b16 %v2753
        %v2839 = vunpack.c.h.b16 %v2753
        %v2840 = vunpack.c.l.b16 %v2754
        %v2841 = vunpack.c.h.b16 %v2754
        %v2842 = vunpack.c.l.b16 %v2755
        %v2843 = vunpack.c.h.b16 %v2755
        %v2844 = vunpack.c.l.b16 %v2756
        %v2845 = vunpack.c.h.b16 %v2756
        %v2846 = vunpack.c.l.b16 %v2757
        %v2847 = vunpack.c.h.b16 %v2757
        %v2848 = vunpack.c.l.b16 %v2758
        %v2849 = vunpack.c.h.b16 %v2758
        %v2850 = vunpack.c.l.b16 %v2759
        %v2851 = vunpack.c.h.b16 %v2759
        %v2852 = vunpack.c.l.b16 %v2760
        %v2853 = vunpack.c.h.b16 %v2760
        %v2854 = vunpack.c.l.b16 %v2761
        %v2855 = vunpack.c.h.b16 %v2761
        %v2856 = vunpack.c.l.b16 %v2762
        %v2857 = vunpack.c.h.b16 %v2762
        %v2858 = vunpack.c.l.b16 %v2763
        %v2859 = vunpack.c.h.b16 %v2763
        %v2860 = vunpack.c.l.b16 %v2764
        %v2861 = vunpack.c.h.b16 %v2764
        %v2862 = vunpack.c.l.b16 %v2765
        %v2863 = vunpack.c.h.b16 %v2765
        %v2864 = vunpack.c.l.b16 %v2766
        %v2865 = vunpack.c.h.b16 %v2766
        %v2866 = vunpack.c.l.b16 %v2767
        %v2867 = vunpack.c.h.b16 %v2767
        %v2868 = vunpack.c.l.b16 %v2768
        %v2869 = vunpack.c.h.b16 %v2768
        %v2870 = vunpack.c.l.b16 %v2769
        %v2871 = vunpack.c.h.b16 %v2769
        %v2872 = vpack.c.b16 %v2812, %v2808
        %v2873 = vpack.c.b16 %v2813, %v2809
        %v2874 = vpack.c.b16 %v2814, %v2810
        %v2875 = vpack.c.b16 %v2815, %v2811
        %v2876 = vpack.c.b16 %v2820, %v2816
        %v2877 = vpack.c.b16 %v2821, %v2817
        %v2878 = vpack.c.b16 %v2822, %v2818
        %v2879 = vpack.c.b16 %v2823, %v2819
        %v2880 = vpack.c.b16 %v2828, %v2824
        %v2881 = vpack.c.b16 %v2829, %v2825
        %v2882 = vpack.c.b16 %v2830, %v2826
        %v2883 = vpack.c.b16 %v2831, %v2827
        %v2884 = vpack.c.b16 %v2836, %v2832
        %v2885 = vpack.c.b16 %v2837, %v2833
        %v2886 = vpack.c.b16 %v2838, %v2834
        %v2887 = vpack.c.b16 %v2839, %v2835
        %v2888 = vpack.c.b16 %v2844, %v2840
        %v2889 = vpack.c.b16 %v2845, %v2841
        %v2890 = vpack.c.b16 %v2846, %v2842
        %v2891 = vpack.c.b16 %v2847, %v2843
        %v2892 = vpack.c.b16 %v2852, %v2848
        %v2893 = vpack.c.b16 %v2853, %v2849
        %v2894 = vpack.c.b16 %v2854, %v2850
        %v2895 = vpack.c.b16 %v2855, %v2851
        %v2896 = vpack.c.b16 %v2860, %v2856
        %v2897 = vpack.c.b16 %v2861, %v2857
        %v2898 = vpack.c.b16 %v2862, %v2858
        %v2899 = vpack.c.b16 %v2863, %v2859
        %v2900 = vpack.c.b16 %v2868, %v2864
        %v2901 = vpack.c.b16 %v2869, %v2865
        %v2902 = vpack.c.b16 %v2870, %v2866
        %v2903 = vpack.c.b16 %v2871, %v2867
        %2936 = vmatpush.bf16.msra.mxu0 %v2900
        %2937 = vmatpush.bf16.msra.mxu0 %v2896
        %2938 = vmatpush.bf16.msra.mxu0 %v2892
        %2939 = vmatpush.bf16.msra.mxu0 %v2888
        %2940 = vmatpush.bf16.msra.mxu0 %v2884
        %2941 = vmatpush.bf16.msra.mxu0 %v2880
        %2942 = vmatpush.bf16.msra.mxu0 %v2876
        %2943 = vmatpush.bf16.msra.mxu0 %v2872
        %2944 = vmatmul.bf16.gmra.mxu0 %v2774
        %v2945 = vpop.f32.mrf.mxu0
        %v2946 = vadd.f32 0.0, %v2945
        %v2947 = vpop.f32.mrf.mxu0
        %v2948 = vadd.f32 0.0, %v2947
        %2949 = vdwg.mxu0
        %2950 = vmatpush.bf16.msra.mxu0 %v2901
        %2951 = vmatpush.bf16.msra.mxu0 %v2897
        %2952 = vmatpush.bf16.msra.mxu0 %v2893
        %2953 = vmatpush.bf16.msra.mxu0 %v2889
        %2954 = vmatpush.bf16.msra.mxu0 %v2885
        %2955 = vmatpush.bf16.msra.mxu0 %v2881
        %2956 = vmatpush.bf16.msra.mxu0 %v2877
        %2957 = vmatpush.bf16.msra.mxu0 %v2873
        %2958 = vmatmul.bf16.gmra.mxu0 %v2774
        %v2959 = vpop.f32.mrf.mxu0
        %v2960 = vadd.f32 0.0, %v2959
        %v2961 = vpop.f32.mrf.mxu0
        %v2962 = vadd.f32 0.0, %v2961
        %2963 = vdwg.mxu0
        %2964 = vmatpush.bf16.msra.mxu0 %v2902
        %2965 = vmatpush.bf16.msra.mxu0 %v2898
        %2966 = vmatpush.bf16.msra.mxu0 %v2894
        %2967 = vmatpush.bf16.msra.mxu0 %v2890
        %2968 = vmatpush.bf16.msra.mxu0 %v2886
        %2969 = vmatpush.bf16.msra.mxu0 %v2882
        %2970 = vmatpush.bf16.msra.mxu0 %v2878
        %2971 = vmatpush.bf16.msra.mxu0 %v2874
        %2972 = vmatmul.bf16.gmra.mxu0 %v2774
        %v2973 = vpop.f32.mrf.mxu0
        %v2974 = vadd.f32 0.0, %v2973
        %v2975 = vpop.f32.mrf.mxu0
        %v2976 = vadd.f32 0.0, %v2975
        %2977 = vdwg.mxu0
        %2978 = vmatpush.bf16.msra.mxu0 %v2903
        %2979 = vmatpush.bf16.msra.mxu0 %v2899
        %2980 = vmatpush.bf16.msra.mxu0 %v2895
        %2981 = vmatpush.bf16.msra.mxu0 %v2891
        %2982 = vmatpush.bf16.msra.mxu0 %v2887
        %2983 = vmatpush.bf16.msra.mxu0 %v2883
        %2984 = vmatpush.bf16.msra.mxu0 %v2879
        %2985 = vmatpush.bf16.msra.mxu0 %v2875
        %2986 = vmatmul.bf16.gmra.mxu0 %v2774
        %v2987 = vpop.f32.mrf.mxu0
        %v2988 = vadd.f32 0.0, %v2987
        %v2989 = vpop.f32.mrf.mxu0
        %v2990 = vadd.f32 0.0, %v2989
        %2991 = vdwg.mxu0
        %v2992 = vadd.f32 %v2730, %v2946
        %v2993 = vadd.f32 %v2731, %v2960
        %v2994 = vadd.f32 %v2732, %v2974
        %v2995 = vadd.f32 %v2733, %v2988
        %v2996 = vadd.f32 %v2734, %v2948
        %v2997 = vadd.f32 %v2735, %v2962
        %v2998 = vadd.f32 %v2736, %v2976
        %v2999 = vadd.f32 %v2737, %v2990
        %v3000 = vmul.f32 %v2992, 0.5
        %v3001 = vmul.f32 %v2996, 0.5
        %v3002 = vtanh.pop %v3000
        %v3003 = vtanh.pop %v3001
        %v3004 = vadd.f32 %v3002, 1.0
        %v3005 = vadd.f32 %v3003, 1.0
        %v3006 = vmul.f32 %v3004, 0.5
        %v3007 = vmul.f32 %v3005, 0.5
        %v3008 = vmul.f32 %v2993, 0.5
        %v3009 = vmul.f32 %v2997, 0.5
        %v3010 = vtanh.pop %v3008
        %v3011 = vtanh.pop %v3009
        %v3012 = vadd.f32 %v3010, 1.0
        %v3013 = vadd.f32 %v3011, 1.0
        %v3014 = vmul.f32 %v3012, 0.5
        %v3015 = vmul.f32 %v3013, 0.5
        %v3016 = vtanh.pop %v2994
        %v3017 = vtanh.pop %v2998
        %v3018 = vmul.f32 %v2995, 0.5
        %v3019 = vmul.f32 %v2999, 0.5
        %v3020 = vtanh.pop %v3018
        %v3021 = vtanh.pop %v3019
        %v3022 = vadd.f32 %v3020, 1.0
        %v3023 = vadd.f32 %v3021, 1.0
        %v3024 = vmul.f32 %v3022, 0.5
        %v3025 = vmul.f32 %v3023, 0.5
        %v3026 = vmul.f32 %v3014, %v2718
        %v3027 = vmul.f32 %v3015, %v2719
        %v3028 = vmul.f32 %v3006, %v3016
        %v3029 = vmul.f32 %v3007, %v3017
        %v3030 = vadd.f32 %v3026, %v3028
        %v3031 = vadd.f32 %v3027, %v3029
        %v3032 = vtanh.pop %v3030
        %v3033 = vtanh.pop %v3031
        %v3034 = vmul.f32 %v3024, %v3032
        %v3035 = vmul.f32 %v3025, %v3033
        %v3036 = vpack.c.bf16 %v3034, %v3034
        %v3037 = vpack.c.bf16 %v3035, %v3035
        %s3038 = scalar_lea.vmem [#allocation2], 32
        %3039 = vst [vmem:[%s3038] sm:$0xf] %v3036
        %3040 = vst [vmem:[%s3038 + $0x4] sm:$0xf] %v3037
        %s3041 = scalar_lea.vmem [#allocation3], 320
        %v3042 = vld [vmem:[%s3041] sm:$0xff]
        %v3043 = vld [vmem:[%s3041 + $0x8] sm:$0xff]
        %v3044 = vld [vmem:[%s3041 + $0x10] sm:$0xff]
        %v3045 = vld [vmem:[%s3041 + $0x18] sm:$0xff]
        %v3046 = vld [vmem:[%s3041 + $0x20] sm:$0xff]
        %v3047 = vld [vmem:[%s3041 + $0x28] sm:$0xff]
        %v3048 = vld [vmem:[%s3041 + $0x30] sm:$0xff]
        %v3049 = vld [vmem:[%s3041 + $0x38] sm:$0xff]
        %v3050 = vld [vmem:[%s338] sm:$0xff]
        %v3051 = vld [vmem:[%s338 + $0x8] sm:$0xff]
        %v3052 = vld [vmem:[%s338 + $0x10] sm:$0xff]
        %v3053 = vld [vmem:[%s338 + $0x18] sm:$0xff]
        %v3054 = vld [vmem:[%s338 + $0x20] sm:$0xff]
        %v3055 = vld [vmem:[%s338 + $0x28] sm:$0xff]
        %v3056 = vld [vmem:[%s338 + $0x30] sm:$0xff]
        %v3057 = vld [vmem:[%s338 + $0x38] sm:$0xff]
        %v3058 = vld [vmem:[%s338 + $0x40] sm:$0xff]
        %v3059 = vld [vmem:[%s338 + $0x48] sm:$0xff]
        %v3060 = vld [vmem:[%s338 + $0x50] sm:$0xff]
        %v3061 = vld [vmem:[%s338 + $0x58] sm:$0xff]
        %v3062 = vld [vmem:[%s338 + $0x60] sm:$0xff]
        %v3063 = vld [vmem:[%s338 + $0x68] sm:$0xff]
        %v3064 = vld [vmem:[%s338 + $0x70] sm:$0xff]
        %v3065 = vld [vmem:[%s338 + $0x78] sm:$0xff]
        %v3066 = vld [vmem:[%s338 + $0x80] sm:$0xff]
        %v3067 = vld [vmem:[%s338 + $0x88] sm:$0xff]
        %v3068 = vld [vmem:[%s338 + $0x90] sm:$0xff]
        %v3069 = vld [vmem:[%s338 + $0x98] sm:$0xff]
        %v3070 = vld [vmem:[%s338 + $0xa0] sm:$0xff]
        %v3071 = vld [vmem:[%s338 + $0xa8] sm:$0xff]
        %v3072 = vld [vmem:[%s338 + $0xb0] sm:$0xff]
        %v3073 = vld [vmem:[%s338 + $0xb8] sm:$0xff]
        %v3074 = vld [vmem:[%s338 + $0xc0] sm:$0xff]
        %v3075 = vld [vmem:[%s338 + $0xc8] sm:$0xff]
        %v3076 = vld [vmem:[%s338 + $0xd0] sm:$0xff]
        %v3077 = vld [vmem:[%s338 + $0xd8] sm:$0xff]
        %v3078 = vld [vmem:[%s338 + $0xe0] sm:$0xff]
        %v3079 = vld [vmem:[%s338 + $0xe8] sm:$0xff]
        %v3080 = vld [vmem:[%s338 + $0xf0] sm:$0xff]
        %v3081 = vld [vmem:[%s338 + $0xf8] sm:$0xff]
        %v3084 = vunpack.c.l.b16 %v3036
        %v3085 = vunpack.c.l.b16 %v3037
        %v3086 = vpack.c.b16 %v3085, %v3084
        %v3120 = vunpack.c.l.b16 %v3050
        %v3121 = vunpack.c.h.b16 %v3050
        %v3122 = vunpack.c.l.b16 %v3051
        %v3123 = vunpack.c.h.b16 %v3051
        %v3124 = vunpack.c.l.b16 %v3052
        %v3125 = vunpack.c.h.b16 %v3052
        %v3126 = vunpack.c.l.b16 %v3053
        %v3127 = vunpack.c.h.b16 %v3053
        %v3128 = vunpack.c.l.b16 %v3054
        %v3129 = vunpack.c.h.b16 %v3054
        %v3130 = vunpack.c.l.b16 %v3055
        %v3131 = vunpack.c.h.b16 %v3055
        %v3132 = vunpack.c.l.b16 %v3056
        %v3133 = vunpack.c.h.b16 %v3056
        %v3134 = vunpack.c.l.b16 %v3057
        %v3135 = vunpack.c.h.b16 %v3057
        %v3136 = vunpack.c.l.b16 %v3058
        %v3137 = vunpack.c.h.b16 %v3058
        %v3138 = vunpack.c.l.b16 %v3059
        %v3139 = vunpack.c.h.b16 %v3059
        %v3140 = vunpack.c.l.b16 %v3060
        %v3141 = vunpack.c.h.b16 %v3060
        %v3142 = vunpack.c.l.b16 %v3061
        %v3143 = vunpack.c.h.b16 %v3061
        %v3144 = vunpack.c.l.b16 %v3062
        %v3145 = vunpack.c.h.b16 %v3062
        %v3146 = vunpack.c.l.b16 %v3063
        %v3147 = vunpack.c.h.b16 %v3063
        %v3148 = vunpack.c.l.b16 %v3064
        %v3149 = vunpack.c.h.b16 %v3064
        %v3150 = vunpack.c.l.b16 %v3065
        %v3151 = vunpack.c.h.b16 %v3065
        %v3152 = vunpack.c.l.b16 %v3066
        %v3153 = vunpack.c.h.b16 %v3066
        %v3154 = vunpack.c.l.b16 %v3067
        %v3155 = vunpack.c.h.b16 %v3067
        %v3156 = vunpack.c.l.b16 %v3068
        %v3157 = vunpack.c.h.b16 %v3068
        %v3158 = vunpack.c.l.b16 %v3069
        %v3159 = vunpack.c.h.b16 %v3069
        %v3160 = vunpack.c.l.b16 %v3070
        %v3161 = vunpack.c.h.b16 %v3070
        %v3162 = vunpack.c.l.b16 %v3071
        %v3163 = vunpack.c.h.b16 %v3071
        %v3164 = vunpack.c.l.b16 %v3072
        %v3165 = vunpack.c.h.b16 %v3072
        %v3166 = vunpack.c.l.b16 %v3073
        %v3167 = vunpack.c.h.b16 %v3073
        %v3168 = vunpack.c.l.b16 %v3074
        %v3169 = vunpack.c.h.b16 %v3074
        %v3170 = vunpack.c.l.b16 %v3075
        %v3171 = vunpack.c.h.b16 %v3075
        %v3172 = vunpack.c.l.b16 %v3076
        %v3173 = vunpack.c.h.b16 %v3076
        %v3174 = vunpack.c.l.b16 %v3077
        %v3175 = vunpack.c.h.b16 %v3077
        %v3176 = vunpack.c.l.b16 %v3078
        %v3177 = vunpack.c.h.b16 %v3078
        %v3178 = vunpack.c.l.b16 %v3079
        %v3179 = vunpack.c.h.b16 %v3079
        %v3180 = vunpack.c.l.b16 %v3080
        %v3181 = vunpack.c.h.b16 %v3080
        %v3182 = vunpack.c.l.b16 %v3081
        %v3183 = vunpack.c.h.b16 %v3081
        %v3184 = vpack.c.b16 %v3124, %v3120
        %v3185 = vpack.c.b16 %v3125, %v3121
        %v3186 = vpack.c.b16 %v3126, %v3122
        %v3187 = vpack.c.b16 %v3127, %v3123
        %v3188 = vpack.c.b16 %v3132, %v3128
        %v3189 = vpack.c.b16 %v3133, %v3129
        %v3190 = vpack.c.b16 %v3134, %v3130
        %v3191 = vpack.c.b16 %v3135, %v3131
        %v3192 = vpack.c.b16 %v3140, %v3136
        %v3193 = vpack.c.b16 %v3141, %v3137
        %v3194 = vpack.c.b16 %v3142, %v3138
        %v3195 = vpack.c.b16 %v3143, %v3139
        %v3196 = vpack.c.b16 %v3148, %v3144
        %v3197 = vpack.c.b16 %v3149, %v3145
        %v3198 = vpack.c.b16 %v3150, %v3146
        %v3199 = vpack.c.b16 %v3151, %v3147
        %v3200 = vpack.c.b16 %v3156, %v3152
        %v3201 = vpack.c.b16 %v3157, %v3153
        %v3202 = vpack.c.b16 %v3158, %v3154
        %v3203 = vpack.c.b16 %v3159, %v3155
        %v3204 = vpack.c.b16 %v3164, %v3160
        %v3205 = vpack.c.b16 %v3165, %v3161
        %v3206 = vpack.c.b16 %v3166, %v3162
        %v3207 = vpack.c.b16 %v3167, %v3163
        %v3208 = vpack.c.b16 %v3172, %v3168
        %v3209 = vpack.c.b16 %v3173, %v3169
        %v3210 = vpack.c.b16 %v3174, %v3170
        %v3211 = vpack.c.b16 %v3175, %v3171
        %v3212 = vpack.c.b16 %v3180, %v3176
        %v3213 = vpack.c.b16 %v3181, %v3177
        %v3214 = vpack.c.b16 %v3182, %v3178
        %v3215 = vpack.c.b16 %v3183, %v3179
        %3248 = vmatpush.bf16.msra.mxu0 %v3212
        %3249 = vmatpush.bf16.msra.mxu0 %v3208
        %3250 = vmatpush.bf16.msra.mxu0 %v3204
        %3251 = vmatpush.bf16.msra.mxu0 %v3200
        %3252 = vmatpush.bf16.msra.mxu0 %v3196
        %3253 = vmatpush.bf16.msra.mxu0 %v3192
        %3254 = vmatpush.bf16.msra.mxu0 %v3188
        %3255 = vmatpush.bf16.msra.mxu0 %v3184
        %3256 = vmatmul.bf16.gmra.mxu0 %v3086
        %v3257 = vpop.f32.mrf.mxu0
        %v3258 = vadd.f32 0.0, %v3257
        %v3259 = vpop.f32.mrf.mxu0
        %v3260 = vadd.f32 0.0, %v3259
        %3261 = vdwg.mxu0
        %3262 = vmatpush.bf16.msra.mxu0 %v3213
        %3263 = vmatpush.bf16.msra.mxu0 %v3209
        %3264 = vmatpush.bf16.msra.mxu0 %v3205
        %3265 = vmatpush.bf16.msra.mxu0 %v3201
        %3266 = vmatpush.bf16.msra.mxu0 %v3197
        %3267 = vmatpush.bf16.msra.mxu0 %v3193
        %3268 = vmatpush.bf16.msra.mxu0 %v3189
        %3269 = vmatpush.bf16.msra.mxu0 %v3185
        %3270 = vmatmul.bf16.gmra.mxu0 %v3086
        %v3271 = vpop.f32.mrf.mxu0
        %v3272 = vadd.f32 0.0, %v3271
        %v3273 = vpop.f32.mrf.mxu0
        %v3274 = vadd.f32 0.0, %v3273
        %3275 = vdwg.mxu0
        %3276 = vmatpush.bf16.msra.mxu0 %v3214
        %3277 = vmatpush.bf16.msra.mxu0 %v3210
        %3278 = vmatpush.bf16.msra.mxu0 %v3206
        %3279 = vmatpush.bf16.msra.mxu0 %v3202
        %3280 = vmatpush.bf16.msra.mxu0 %v3198
        %3281 = vmatpush.bf16.msra.mxu0 %v3194
        %3282 = vmatpush.bf16.msra.mxu0 %v3190
        %3283 = vmatpush.bf16.msra.mxu0 %v3186
        %3284 = vmatmul.bf16.gmra.mxu0 %v3086
        %v3285 = vpop.f32.mrf.mxu0
        %v3286 = vadd.f32 0.0, %v3285
        %v3287 = vpop.f32.mrf.mxu0
        %v3288 = vadd.f32 0.0, %v3287
        %3289 = vdwg.mxu0
        %3290 = vmatpush.bf16.msra.mxu0 %v3215
        %3291 = vmatpush.bf16.msra.mxu0 %v3211
        %3292 = vmatpush.bf16.msra.mxu0 %v3207
        %3293 = vmatpush.bf16.msra.mxu0 %v3203
        %3294 = vmatpush.bf16.msra.mxu0 %v3199
        %3295 = vmatpush.bf16.msra.mxu0 %v3195
        %3296 = vmatpush.bf16.msra.mxu0 %v3191
        %3297 = vmatpush.bf16.msra.mxu0 %v3187
        %3298 = vmatmul.bf16.gmra.mxu0 %v3086
        %v3299 = vpop.f32.mrf.mxu0
        %v3300 = vadd.f32 0.0, %v3299
        %v3301 = vpop.f32.mrf.mxu0
        %v3302 = vadd.f32 0.0, %v3301
        %3303 = vdwg.mxu0
        %v3304 = vadd.f32 %v3042, %v3258
        %v3305 = vadd.f32 %v3043, %v3272
        %v3306 = vadd.f32 %v3044, %v3286
        %v3307 = vadd.f32 %v3045, %v3300
        %v3308 = vadd.f32 %v3046, %v3260
        %v3309 = vadd.f32 %v3047, %v3274
        %v3310 = vadd.f32 %v3048, %v3288
        %v3311 = vadd.f32 %v3049, %v3302
        %v3312 = vmul.f32 %v3304, 0.5
        %v3313 = vmul.f32 %v3308, 0.5
        %v3314 = vtanh.pop %v3312
        %v3315 = vtanh.pop %v3313
        %v3316 = vadd.f32 %v3314, 1.0
        %v3317 = vadd.f32 %v3315, 1.0
        %v3318 = vmul.f32 %v3316, 0.5
        %v3319 = vmul.f32 %v3317, 0.5
        %v3320 = vmul.f32 %v3305, 0.5
        %v3321 = vmul.f32 %v3309, 0.5
        %v3322 = vtanh.pop %v3320
        %v3323 = vtanh.pop %v3321
        %v3324 = vadd.f32 %v3322, 1.0
        %v3325 = vadd.f32 %v3323, 1.0
        %v3326 = vmul.f32 %v3324, 0.5
        %v3327 = vmul.f32 %v3325, 0.5
        %v3328 = vtanh.pop %v3306
        %v3329 = vtanh.pop %v3310
        %v3330 = vmul.f32 %v3307, 0.5
        %v3331 = vmul.f32 %v3311, 0.5
        %v3332 = vtanh.pop %v3330
        %v3333 = vtanh.pop %v3331
        %v3334 = vadd.f32 %v3332, 1.0
        %v3335 = vadd.f32 %v3333, 1.0
        %v3336 = vmul.f32 %v3334, 0.5
        %v3337 = vmul.f32 %v3335, 0.5
        %v3338 = vmul.f32 %v3326, %v3030
        %v3339 = vmul.f32 %v3327, %v3031
        %v3340 = vmul.f32 %v3318, %v3328
        %v3341 = vmul.f32 %v3319, %v3329
        %v3342 = vadd.f32 %v3338, %v3340
        %v3343 = vadd.f32 %v3339, %v3341
        %v3344 = vtanh.pop %v3342
        %v3345 = vtanh.pop %v3343
        %v3346 = vmul.f32 %v3336, %v3344
        %v3347 = vmul.f32 %v3337, %v3345
        %v3348 = vpack.c.bf16 %v3346, %v3346
        %v3349 = vpack.c.bf16 %v3347, %v3347
        %s3350 = scalar_lea.vmem [#allocation2], 40
        %3351 = vst [vmem:[%s3350] sm:$0xf] %v3348
        %3352 = vst [vmem:[%s3350 + $0x4] sm:$0xf] %v3349
        %s3353 = scalar_lea.vmem [#allocation3], 384
        %v3354 = vld [vmem:[%s3353] sm:$0xff]
        %v3355 = vld [vmem:[%s3353 + $0x8] sm:$0xff]
        %v3356 = vld [vmem:[%s3353 + $0x10] sm:$0xff]
        %v3357 = vld [vmem:[%s3353 + $0x18] sm:$0xff]
        %v3358 = vld [vmem:[%s3353 + $0x20] sm:$0xff]
        %v3359 = vld [vmem:[%s3353 + $0x28] sm:$0xff]
        %v3360 = vld [vmem:[%s3353 + $0x30] sm:$0xff]
        %v3361 = vld [vmem:[%s3353 + $0x38] sm:$0xff]
        %v3362 = vld [vmem:[%s338] sm:$0xff]
        %v3363 = vld [vmem:[%s338 + $0x8] sm:$0xff]
        %v3364 = vld [vmem:[%s338 + $0x10] sm:$0xff]
        %v3365 = vld [vmem:[%s338 + $0x18] sm:$0xff]
        %v3366 = vld [vmem:[%s338 + $0x20] sm:$0xff]
        %v3367 = vld [vmem:[%s338 + $0x28] sm:$0xff]
        %v3368 = vld [vmem:[%s338 + $0x30] sm:$0xff]
        %v3369 = vld [vmem:[%s338 + $0x38] sm:$0xff]
        %v3370 = vld [vmem:[%s338 + $0x40] sm:$0xff]
        %v3371 = vld [vmem:[%s338 + $0x48] sm:$0xff]
        %v3372 = vld [vmem:[%s338 + $0x50] sm:$0xff]
        %v3373 = vld [vmem:[%s338 + $0x58] sm:$0xff]
        %v3374 = vld [vmem:[%s338 + $0x60] sm:$0xff]
        %v3375 = vld [vmem:[%s338 + $0x68] sm:$0xff]
        %v3376 = vld [vmem:[%s338 + $0x70] sm:$0xff]
        %v3377 = vld [vmem:[%s338 + $0x78] sm:$0xff]
        %v3378 = vld [vmem:[%s338 + $0x80] sm:$0xff]
        %v3379 = vld [vmem:[%s338 + $0x88] sm:$0xff]
        %v3380 = vld [vmem:[%s338 + $0x90] sm:$0xff]
        %v3381 = vld [vmem:[%s338 + $0x98] sm:$0xff]
        %v3382 = vld [vmem:[%s338 + $0xa0] sm:$0xff]
        %v3383 = vld [vmem:[%s338 + $0xa8] sm:$0xff]
        %v3384 = vld [vmem:[%s338 + $0xb0] sm:$0xff]
        %v3385 = vld [vmem:[%s338 + $0xb8] sm:$0xff]
        %v3386 = vld [vmem:[%s338 + $0xc0] sm:$0xff]
        %v3387 = vld [vmem:[%s338 + $0xc8] sm:$0xff]
        %v3388 = vld [vmem:[%s338 + $0xd0] sm:$0xff]
        %v3389 = vld [vmem:[%s338 + $0xd8] sm:$0xff]
        %v3390 = vld [vmem:[%s338 + $0xe0] sm:$0xff]
        %v3391 = vld [vmem:[%s338 + $0xe8] sm:$0xff]
        %v3392 = vld [vmem:[%s338 + $0xf0] sm:$0xff]
        %v3393 = vld [vmem:[%s338 + $0xf8] sm:$0xff]
        %v3396 = vunpack.c.l.b16 %v3348
        %v3397 = vunpack.c.l.b16 %v3349
        %v3398 = vpack.c.b16 %v3397, %v3396
        %v3432 = vunpack.c.l.b16 %v3362
        %v3433 = vunpack.c.h.b16 %v3362
        %v3434 = vunpack.c.l.b16 %v3363
        %v3435 = vunpack.c.h.b16 %v3363
        %v3436 = vunpack.c.l.b16 %v3364
        %v3437 = vunpack.c.h.b16 %v3364
        %v3438 = vunpack.c.l.b16 %v3365
        %v3439 = vunpack.c.h.b16 %v3365
        %v3440 = vunpack.c.l.b16 %v3366
        %v3441 = vunpack.c.h.b16 %v3366
        %v3442 = vunpack.c.l.b16 %v3367
        %v3443 = vunpack.c.h.b16 %v3367
        %v3444 = vunpack.c.l.b16 %v3368
        %v3445 = vunpack.c.h.b16 %v3368
        %v3446 = vunpack.c.l.b16 %v3369
        %v3447 = vunpack.c.h.b16 %v3369
        %v3448 = vunpack.c.l.b16 %v3370
        %v3449 = vunpack.c.h.b16 %v3370
        %v3450 = vunpack.c.l.b16 %v3371
        %v3451 = vunpack.c.h.b16 %v3371
        %v3452 = vunpack.c.l.b16 %v3372
        %v3453 = vunpack.c.h.b16 %v3372
        %v3454 = vunpack.c.l.b16 %v3373
        %v3455 = vunpack.c.h.b16 %v3373
        %v3456 = vunpack.c.l.b16 %v3374
        %v3457 = vunpack.c.h.b16 %v3374
        %v3458 = vunpack.c.l.b16 %v3375
        %v3459 = vunpack.c.h.b16 %v3375
        %v3460 = vunpack.c.l.b16 %v3376
        %v3461 = vunpack.c.h.b16 %v3376
        %v3462 = vunpack.c.l.b16 %v3377
        %v3463 = vunpack.c.h.b16 %v3377
        %v3464 = vunpack.c.l.b16 %v3378
        %v3465 = vunpack.c.h.b16 %v3378
        %v3466 = vunpack.c.l.b16 %v3379
        %v3467 = vunpack.c.h.b16 %v3379
        %v3468 = vunpack.c.l.b16 %v3380
        %v3469 = vunpack.c.h.b16 %v3380
        %v3470 = vunpack.c.l.b16 %v3381
        %v3471 = vunpack.c.h.b16 %v3381
        %v3472 = vunpack.c.l.b16 %v3382
        %v3473 = vunpack.c.h.b16 %v3382
        %v3474 = vunpack.c.l.b16 %v3383
        %v3475 = vunpack.c.h.b16 %v3383
        %v3476 = vunpack.c.l.b16 %v3384
        %v3477 = vunpack.c.h.b16 %v3384
        %v3478 = vunpack.c.l.b16 %v3385
        %v3479 = vunpack.c.h.b16 %v3385
        %v3480 = vunpack.c.l.b16 %v3386
        %v3481 = vunpack.c.h.b16 %v3386
        %v3482 = vunpack.c.l.b16 %v3387
        %v3483 = vunpack.c.h.b16 %v3387
        %v3484 = vunpack.c.l.b16 %v3388
        %v3485 = vunpack.c.h.b16 %v3388
        %v3486 = vunpack.c.l.b16 %v3389
        %v3487 = vunpack.c.h.b16 %v3389
        %v3488 = vunpack.c.l.b16 %v3390
        %v3489 = vunpack.c.h.b16 %v3390
        %v3490 = vunpack.c.l.b16 %v3391
        %v3491 = vunpack.c.h.b16 %v3391
        %v3492 = vunpack.c.l.b16 %v3392
        %v3493 = vunpack.c.h.b16 %v3392
        %v3494 = vunpack.c.l.b16 %v3393
        %v3495 = vunpack.c.h.b16 %v3393
        %v3496 = vpack.c.b16 %v3436, %v3432
        %v3497 = vpack.c.b16 %v3437, %v3433
        %v3498 = vpack.c.b16 %v3438, %v3434
        %v3499 = vpack.c.b16 %v3439, %v3435
        %v3500 = vpack.c.b16 %v3444, %v3440
        %v3501 = vpack.c.b16 %v3445, %v3441
        %v3502 = vpack.c.b16 %v3446, %v3442
        %v3503 = vpack.c.b16 %v3447, %v3443
        %v3504 = vpack.c.b16 %v3452, %v3448
        %v3505 = vpack.c.b16 %v3453, %v3449
        %v3506 = vpack.c.b16 %v3454, %v3450
        %v3507 = vpack.c.b16 %v3455, %v3451
        %v3508 = vpack.c.b16 %v3460, %v3456
        %v3509 = vpack.c.b16 %v3461, %v3457
        %v3510 = vpack.c.b16 %v3462, %v3458
        %v3511 = vpack.c.b16 %v3463, %v3459
        %v3512 = vpack.c.b16 %v3468, %v3464
        %v3513 = vpack.c.b16 %v3469, %v3465
        %v3514 = vpack.c.b16 %v3470, %v3466
        %v3515 = vpack.c.b16 %v3471, %v3467
        %v3516 = vpack.c.b16 %v3476, %v3472
        %v3517 = vpack.c.b16 %v3477, %v3473
        %v3518 = vpack.c.b16 %v3478, %v3474
        %v3519 = vpack.c.b16 %v3479, %v3475
        %v3520 = vpack.c.b16 %v3484, %v3480
        %v3521 = vpack.c.b16 %v3485, %v3481
        %v3522 = vpack.c.b16 %v3486, %v3482
        %v3523 = vpack.c.b16 %v3487, %v3483
        %v3524 = vpack.c.b16 %v3492, %v3488
        %v3525 = vpack.c.b16 %v3493, %v3489
        %v3526 = vpack.c.b16 %v3494, %v3490
        %v3527 = vpack.c.b16 %v3495, %v3491
        %3560 = vmatpush.bf16.msra.mxu0 %v3524
        %3561 = vmatpush.bf16.msra.mxu0 %v3520
        %3562 = vmatpush.bf16.msra.mxu0 %v3516
        %3563 = vmatpush.bf16.msra.mxu0 %v3512
        %3564 = vmatpush.bf16.msra.mxu0 %v3508
        %3565 = vmatpush.bf16.msra.mxu0 %v3504
        %3566 = vmatpush.bf16.msra.mxu0 %v3500
        %3567 = vmatpush.bf16.msra.mxu0 %v3496
        %3568 = vmatmul.bf16.gmra.mxu0 %v3398
        %v3569 = vpop.f32.mrf.mxu0
        %v3570 = vadd.f32 0.0, %v3569
        %v3571 = vpop.f32.mrf.mxu0
        %v3572 = vadd.f32 0.0, %v3571
        %3573 = vdwg.mxu0
        %3574 = vmatpush.bf16.msra.mxu0 %v3525
        %3575 = vmatpush.bf16.msra.mxu0 %v3521
        %3576 = vmatpush.bf16.msra.mxu0 %v3517
        %3577 = vmatpush.bf16.msra.mxu0 %v3513
        %3578 = vmatpush.bf16.msra.mxu0 %v3509
        %3579 = vmatpush.bf16.msra.mxu0 %v3505
        %3580 = vmatpush.bf16.msra.mxu0 %v3501
        %3581 = vmatpush.bf16.msra.mxu0 %v3497
        %3582 = vmatmul.bf16.gmra.mxu0 %v3398
        %v3583 = vpop.f32.mrf.mxu0
        %v3584 = vadd.f32 0.0, %v3583
        %v3585 = vpop.f32.mrf.mxu0
        %v3586 = vadd.f32 0.0, %v3585
        %3587 = vdwg.mxu0
        %3588 = vmatpush.bf16.msra.mxu0 %v3526
        %3589 = vmatpush.bf16.msra.mxu0 %v3522
        %3590 = vmatpush.bf16.msra.mxu0 %v3518
        %3591 = vmatpush.bf16.msra.mxu0 %v3514
        %3592 = vmatpush.bf16.msra.mxu0 %v3510
        %3593 = vmatpush.bf16.msra.mxu0 %v3506
        %3594 = vmatpush.bf16.msra.mxu0 %v3502
        %3595 = vmatpush.bf16.msra.mxu0 %v3498
        %3596 = vmatmul.bf16.gmra.mxu0 %v3398
        %v3597 = vpop.f32.mrf.mxu0
        %v3598 = vadd.f32 0.0, %v3597
        %v3599 = vpop.f32.mrf.mxu0
        %v3600 = vadd.f32 0.0, %v3599
        %3601 = vdwg.mxu0
        %3602 = vmatpush.bf16.msra.mxu0 %v3527
        %3603 = vmatpush.bf16.msra.mxu0 %v3523
        %3604 = vmatpush.bf16.msra.mxu0 %v3519
        %3605 = vmatpush.bf16.msra.mxu0 %v3515
        %3606 = vmatpush.bf16.msra.mxu0 %v3511
        %3607 = vmatpush.bf16.msra.mxu0 %v3507
        %3608 = vmatpush.bf16.msra.mxu0 %v3503
        %3609 = vmatpush.bf16.msra.mxu0 %v3499
        %3610 = vmatmul.bf16.gmra.mxu0 %v3398
        %v3611 = vpop.f32.mrf.mxu0
        %v3612 = vadd.f32 0.0, %v3611
        %v3613 = vpop.f32.mrf.mxu0
        %v3614 = vadd.f32 0.0, %v3613
        %3615 = vdwg.mxu0
        %v3616 = vadd.f32 %v3354, %v3570
        %v3617 = vadd.f32 %v3355, %v3584
        %v3618 = vadd.f32 %v3356, %v3598
        %v3619 = vadd.f32 %v3357, %v3612
        %v3620 = vadd.f32 %v3358, %v3572
        %v3621 = vadd.f32 %v3359, %v3586
        %v3622 = vadd.f32 %v3360, %v3600
        %v3623 = vadd.f32 %v3361, %v3614
        %v3624 = vmul.f32 %v3616, 0.5
        %v3625 = vmul.f32 %v3620, 0.5
        %v3626 = vtanh.pop %v3624
        %v3627 = vtanh.pop %v3625
        %v3628 = vadd.f32 %v3626, 1.0
        %v3629 = vadd.f32 %v3627, 1.0
        %v3630 = vmul.f32 %v3628, 0.5
        %v3631 = vmul.f32 %v3629, 0.5
        %v3632 = vmul.f32 %v3617, 0.5
        %v3633 = vmul.f32 %v3621, 0.5
        %v3634 = vtanh.pop %v3632
        %v3635 = vtanh.pop %v3633
        %v3636 = vadd.f32 %v3634, 1.0
        %v3637 = vadd.f32 %v3635, 1.0
        %v3638 = vmul.f32 %v3636, 0.5
        %v3639 = vmul.f32 %v3637, 0.5
        %v3640 = vtanh.pop %v3618
        %v3641 = vtanh.pop %v3622
        %v3642 = vmul.f32 %v3619, 0.5
        %v3643 = vmul.f32 %v3623, 0.5
        %v3644 = vtanh.pop %v3642
        %v3645 = vtanh.pop %v3643
        %v3646 = vadd.f32 %v3644, 1.0
        %v3647 = vadd.f32 %v3645, 1.0
        %v3648 = vmul.f32 %v3646, 0.5
        %v3649 = vmul.f32 %v3647, 0.5
        %v3650 = vmul.f32 %v3638, %v3342
        %v3651 = vmul.f32 %v3639, %v3343
        %v3652 = vmul.f32 %v3630, %v3640
        %v3653 = vmul.f32 %v3631, %v3641
        %v3654 = vadd.f32 %v3650, %v3652
        %v3655 = vadd.f32 %v3651, %v3653
        %v3656 = vtanh.pop %v3654
        %v3657 = vtanh.pop %v3655
        %v3658 = vmul.f32 %v3648, %v3656
        %v3659 = vmul.f32 %v3649, %v3657
        %v3660 = vpack.c.bf16 %v3658, %v3658
        %v3661 = vpack.c.bf16 %v3659, %v3659
        %s3662 = scalar_lea.vmem [#allocation2], 48
        %3663 = vst [vmem:[%s3662] sm:$0xf] %v3660
        %3664 = vst [vmem:[%s3662 + $0x4] sm:$0xf] %v3661
        %s3665 = scalar_lea.vmem [#allocation3], 448
        %v3666 = vld [vmem:[%s3665] sm:$0xff]
        %v3667 = vld [vmem:[%s3665 + $0x8] sm:$0xff]
        %v3668 = vld [vmem:[%s3665 + $0x10] sm:$0xff]
        %v3669 = vld [vmem:[%s3665 + $0x18] sm:$0xff]
        %v3670 = vld [vmem:[%s3665 + $0x20] sm:$0xff]
        %v3671 = vld [vmem:[%s3665 + $0x28] sm:$0xff]
        %v3672 = vld [vmem:[%s3665 + $0x30] sm:$0xff]
        %v3673 = vld [vmem:[%s3665 + $0x38] sm:$0xff]
        %v3674 = vld [vmem:[%s338] sm:$0xff]
        %v3675 = vld [vmem:[%s338 + $0x8] sm:$0xff]
        %v3676 = vld [vmem:[%s338 + $0x10] sm:$0xff]
        %v3677 = vld [vmem:[%s338 + $0x18] sm:$0xff]
        %v3678 = vld [vmem:[%s338 + $0x20] sm:$0xff]
        %v3679 = vld [vmem:[%s338 + $0x28] sm:$0xff]
        %v3680 = vld [vmem:[%s338 + $0x30] sm:$0xff]
        %v3681 = vld [vmem:[%s338 + $0x38] sm:$0xff]
        %v3682 = vld [vmem:[%s338 + $0x40] sm:$0xff]
        %v3683 = vld [vmem:[%s338 + $0x48] sm:$0xff]
        %v3684 = vld [vmem:[%s338 + $0x50] sm:$0xff]
        %v3685 = vld [vmem:[%s338 + $0x58] sm:$0xff]
        %v3686 = vld [vmem:[%s338 + $0x60] sm:$0xff]
        %v3687 = vld [vmem:[%s338 + $0x68] sm:$0xff]
        %v3688 = vld [vmem:[%s338 + $0x70] sm:$0xff]
        %v3689 = vld [vmem:[%s338 + $0x78] sm:$0xff]
        %v3690 = vld [vmem:[%s338 + $0x80] sm:$0xff]
        %v3691 = vld [vmem:[%s338 + $0x88] sm:$0xff]
        %v3692 = vld [vmem:[%s338 + $0x90] sm:$0xff]
        %v3693 = vld [vmem:[%s338 + $0x98] sm:$0xff]
        %v3694 = vld [vmem:[%s338 + $0xa0] sm:$0xff]
        %v3695 = vld [vmem:[%s338 + $0xa8] sm:$0xff]
        %v3696 = vld [vmem:[%s338 + $0xb0] sm:$0xff]
        %v3697 = vld [vmem:[%s338 + $0xb8] sm:$0xff]
        %v3698 = vld [vmem:[%s338 + $0xc0] sm:$0xff]
        %v3699 = vld [vmem:[%s338 + $0xc8] sm:$0xff]
        %v3700 = vld [vmem:[%s338 + $0xd0] sm:$0xff]
        %v3701 = vld [vmem:[%s338 + $0xd8] sm:$0xff]
        %v3702 = vld [vmem:[%s338 + $0xe0] sm:$0xff]
        %v3703 = vld [vmem:[%s338 + $0xe8] sm:$0xff]
        %v3704 = vld [vmem:[%s338 + $0xf0] sm:$0xff]
        %v3705 = vld [vmem:[%s338 + $0xf8] sm:$0xff]
        %v3708 = vunpack.c.l.b16 %v3660
        %v3709 = vunpack.c.l.b16 %v3661
        %v3710 = vpack.c.b16 %v3709, %v3708
        %v3744 = vunpack.c.l.b16 %v3674
        %v3745 = vunpack.c.h.b16 %v3674
        %v3746 = vunpack.c.l.b16 %v3675
        %v3747 = vunpack.c.h.b16 %v3675
        %v3748 = vunpack.c.l.b16 %v3676
        %v3749 = vunpack.c.h.b16 %v3676
        %v3750 = vunpack.c.l.b16 %v3677
        %v3751 = vunpack.c.h.b16 %v3677
        %v3752 = vunpack.c.l.b16 %v3678
        %v3753 = vunpack.c.h.b16 %v3678
        %v3754 = vunpack.c.l.b16 %v3679
        %v3755 = vunpack.c.h.b16 %v3679
        %v3756 = vunpack.c.l.b16 %v3680
        %v3757 = vunpack.c.h.b16 %v3680
        %v3758 = vunpack.c.l.b16 %v3681
        %v3759 = vunpack.c.h.b16 %v3681
        %v3760 = vunpack.c.l.b16 %v3682
        %v3761 = vunpack.c.h.b16 %v3682
        %v3762 = vunpack.c.l.b16 %v3683
        %v3763 = vunpack.c.h.b16 %v3683
        %v3764 = vunpack.c.l.b16 %v3684
        %v3765 = vunpack.c.h.b16 %v3684
        %v3766 = vunpack.c.l.b16 %v3685
        %v3767 = vunpack.c.h.b16 %v3685
        %v3768 = vunpack.c.l.b16 %v3686
        %v3769 = vunpack.c.h.b16 %v3686
        %v3770 = vunpack.c.l.b16 %v3687
        %v3771 = vunpack.c.h.b16 %v3687
        %v3772 = vunpack.c.l.b16 %v3688
        %v3773 = vunpack.c.h.b16 %v3688
        %v3774 = vunpack.c.l.b16 %v3689
        %v3775 = vunpack.c.h.b16 %v3689
        %v3776 = vunpack.c.l.b16 %v3690
        %v3777 = vunpack.c.h.b16 %v3690
        %v3778 = vunpack.c.l.b16 %v3691
        %v3779 = vunpack.c.h.b16 %v3691
        %v3780 = vunpack.c.l.b16 %v3692
        %v3781 = vunpack.c.h.b16 %v3692
        %v3782 = vunpack.c.l.b16 %v3693
        %v3783 = vunpack.c.h.b16 %v3693
        %v3784 = vunpack.c.l.b16 %v3694
        %v3785 = vunpack.c.h.b16 %v3694
        %v3786 = vunpack.c.l.b16 %v3695
        %v3787 = vunpack.c.h.b16 %v3695
        %v3788 = vunpack.c.l.b16 %v3696
        %v3789 = vunpack.c.h.b16 %v3696
        %v3790 = vunpack.c.l.b16 %v3697
        %v3791 = vunpack.c.h.b16 %v3697
        %v3792 = vunpack.c.l.b16 %v3698
        %v3793 = vunpack.c.h.b16 %v3698
        %v3794 = vunpack.c.l.b16 %v3699
        %v3795 = vunpack.c.h.b16 %v3699
        %v3796 = vunpack.c.l.b16 %v3700
        %v3797 = vunpack.c.h.b16 %v3700
        %v3798 = vunpack.c.l.b16 %v3701
        %v3799 = vunpack.c.h.b16 %v3701
        %v3800 = vunpack.c.l.b16 %v3702
        %v3801 = vunpack.c.h.b16 %v3702
        %v3802 = vunpack.c.l.b16 %v3703
        %v3803 = vunpack.c.h.b16 %v3703
        %v3804 = vunpack.c.l.b16 %v3704
        %v3805 = vunpack.c.h.b16 %v3704
        %v3806 = vunpack.c.l.b16 %v3705
        %v3807 = vunpack.c.h.b16 %v3705
        %v3808 = vpack.c.b16 %v3748, %v3744
        %v3809 = vpack.c.b16 %v3749, %v3745
        %v3810 = vpack.c.b16 %v3750, %v3746
        %v3811 = vpack.c.b16 %v3751, %v3747
        %v3812 = vpack.c.b16 %v3756, %v3752
        %v3813 = vpack.c.b16 %v3757, %v3753
        %v3814 = vpack.c.b16 %v3758, %v3754
        %v3815 = vpack.c.b16 %v3759, %v3755
        %v3816 = vpack.c.b16 %v3764, %v3760
        %v3817 = vpack.c.b16 %v3765, %v3761
        %v3818 = vpack.c.b16 %v3766, %v3762
        %v3819 = vpack.c.b16 %v3767, %v3763
        %v3820 = vpack.c.b16 %v3772, %v3768
        %v3821 = vpack.c.b16 %v3773, %v3769
        %v3822 = vpack.c.b16 %v3774, %v3770
        %v3823 = vpack.c.b16 %v3775, %v3771
        %v3824 = vpack.c.b16 %v3780, %v3776
        %v3825 = vpack.c.b16 %v3781, %v3777
        %v3826 = vpack.c.b16 %v3782, %v3778
        %v3827 = vpack.c.b16 %v3783, %v3779
        %v3828 = vpack.c.b16 %v3788, %v3784
        %v3829 = vpack.c.b16 %v3789, %v3785
        %v3830 = vpack.c.b16 %v3790, %v3786
        %v3831 = vpack.c.b16 %v3791, %v3787
        %v3832 = vpack.c.b16 %v3796, %v3792
        %v3833 = vpack.c.b16 %v3797, %v3793
        %v3834 = vpack.c.b16 %v3798, %v3794
        %v3835 = vpack.c.b16 %v3799, %v3795
        %v3836 = vpack.c.b16 %v3804, %v3800
        %v3837 = vpack.c.b16 %v3805, %v3801
        %v3838 = vpack.c.b16 %v3806, %v3802
        %v3839 = vpack.c.b16 %v3807, %v3803
        %3872 = vmatpush.bf16.msra.mxu0 %v3836
        %3873 = vmatpush.bf16.msra.mxu0 %v3832
        %3874 = vmatpush.bf16.msra.mxu0 %v3828
        %3875 = vmatpush.bf16.msra.mxu0 %v3824
        %3876 = vmatpush.bf16.msra.mxu0 %v3820
        %3877 = vmatpush.bf16.msra.mxu0 %v3816
        %3878 = vmatpush.bf16.msra.mxu0 %v3812
        %3879 = vmatpush.bf16.msra.mxu0 %v3808
        %3880 = vmatmul.bf16.gmra.mxu0 %v3710
        %v3881 = vpop.f32.mrf.mxu0
        %v3882 = vadd.f32 0.0, %v3881
        %v3883 = vpop.f32.mrf.mxu0
        %v3884 = vadd.f32 0.0, %v3883
        %3885 = vdwg.mxu0
        %3886 = vmatpush.bf16.msra.mxu0 %v3837
        %3887 = vmatpush.bf16.msra.mxu0 %v3833
        %3888 = vmatpush.bf16.msra.mxu0 %v3829
        %3889 = vmatpush.bf16.msra.mxu0 %v3825
        %3890 = vmatpush.bf16.msra.mxu0 %v3821
        %3891 = vmatpush.bf16.msra.mxu0 %v3817
        %3892 = vmatpush.bf16.msra.mxu0 %v3813
        %3893 = vmatpush.bf16.msra.mxu0 %v3809
        %3894 = vmatmul.bf16.gmra.mxu0 %v3710
        %v3895 = vpop.f32.mrf.mxu0
        %v3896 = vadd.f32 0.0, %v3895
        %v3897 = vpop.f32.mrf.mxu0
        %v3898 = vadd.f32 0.0, %v3897
        %3899 = vdwg.mxu0
        %3900 = vmatpush.bf16.msra.mxu0 %v3838
        %3901 = vmatpush.bf16.msra.mxu0 %v3834
        %3902 = vmatpush.bf16.msra.mxu0 %v3830
        %3903 = vmatpush.bf16.msra.mxu0 %v3826
        %3904 = vmatpush.bf16.msra.mxu0 %v3822
        %3905 = vmatpush.bf16.msra.mxu0 %v3818
        %3906 = vmatpush.bf16.msra.mxu0 %v3814
        %3907 = vmatpush.bf16.msra.mxu0 %v3810
        %3908 = vmatmul.bf16.gmra.mxu0 %v3710
        %v3909 = vpop.f32.mrf.mxu0
        %v3910 = vadd.f32 0.0, %v3909
        %v3911 = vpop.f32.mrf.mxu0
        %v3912 = vadd.f32 0.0, %v3911
        %3913 = vdwg.mxu0
        %3914 = vmatpush.bf16.msra.mxu0 %v3839
        %3915 = vmatpush.bf16.msra.mxu0 %v3835
        %3916 = vmatpush.bf16.msra.mxu0 %v3831
        %3917 = vmatpush.bf16.msra.mxu0 %v3827
        %3918 = vmatpush.bf16.msra.mxu0 %v3823
        %3919 = vmatpush.bf16.msra.mxu0 %v3819
        %3920 = vmatpush.bf16.msra.mxu0 %v3815
        %3921 = vmatpush.bf16.msra.mxu0 %v3811
        %3922 = vmatmul.bf16.gmra.mxu0 %v3710
        %v3923 = vpop.f32.mrf.mxu0
        %v3924 = vadd.f32 0.0, %v3923
        %v3925 = vpop.f32.mrf.mxu0
        %v3926 = vadd.f32 0.0, %v3925
        %3927 = vdwg.mxu0
        %v3928 = vadd.f32 %v3666, %v3882
        %v3929 = vadd.f32 %v3667, %v3896
        %v3930 = vadd.f32 %v3668, %v3910
        %v3931 = vadd.f32 %v3669, %v3924
        %v3932 = vadd.f32 %v3670, %v3884
        %v3933 = vadd.f32 %v3671, %v3898
        %v3934 = vadd.f32 %v3672, %v3912
        %v3935 = vadd.f32 %v3673, %v3926
        %v3936 = vmul.f32 %v3928, 0.5
        %v3937 = vmul.f32 %v3932, 0.5
        %v3938 = vtanh.pop %v3936
        %v3939 = vtanh.pop %v3937
        %v3940 = vadd.f32 %v3938, 1.0
        %v3941 = vadd.f32 %v3939, 1.0
        %v3942 = vmul.f32 %v3940, 0.5
        %v3943 = vmul.f32 %v3941, 0.5
        %v3944 = vmul.f32 %v3929, 0.5
        %v3945 = vmul.f32 %v3933, 0.5
        %v3946 = vtanh.pop %v3944
        %v3947 = vtanh.pop %v3945
        %v3948 = vadd.f32 %v3946, 1.0
        %v3949 = vadd.f32 %v3947, 1.0
        %v3950 = vmul.f32 %v3948, 0.5
        %v3951 = vmul.f32 %v3949, 0.5
        %v3952 = vtanh.pop %v3930
        %v3953 = vtanh.pop %v3934
        %v3954 = vmul.f32 %v3931, 0.5
        %v3955 = vmul.f32 %v3935, 0.5
        %v3956 = vtanh.pop %v3954
        %v3957 = vtanh.pop %v3955
        %v3958 = vadd.f32 %v3956, 1.0
        %v3959 = vadd.f32 %v3957, 1.0
        %v3960 = vmul.f32 %v3958, 0.5
        %v3961 = vmul.f32 %v3959, 0.5
        %v3962 = vmul.f32 %v3950, %v3654
        %v3963 = vmul.f32 %v3951, %v3655
        %v3964 = vmul.f32 %v3942, %v3952
        %v3965 = vmul.f32 %v3943, %v3953
        %v3966 = vadd.f32 %v3962, %v3964
        %v3967 = vadd.f32 %v3963, %v3965
        %v3968 = vtanh.pop %v3966
        %v3969 = vtanh.pop %v3967
        %v3970 = vmul.f32 %v3960, %v3968
        %v3971 = vmul.f32 %v3961, %v3969
        %v3972 = vpack.c.bf16 %v3970, %v3970
        %v3973 = vpack.c.bf16 %v3971, %v3971
        %s3974 = scalar_lea.vmem [#allocation2], 56
        %3975 = vst [vmem:[%s3974] sm:$0xf] %v3972
        %3976 = vst [vmem:[%s3974 + $0x4] sm:$0xf] %v3973
        %3977 = vst [vmem:[%s416] sm:$0xff] %v3970
        %3978 = vst [vmem:[%s416 + $0x8] sm:$0xff] %v3971
        %3979 = vst [vmem:[%s426] sm:$0xff] %v3966
        %3980 = vst [vmem:[%s426 + $0x8] sm:$0xff] %v3967
        %s3981 = smul.u32 2, %s26
        %p3982 = scmp.lt.s32.totalorder %s27, 1
        %s3983 = scalar_select %p3982, %s27, 1
        %p3984 = scmp.lt.s32.totalorder %s3981, 1
        %s3985 = scalar_select %p3984, %s3981, 1
        %s3986 = smul.addr %s3983, 2
        %s3987 = sadd.s32 %s3985, %s3986
        %s3988 = smul.addr %s3987, 8
        %s3989 = scalar_lea.vmem %s5, %s3988
        %s3990 = smul.u32 2, %s26
        %p3991 = scmp.lt.s32.totalorder %s27, 1
        %s3992 = scalar_select %p3991, %s27, 1
        %p3993 = scmp.lt.s32.totalorder %s3990, 1
        %s3994 = scalar_select %p3993, %s3990, 1
        %s3995 = smul.addr %s3992, 2
        %s3996 = sadd.s32 %s3994, %s3995
        %s3997 = smul.addr %s3996, 8
        %s3998 = scalar_lea.vmem %s6, %s3997
        // Predicated region
        $region61: #{encoder_forward.1} parent=39 // pred_check
          %p3999 = pneg %p185
        $region62: #{encoder_forward.1} parent=39 // pred_check_branch
          %4001 = sbr.rel (%p3999) target = $region64
        $region63: #{encoder_forward.1} parent=39 // pred_region
          %s4002 = smul.u32 2, %s26
        $region64: #{encoder_forward.1} parent=39 // pred_fallthru
          _
        // Predicated region
        $region65: #{encoder_forward.1} parent=39 // pred_check
          %p4003 = pneg %p213
        $region66: #{encoder_forward.1} parent=39 // pred_check_branch
          %4005 = sbr.rel (%p4003) target = $region68
        $region67: #{encoder_forward.1} parent=39 // pred_region
          %s4006 = smul.u32 2, %s26
        $region68: #{encoder_forward.1} parent=39 // pred_fallthru
          _
      $region40: #{encoder_forward.1} parent=5 // pred_fallthru
        _
      %p4007 = scmp.le.s32.totalorder 2, %s17
      // Predicated region
      $region69: #{encoder_forward.1} parent=5 // pred_check
        %p4008 = pneg %p4007
      $region70: #{encoder_forward.1} parent=5 // pred_check_branch
        %4010 = sbr.rel (%p4008) target = $region72
      $region71: #{encoder_forward.1} parent=5 // pred_region
        %s4011 = ssub.s32 %s17, 2
        // Predicated region
        $region73: #{encoder_forward.1} parent=71 // pred_check
          %p4012 = pneg %p191
        $region74: #{encoder_forward.1} parent=71 // pred_check_branch
          %4014 = sbr.rel (%p4012) target = $region76
        $region75: #{encoder_forward.1} parent=71 // pred_region
          %s4015 = smul.u32 2, %s28
          %p4016 = scmp.lt.s32.totalorder %s29, 1
          %s4017 = scalar_select %p4016, %s29, 1
          %p4018 = scmp.lt.s32.totalorder %s4015, 1
          %s4019 = scalar_select %p4018, %s4015, 1
          %s4020 = smul.addr %s4017, 2
          %s4021 = sadd.s32 %s4019, %s4020
          %s4022 = smul.addr %s4021, 8
          %s4023 = scalar_lea.vmem %s5, %s4022
        $region76: #{encoder_forward.1} parent=71 // pred_fallthru
          _
        // Predicated region
        $region77: #{encoder_forward.1} parent=71 // pred_check
          %p4024 = pneg %p219
        $region78: #{encoder_forward.1} parent=71 // pred_check_branch
          %4026 = sbr.rel (%p4024) target = $region80
        $region79: #{encoder_forward.1} parent=71 // pred_region
          %s4027 = smul.u32 2, %s28
          %p4028 = scmp.lt.s32.totalorder %s29, 1
          %s4029 = scalar_select %p4028, %s29, 1
          %p4030 = scmp.lt.s32.totalorder %s4027, 1
          %s4031 = scalar_select %p4030, %s4027, 1
          %s4032 = smul.addr %s4029, 2
          %s4033 = sadd.s32 %s4031, %s4032
          %s4034 = smul.addr %s4033, 8
          %s4035 = scalar_lea.vmem %s6, %s4034
        $region80: #{encoder_forward.1} parent=71 // pred_fallthru
          _
      $region72: #{encoder_forward.1} parent=5 // pred_fallthru
        _
    $region6: #{encoder_forward.1} parent=1 // loop_footer
      %s21 = sadd.s32 1, %s17
    $region7: #{encoder_forward.1} parent=1 // loop_footer_branch
      %16 = sbr.rel target = $region3
    $region8: #{encoder_forward.1} parent=1 // loop_exit
      _
    %4036 = vsyncpa [#allocation5], 1
    %s4037 = scalar_lea.sflag [#allocation5], 1
    %4038 = vsyncpa %s4037, 1
    %4039 = vsyncpa [#allocation7], 1
    %s4040 = scalar_lea.sflag [#allocation7], 1
    %4041 = vsyncpa %s4040, 1

// kernel: encoder_forward.1
$region0: #{encoder_forward.1}
  #allocation0 [shape = 'u32[]', space=smem, size = 0x4, offset = 0x4, fixed_abs, tag = 'smem constant byte address 0x4 - core index']
  #allocation1 [shape = 'u32[72,128]{1,0:T(1,128)}', space=vmem, size = 0x9000, scoped, tag = 'internal scratch']
  #allocation2 [shape = 'bf16[8,16,128]{2,1,0:T(8,128)(2,1)}', space=vmem, size = 0x8000, scoped, tag = 'scratch operand']
  #allocation3 [shape = 'f32[1,8,16,512]{3,2,1,0:T(8,128)}', space=vmem, size = 0x40000, scoped, tag = 'scratch operand']
  %s0 = inlined_call_operand.vmem [shape: bf16[8,16,128], index: 0, kind: input, shape index: {}]
  %s1 = inlined_call_operand.hbm [shape: bf16[128,512], index: 1, kind: input, shape index: {}]
  %s2 = inlined_call_operand.vmem [shape: f32[2,1,512], index: 2, kind: input, shape index: {}]
  %s3 = inlined_call_operand.hbm [shape: bf16[1,128,512], index: 3, kind: input, shape index: {}]
  %s4 = inlined_call_operand.hbm [shape: bf16[2,128,512], index: 4, kind: input, shape index: {}]
  %s5 = inlined_call_operand.vmem [shape: f32[2,16,128], index: 5, kind: output, shape index: {0}]
  %s6 = inlined_call_operand.vmem [shape: f32[2,16,128], index: 6, kind: output, shape index: {1}]
  %7 = xla_tuple %s5, %s6
  %s8 = sld [smem:[#allocation0]]
  $region81: #{encoder_forward.1} parent=0
    _
  %s10 = ssub.s32 1, %s8
  %s11 = scalar_select 0, %s10, %s8
  $region1: #{encoder_forward.1} parent=0
    #allocation4 [shape = 'u8[131072]{0}', space=vmem, size = 0x20000, scoped, tag = 'input window, operand 1, single buffered']
    #allocation5 [shape = 's32[2]{0}', space=sflag, size = 0x8, scoped, tag = 'scoped memory for encoder_forward.1']
    #allocation6 [shape = 'u8[262144]{0}', space=vmem, size = 0x40000, scoped, tag = 'input window, operand 3']
    #allocation7 [shape = 's32[2]{0}', space=sflag, size = 0x8, scoped, tag = 'scoped memory for encoder_forward.1']
    #allocation8 [shape = 'u8[262144]{0}', space=vmem, size = 0x40000, scoped, tag = 'input window, operand 4']
    %12 = vsyncpa [#allocation5], 0
    %13 = vsyncpa [#allocation7], 0
    %s14 = scalar_lea.sflag [#allocation7], 1
    %15 = vsyncpa %s14, 0
    loop: start=0, step=1, limit=4
    $region2: #{encoder_forward.1} parent=1 // loop_pre_header
      _
    $region3: #{encoder_forward.1} parent=1 // loop_header
      %s17 = sphi 0, %s21
      %p18 = scmp.ge.s32.totalorder %s17, 4
      %s24 = sphi 0, %s36
      %s25 = sphi 0, %s32
      %s26 = sphi 0, %s24
      %s27 = sphi 0, %s25
      %s28 = sphi 0, %s26
      %s29 = sphi 0, %s27
      %s39 = sphi 0, %s41
      %s42 = sphi 0, %s39
      %s43 = sphi 0, %s42
      %s59 = sphi 0, %s43
      %s63 = sphi 0, %s63
      %s65 = sphi 0, %s63
      %s66 = sphi 0, %s65
      %s80 = sphi 0, %s66
      %s86 = sphi 0, %s88
      %s89 = sphi 0, %s86
      %s90 = sphi 0, %s89
      %s106 = sphi 0, %s90
      %s118 = sphi 0, %s120
      %s121 = sphi 0, %s118
      %s122 = sphi 0, %s121
      %s138 = sphi 0, %s122
      %s144 = sphi 0, %s146
      %s147 = sphi 0, %s144
      %s148 = sphi 0, %s147
      %s164 = sphi 0, %s148
      %s172 = sphi 0, %s174
      %s175 = sphi 0, %s172
      %s176 = sphi 0, %s175
      %s192 = sphi 0, %s176
      %s200 = sphi 0, %s202
      %s203 = sphi 0, %s200
      %s204 = sphi 0, %s203
      %s220 = sphi 0, %s204
    $region4: #{encoder_forward.1} parent=1 // loop_header_branch
      %20 = sbr.rel (%p18) target = $region8
    $region5: #{encoder_forward.1} parent=1 // loop_body
      %s22 = ssub.s32 %s17, 1
      %s23 = ssub.s32 %s17, 2
      %s30 = sadd.s32 1, %s25
      %p31 = scmp.ge.s32.totalorder %s30, 2
      %s32 = scalar_select %p31, 0, %s30
      %s33 = sadd.s32 1, %s24
      %s34 = scalar_select %p31, %s33, %s24
      %p35 = scmp.ge.s32.totalorder %s34, 1
      %s36 = scalar_select %p35, 0, %s34
      %s37 = ssub.s32 %s24, %s36
      %p38 = scmp.eq.s32.totalorder %s37, 0
      %s40 = sadd.s32 %s39, 1
      %s41 = scalar_select %p38, %s39, %s40
      %p44 = pneg %p38
      %p45 = scmp.eq.s32.totalorder %s17, 1
      %p46 = por %p44, %p45
      %p47 = scmp.ne.s32.totalorder %s39, %s42
      %p48 = scmp.eq.s32.totalorder %s17, 0
      %p49 = por %p47, %p48
      %p50 = scmp.ne.s32.totalorder %s39, %s42
      %p51 = scmp.eq.s32.totalorder %s22, 1
      %p52 = por %p50, %p51
      %p53 = scmp.ne.s32.totalorder %s42, %s43
      %p54 = scmp.eq.s32.totalorder %s22, 0
      %p55 = por %p53, %p54
      %p56 = scmp.ne.s32.totalorder %s42, %s43
      %p57 = scmp.eq.s32.totalorder %s23, 1
      %p58 = por %p56, %p57
      %p60 = scmp.ne.s32.totalorder %s43, %s59
      %p61 = scmp.eq.s32.totalorder %s23, 0
      %p62 = por %p60, %p61
      %s64 = sadd.s32 %s63, 1
      %p67 = scmp.eq.s32.totalorder %s17, 1
      %p68 = scmp.ne.s32.totalorder %s63, %s65
      %p69 = scmp.eq.s32.totalorder %s17, 0
      %p70 = por %p68, %p69
      %p71 = scmp.ne.s32.totalorder %s63, %s65
      %p72 = scmp.eq.s32.totalorder %s22, 1
      %p73 = por %p71, %p72
      %p74 = scmp.ne.s32.totalorder %s65, %s66
      %p75 = scmp.eq.s32.totalorder %s22, 0
      %p76 = por %p74, %p75
      %p77 = scmp.ne.s32.totalorder %s65, %s66
      %p78 = scmp.eq.s32.totalorder %s23, 1
      %p79 = por %p77, %p78
      %p81 = scmp.ne.s32.totalorder %s66, %s80
      %p82 = scmp.eq.s32.totalorder %s23, 0
      %p83 = por %p81, %p82
      %s84 = ssub.s32 %s25, %s32
      %p85 = scmp.eq.s32.totalorder %s84, 0
      %s87 = sadd.s32 %s86, 1
      %s88 = scalar_select %p85, %s86, %s87
      %p91 = pneg %p85
      %p92 = scmp.eq.s32.totalorder %s17, 1
      %p93 = por %p91, %p92
      %p94 = scmp.ne.s32.totalorder %s86, %s89
      %p95 = scmp.eq.s32.totalorder %s17, 0
      %p96 = por %p94, %p95
      %p97 = scmp.ne.s32.totalorder %s86, %s89
      %p98 = scmp.eq.s32.totalorder %s22, 1
      %p99 = por %p97, %p98
      %p100 = scmp.ne.s32.totalorder %s89, %s90
      %p101 = scmp.eq.s32.totalorder %s22, 0
      %p102 = por %p100, %p101
      %p103 = scmp.ne.s32.totalorder %s89, %s90
      %p104 = scmp.eq.s32.totalorder %s23, 1
      %p105 = por %p103, %p104
      %p107 = scmp.ne.s32.totalorder %s90, %s106
      %p108 = scmp.eq.s32.totalorder %s23, 0
      %p109 = por %p107, %p108
      %s110 = ssub.s32 %s25, 1
      %p111 = scmp.gt.s32.totalorder %s110, 0
      %s112 = scalar_select %p111, %s110, 0
      %s113 = ssub.s32 %s32, 1
      %p114 = scmp.gt.s32.totalorder %s113, 0
      %s115 = scalar_select %p114, %s113, 0
      %s116 = ssub.s32 %s112, %s115
      %p117 = scmp.eq.s32.totalorder %s116, 0
      %s119 = sadd.s32 %s118, 1
      %s120 = scalar_select %p117, %s118, %s119
      %p123 = pneg %p117
      %p124 = scmp.eq.s32.totalorder %s17, 1
      %p125 = por %p123, %p124
      %p126 = scmp.ne.s32.totalorder %s118, %s121
      %p127 = scmp.eq.s32.totalorder %s17, 0
      %p128 = por %p126, %p127
      %p129 = scmp.ne.s32.totalorder %s118, %s121
      %p130 = scmp.eq.s32.totalorder %s22, 1
      %p131 = por %p129, %p130
      %p132 = scmp.ne.s32.totalorder %s121, %s122
      %p133 = scmp.eq.s32.totalorder %s22, 0
      %p134 = por %p132, %p133
      %p135 = scmp.ne.s32.totalorder %s121, %s122
      %p136 = scmp.eq.s32.totalorder %s23, 1
      %p137 = por %p135, %p136
      %p139 = scmp.ne.s32.totalorder %s122, %s138
      %p140 = scmp.eq.s32.totalorder %s23, 0
      %p141 = por %p139, %p140
      %s142 = ssub.s32 %s25, %s32
      %p143 = scmp.eq.s32.totalorder %s142, 0
      %s145 = sadd.s32 %s144, 1
      %s146 = scalar_select %p143, %s144, %s145
      %p149 = pneg %p143
      %p150 = scmp.eq.s32.totalorder %s17, 1
      %p151 = por %p149, %p150
      %p152 = scmp.ne.s32.totalorder %s144, %s147
      %p153 = scmp.eq.s32.totalorder %s17, 0
      %p154 = por %p152, %p153
      %p155 = scmp.ne.s32.totalorder %s144, %s147
      %p156 = scmp.eq.s32.totalorder %s22, 1
      %p157 = por %p155, %p156
      %p158 = scmp.ne.s32.totalorder %s147, %s148
      %p159 = scmp.eq.s32.totalorder %s22, 0
      %p160 = por %p158, %p159
      %p161 = scmp.ne.s32.totalorder %s147, %s148
      %p162 = scmp.eq.s32.totalorder %s23, 1
      %p163 = por %p161, %p162
      %p165 = scmp.ne.s32.totalorder %s148, %s164
      %p166 = scmp.eq.s32.totalorder %s23, 0
      %p167 = por %p165, %p166
      %s168 = ssub.s32 %s25, %s32
      %s169 = ssub.s32 %s24, %s36
      %s170 = sor.u32 %s168, %s169
      %p171 = scmp.eq.s32.totalorder %s170, 0
      %s173 = sadd.s32 %s172, 1
      %s174 = scalar_select %p171, %s172, %s173
      %p177 = pneg %p171
      %p178 = scmp.eq.s32.totalorder %s17, 1
      %p179 = por %p177, %p178
      %p180 = scmp.ne.s32.totalorder %s172, %s175
      %p181 = scmp.eq.s32.totalorder %s17, 0
      %p182 = por %p180, %p181
      %p183 = scmp.ne.s32.totalorder %s172, %s175
      %p184 = scmp.eq.s32.totalorder %s22, 1
      %p185 = por %p183, %p184
      %p186 = scmp.ne.s32.totalorder %s175, %s176
      %p187 = scmp.eq.s32.totalorder %s22, 0
      %p188 = por %p186, %p187
      %p189 = scmp.ne.s32.totalorder %s175, %s176
      %p190 = scmp.eq.s32.totalorder %s23, 1
      %p191 = por %p189, %p190
      %p193 = scmp.ne.s32.totalorder %s176, %s192
      %p194 = scmp.eq.s32.totalorder %s23, 0
      %p195 = por %p193, %p194
      %s196 = ssub.s32 %s25, %s32
      %s197 = ssub.s32 %s24, %s36
      %s198 = sor.u32 %s196, %s197
      %p199 = scmp.eq.s32.totalorder %s198, 0
      %s201 = sadd.s32 %s200, 1
      %s202 = scalar_select %p199, %s200, %s201
      %p205 = pneg %p199
      %p206 = scmp.eq.s32.totalorder %s17, 1
      %p207 = por %p205, %p206
      %p208 = scmp.ne.s32.totalorder %s200, %s203
      %p209 = scmp.eq.s32.totalorder %s17, 0
      %p210 = por %p208, %p209
      %p211 = scmp.ne.s32.totalorder %s200, %s203
      %p212 = scmp.eq.s32.totalorder %s22, 1
      %p213 = por %p211, %p212
      %p214 = scmp.ne.s32.totalorder %s203, %s204
      %p215 = scmp.eq.s32.totalorder %s22, 0
      %p216 = por %p214, %p215
      %p217 = scmp.ne.s32.totalorder %s203, %s204
      %p218 = scmp.eq.s32.totalorder %s23, 1
      %p219 = por %p217, %p218
      %p221 = scmp.ne.s32.totalorder %s204, %s220
      %p222 = scmp.eq.s32.totalorder %s23, 0
      %p223 = por %p221, %p222
      %p224 = scmp.le.s32.totalorder 1, %s17
      %p225 = scmp.lt.s32.totalorder %s17, 3
      %p226 = pnand %p224, %p225
      %p227 = pneg %p226
      // Predicated region
      $region9: #{encoder_forward.1} parent=5 // pred_check
        _
      $region10: #{encoder_forward.1} parent=5 // pred_check_branch
        %229 = sbr.rel (%p226) target = $region12
      $region11: #{encoder_forward.1} parent=5 // pred_region
        %s230 = ssub.s32 %s17, 1
        // Predicated region
        $region13: #{encoder_forward.1} parent=11 // pred_check
          %p231 = pneg %p55
        $region14: #{encoder_forward.1} parent=11 // pred_check_branch
          %233 = sbr.rel (%p231) target = $region16
        $region15: #{encoder_forward.1} parent=11 // pred_region
          %s234 = smul.u32 2, %s26
          %p235 = scmp.lt.s32.totalorder %s234, 1
          %s236 = scalar_select %p235, %s234, 1
          %s237 = smul.addr %s236, 4
          %s238 = scalar_lea.vmem %s0, %s237
          %s239 = smul.u32 2, %s26
        $region16: #{encoder_forward.1} parent=11 // pred_fallthru
          _
        // Predicated region
        $region17: #{encoder_forward.1} parent=11 // pred_check
          %p240 = pneg %p76
        $region18: #{encoder_forward.1} parent=11 // pred_check_branch
          %242 = sbr.rel (%p240) target = $region20
        $region19: #{encoder_forward.1} parent=11 // pred_region
          %244 = vsyncadd [#allocation5], 0
          %s245 = sshll.u32 %s1, 4
          %s246 = int_to_ptr.hbm [resolvable:$true] %s245
          %s247 = sshll.u32 [#allocation4], 4
          %s248 = int_to_ptr.vmem [resolvable:$true] %s247
          %253 = dma.hbm_to_vmem [thread:$0]  %s246, 4096, %s248, [#allocation5], 256, 256, 16
        $region20: #{encoder_forward.1} parent=11 // pred_fallthru
          _
      $region12: #{encoder_forward.1} parent=5 // pred_fallthru
        _
      %p254 = scmp.lt.s32.totalorder %s17, 2
      // Predicated region
      $region21: #{encoder_forward.1} parent=5 // pred_check
        %p255 = pneg %p254
      $region22: #{encoder_forward.1} parent=5 // pred_check_branch
        %257 = sbr.rel (%p255) target = $region24
      $region23: #{encoder_forward.1} parent=5 // pred_region
        // Predicated region
        $region25: #{encoder_forward.1} parent=23 // pred_check
          %p258 = pneg %p96
        $region26: #{encoder_forward.1} parent=23 // pred_check_branch
          %260 = sbr.rel (%p258) target = $region28
        $region27: #{encoder_forward.1} parent=23 // pred_region
          %p261 = scmp.lt.s32.totalorder %s25, 1
          %s262 = scalar_select %p261, %s25, 1
          %s263 = smul.addr %s262, 4
          %s264 = scalar_lea.vmem %s2, %s263
        $region28: #{encoder_forward.1} parent=23 // pred_fallthru
          _
        // Predicated region
        $region29: #{encoder_forward.1} parent=23 // pred_check
          %p265 = pneg %p128
        $region30: #{encoder_forward.1} parent=23 // pred_check_branch
          %267 = sbr.rel (%p265) target = $region32
        $region31: #{encoder_forward.1} parent=23 // pred_region
          %s268 = sand.u32 %s17, 1
          %s269 = scalar_lea.sflag [#allocation7], %s268
          %s270 = sand.u32 %s118, 1
          %s271 = smul.addr %s270, 256
          %s272 = scalar_lea.vmem [#allocation6], %s271
          %s273 = ssub.s32 %s25, 1
          %p274 = scmp.gt.s32.totalorder %s273, 0
          %s275 = scalar_select %p274, %s273, 0
          %277 = vsyncadd %s269, 0
          %s278 = smul.addr %s275, 64
          %s279 = smul.addr %s278, 4
          %s280 = scalar_lea.hbm %s3, %s279
          %s281 = sshll.u32 %s280, 4
          %s282 = int_to_ptr.hbm [resolvable:$true] %s281
          %s283 = sshll.u32 %s272, 4
          %s284 = int_to_ptr.vmem [resolvable:$true] %s283
          %289 = dma.hbm_to_vmem [thread:$0]  %s282, 4096, %s284, %s269, 256, 256, 16
        $region32: #{encoder_forward.1} parent=23 // pred_fallthru
          _
        // Predicated region
        $region33: #{encoder_forward.1} parent=23 // pred_check
          %p290 = pneg %p154
        $region34: #{encoder_forward.1} parent=23 // pred_check_branch
          %292 = sbr.rel (%p290) target = $region36
        $region35: #{encoder_forward.1} parent=23 // pred_region
          %s293 = sand.u32 %s17, 1
          %s294 = scalar_lea.sflag [#allocation7], %s293
          %s295 = sand.u32 %s144, 1
          %s296 = smul.addr %s295, 256
          %s297 = scalar_lea.vmem [#allocation8], %s296
          %299 = vsyncadd %s294, 0
          %s300 = smul.addr %s25, 64
          %s301 = smul.addr %s300, 4
          %s302 = scalar_lea.hbm %s4, %s301
          %s303 = sshll.u32 %s302, 4
          %s304 = int_to_ptr.hbm [resolvable:$true] %s303
          %s305 = sshll.u32 %s297, 4
          %s306 = int_to_ptr.vmem [resolvable:$true] %s305
          %311 = dma.hbm_to_vmem [thread:$0]  %s304, 4096, %s306, %s294, 256, 256, 16
        $region36: #{encoder_forward.1} parent=23 // pred_fallthru
          _
      $region24: #{encoder_forward.1} parent=5 // pred_fallthru
        _
      %p312 = scmp.le.s32.totalorder 1, %s17
      %p313 = scmp.lt.s32.totalorder %s17, 3
      %p314 = pnand %p312, %p313
      %p315 = pneg %p314
      // Predicated region
      $region37: #{encoder_forward.1} parent=5 // pred_check
        _
      $region38: #{encoder_forward.1} parent=5 // pred_check_branch
        %317 = sbr.rel (%p314) target = $region40
      $region39: #{encoder_forward.1} parent=5 // pred_region
        %s318 = ssub.s32 %s17, 1
        // Predicated region
        $region41: #{encoder_forward.1} parent=39 // pred_check
          %p319 = pneg %p76
        $region42: #{encoder_forward.1} parent=39 // pred_check_branch
          %321 = sbr.rel (%p319) target = $region44
        $region43: #{encoder_forward.1} parent=39 // pred_region
          %323 = dma.done [#allocation5], 4096
        $region44: #{encoder_forward.1} parent=39 // pred_fallthru
          _
        %s324 = sand.u32 %s22, 1
        %s325 = scalar_lea.sflag [#allocation7], %s324
        %s326 = sand.u32 %s121, 1
        %s327 = smul.addr %s326, 256
        %s328 = scalar_lea.vmem [#allocation6], %s327
        // Predicated region
        $region45: #{encoder_forward.1} parent=39 // pred_check
          %p329 = pneg %p134
        $region46: #{encoder_forward.1} parent=39 // pred_check_branch
          %331 = sbr.rel (%p329) target = $region48
        $region47: #{encoder_forward.1} parent=39 // pred_region
          %333 = dma.done %s325, 4096
        $region48: #{encoder_forward.1} parent=39 // pred_fallthru
          _
        %s334 = sand.u32 %s22, 1
        %s335 = scalar_lea.sflag [#allocation7], %s334
        %s336 = sand.u32 %s147, 1
        %s337 = smul.addr %s336, 256
        %s338 = scalar_lea.vmem [#allocation8], %s337
        // Predicated region
        $region49: #{encoder_forward.1} parent=39 // pred_check
          %p339 = pneg %p160
        $region50: #{encoder_forward.1} parent=39 // pred_check_branch
          %341 = sbr.rel (%p339) target = $region52
        $region51: #{encoder_forward.1} parent=39 // pred_region
          %343 = dma.done %s335, 4096
        $region52: #{encoder_forward.1} parent=39 // pred_fallthru
          _
        %s344 = smul.u32 2, %s26
        %p345 = scmp.lt.s32.totalorder %s344, 1
        %s346 = scalar_select %p345, %s344, 1
        %s347 = smul.addr %s346, 4
        %s348 = scalar_lea.vmem %s0, %s347
        %p349 = pneg %p55
        %p350 = pneg %p52
        %p351 = pneg %p76
        %p352 = pneg %p73
        %p353 = scmp.lt.s32.totalorder %s27, 1
        %s354 = scalar_select %p353, %s27, 1
        %s355 = smul.addr %s354, 4
        %s356 = scalar_lea.vmem %s2, %s355
        %p357 = pneg %p102
        %p358 = pneg %p99
        %s359 = sand.u32 %s22, 1
        %s360 = scalar_lea.sflag [#allocation7], %s359
        %s361 = sand.u32 %s121, 1
        %s362 = smul.addr %s361, 256
        %s363 = scalar_lea.vmem [#allocation6], %s362
        %p364 = pneg %p134
        %p365 = pneg %p131
        %s366 = sand.u32 %s22, 1
        %s367 = scalar_lea.sflag [#allocation7], %s366
        %s368 = sand.u32 %s147, 1
        %s369 = smul.addr %s368, 256
        %s370 = scalar_lea.vmem [#allocation8], %s369
        %p371 = pneg %p160
        %p372 = pneg %p157
        %p373 = pneg %p188
        %p374 = pneg %p185
        %s375 = smul.u32 2, %s26
        %p376 = scmp.lt.s32.totalorder %s27, 1
        %s377 = scalar_select %p376, %s27, 1
        %p378 = scmp.lt.s32.totalorder %s375, 1
        %s379 = scalar_select %p378, %s375, 1
        %s380 = smul.addr %s377, 2
        %s381 = sadd.s32 %s379, %s380
        %s382 = smul.addr %s381, 8
        %s383 = scalar_lea.vmem %s5, %s382
        %p384 = pneg %p216
        %p385 = pneg %p213
        %s386 = smul.u32 2, %s26
        %p387 = scmp.lt.s32.totalorder %s27, 1
        %s388 = scalar_select %p387, %s27, 1
        %p389 = scmp.lt.s32.totalorder %s386, 1
        %s390 = scalar_select %p389, %s386, 1
        %s391 = smul.addr %s388, 2
        %s392 = sadd.s32 %s390, %s391
        %s393 = smul.addr %s392, 8
        %s394 = scalar_lea.vmem %s6, %s393
        %s395 = smul.u32 2, %s26
        %p396 = scmp.lt.s32.totalorder %s395, 1
        %s397 = scalar_select %p396, %s395, 1
        %s398 = smul.addr %s397, 4
        %s399 = scalar_lea.vmem %s0, %s398
        %s400 = smul.u32 2, %s26
        %p401 = scmp.lt.s32.totalorder %s27, 1
        %s402 = scalar_select %p401, %s27, 1
        %s403 = smul.addr %s402, 4
        %s404 = scalar_lea.vmem %s2, %s403
        %s405 = ssub.s32 %s27, 1
        %p406 = scmp.gt.s32.totalorder %s405, 0
        %s407 = scalar_select %p406, %s405, 0
        %s408 = smul.u32 2, %s26
        %p409 = scmp.lt.s32.totalorder %s27, 1
        %s410 = scalar_select %p409, %s27, 1
        %p411 = scmp.lt.s32.totalorder %s408, 1
        %s412 = scalar_select %p411, %s408, 1
        %s413 = smul.addr %s410, 2
        %s414 = sadd.s32 %s412, %s413
        %s415 = smul.addr %s414, 8
        %s416 = scalar_lea.vmem %s5, %s415
        %s417 = smul.u32 2, %s26
        %s418 = smul.u32 2, %s26
        %p419 = scmp.lt.s32.totalorder %s27, 1
        %s420 = scalar_select %p419, %s27, 1
        %p421 = scmp.lt.s32.totalorder %s418, 1
        %s422 = scalar_select %p421, %s418, 1
        %s423 = smul.addr %s420, 2
        %s424 = sadd.s32 %s422, %s423
        %s425 = smul.addr %s424, 8
        %s426 = scalar_lea.vmem %s6, %s425
        %s427 = smul.u32 2, %s26
        %p429 = scmp.eq.s32.totalorder %s27, 0
        // Predicated region
        $region53: #{encoder_forward.1} parent=39 // pred_check
          %p430 = pneg %p429
        $region54: #{encoder_forward.1} parent=39 // pred_check_branch
          %432 = sbr.rel (%p430) target = $region56
        $region55: #{encoder_forward.1} parent=39 // pred_region
          %v433 = vld [vmem:[%s399] sm:$0xf]
          %v434 = vld [vmem:[%s399 + $0x4] sm:$0xf]
          %v435 = vld [vmem:[%s399 + $0x8] sm:$0xf]
          %v436 = vld [vmem:[%s399 + $0xc] sm:$0xf]
          %v437 = vld [vmem:[%s399 + $0x10] sm:$0xf]
          %v438 = vld [vmem:[%s399 + $0x14] sm:$0xf]
          %v439 = vld [vmem:[%s399 + $0x18] sm:$0xf]
          %v440 = vld [vmem:[%s399 + $0x1c] sm:$0xf]
          %v441 = vld [vmem:[%s399 + $0x20] sm:$0xf]
          %v442 = vld [vmem:[%s399 + $0x24] sm:$0xf]
          %v443 = vld [vmem:[%s399 + $0x28] sm:$0xf]
          %v444 = vld [vmem:[%s399 + $0x2c] sm:$0xf]
          %v445 = vld [vmem:[%s399 + $0x30] sm:$0xf]
          %v446 = vld [vmem:[%s399 + $0x34] sm:$0xf]
          %v447 = vld [vmem:[%s399 + $0x38] sm:$0xf]
          %v448 = vld [vmem:[%s399 + $0x3c] sm:$0xf]
          %v449 = vld [vmem:[#allocation4] sm:$0xff]
          %v450 = vld [vmem:[#allocation4 + $0x8] sm:$0xff]
          %v451 = vld [vmem:[#allocation4 + $0x10] sm:$0xff]
          %v452 = vld [vmem:[#allocation4 + $0x18] sm:$0xff]
          %v453 = vld [vmem:[#allocation4 + $0x20] sm:$0xff]
          %v454 = vld [vmem:[#allocation4 + $0x28] sm:$0xff]
          %v455 = vld [vmem:[#allocation4 + $0x30] sm:$0xff]
          %v456 = vld [vmem:[#allocation4 + $0x38] sm:$0xff]
          %v457 = vld [vmem:[#allocation4 + $0x40] sm:$0xff]
          %v458 = vld [vmem:[#allocation4 + $0x48] sm:$0xff]
          %v459 = vld [vmem:[#allocation4 + $0x50] sm:$0xff]
          %v460 = vld [vmem:[#allocation4 + $0x58] sm:$0xff]
          %v461 = vld [vmem:[#allocation4 + $0x60] sm:$0xff]
          %v462 = vld [vmem:[#allocation4 + $0x68] sm:$0xff]
          %v463 = vld [vmem:[#allocation4 + $0x70] sm:$0xff]
          %v464 = vld [vmem:[#allocation4 + $0x78] sm:$0xff]
          %v465 = vld [vmem:[#allocation4 + $0x80] sm:$0xff]
          %v466 = vld [vmem:[#allocation4 + $0x88] sm:$0xff]
          %v467 = vld [vmem:[#allocation4 + $0x90] sm:$0xff]
          %v468 = vld [vmem:[#allocation4 + $0x98] sm:$0xff]
          %v469 = vld [vmem:[#allocation4 + $0xa0] sm:$0xff]
          %v470 = vld [vmem:[#allocation4 + $0xa8] sm:$0xff]
          %v471 = vld [vmem:[#allocation4 + $0xb0] sm:$0xff]
          %v472 = vld [vmem:[#allocation4 + $0xb8] sm:$0xff]
          %v473 = vld [vmem:[#allocation4 + $0xc0] sm:$0xff]
          %v474 = vld [vmem:[#allocation4 + $0xc8] sm:$0xff]
          %v475 = vld [vmem:[#allocation4 + $0xd0] sm:$0xff]
          %v476 = vld [vmem:[#allocation4 + $0xd8] sm:$0xff]
          %v477 = vld [vmem:[#allocation4 + $0xe0] sm:$0xff]
          %v478 = vld [vmem:[#allocation4 + $0xe8] sm:$0xff]
          %v479 = vld [vmem:[#allocation4 + $0xf0] sm:$0xff]
          %v480 = vld [vmem:[#allocation4 + $0xf8] sm:$0xff]
          %v481 = vld [vmem:[%s404] sm:$0xf]
          %v483 = vperm.slane %v481, 0
          %v484 = vperm.slane %v481, 1
          %v485 = vperm.slane %v481, 2
          %v486 = vperm.slane %v481, 3
          %v507 = vunpack.c.l.b16 %v433
          %v508 = vunpack.c.l.b16 %v434
          %v509 = vunpack.c.l.b16 %v435
          %v510 = vunpack.c.l.b16 %v436
          %v511 = vunpack.c.l.b16 %v437
          %v512 = vunpack.c.l.b16 %v438
          %v513 = vunpack.c.l.b16 %v439
          %v514 = vunpack.c.l.b16 %v440
          %v515 = vunpack.c.l.b16 %v441
          %v516 = vunpack.c.l.b16 %v442
          %v517 = vunpack.c.l.b16 %v443
          %v518 = vunpack.c.l.b16 %v444
          %v519 = vunpack.c.l.b16 %v445
          %v520 = vunpack.c.l.b16 %v446
          %v521 = vunpack.c.l.b16 %v447
          %v522 = vunpack.c.l.b16 %v448
          %v523 = vpack.c.b16 %v508, %v507
          %v524 = vpack.c.b16 %v510, %v509
          %v525 = vpack.c.b16 %v512, %v511
          %v526 = vpack.c.b16 %v514, %v513
          %v527 = vpack.c.b16 %v516, %v515
          %v528 = vpack.c.b16 %v518, %v517
          %v529 = vpack.c.b16 %v520, %v519
          %v530 = vpack.c.b16 %v522, %v521
          %v571 = vunpack.c.l.b16 %v449
          %v572 = vunpack.c.h.b16 %v449
          %v573 = vunpack.c.l.b16 %v450
          %v574 = vunpack.c.h.b16 %v450
          %v575 = vunpack.c.l.b16 %v451
          %v576 = vunpack.c.h.b16 %v451
          %v577 = vunpack.c.l.b16 %v452
          %v578 = vunpack.c.h.b16 %v452
          %v579 = vunpack.c.l.b16 %v453
          %v580 = vunpack.c.h.b16 %v453
          %v581 = vunpack.c.l.b16 %v454
          %v582 = vunpack.c.h.b16 %v454
          %v583 = vunpack.c.l.b16 %v455
          %v584 = vunpack.c.h.b16 %v455
          %v585 = vunpack.c.l.b16 %v456
          %v586 = vunpack.c.h.b16 %v456
          %v587 = vunpack.c.l.b16 %v457
          %v588 = vunpack.c.h.b16 %v457
          %v589 = vunpack.c.l.b16 %v458
          %v590 = vunpack.c.h.b16 %v458
          %v591 = vunpack.c.l.b16 %v459
          %v592 = vunpack.c.h.b16 %v459
          %v593 = vunpack.c.l.b16 %v460
          %v594 = vunpack.c.h.b16 %v460
          %v595 = vunpack.c.l.b16 %v461
          %v596 = vunpack.c.h.b16 %v461
          %v597 = vunpack.c.l.b16 %v462
          %v598 = vunpack.c.h.b16 %v462
          %v599 = vunpack.c.l.b16 %v463
          %v600 = vunpack.c.h.b16 %v463
          %v601 = vunpack.c.l.b16 %v464
          %v602 = vunpack.c.h.b16 %v464
          %v603 = vunpack.c.l.b16 %v465
          %v604 = vunpack.c.h.b16 %v465
          %v605 = vunpack.c.l.b16 %v466
          %v606 = vunpack.c.h.b16 %v466
          %v607 = vunpack.c.l.b16 %v467
          %v608 = vunpack.c.h.b16 %v467
          %v609 = vunpack.c.l.b16 %v468
          %v610 = vunpack.c.h.b16 %v468
          %v611 = vunpack.c.l.b16 %v469
          %v612 = vunpack.c.h.b16 %v469
          %v613 = vunpack.c.l.b16 %v470
          %v614 = vunpack.c.h.b16 %v470
          %v615 = vunpack.c.l.b16 %v471
          %v616 = vunpack.c.h.b16 %v471
          %v617 = vunpack.c.l.b16 %v472
          %v618 = vunpack.c.h.b16 %v472
          %v619 = vunpack.c.l.b16 %v473
          %v620 = vunpack.c.h.b16 %v473
          %v621 = vunpack.c.l.b16 %v474
          %v622 = vunpack.c.h.b16 %v474
          %v623 = vunpack.c.l.b16 %v475
          %v624 = vunpack.c.h.b16 %v475
          %v625 = vunpack.c.l.b16 %v476
          %v626 = vunpack.c.h.b16 %v476
          %v627 = vunpack.c.l.b16 %v477
          %v628 = vunpack.c.h.b16 %v477
          %v629 = vunpack.c.l.b16 %v478
          %v630 = vunpack.c.h.b16 %v478
          %v631 = vunpack.c.l.b16 %v479
          %v632 = vunpack.c.h.b16 %v479
          %v633 = vunpack.c.l.b16 %v480
          %v634 = vunpack.c.h.b16 %v480
          %v635 = vpack.c.b16 %v575, %v571
          %v636 = vpack.c.b16 %v576, %v572
          %v637 = vpack.c.b16 %v577, %v573
          %v638 = vpack.c.b16 %v578, %v574
          %v639 = vpack.c.b16 %v583, %v579
          %v640 = vpack.c.b16 %v584, %v580
          %v641 = vpack.c.b16 %v585, %v581
          %v642 = vpack.c.b16 %v586, %v582
          %v643 = vpack.c.b16 %v591, %v587
          %v644 = vpack.c.b16 %v592, %v588
          %v645 = vpack.c.b16 %v593, %v589
          %v646 = vpack.c.b16 %v594, %v590
          %v647 = vpack.c.b16 %v599, %v595
          %v648 = vpack.c.b16 %v600, %v596
          %v649 = vpack.c.b16 %v601, %v597
          %v650 = vpack.c.b16 %v602, %v598
          %v651 = vpack.c.b16 %v607, %v603
          %v652 = vpack.c.b16 %v608, %v604
          %v653 = vpack.c.b16 %v609, %v605
          %v654 = vpack.c.b16 %v610, %v606
          %v655 = vpack.c.b16 %v615, %v611
          %v656 = vpack.c.b16 %v616, %v612
          %v657 = vpack.c.b16 %v617, %v613
          %v658 = vpack.c.b16 %v618, %v614
          %v659 = vpack.c.b16 %v623, %v619
          %v660 = vpack.c.b16 %v624, %v620
          %v661 = vpack.c.b16 %v625, %v621
          %v662 = vpack.c.b16 %v626, %v622
          %v663 = vpack.c.b16 %v631, %v627
          %v664 = vpack.c.b16 %v632, %v628
          %v665 = vpack.c.b16 %v633, %v629
          %v666 = vpack.c.b16 %v634, %v630
          %699 = vmatpush.bf16.msra.mxu0 %v663
          %700 = vmatpush.bf16.msra.mxu0 %v659
          %701 = vmatpush.bf16.msra.mxu0 %v655
          %702 = vmatpush.bf16.msra.mxu0 %v651
          %703 = vmatpush.bf16.msra.mxu0 %v647
          %704 = vmatpush.bf16.msra.mxu0 %v643
          %705 = vmatpush.bf16.msra.mxu0 %v639
          %706 = vmatpush.bf16.msra.mxu0 %v635
          %707 = vmatmul.bf16.gmra.mxu0 %v523
          %v708 = vpop.f32.mrf.mxu0
          %v709 = vadd.f32 %v483, %v708
          %v710 = vpop.f32.mrf.mxu0
          %v711 = vadd.f32 %v483, %v710
          %712 = vmatmul.bf16.gmra.mxu0 %v524
          %v713 = vpop.f32.mrf.mxu0
          %v714 = vadd.f32 %v483, %v713
          %v715 = vpop.f32.mrf.mxu0
          %v716 = vadd.f32 %v483, %v715
          %717 = vmatmul.bf16.gmra.mxu0 %v525
          %v718 = vpop.f32.mrf.mxu0
          %v719 = vadd.f32 %v483, %v718
          %v720 = vpop.f32.mrf.mxu0
          %v721 = vadd.f32 %v483, %v720
          %722 = vmatmul.bf16.gmra.mxu0 %v526
          %v723 = vpop.f32.mrf.mxu0
          %v724 = vadd.f32 %v483, %v723
          %v725 = vpop.f32.mrf.mxu0
          %v726 = vadd.f32 %v483, %v725
          %727 = vmatmul.bf16.gmra.mxu0 %v527
          %v728 = vpop.f32.mrf.mxu0
          %v729 = vadd.f32 %v483, %v728
          %v730 = vpop.f32.mrf.mxu0
          %v731 = vadd.f32 %v483, %v730
          %732 = vmatmul.bf16.gmra.mxu0 %v528
          %v733 = vpop.f32.mrf.mxu0
          %v734 = vadd.f32 %v483, %v733
          %v735 = vpop.f32.mrf.mxu0
          %v736 = vadd.f32 %v483, %v735
          %737 = vmatmul.bf16.gmra.mxu0 %v529
          %v738 = vpop.f32.mrf.mxu0
          %v739 = vadd.f32 %v483, %v738
          %v740 = vpop.f32.mrf.mxu0
          %v741 = vadd.f32 %v483, %v740
          %742 = vmatmul.bf16.gmra.mxu0 %v530
          %v743 = vpop.f32.mrf.mxu0
          %v744 = vadd.f32 %v483, %v743
          %v745 = vpop.f32.mrf.mxu0
          %v746 = vadd.f32 %v483, %v745
          %747 = vdwg.mxu0
          %748 = vmatpush.bf16.msra.mxu0 %v664
          %749 = vmatpush.bf16.msra.mxu0 %v660
          %750 = vmatpush.bf16.msra.mxu0 %v656
          %751 = vmatpush.bf16.msra.mxu0 %v652
          %752 = vmatpush.bf16.msra.mxu0 %v648
          %753 = vmatpush.bf16.msra.mxu0 %v644
          %754 = vmatpush.bf16.msra.mxu0 %v640
          %755 = vmatpush.bf16.msra.mxu0 %v636
          %756 = vmatmul.bf16.gmra.mxu0 %v523
          %v757 = vpop.f32.mrf.mxu0
          %v758 = vadd.f32 %v484, %v757
          %v759 = vpop.f32.mrf.mxu0
          %v760 = vadd.f32 %v484, %v759
          %761 = vmatmul.bf16.gmra.mxu0 %v524
          %v762 = vpop.f32.mrf.mxu0
          %v763 = vadd.f32 %v484, %v762
          %v764 = vpop.f32.mrf.mxu0
          %v765 = vadd.f32 %v484, %v764
          %766 = vmatmul.bf16.gmra.mxu0 %v525
          %v767 = vpop.f32.mrf.mxu0
          %v768 = vadd.f32 %v484, %v767
          %v769 = vpop.f32.mrf.mxu0
          %v770 = vadd.f32 %v484, %v769
          %771 = vmatmul.bf16.gmra.mxu0 %v526
          %v772 = vpop.f32.mrf.mxu0
          %v773 = vadd.f32 %v484, %v772
          %v774 = vpop.f32.mrf.mxu0
          %v775 = vadd.f32 %v484, %v774
          %776 = vmatmul.bf16.gmra.mxu0 %v527
          %v777 = vpop.f32.mrf.mxu0
          %v778 = vadd.f32 %v484, %v777
          %v779 = vpop.f32.mrf.mxu0
          %v780 = vadd.f32 %v484, %v779
          %781 = vmatmul.bf16.gmra.mxu0 %v528
          %v782 = vpop.f32.mrf.mxu0
          %v783 = vadd.f32 %v484, %v782
          %v784 = vpop.f32.mrf.mxu0
          %v785 = vadd.f32 %v484, %v784
          %786 = vmatmul.bf16.gmra.mxu0 %v529
          %v787 = vpop.f32.mrf.mxu0
          %v788 = vadd.f32 %v484, %v787
          %v789 = vpop.f32.mrf.mxu0
          %v790 = vadd.f32 %v484, %v789
          %791 = vmatmul.bf16.gmra.mxu0 %v530
          %v792 = vpop.f32.mrf.mxu0
          %v793 = vadd.f32 %v484, %v792
          %v794 = vpop.f32.mrf.mxu0
          %v795 = vadd.f32 %v484, %v794
          %796 = vdwg.mxu0
          %797 = vmatpush.bf16.msra.mxu0 %v665
          %798 = vmatpush.bf16.msra.mxu0 %v661
          %799 = vmatpush.bf16.msra.mxu0 %v657
          %800 = vmatpush.bf16.msra.mxu0 %v653
          %801 = vmatpush.bf16.msra.mxu0 %v649
          %802 = vmatpush.bf16.msra.mxu0 %v645
          %803 = vmatpush.bf16.msra.mxu0 %v641
          %804 = vmatpush.bf16.msra.mxu0 %v637
          %805 = vmatmul.bf16.gmra.mxu0 %v523
          %v806 = vpop.f32.mrf.mxu0
          %v807 = vadd.f32 %v485, %v806
          %v808 = vpop.f32.mrf.mxu0
          %v809 = vadd.f32 %v485, %v808
          %810 = vmatmul.bf16.gmra.mxu0 %v524
          %v811 = vpop.f32.mrf.mxu0
          %v812 = vadd.f32 %v485, %v811
          %v813 = vpop.f32.mrf.mxu0
          %v814 = vadd.f32 %v485, %v813
          %815 = vmatmul.bf16.gmra.mxu0 %v525
          %v816 = vpop.f32.mrf.mxu0
          %v817 = vadd.f32 %v485, %v816
          %v818 = vpop.f32.mrf.mxu0
          %v819 = vadd.f32 %v485, %v818
          %820 = vmatmul.bf16.gmra.mxu0 %v526
          %v821 = vpop.f32.mrf.mxu0
          %v822 = vadd.f32 %v485, %v821
          %v823 = vpop.f32.mrf.mxu0
          %v824 = vadd.f32 %v485, %v823
          %825 = vmatmul.bf16.gmra.mxu0 %v527
          %v826 = vpop.f32.mrf.mxu0
          %v827 = vadd.f32 %v485, %v826
          %v828 = vpop.f32.mrf.mxu0
          %v829 = vadd.f32 %v485, %v828
          %830 = vmatmul.bf16.gmra.mxu0 %v528
          %v831 = vpop.f32.mrf.mxu0
          %v832 = vadd.f32 %v485, %v831
          %v833 = vpop.f32.mrf.mxu0
          %v834 = vadd.f32 %v485, %v833
          %835 = vmatmul.bf16.gmra.mxu0 %v529
          %v836 = vpop.f32.mrf.mxu0
          %v837 = vadd.f32 %v485, %v836
          %v838 = vpop.f32.mrf.mxu0
          %v839 = vadd.f32 %v485, %v838
          %840 = vmatmul.bf16.gmra.mxu0 %v530
          %v841 = vpop.f32.mrf.mxu0
          %v842 = vadd.f32 %v485, %v841
          %v843 = vpop.f32.mrf.mxu0
          %v844 = vadd.f32 %v485, %v843
          %845 = vdwg.mxu0
          %846 = vmatpush.bf16.msra.mxu0 %v666
          %847 = vmatpush.bf16.msra.mxu0 %v662
          %848 = vmatpush.bf16.msra.mxu0 %v658
          %849 = vmatpush.bf16.msra.mxu0 %v654
          %850 = vmatpush.bf16.msra.mxu0 %v650
          %851 = vmatpush.bf16.msra.mxu0 %v646
          %852 = vmatpush.bf16.msra.mxu0 %v642
          %853 = vmatpush.bf16.msra.mxu0 %v638
          %854 = vmatmul.bf16.gmra.mxu0 %v523
          %v855 = vpop.f32.mrf.mxu0
          %v856 = vadd.f32 %v486, %v855
          %v857 = vpop.f32.mrf.mxu0
          %v858 = vadd.f32 %v486, %v857
          %859 = vmatmul.bf16.gmra.mxu0 %v524
          %v860 = vpop.f32.mrf.mxu0
          %v861 = vadd.f32 %v486, %v860
          %v862 = vpop.f32.mrf.mxu0
          %v863 = vadd.f32 %v486, %v862
          %864 = vmatmul.bf16.gmra.mxu0 %v525
          %v865 = vpop.f32.mrf.mxu0
          %v866 = vadd.f32 %v486, %v865
          %v867 = vpop.f32.mrf.mxu0
          %v868 = vadd.f32 %v486, %v867
          %869 = vmatmul.bf16.gmra.mxu0 %v526
          %v870 = vpop.f32.mrf.mxu0
          %v871 = vadd.f32 %v486, %v870
          %v872 = vpop.f32.mrf.mxu0
          %v873 = vadd.f32 %v486, %v872
          %874 = vmatmul.bf16.gmra.mxu0 %v527
          %v875 = vpop.f32.mrf.mxu0
          %v876 = vadd.f32 %v486, %v875
          %v877 = vpop.f32.mrf.mxu0
          %v878 = vadd.f32 %v486, %v877
          %879 = vmatmul.bf16.gmra.mxu0 %v528
          %v880 = vpop.f32.mrf.mxu0
          %v881 = vadd.f32 %v486, %v880
          %v882 = vpop.f32.mrf.mxu0
          %v883 = vadd.f32 %v486, %v882
          %884 = vmatmul.bf16.gmra.mxu0 %v529
          %v885 = vpop.f32.mrf.mxu0
          %v886 = vadd.f32 %v486, %v885
          %v887 = vpop.f32.mrf.mxu0
          %v888 = vadd.f32 %v486, %v887
          %889 = vmatmul.bf16.gmra.mxu0 %v530
          %v890 = vpop.f32.mrf.mxu0
          %v891 = vadd.f32 %v486, %v890
          %v892 = vpop.f32.mrf.mxu0
          %v893 = vadd.f32 %v486, %v892
          %894 = vdwg.mxu0
          %895 = vst [vmem:[#allocation3] sm:$0xff] %v709
          %896 = vst [vmem:[#allocation3 + $0x8] sm:$0xff] %v758
          %897 = vst [vmem:[#allocation3 + $0x10] sm:$0xff] %v807
          %898 = vst [vmem:[#allocation3 + $0x18] sm:$0xff] %v856
          %899 = vst [vmem:[#allocation3 + $0x20] sm:$0xff] %v711
          %900 = vst [vmem:[#allocation3 + $0x28] sm:$0xff] %v760
          %901 = vst [vmem:[#allocation3 + $0x30] sm:$0xff] %v809
          %902 = vst [vmem:[#allocation3 + $0x38] sm:$0xff] %v858
          %903 = vst [vmem:[#allocation3 + $0x40] sm:$0xff] %v714
          %904 = vst [vmem:[#allocation3 + $0x48] sm:$0xff] %v763
          %905 = vst [vmem:[#allocation3 + $0x50] sm:$0xff] %v812
          %906 = vst [vmem:[#allocation3 + $0x58] sm:$0xff] %v861
          %907 = vst [vmem:[#allocation3 + $0x60] sm:$0xff] %v716
          %908 = vst [vmem:[#allocation3 + $0x68] sm:$0xff] %v765
          %909 = vst [vmem:[#allocation3 + $0x70] sm:$0xff] %v814
          %910 = vst [vmem:[#allocation3 + $0x78] sm:$0xff] %v863
          %911 = vst [vmem:[#allocation3 + $0x80] sm:$0xff] %v719
          %912 = vst [vmem:[#allocation3 + $0x88] sm:$0xff] %v768
          %913 = vst [vmem:[#allocation3 + $0x90] sm:$0xff] %v817
          %914 = vst [vmem:[#allocation3 + $0x98] sm:$0xff] %v866
          %915 = vst [vmem:[#allocation3 + $0xa0] sm:$0xff] %v721
          %916 = vst [vmem:[#allocation3 + $0xa8] sm:$0xff] %v770
          %917 = vst [vmem:[#allocation3 + $0xb0] sm:$0xff] %v819
          %918 = vst [vmem:[#allocation3 + $0xb8] sm:$0xff] %v868
          %919 = vst [vmem:[#allocation3 + $0xc0] sm:$0xff] %v724
          %920 = vst [vmem:[#allocation3 + $0xc8] sm:$0xff] %v773
          %921 = vst [vmem:[#allocation3 + $0xd0] sm:$0xff] %v822
          %922 = vst [vmem:[#allocation3 + $0xd8] sm:$0xff] %v871
          %923 = vst [vmem:[#allocation3 + $0xe0] sm:$0xff] %v726
          %924 = vst [vmem:[#allocation3 + $0xe8] sm:$0xff] %v775
          %925 = vst [vmem:[#allocation3 + $0xf0] sm:$0xff] %v824
          %926 = vst [vmem:[#allocation3 + $0xf8] sm:$0xff] %v873
          %927 = vst [vmem:[#allocation3 + $0x100] sm:$0xff] %v729
          %928 = vst [vmem:[#allocation3 + $0x108] sm:$0xff] %v778
          %929 = vst [vmem:[#allocation3 + $0x110] sm:$0xff] %v827
          %930 = vst [vmem:[#allocation3 + $0x118] sm:$0xff] %v876
          %931 = vst [vmem:[#allocation3 + $0x120] sm:$0xff] %v731
          %932 = vst [vmem:[#allocation3 + $0x128] sm:$0xff] %v780
          %933 = vst [vmem:[#allocation3 + $0x130] sm:$0xff] %v829
          %934 = vst [vmem:[#allocation3 + $0x138] sm:$0xff] %v878
          %935 = vst [vmem:[#allocation3 + $0x140] sm:$0xff] %v734
          %936 = vst [vmem:[#allocation3 + $0x148] sm:$0xff] %v783
          %937 = vst [vmem:[#allocation3 + $0x150] sm:$0xff] %v832
          %938 = vst [vmem:[#allocation3 + $0x158] sm:$0xff] %v881
          %939 = vst [vmem:[#allocation3 + $0x160] sm:$0xff] %v736
          %940 = vst [vmem:[#allocation3 + $0x168] sm:$0xff] %v785
          %941 = vst [vmem:[#allocation3 + $0x170] sm:$0xff] %v834
          %942 = vst [vmem:[#allocation3 + $0x178] sm:$0xff] %v883
          %943 = vst [vmem:[#allocation3 + $0x180] sm:$0xff] %v739
          %944 = vst [vmem:[#allocation3 + $0x188] sm:$0xff] %v788
          %945 = vst [vmem:[#allocation3 + $0x190] sm:$0xff] %v837
          %946 = vst [vmem:[#allocation3 + $0x198] sm:$0xff] %v886
          %947 = vst [vmem:[#allocation3 + $0x1a0] sm:$0xff] %v741
          %948 = vst [vmem:[#allocation3 + $0x1a8] sm:$0xff] %v790
          %949 = vst [vmem:[#allocation3 + $0x1b0] sm:$0xff] %v839
          %950 = vst [vmem:[#allocation3 + $0x1b8] sm:$0xff] %v888
          %951 = vst [vmem:[#allocation3 + $0x1c0] sm:$0xff] %v744
          %952 = vst [vmem:[#allocation3 + $0x1c8] sm:$0xff] %v793
          %953 = vst [vmem:[#allocation3 + $0x1d0] sm:$0xff] %v842
          %954 = vst [vmem:[#allocation3 + $0x1d8] sm:$0xff] %v891
          %955 = vst [vmem:[#allocation3 + $0x1e0] sm:$0xff] %v746
          %956 = vst [vmem:[#allocation3 + $0x1e8] sm:$0xff] %v795
          %957 = vst [vmem:[#allocation3 + $0x1f0] sm:$0xff] %v844
          %958 = vst [vmem:[#allocation3 + $0x1f8] sm:$0xff] %v893
        $region56: #{encoder_forward.1} parent=39 // pred_fallthru
          _
        %p959 = scmp.gt.s32.totalorder %s27, 0
        // Predicated region
        $region57: #{encoder_forward.1} parent=39 // pred_check
          %p960 = pneg %p959
        $region58: #{encoder_forward.1} parent=39 // pred_check_branch
          %962 = sbr.rel (%p960) target = $region60
        $region59: #{encoder_forward.1} parent=39 // pred_region
          %v963 = vld [vmem:[#allocation2] sm:$0xf]
          %v964 = vld [vmem:[#allocation2 + $0x4] sm:$0xf]
          %v965 = vld [vmem:[#allocation2 + $0x8] sm:$0xf]
          %v966 = vld [vmem:[#allocation2 + $0xc] sm:$0xf]
          %v967 = vld [vmem:[#allocation2 + $0x10] sm:$0xf]
          %v968 = vld [vmem:[#allocation2 + $0x14] sm:$0xf]
          %v969 = vld [vmem:[#allocation2 + $0x18] sm:$0xf]
          %v970 = vld [vmem:[#allocation2 + $0x1c] sm:$0xf]
          %v971 = vld [vmem:[#allocation2 + $0x20] sm:$0xf]
          %v972 = vld [vmem:[#allocation2 + $0x24] sm:$0xf]
          %v973 = vld [vmem:[#allocation2 + $0x28] sm:$0xf]
          %v974 = vld [vmem:[#allocation2 + $0x2c] sm:$0xf]
          %v975 = vld [vmem:[#allocation2 + $0x30] sm:$0xf]
          %v976 = vld [vmem:[#allocation2 + $0x34] sm:$0xf]
          %v977 = vld [vmem:[#allocation2 + $0x38] sm:$0xf]
          %v978 = vld [vmem:[#allocation2 + $0x3c] sm:$0xf]
          %v979 = vld [vmem:[%s328] sm:$0xff]
          %v980 = vld [vmem:[%s328 + $0x8] sm:$0xff]
          %v981 = vld [vmem:[%s328 + $0x10] sm:$0xff]
          %v982 = vld [vmem:[%s328 + $0x18] sm:$0xff]
          %v983 = vld [vmem:[%s328 + $0x20] sm:$0xff]
          %v984 = vld [vmem:[%s328 + $0x28] sm:$0xff]
          %v985 = vld [vmem:[%s328 + $0x30] sm:$0xff]
          %v986 = vld [vmem:[%s328 + $0x38] sm:$0xff]
          %v987 = vld [vmem:[%s328 + $0x40] sm:$0xff]
          %v988 = vld [vmem:[%s328 + $0x48] sm:$0xff]
          %v989 = vld [vmem:[%s328 + $0x50] sm:$0xff]
          %v990 = vld [vmem:[%s328 + $0x58] sm:$0xff]
          %v991 = vld [vmem:[%s328 + $0x60] sm:$0xff]
          %v992 = vld [vmem:[%s328 + $0x68] sm:$0xff]
          %v993 = vld [vmem:[%s328 + $0x70] sm:$0xff]
          %v994 = vld [vmem:[%s328 + $0x78] sm:$0xff]
          %v995 = vld [vmem:[%s328 + $0x80] sm:$0xff]
          %v996 = vld [vmem:[%s328 + $0x88] sm:$0xff]
          %v997 = vld [vmem:[%s328 + $0x90] sm:$0xff]
          %v998 = vld [vmem:[%s328 + $0x98] sm:$0xff]
          %v999 = vld [vmem:[%s328 + $0xa0] sm:$0xff]
          %v1000 = vld [vmem:[%s328 + $0xa8] sm:$0xff]
          %v1001 = vld [vmem:[%s328 + $0xb0] sm:$0xff]
          %v1002 = vld [vmem:[%s328 + $0xb8] sm:$0xff]
          %v1003 = vld [vmem:[%s328 + $0xc0] sm:$0xff]
          %v1004 = vld [vmem:[%s328 + $0xc8] sm:$0xff]
          %v1005 = vld [vmem:[%s328 + $0xd0] sm:$0xff]
          %v1006 = vld [vmem:[%s328 + $0xd8] sm:$0xff]
          %v1007 = vld [vmem:[%s328 + $0xe0] sm:$0xff]
          %v1008 = vld [vmem:[%s328 + $0xe8] sm:$0xff]
          %v1009 = vld [vmem:[%s328 + $0xf0] sm:$0xff]
          %v1010 = vld [vmem:[%s328 + $0xf8] sm:$0xff]
          %v1011 = vld [vmem:[%s404] sm:$0xf]
          %v1013 = vperm.slane %v1011, 0
          %v1014 = vperm.slane %v1011, 1
          %v1015 = vperm.slane %v1011, 2
          %v1016 = vperm.slane %v1011, 3
          %v1037 = vunpack.c.l.b16 %v963
          %v1038 = vunpack.c.l.b16 %v964
          %v1039 = vunpack.c.l.b16 %v965
          %v1040 = vunpack.c.l.b16 %v966
          %v1041 = vunpack.c.l.b16 %v967
          %v1042 = vunpack.c.l.b16 %v968
          %v1043 = vunpack.c.l.b16 %v969
          %v1044 = vunpack.c.l.b16 %v970
          %v1045 = vunpack.c.l.b16 %v971
          %v1046 = vunpack.c.l.b16 %v972
          %v1047 = vunpack.c.l.b16 %v973
          %v1048 = vunpack.c.l.b16 %v974
          %v1049 = vunpack.c.l.b16 %v975
          %v1050 = vunpack.c.l.b16 %v976
          %v1051 = vunpack.c.l.b16 %v977
          %v1052 = vunpack.c.l.b16 %v978
          %v1053 = vpack.c.b16 %v1038, %v1037
          %v1054 = vpack.c.b16 %v1040, %v1039
          %v1055 = vpack.c.b16 %v1042, %v1041
          %v1056 = vpack.c.b16 %v1044, %v1043
          %v1057 = vpack.c.b16 %v1046, %v1045
          %v1058 = vpack.c.b16 %v1048, %v1047
          %v1059 = vpack.c.b16 %v1050, %v1049
          %v1060 = vpack.c.b16 %v1052, %v1051
          %v1101 = vunpack.c.l.b16 %v979
          %v1102 = vunpack.c.h.b16 %v979
          %v1103 = vunpack.c.l.b16 %v980
          %v1104 = vunpack.c.h.b16 %v980
          %v1105 = vunpack.c.l.b16 %v981
          %v1106 = vunpack.c.h.b16 %v981
          %v1107 = vunpack.c.l.b16 %v982
          %v1108 = vunpack.c.h.b16 %v982
          %v1109 = vunpack.c.l.b16 %v983
          %v1110 = vunpack.c.h.b16 %v983
          %v1111 = vunpack.c.l.b16 %v984
          %v1112 = vunpack.c.h.b16 %v984
          %v1113 = vunpack.c.l.b16 %v985
          %v1114 = vunpack.c.h.b16 %v985
          %v1115 = vunpack.c.l.b16 %v986
          %v1116 = vunpack.c.h.b16 %v986
          %v1117 = vunpack.c.l.b16 %v987
          %v1118 = vunpack.c.h.b16 %v987
          %v1119 = vunpack.c.l.b16 %v988
          %v1120 = vunpack.c.h.b16 %v988
          %v1121 = vunpack.c.l.b16 %v989
          %v1122 = vunpack.c.h.b16 %v989
          %v1123 = vunpack.c.l.b16 %v990
          %v1124 = vunpack.c.h.b16 %v990
          %v1125 = vunpack.c.l.b16 %v991
          %v1126 = vunpack.c.h.b16 %v991
          %v1127 = vunpack.c.l.b16 %v992
          %v1128 = vunpack.c.h.b16 %v992
          %v1129 = vunpack.c.l.b16 %v993
          %v1130 = vunpack.c.h.b16 %v993
          %v1131 = vunpack.c.l.b16 %v994
          %v1132 = vunpack.c.h.b16 %v994
          %v1133 = vunpack.c.l.b16 %v995
          %v1134 = vunpack.c.h.b16 %v995
          %v1135 = vunpack.c.l.b16 %v996
          %v1136 = vunpack.c.h.b16 %v996
          %v1137 = vunpack.c.l.b16 %v997
          %v1138 = vunpack.c.h.b16 %v997
          %v1139 = vunpack.c.l.b16 %v998
          %v1140 = vunpack.c.h.b16 %v998
          %v1141 = vunpack.c.l.b16 %v999
          %v1142 = vunpack.c.h.b16 %v999
          %v1143 = vunpack.c.l.b16 %v1000
          %v1144 = vunpack.c.h.b16 %v1000
          %v1145 = vunpack.c.l.b16 %v1001
          %v1146 = vunpack.c.h.b16 %v1001
          %v1147 = vunpack.c.l.b16 %v1002
          %v1148 = vunpack.c.h.b16 %v1002
          %v1149 = vunpack.c.l.b16 %v1003
          %v1150 = vunpack.c.h.b16 %v1003
          %v1151 = vunpack.c.l.b16 %v1004
          %v1152 = vunpack.c.h.b16 %v1004
          %v1153 = vunpack.c.l.b16 %v1005
          %v1154 = vunpack.c.h.b16 %v1005
          %v1155 = vunpack.c.l.b16 %v1006
          %v1156 = vunpack.c.h.b16 %v1006
          %v1157 = vunpack.c.l.b16 %v1007
          %v1158 = vunpack.c.h.b16 %v1007
          %v1159 = vunpack.c.l.b16 %v1008
          %v1160 = vunpack.c.h.b16 %v1008
          %v1161 = vunpack.c.l.b16 %v1009
          %v1162 = vunpack.c.h.b16 %v1009
          %v1163 = vunpack.c.l.b16 %v1010
          %v1164 = vunpack.c.h.b16 %v1010
          %v1165 = vpack.c.b16 %v1105, %v1101
          %v1166 = vpack.c.b16 %v1106, %v1102
          %v1167 = vpack.c.b16 %v1107, %v1103
          %v1168 = vpack.c.b16 %v1108, %v1104
          %v1169 = vpack.c.b16 %v1113, %v1109
          %v1170 = vpack.c.b16 %v1114, %v1110
          %v1171 = vpack.c.b16 %v1115, %v1111
          %v1172 = vpack.c.b16 %v1116, %v1112
          %v1173 = vpack.c.b16 %v1121, %v1117
          %v1174 = vpack.c.b16 %v1122, %v1118
          %v1175 = vpack.c.b16 %v1123, %v1119
          %v1176 = vpack.c.b16 %v1124, %v1120
          %v1177 = vpack.c.b16 %v1129, %v1125
          %v1178 = vpack.c.b16 %v1130, %v1126
          %v1179 = vpack.c.b16 %v1131, %v1127
          %v1180 = vpack.c.b16 %v1132, %v1128
          %v1181 = vpack.c.b16 %v1137, %v1133
          %v1182 = vpack.c.b16 %v1138, %v1134
          %v1183 = vpack.c.b16 %v1139, %v1135
          %v1184 = vpack.c.b16 %v1140, %v1136
          %v1185 = vpack.c.b16 %v1145, %v1141
          %v1186 = vpack.c.b16 %v1146, %v1142
          %v1187 = vpack.c.b16 %v1147, %v1143
          %v1188 = vpack.c.b16 %v1148, %v1144
          %v1189 = vpack.c.b16 %v1153, %v1149
          %v1190 = vpack.c.b16 %v1154, %v1150
          %v1191 = vpack.c.b16 %v1155, %v1151
          %v1192 = vpack.c.b16 %v1156, %v1152
          %v1193 = vpack.c.b16 %v1161, %v1157
          %v1194 = vpack.c.b16 %v1162, %v1158
          %v1195 = vpack.c.b16 %v1163, %v1159
          %v1196 = vpack.c.b16 %v1164, %v1160
          %1229 = vmatpush.bf16.msra.mxu0 %v1193
          %1230 = vmatpush.bf16.msra.mxu0 %v1189
          %1231 = vmatpush.bf16.msra.mxu0 %v1185
          %1232 = vmatpush.bf16.msra.mxu0 %v1181
          %1233 = vmatpush.bf16.msra.mxu0 %v1177
          %1234 = vmatpush.bf16.msra.mxu0 %v1173
          %1235 = vmatpush.bf16.msra.mxu0 %v1169
          %1236 = vmatpush.bf16.msra.mxu0 %v1165
          %1237 = vmatmul.bf16.gmra.mxu0 %v1053
          %v1238 = vpop.f32.mrf.mxu0
          %v1239 = vadd.f32 %v1013, %v1238
          %v1240 = vpop.f32.mrf.mxu0
          %v1241 = vadd.f32 %v1013, %v1240
          %1242 = vmatmul.bf16.gmra.mxu0 %v1054
          %v1243 = vpop.f32.mrf.mxu0
          %v1244 = vadd.f32 %v1013, %v1243
          %v1245 = vpop.f32.mrf.mxu0
          %v1246 = vadd.f32 %v1013, %v1245
          %1247 = vmatmul.bf16.gmra.mxu0 %v1055
          %v1248 = vpop.f32.mrf.mxu0
          %v1249 = vadd.f32 %v1013, %v1248
          %v1250 = vpop.f32.mrf.mxu0
          %v1251 = vadd.f32 %v1013, %v1250
          %1252 = vmatmul.bf16.gmra.mxu0 %v1056
          %v1253 = vpop.f32.mrf.mxu0
          %v1254 = vadd.f32 %v1013, %v1253
          %v1255 = vpop.f32.mrf.mxu0
          %v1256 = vadd.f32 %v1013, %v1255
          %1257 = vmatmul.bf16.gmra.mxu0 %v1057
          %v1258 = vpop.f32.mrf.mxu0
          %v1259 = vadd.f32 %v1013, %v1258
          %v1260 = vpop.f32.mrf.mxu0
          %v1261 = vadd.f32 %v1013, %v1260
          %1262 = vmatmul.bf16.gmra.mxu0 %v1058
          %v1263 = vpop.f32.mrf.mxu0
          %v1264 = vadd.f32 %v1013, %v1263
          %v1265 = vpop.f32.mrf.mxu0
          %v1266 = vadd.f32 %v1013, %v1265
          %1267 = vmatmul.bf16.gmra.mxu0 %v1059
          %v1268 = vpop.f32.mrf.mxu0
          %v1269 = vadd.f32 %v1013, %v1268
          %v1270 = vpop.f32.mrf.mxu0
          %v1271 = vadd.f32 %v1013, %v1270
          %1272 = vmatmul.bf16.gmra.mxu0 %v1060
          %v1273 = vpop.f32.mrf.mxu0
          %v1274 = vadd.f32 %v1013, %v1273
          %v1275 = vpop.f32.mrf.mxu0
          %v1276 = vadd.f32 %v1013, %v1275
          %1277 = vdwg.mxu0
          %1278 = vmatpush.bf16.msra.mxu0 %v1194
          %1279 = vmatpush.bf16.msra.mxu0 %v1190
          %1280 = vmatpush.bf16.msra.mxu0 %v1186
          %1281 = vmatpush.bf16.msra.mxu0 %v1182
          %1282 = vmatpush.bf16.msra.mxu0 %v1178
          %1283 = vmatpush.bf16.msra.mxu0 %v1174
          %1284 = vmatpush.bf16.msra.mxu0 %v1170
          %1285 = vmatpush.bf16.msra.mxu0 %v1166
          %1286 = vmatmul.bf16.gmra.mxu0 %v1053
          %v1287 = vpop.f32.mrf.mxu0
          %v1288 = vadd.f32 %v1014, %v1287
          %v1289 = vpop.f32.mrf.mxu0
          %v1290 = vadd.f32 %v1014, %v1289
          %1291 = vmatmul.bf16.gmra.mxu0 %v1054
          %v1292 = vpop.f32.mrf.mxu0
          %v1293 = vadd.f32 %v1014, %v1292
          %v1294 = vpop.f32.mrf.mxu0
          %v1295 = vadd.f32 %v1014, %v1294
          %1296 = vmatmul.bf16.gmra.mxu0 %v1055
          %v1297 = vpop.f32.mrf.mxu0
          %v1298 = vadd.f32 %v1014, %v1297
          %v1299 = vpop.f32.mrf.mxu0
          %v1300 = vadd.f32 %v1014, %v1299
          %1301 = vmatmul.bf16.gmra.mxu0 %v1056
          %v1302 = vpop.f32.mrf.mxu0
          %v1303 = vadd.f32 %v1014, %v1302
          %v1304 = vpop.f32.mrf.mxu0
          %v1305 = vadd.f32 %v1014, %v1304
          %1306 = vmatmul.bf16.gmra.mxu0 %v1057
          %v1307 = vpop.f32.mrf.mxu0
          %v1308 = vadd.f32 %v1014, %v1307
          %v1309 = vpop.f32.mrf.mxu0
          %v1310 = vadd.f32 %v1014, %v1309
          %1311 = vmatmul.bf16.gmra.mxu0 %v1058
          %v1312 = vpop.f32.mrf.mxu0
          %v1313 = vadd.f32 %v1014, %v1312
          %v1314 = vpop.f32.mrf.mxu0
          %v1315 = vadd.f32 %v1014, %v1314
          %1316 = vmatmul.bf16.gmra.mxu0 %v1059
          %v1317 = vpop.f32.mrf.mxu0
          %v1318 = vadd.f32 %v1014, %v1317
          %v1319 = vpop.f32.mrf.mxu0
          %v1320 = vadd.f32 %v1014, %v1319
          %1321 = vmatmul.bf16.gmra.mxu0 %v1060
          %v1322 = vpop.f32.mrf.mxu0
          %v1323 = vadd.f32 %v1014, %v1322
          %v1324 = vpop.f32.mrf.mxu0
          %v1325 = vadd.f32 %v1014, %v1324
          %1326 = vdwg.mxu0
          %1327 = vmatpush.bf16.msra.mxu0 %v1195
          %1328 = vmatpush.bf16.msra.mxu0 %v1191
          %1329 = vmatpush.bf16.msra.mxu0 %v1187
          %1330 = vmatpush.bf16.msra.mxu0 %v1183
          %1331 = vmatpush.bf16.msra.mxu0 %v1179
          %1332 = vmatpush.bf16.msra.mxu0 %v1175
          %1333 = vmatpush.bf16.msra.mxu0 %v1171
          %1334 = vmatpush.bf16.msra.mxu0 %v1167
          %1335 = vmatmul.bf16.gmra.mxu0 %v1053
          %v1336 = vpop.f32.mrf.mxu0
          %v1337 = vadd.f32 %v1015, %v1336
          %v1338 = vpop.f32.mrf.mxu0
          %v1339 = vadd.f32 %v1015, %v1338
          %1340 = vmatmul.bf16.gmra.mxu0 %v1054
          %v1341 = vpop.f32.mrf.mxu0
          %v1342 = vadd.f32 %v1015, %v1341
          %v1343 = vpop.f32.mrf.mxu0
          %v1344 = vadd.f32 %v1015, %v1343
          %1345 = vmatmul.bf16.gmra.mxu0 %v1055
          %v1346 = vpop.f32.mrf.mxu0
          %v1347 = vadd.f32 %v1015, %v1346
          %v1348 = vpop.f32.mrf.mxu0
          %v1349 = vadd.f32 %v1015, %v1348
          %1350 = vmatmul.bf16.gmra.mxu0 %v1056
          %v1351 = vpop.f32.mrf.mxu0
          %v1352 = vadd.f32 %v1015, %v1351
          %v1353 = vpop.f32.mrf.mxu0
          %v1354 = vadd.f32 %v1015, %v1353
          %1355 = vmatmul.bf16.gmra.mxu0 %v1057
          %v1356 = vpop.f32.mrf.mxu0
          %v1357 = vadd.f32 %v1015, %v1356
          %v1358 = vpop.f32.mrf.mxu0
          %v1359 = vadd.f32 %v1015, %v1358
          %1360 = vmatmul.bf16.gmra.mxu0 %v1058
          %v1361 = vpop.f32.mrf.mxu0
          %v1362 = vadd.f32 %v1015, %v1361
          %v1363 = vpop.f32.mrf.mxu0
          %v1364 = vadd.f32 %v1015, %v1363
          %1365 = vmatmul.bf16.gmra.mxu0 %v1059
          %v1366 = vpop.f32.mrf.mxu0
          %v1367 = vadd.f32 %v1015, %v1366
          %v1368 = vpop.f32.mrf.mxu0
          %v1369 = vadd.f32 %v1015, %v1368
          %1370 = vmatmul.bf16.gmra.mxu0 %v1060
          %v1371 = vpop.f32.mrf.mxu0
          %v1372 = vadd.f32 %v1015, %v1371
          %v1373 = vpop.f32.mrf.mxu0
          %v1374 = vadd.f32 %v1015, %v1373
          %1375 = vdwg.mxu0
          %1376 = vmatpush.bf16.msra.mxu0 %v1196
          %1377 = vmatpush.bf16.msra.mxu0 %v1192
          %1378 = vmatpush.bf16.msra.mxu0 %v1188
          %1379 = vmatpush.bf16.msra.mxu0 %v1184
          %1380 = vmatpush.bf16.msra.mxu0 %v1180
          %1381 = vmatpush.bf16.msra.mxu0 %v1176
          %1382 = vmatpush.bf16.msra.mxu0 %v1172
          %1383 = vmatpush.bf16.msra.mxu0 %v1168
          %1384 = vmatmul.bf16.gmra.mxu0 %v1053
          %v1385 = vpop.f32.mrf.mxu0
          %v1386 = vadd.f32 %v1016, %v1385
          %v1387 = vpop.f32.mrf.mxu0
          %v1388 = vadd.f32 %v1016, %v1387
          %1389 = vmatmul.bf16.gmra.mxu0 %v1054
          %v1390 = vpop.f32.mrf.mxu0
          %v1391 = vadd.f32 %v1016, %v1390
          %v1392 = vpop.f32.mrf.mxu0
          %v1393 = vadd.f32 %v1016, %v1392
          %1394 = vmatmul.bf16.gmra.mxu0 %v1055
          %v1395 = vpop.f32.mrf.mxu0
          %v1396 = vadd.f32 %v1016, %v1395
          %v1397 = vpop.f32.mrf.mxu0
          %v1398 = vadd.f32 %v1016, %v1397
          %1399 = vmatmul.bf16.gmra.mxu0 %v1056
          %v1400 = vpop.f32.mrf.mxu0
          %v1401 = vadd.f32 %v1016, %v1400
          %v1402 = vpop.f32.mrf.mxu0
          %v1403 = vadd.f32 %v1016, %v1402
          %1404 = vmatmul.bf16.gmra.mxu0 %v1057
          %v1405 = vpop.f32.mrf.mxu0
          %v1406 = vadd.f32 %v1016, %v1405
          %v1407 = vpop.f32.mrf.mxu0
          %v1408 = vadd.f32 %v1016, %v1407
          %1409 = vmatmul.bf16.gmra.mxu0 %v1058
          %v1410 = vpop.f32.mrf.mxu0
          %v1411 = vadd.f32 %v1016, %v1410
          %v1412 = vpop.f32.mrf.mxu0
          %v1413 = vadd.f32 %v1016, %v1412
          %1414 = vmatmul.bf16.gmra.mxu0 %v1059
          %v1415 = vpop.f32.mrf.mxu0
          %v1416 = vadd.f32 %v1016, %v1415
          %v1417 = vpop.f32.mrf.mxu0
          %v1418 = vadd.f32 %v1016, %v1417
          %1419 = vmatmul.bf16.gmra.mxu0 %v1060
          %v1420 = vpop.f32.mrf.mxu0
          %v1421 = vadd.f32 %v1016, %v1420
          %v1422 = vpop.f32.mrf.mxu0
          %v1423 = vadd.f32 %v1016, %v1422
          %1424 = vdwg.mxu0
          %1425 = vst [vmem:[#allocation3] sm:$0xff] %v1239
          %1426 = vst [vmem:[#allocation3 + $0x8] sm:$0xff] %v1288
          %1427 = vst [vmem:[#allocation3 + $0x10] sm:$0xff] %v1337
          %1428 = vst [vmem:[#allocation3 + $0x18] sm:$0xff] %v1386
          %1429 = vst [vmem:[#allocation3 + $0x20] sm:$0xff] %v1241
          %1430 = vst [vmem:[#allocation3 + $0x28] sm:$0xff] %v1290
          %1431 = vst [vmem:[#allocation3 + $0x30] sm:$0xff] %v1339
          %1432 = vst [vmem:[#allocation3 + $0x38] sm:$0xff] %v1388
          %1433 = vst [vmem:[#allocation3 + $0x40] sm:$0xff] %v1244
          %1434 = vst [vmem:[#allocation3 + $0x48] sm:$0xff] %v1293
          %1435 = vst [vmem:[#allocation3 + $0x50] sm:$0xff] %v1342
          %1436 = vst [vmem:[#allocation3 + $0x58] sm:$0xff] %v1391
          %1437 = vst [vmem:[#allocation3 + $0x60] sm:$0xff] %v1246
          %1438 = vst [vmem:[#allocation3 + $0x68] sm:$0xff] %v1295
          %1439 = vst [vmem:[#allocation3 + $0x70] sm:$0xff] %v1344
          %1440 = vst [vmem:[#allocation3 + $0x78] sm:$0xff] %v1393
          %1441 = vst [vmem:[#allocation3 + $0x80] sm:$0xff] %v1249
          %1442 = vst [vmem:[#allocation3 + $0x88] sm:$0xff] %v1298
          %1443 = vst [vmem:[#allocation3 + $0x90] sm:$0xff] %v1347
          %1444 = vst [vmem:[#allocation3 + $0x98] sm:$0xff] %v1396
          %1445 = vst [vmem:[#allocation3 + $0xa0] sm:$0xff] %v1251
          %1446 = vst [vmem:[#allocation3 + $0xa8] sm:$0xff] %v1300
          %1447 = vst [vmem:[#allocation3 + $0xb0] sm:$0xff] %v1349
          %1448 = vst [vmem:[#allocation3 + $0xb8] sm:$0xff] %v1398
          %1449 = vst [vmem:[#allocation3 + $0xc0] sm:$0xff] %v1254
          %1450 = vst [vmem:[#allocation3 + $0xc8] sm:$0xff] %v1303
          %1451 = vst [vmem:[#allocation3 + $0xd0] sm:$0xff] %v1352
          %1452 = vst [vmem:[#allocation3 + $0xd8] sm:$0xff] %v1401
          %1453 = vst [vmem:[#allocation3 + $0xe0] sm:$0xff] %v1256
          %1454 = vst [vmem:[#allocation3 + $0xe8] sm:$0xff] %v1305
          %1455 = vst [vmem:[#allocation3 + $0xf0] sm:$0xff] %v1354
          %1456 = vst [vmem:[#allocation3 + $0xf8] sm:$0xff] %v1403
          %1457 = vst [vmem:[#allocation3 + $0x100] sm:$0xff] %v1259
          %1458 = vst [vmem:[#allocation3 + $0x108] sm:$0xff] %v1308
          %1459 = vst [vmem:[#allocation3 + $0x110] sm:$0xff] %v1357
          %1460 = vst [vmem:[#allocation3 + $0x118] sm:$0xff] %v1406
          %1461 = vst [vmem:[#allocation3 + $0x120] sm:$0xff] %v1261
          %1462 = vst [vmem:[#allocation3 + $0x128] sm:$0xff] %v1310
          %1463 = vst [vmem:[#allocation3 + $0x130] sm:$0xff] %v1359
          %1464 = vst [vmem:[#allocation3 + $0x138] sm:$0xff] %v1408
          %1465 = vst [vmem:[#allocation3 + $0x140] sm:$0xff] %v1264
          %1466 = vst [vmem:[#allocation3 + $0x148] sm:$0xff] %v1313
          %1467 = vst [vmem:[#allocation3 + $0x150] sm:$0xff] %v1362
          %1468 = vst [vmem:[#allocation3 + $0x158] sm:$0xff] %v1411
          %1469 = vst [vmem:[#allocation3 + $0x160] sm:$0xff] %v1266
          %1470 = vst [vmem:[#allocation3 + $0x168] sm:$0xff] %v1315
          %1471 = vst [vmem:[#allocation3 + $0x170] sm:$0xff] %v1364
          %1472 = vst [vmem:[#allocation3 + $0x178] sm:$0xff] %v1413
          %1473 = vst [vmem:[#allocation3 + $0x180] sm:$0xff] %v1269
          %1474 = vst [vmem:[#allocation3 + $0x188] sm:$0xff] %v1318
          %1475 = vst [vmem:[#allocation3 + $0x190] sm:$0xff] %v1367
          %1476 = vst [vmem:[#allocation3 + $0x198] sm:$0xff] %v1416
          %1477 = vst [vmem:[#allocation3 + $0x1a0] sm:$0xff] %v1271
          %1478 = vst [vmem:[#allocation3 + $0x1a8] sm:$0xff] %v1320
          %1479 = vst [vmem:[#allocation3 + $0x1b0] sm:$0xff] %v1369
          %1480 = vst [vmem:[#allocation3 + $0x1b8] sm:$0xff] %v1418
          %1481 = vst [vmem:[#allocation3 + $0x1c0] sm:$0xff] %v1274
          %1482 = vst [vmem:[#allocation3 + $0x1c8] sm:$0xff] %v1323
          %1483 = vst [vmem:[#allocation3 + $0x1d0] sm:$0xff] %v1372
          %1484 = vst [vmem:[#allocation3 + $0x1d8] sm:$0xff] %v1421
          %1485 = vst [vmem:[#allocation3 + $0x1e0] sm:$0xff] %v1276
          %1486 = vst [vmem:[#allocation3 + $0x1e8] sm:$0xff] %v1325
          %1487 = vst [vmem:[#allocation3 + $0x1f0] sm:$0xff] %v1374
          %1488 = vst [vmem:[#allocation3 + $0x1f8] sm:$0xff] %v1423
        $region60: #{encoder_forward.1} parent=39 // pred_fallthru
          _
        %v1489 = vld [vmem:[#allocation3] sm:$0xff]
        %v1490 = vld [vmem:[#allocation3 + $0x8] sm:$0xff]
        %v1491 = vld [vmem:[#allocation3 + $0x10] sm:$0xff]
        %v1492 = vld [vmem:[#allocation3 + $0x18] sm:$0xff]
        %v1493 = vld [vmem:[#allocation3 + $0x20] sm:$0xff]
        %v1494 = vld [vmem:[#allocation3 + $0x28] sm:$0xff]
        %v1495 = vld [vmem:[#allocation3 + $0x30] sm:$0xff]
        %v1496 = vld [vmem:[#allocation3 + $0x38] sm:$0xff]
        %v1497 = vld [vmem:[%s338] sm:$0xff]
        %v1498 = vld [vmem:[%s338 + $0x8] sm:$0xff]
        %v1499 = vld [vmem:[%s338 + $0x10] sm:$0xff]
        %v1500 = vld [vmem:[%s338 + $0x18] sm:$0xff]
        %v1501 = vld [vmem:[%s338 + $0x20] sm:$0xff]
        %v1502 = vld [vmem:[%s338 + $0x28] sm:$0xff]
        %v1503 = vld [vmem:[%s338 + $0x30] sm:$0xff]
        %v1504 = vld [vmem:[%s338 + $0x38] sm:$0xff]
        %v1505 = vld [vmem:[%s338 + $0x40] sm:$0xff]
        %v1506 = vld [vmem:[%s338 + $0x48] sm:$0xff]
        %v1507 = vld [vmem:[%s338 + $0x50] sm:$0xff]
        %v1508 = vld [vmem:[%s338 + $0x58] sm:$0xff]
        %v1509 = vld [vmem:[%s338 + $0x60] sm:$0xff]
        %v1510 = vld [vmem:[%s338 + $0x68] sm:$0xff]
        %v1511 = vld [vmem:[%s338 + $0x70] sm:$0xff]
        %v1512 = vld [vmem:[%s338 + $0x78] sm:$0xff]
        %v1513 = vld [vmem:[%s338 + $0x80] sm:$0xff]
        %v1514 = vld [vmem:[%s338 + $0x88] sm:$0xff]
        %v1515 = vld [vmem:[%s338 + $0x90] sm:$0xff]
        %v1516 = vld [vmem:[%s338 + $0x98] sm:$0xff]
        %v1517 = vld [vmem:[%s338 + $0xa0] sm:$0xff]
        %v1518 = vld [vmem:[%s338 + $0xa8] sm:$0xff]
        %v1519 = vld [vmem:[%s338 + $0xb0] sm:$0xff]
        %v1520 = vld [vmem:[%s338 + $0xb8] sm:$0xff]
        %v1521 = vld [vmem:[%s338 + $0xc0] sm:$0xff]
        %v1522 = vld [vmem:[%s338 + $0xc8] sm:$0xff]
        %v1523 = vld [vmem:[%s338 + $0xd0] sm:$0xff]
        %v1524 = vld [vmem:[%s338 + $0xd8] sm:$0xff]
        %v1525 = vld [vmem:[%s338 + $0xe0] sm:$0xff]
        %v1526 = vld [vmem:[%s338 + $0xe8] sm:$0xff]
        %v1527 = vld [vmem:[%s338 + $0xf0] sm:$0xff]
        %v1528 = vld [vmem:[%s338 + $0xf8] sm:$0xff]
        %v1561 = vunpack.c.l.b16 %v1497
        %v1562 = vunpack.c.h.b16 %v1497
        %v1563 = vunpack.c.l.b16 %v1498
        %v1564 = vunpack.c.h.b16 %v1498
        %v1565 = vunpack.c.l.b16 %v1499
        %v1566 = vunpack.c.h.b16 %v1499
        %v1567 = vunpack.c.l.b16 %v1500
        %v1568 = vunpack.c.h.b16 %v1500
        %v1569 = vunpack.c.l.b16 %v1501
        %v1570 = vunpack.c.h.b16 %v1501
        %v1571 = vunpack.c.l.b16 %v1502
        %v1572 = vunpack.c.h.b16 %v1502
        %v1573 = vunpack.c.l.b16 %v1503
        %v1574 = vunpack.c.h.b16 %v1503
        %v1575 = vunpack.c.l.b16 %v1504
        %v1576 = vunpack.c.h.b16 %v1504
        %v1577 = vunpack.c.l.b16 %v1505
        %v1578 = vunpack.c.h.b16 %v1505
        %v1579 = vunpack.c.l.b16 %v1506
        %v1580 = vunpack.c.h.b16 %v1506
        %v1581 = vunpack.c.l.b16 %v1507
        %v1582 = vunpack.c.h.b16 %v1507
        %v1583 = vunpack.c.l.b16 %v1508
        %v1584 = vunpack.c.h.b16 %v1508
        %v1585 = vunpack.c.l.b16 %v1509
        %v1586 = vunpack.c.h.b16 %v1509
        %v1587 = vunpack.c.l.b16 %v1510
        %v1588 = vunpack.c.h.b16 %v1510
        %v1589 = vunpack.c.l.b16 %v1511
        %v1590 = vunpack.c.h.b16 %v1511
        %v1591 = vunpack.c.l.b16 %v1512
        %v1592 = vunpack.c.h.b16 %v1512
        %v1593 = vunpack.c.l.b16 %v1513
        %v1594 = vunpack.c.h.b16 %v1513
        %v1595 = vunpack.c.l.b16 %v1514
        %v1596 = vunpack.c.h.b16 %v1514
        %v1597 = vunpack.c.l.b16 %v1515
        %v1598 = vunpack.c.h.b16 %v1515
        %v1599 = vunpack.c.l.b16 %v1516
        %v1600 = vunpack.c.h.b16 %v1516
        %v1601 = vunpack.c.l.b16 %v1517
        %v1602 = vunpack.c.h.b16 %v1517
        %v1603 = vunpack.c.l.b16 %v1518
        %v1604 = vunpack.c.h.b16 %v1518
        %v1605 = vunpack.c.l.b16 %v1519
        %v1606 = vunpack.c.h.b16 %v1519
        %v1607 = vunpack.c.l.b16 %v1520
        %v1608 = vunpack.c.h.b16 %v1520
        %v1609 = vunpack.c.l.b16 %v1521
        %v1610 = vunpack.c.h.b16 %v1521
        %v1611 = vunpack.c.l.b16 %v1522
        %v1612 = vunpack.c.h.b16 %v1522
        %v1613 = vunpack.c.l.b16 %v1523
        %v1614 = vunpack.c.h.b16 %v1523
        %v1615 = vunpack.c.l.b16 %v1524
        %v1616 = vunpack.c.h.b16 %v1524
        %v1617 = vunpack.c.l.b16 %v1525
        %v1618 = vunpack.c.h.b16 %v1525
        %v1619 = vunpack.c.l.b16 %v1526
        %v1620 = vunpack.c.h.b16 %v1526
        %v1621 = vunpack.c.l.b16 %v1527
        %v1622 = vunpack.c.h.b16 %v1527
        %v1623 = vunpack.c.l.b16 %v1528
        %v1624 = vunpack.c.h.b16 %v1528
        %v1625 = vpack.c.b16 %v1565, %v1561
        %v1626 = vpack.c.b16 %v1566, %v1562
        %v1627 = vpack.c.b16 %v1567, %v1563
        %v1628 = vpack.c.b16 %v1568, %v1564
        %v1629 = vpack.c.b16 %v1573, %v1569
        %v1630 = vpack.c.b16 %v1574, %v1570
        %v1631 = vpack.c.b16 %v1575, %v1571
        %v1632 = vpack.c.b16 %v1576, %v1572
        %v1633 = vpack.c.b16 %v1581, %v1577
        %v1634 = vpack.c.b16 %v1582, %v1578
        %v1635 = vpack.c.b16 %v1583, %v1579
        %v1636 = vpack.c.b16 %v1584, %v1580
        %v1637 = vpack.c.b16 %v1589, %v1585
        %v1638 = vpack.c.b16 %v1590, %v1586
        %v1639 = vpack.c.b16 %v1591, %v1587
        %v1640 = vpack.c.b16 %v1592, %v1588
        %v1641 = vpack.c.b16 %v1597, %v1593
        %v1642 = vpack.c.b16 %v1598, %v1594
        %v1643 = vpack.c.b16 %v1599, %v1595
        %v1644 = vpack.c.b16 %v1600, %v1596
        %v1645 = vpack.c.b16 %v1605, %v1601
        %v1646 = vpack.c.b16 %v1606, %v1602
        %v1647 = vpack.c.b16 %v1607, %v1603
        %v1648 = vpack.c.b16 %v1608, %v1604
        %v1649 = vpack.c.b16 %v1613, %v1609
        %v1650 = vpack.c.b16 %v1614, %v1610
        %v1651 = vpack.c.b16 %v1615, %v1611
        %v1652 = vpack.c.b16 %v1616, %v1612
        %v1653 = vpack.c.b16 %v1621, %v1617
        %v1654 = vpack.c.b16 %v1622, %v1618
        %v1655 = vpack.c.b16 %v1623, %v1619
        %v1656 = vpack.c.b16 %v1624, %v1620
        %1689 = vmatpush.bf16.msra.mxu0 %v1653
        %1690 = vmatpush.bf16.msra.mxu0 %v1649
        %1691 = vmatpush.bf16.msra.mxu0 %v1645
        %1692 = vmatpush.bf16.msra.mxu0 %v1641
        %1693 = vmatpush.bf16.msra.mxu0 %v1637
        %1694 = vmatpush.bf16.msra.mxu0 %v1633
        %1695 = vmatpush.bf16.msra.mxu0 %v1629
        %1696 = vmatpush.bf16.msra.mxu0 %v1625
        %1697 = vmatmul.bf16.gmra.mxu0 0
        %v1698 = vpop.f32.mrf.mxu0
        %v1699 = vadd.f32 0.0, %v1698
        %v1700 = vpop.f32.mrf.mxu0
        %v1701 = vadd.f32 0.0, %v1700
        %1702 = vdwg.mxu0
        %1703 = vmatpush.bf16.msra.mxu0 %v1654
        %1704 = vmatpush.bf16.msra.mxu0 %v1650
        %1705 = vmatpush.bf16.msra.mxu0 %v1646
        %1706 = vmatpush.bf16.msra.mxu0 %v1642
        %1707 = vmatpush.bf16.msra.mxu0 %v1638
        %1708 = vmatpush.bf16.msra.mxu0 %v1634
        %1709 = vmatpush.bf16.msra.mxu0 %v1630
        %1710 = vmatpush.bf16.msra.mxu0 %v1626
        %1711 = vmatmul.bf16.gmra.mxu0 0
        %v1712 = vpop.f32.mrf.mxu0
        %v1713 = vadd.f32 0.0, %v1712
        %v1714 = vpop.f32.mrf.mxu0
        %v1715 = vadd.f32 0.0, %v1714
        %1716 = vdwg.mxu0
        %1717 = vmatpush.bf16.msra.mxu0 %v1655
        %1718 = vmatpush.bf16.msra.mxu0 %v1651
        %1719 = vmatpush.bf16.msra.mxu0 %v1647
        %1720 = vmatpush.bf16.msra.mxu0 %v1643
        %1721 = vmatpush.bf16.msra.mxu0 %v1639
        %1722 = vmatpush.bf16.msra.mxu0 %v1635
        %1723 = vmatpush.bf16.msra.mxu0 %v1631
        %1724 = vmatpush.bf16.msra.mxu0 %v1627
        %1725 = vmatmul.bf16.gmra.mxu0 0
        %v1726 = vpop.f32.mrf.mxu0
        %v1727 = vadd.f32 0.0, %v1726
        %v1728 = vpop.f32.mrf.mxu0
        %v1729 = vadd.f32 0.0, %v1728
        %1730 = vdwg.mxu0
        %1731 = vmatpush.bf16.msra.mxu0 %v1656
        %1732 = vmatpush.bf16.msra.mxu0 %v1652
        %1733 = vmatpush.bf16.msra.mxu0 %v1648
        %1734 = vmatpush.bf16.msra.mxu0 %v1644
        %1735 = vmatpush.bf16.msra.mxu0 %v1640
        %1736 = vmatpush.bf16.msra.mxu0 %v1636
        %1737 = vmatpush.bf16.msra.mxu0 %v1632
        %1738 = vmatpush.bf16.msra.mxu0 %v1628
        %1739 = vmatmul.bf16.gmra.mxu0 0
        %v1740 = vpop.f32.mrf.mxu0
        %v1741 = vadd.f32 0.0, %v1740
        %v1742 = vpop.f32.mrf.mxu0
        %v1743 = vadd.f32 0.0, %v1742
        %1744 = vdwg.mxu0
        %v1745 = vadd.f32 %v1489, %v1699
        %v1746 = vadd.f32 %v1490, %v1713
        %v1747 = vadd.f32 %v1491, %v1727
        %v1748 = vadd.f32 %v1492, %v1741
        %v1749 = vadd.f32 %v1493, %v1701
        %v1750 = vadd.f32 %v1494, %v1715
        %v1751 = vadd.f32 %v1495, %v1729
        %v1752 = vadd.f32 %v1496, %v1743
        %v1753 = vmul.f32 %v1745, 0.5
        %v1754 = vmul.f32 %v1749, 0.5
        %v1755 = vtanh.pop %v1753
        %v1756 = vtanh.pop %v1754
        %v1757 = vadd.f32 %v1755, 1.0
        %v1758 = vadd.f32 %v1756, 1.0
        %v1759 = vmul.f32 %v1757, 0.5
        %v1760 = vmul.f32 %v1758, 0.5
        %v1761 = vmul.f32 %v1746, 0.5
        %v1762 = vmul.f32 %v1750, 0.5
        %v1763 = vtanh.pop %v1761
        %v1764 = vtanh.pop %v1762
        %v1765 = vadd.f32 %v1763, 1.0
        %v1766 = vadd.f32 %v1764, 1.0
        %v1767 = vmul.f32 %v1765, 0.5
        %v1768 = vmul.f32 %v1766, 0.5
        %v1769 = vtanh.pop %v1747
        %v1770 = vtanh.pop %v1751
        %v1771 = vmul.f32 %v1748, 0.5
        %v1772 = vmul.f32 %v1752, 0.5
        %v1773 = vtanh.pop %v1771
        %v1774 = vtanh.pop %v1772
        %v1775 = vadd.f32 %v1773, 1.0
        %v1776 = vadd.f32 %v1774, 1.0
        %v1777 = vmul.f32 %v1775, 0.5
        %v1778 = vmul.f32 %v1776, 0.5
        %v1779 = vmul.f32 %v1767, 0.0
        %v1780 = vmul.f32 %v1768, 0.0
        %v1781 = vmul.f32 %v1759, %v1769
        %v1782 = vmul.f32 %v1760, %v1770
        %v1783 = vadd.f32 %v1779, %v1781
        %v1784 = vadd.f32 %v1780, %v1782
        %v1785 = vtanh.pop %v1783
        %v1786 = vtanh.pop %v1784
        %v1787 = vmul.f32 %v1777, %v1785
        %v1788 = vmul.f32 %v1778, %v1786
        %v1789 = vpack.c.bf16 %v1787, %v1787
        %v1790 = vpack.c.bf16 %v1788, %v1788
        %1791 = vst [vmem:[#allocation2] sm:$0xf] %v1789
        %1792 = vst [vmem:[#allocation2 + $0x4] sm:$0xf] %v1790
        %s1793 = scalar_lea.vmem [#allocation3], 64
        %v1794 = vld [vmem:[%s1793] sm:$0xff]
        %v1795 = vld [vmem:[%s1793 + $0x8] sm:$0xff]
        %v1796 = vld [vmem:[%s1793 + $0x10] sm:$0xff]
        %v1797 = vld [vmem:[%s1793 + $0x18] sm:$0xff]
        %v1798 = vld [vmem:[%s1793 + $0x20] sm:$0xff]
        %v1799 = vld [vmem:[%s1793 + $0x28] sm:$0xff]
        %v1800 = vld [vmem:[%s1793 + $0x30] sm:$0xff]
        %v1801 = vld [vmem:[%s1793 + $0x38] sm:$0xff]
        %v1802 = vld [vmem:[%s338] sm:$0xff]
        %v1803 = vld [vmem:[%s338 + $0x8] sm:$0xff]
        %v1804 = vld [vmem:[%s338 + $0x10] sm:$0xff]
        %v1805 = vld [vmem:[%s338 + $0x18] sm:$0xff]
        %v1806 = vld [vmem:[%s338 + $0x20] sm:$0xff]
        %v1807 = vld [vmem:[%s338 + $0x28] sm:$0xff]
        %v1808 = vld [vmem:[%s338 + $0x30] sm:$0xff]
        %v1809 = vld [vmem:[%s338 + $0x38] sm:$0xff]
        %v1810 = vld [vmem:[%s338 + $0x40] sm:$0xff]
        %v1811 = vld [vmem:[%s338 + $0x48] sm:$0xff]
        %v1812 = vld [vmem:[%s338 + $0x50] sm:$0xff]
        %v1813 = vld [vmem:[%s338 + $0x58] sm:$0xff]
        %v1814 = vld [vmem:[%s338 + $0x60] sm:$0xff]
        %v1815 = vld [vmem:[%s338 + $0x68] sm:$0xff]
        %v1816 = vld [vmem:[%s338 + $0x70] sm:$0xff]
        %v1817 = vld [vmem:[%s338 + $0x78] sm:$0xff]
        %v1818 = vld [vmem:[%s338 + $0x80] sm:$0xff]
        %v1819 = vld [vmem:[%s338 + $0x88] sm:$0xff]
        %v1820 = vld [vmem:[%s338 + $0x90] sm:$0xff]
        %v1821 = vld [vmem:[%s338 + $0x98] sm:$0xff]
        %v1822 = vld [vmem:[%s338 + $0xa0] sm:$0xff]
        %v1823 = vld [vmem:[%s338 + $0xa8] sm:$0xff]
        %v1824 = vld [vmem:[%s338 + $0xb0] sm:$0xff]
        %v1825 = vld [vmem:[%s338 + $0xb8] sm:$0xff]
        %v1826 = vld [vmem:[%s338 + $0xc0] sm:$0xff]
        %v1827 = vld [vmem:[%s338 + $0xc8] sm:$0xff]
        %v1828 = vld [vmem:[%s338 + $0xd0] sm:$0xff]
        %v1829 = vld [vmem:[%s338 + $0xd8] sm:$0xff]
        %v1830 = vld [vmem:[%s338 + $0xe0] sm:$0xff]
        %v1831 = vld [vmem:[%s338 + $0xe8] sm:$0xff]
        %v1832 = vld [vmem:[%s338 + $0xf0] sm:$0xff]
        %v1833 = vld [vmem:[%s338 + $0xf8] sm:$0xff]
        %v1836 = vunpack.c.l.b16 %v1789
        %v1837 = vunpack.c.l.b16 %v1790
        %v1838 = vpack.c.b16 %v1837, %v1836
        %v1872 = vunpack.c.l.b16 %v1802
        %v1873 = vunpack.c.h.b16 %v1802
        %v1874 = vunpack.c.l.b16 %v1803
        %v1875 = vunpack.c.h.b16 %v1803
        %v1876 = vunpack.c.l.b16 %v1804
        %v1877 = vunpack.c.h.b16 %v1804
        %v1878 = vunpack.c.l.b16 %v1805
        %v1879 = vunpack.c.h.b16 %v1805
        %v1880 = vunpack.c.l.b16 %v1806
        %v1881 = vunpack.c.h.b16 %v1806
        %v1882 = vunpack.c.l.b16 %v1807
        %v1883 = vunpack.c.h.b16 %v1807
        %v1884 = vunpack.c.l.b16 %v1808
        %v1885 = vunpack.c.h.b16 %v1808
        %v1886 = vunpack.c.l.b16 %v1809
        %v1887 = vunpack.c.h.b16 %v1809
        %v1888 = vunpack.c.l.b16 %v1810
        %v1889 = vunpack.c.h.b16 %v1810
        %v1890 = vunpack.c.l.b16 %v1811
        %v1891 = vunpack.c.h.b16 %v1811
        %v1892 = vunpack.c.l.b16 %v1812
        %v1893 = vunpack.c.h.b16 %v1812
        %v1894 = vunpack.c.l.b16 %v1813
        %v1895 = vunpack.c.h.b16 %v1813
        %v1896 = vunpack.c.l.b16 %v1814
        %v1897 = vunpack.c.h.b16 %v1814
        %v1898 = vunpack.c.l.b16 %v1815
        %v1899 = vunpack.c.h.b16 %v1815
        %v1900 = vunpack.c.l.b16 %v1816
        %v1901 = vunpack.c.h.b16 %v1816
        %v1902 = vunpack.c.l.b16 %v1817
        %v1903 = vunpack.c.h.b16 %v1817
        %v1904 = vunpack.c.l.b16 %v1818
        %v1905 = vunpack.c.h.b16 %v1818
        %v1906 = vunpack.c.l.b16 %v1819
        %v1907 = vunpack.c.h.b16 %v1819
        %v1908 = vunpack.c.l.b16 %v1820
        %v1909 = vunpack.c.h.b16 %v1820
        %v1910 = vunpack.c.l.b16 %v1821
        %v1911 = vunpack.c.h.b16 %v1821
        %v1912 = vunpack.c.l.b16 %v1822
        %v1913 = vunpack.c.h.b16 %v1822
        %v1914 = vunpack.c.l.b16 %v1823
        %v1915 = vunpack.c.h.b16 %v1823
        %v1916 = vunpack.c.l.b16 %v1824
        %v1917 = vunpack.c.h.b16 %v1824
        %v1918 = vunpack.c.l.b16 %v1825
        %v1919 = vunpack.c.h.b16 %v1825
        %v1920 = vunpack.c.l.b16 %v1826
        %v1921 = vunpack.c.h.b16 %v1826
        %v1922 = vunpack.c.l.b16 %v1827
        %v1923 = vunpack.c.h.b16 %v1827
        %v1924 = vunpack.c.l.b16 %v1828
        %v1925 = vunpack.c.h.b16 %v1828
        %v1926 = vunpack.c.l.b16 %v1829
        %v1927 = vunpack.c.h.b16 %v1829
        %v1928 = vunpack.c.l.b16 %v1830
        %v1929 = vunpack.c.h.b16 %v1830
        %v1930 = vunpack.c.l.b16 %v1831
        %v1931 = vunpack.c.h.b16 %v1831
        %v1932 = vunpack.c.l.b16 %v1832
        %v1933 = vunpack.c.h.b16 %v1832
        %v1934 = vunpack.c.l.b16 %v1833
        %v1935 = vunpack.c.h.b16 %v1833
        %v1936 = vpack.c.b16 %v1876, %v1872
        %v1937 = vpack.c.b16 %v1877, %v1873
        %v1938 = vpack.c.b16 %v1878, %v1874
        %v1939 = vpack.c.b16 %v1879, %v1875
        %v1940 = vpack.c.b16 %v1884, %v1880
        %v1941 = vpack.c.b16 %v1885, %v1881
        %v1942 = vpack.c.b16 %v1886, %v1882
        %v1943 = vpack.c.b16 %v1887, %v1883
        %v1944 = vpack.c.b16 %v1892, %v1888
        %v1945 = vpack.c.b16 %v1893, %v1889
        %v1946 = vpack.c.b16 %v1894, %v1890
        %v1947 = vpack.c.b16 %v1895, %v1891
        %v1948 = vpack.c.b16 %v1900, %v1896
        %v1949 = vpack.c.b16 %v1901, %v1897
        %v1950 = vpack.c.b16 %v1902, %v1898
        %v1951 = vpack.c.b16 %v1903, %v1899
        %v1952 = vpack.c.b16 %v1908, %v1904
        %v1953 = vpack.c.b16 %v1909, %v1905
        %v1954 = vpack.c.b16 %v1910, %v1906
        %v1955 = vpack.c.b16 %v1911, %v1907
        %v1956 = vpack.c.b16 %v1916, %v1912
        %v1957 = vpack.c.b16 %v1917, %v1913
        %v1958 = vpack.c.b16 %v1918, %v1914
        %v1959 = vpack.c.b16 %v1919, %v1915
        %v1960 = vpack.c.b16 %v1924, %v1920
        %v1961 = vpack.c.b16 %v1925, %v1921
        %v1962 = vpack.c.b16 %v1926, %v1922
        %v1963 = vpack.c.b16 %v1927, %v1923
        %v1964 = vpack.c.b16 %v1932, %v1928
        %v1965 = vpack.c.b16 %v1933, %v1929
        %v1966 = vpack.c.b16 %v1934, %v1930
        %v1967 = vpack.c.b16 %v1935, %v1931
        %2000 = vmatpush.bf16.msra.mxu0 %v1964
        %2001 = vmatpush.bf16.msra.mxu0 %v1960
        %2002 = vmatpush.bf16.msra.mxu0 %v1956
        %2003 = vmatpush.bf16.msra.mxu0 %v1952
        %2004 = vmatpush.bf16.msra.mxu0 %v1948
        %2005 = vmatpush.bf16.msra.mxu0 %v1944
        %2006 = vmatpush.bf16.msra.mxu0 %v1940
        %2007 = vmatpush.bf16.msra.mxu0 %v1936
        %2008 = vmatmul.bf16.gmra.mxu0 %v1838
        %v2009 = vpop.f32.mrf.mxu0
        %v2010 = vadd.f32 0.0, %v2009
        %v2011 = vpop.f32.mrf.mxu0
        %v2012 = vadd.f32 0.0, %v2011
        %2013 = vdwg.mxu0
        %2014 = vmatpush.bf16.msra.mxu0 %v1965
        %2015 = vmatpush.bf16.msra.mxu0 %v1961
        %2016 = vmatpush.bf16.msra.mxu0 %v1957
        %2017 = vmatpush.bf16.msra.mxu0 %v1953
        %2018 = vmatpush.bf16.msra.mxu0 %v1949
        %2019 = vmatpush.bf16.msra.mxu0 %v1945
        %2020 = vmatpush.bf16.msra.mxu0 %v1941
        %2021 = vmatpush.bf16.msra.mxu0 %v1937
        %2022 = vmatmul.bf16.gmra.mxu0 %v1838
        %v2023 = vpop.f32.mrf.mxu0
        %v2024 = vadd.f32 0.0, %v2023
        %v2025 = vpop.f32.mrf.mxu0
        %v2026 = vadd.f32 0.0, %v2025
        %2027 = vdwg.mxu0
        %2028 = vmatpush.bf16.msra.mxu0 %v1966
        %2029 = vmatpush.bf16.msra.mxu0 %v1962
        %2030 = vmatpush.bf16.msra.mxu0 %v1958
        %2031 = vmatpush.bf16.msra.mxu0 %v1954
        %2032 = vmatpush.bf16.msra.mxu0 %v1950
        %2033 = vmatpush.bf16.msra.mxu0 %v1946
        %2034 = vmatpush.bf16.msra.mxu0 %v1942
        %2035 = vmatpush.bf16.msra.mxu0 %v1938
        %2036 = vmatmul.bf16.gmra.mxu0 %v1838
        %v2037 = vpop.f32.mrf.mxu0
        %v2038 = vadd.f32 0.0, %v2037
        %v2039 = vpop.f32.mrf.mxu0
        %v2040 = vadd.f32 0.0, %v2039
        %2041 = vdwg.mxu0
        %2042 = vmatpush.bf16.msra.mxu0 %v1967
        %2043 = vmatpush.bf16.msra.mxu0 %v1963
        %2044 = vmatpush.bf16.msra.mxu0 %v1959
        %2045 = vmatpush.bf16.msra.mxu0 %v1955
        %2046 = vmatpush.bf16.msra.mxu0 %v1951
        %2047 = vmatpush.bf16.msra.mxu0 %v1947
        %2048 = vmatpush.bf16.msra.mxu0 %v1943
        %2049 = vmatpush.bf16.msra.mxu0 %v1939
        %2050 = vmatmul.bf16.gmra.mxu0 %v1838
        %v2051 = vpop.f32.mrf.mxu0
        %v2052 = vadd.f32 0.0, %v2051
        %v2053 = vpop.f32.mrf.mxu0
        %v2054 = vadd.f32 0.0, %v2053
        %2055 = vdwg.mxu0
        %v2056 = vadd.f32 %v1794, %v2010
        %v2057 = vadd.f32 %v1795, %v2024
        %v2058 = vadd.f32 %v1796, %v2038
        %v2059 = vadd.f32 %v1797, %v2052
        %v2060 = vadd.f32 %v1798, %v2012
        %v2061 = vadd.f32 %v1799, %v2026
        %v2062 = vadd.f32 %v1800, %v2040
        %v2063 = vadd.f32 %v1801, %v2054
        %v2064 = vmul.f32 %v2056, 0.5
        %v2065 = vmul.f32 %v2060, 0.5
        %v2066 = vtanh.pop %v2064
        %v2067 = vtanh.pop %v2065
        %v2068 = vadd.f32 %v2066, 1.0
        %v2069 = vadd.f32 %v2067, 1.0
        %v2070 = vmul.f32 %v2068, 0.5
        %v2071 = vmul.f32 %v2069, 0.5
        %v2072 = vmul.f32 %v2057, 0.5
        %v2073 = vmul.f32 %v2061, 0.5
        %v2074 = vtanh.pop %v2072
        %v2075 = vtanh.pop %v2073
        %v2076 = vadd.f32 %v2074, 1.0
        %v2077 = vadd.f32 %v2075, 1.0
        %v2078 = vmul.f32 %v2076, 0.5
        %v2079 = vmul.f32 %v2077, 0.5
        %v2080 = vtanh.pop %v2058
        %v2081 = vtanh.pop %v2062
        %v2082 = vmul.f32 %v2059, 0.5
        %v2083 = vmul.f32 %v2063, 0.5
        %v2084 = vtanh.pop %v2082
        %v2085 = vtanh.pop %v2083
        %v2086 = vadd.f32 %v2084, 1.0
        %v2087 = vadd.f32 %v2085, 1.0
        %v2088 = vmul.f32 %v2086, 0.5
        %v2089 = vmul.f32 %v2087, 0.5
        %v2090 = vmul.f32 %v2078, %v1783
        %v2091 = vmul.f32 %v2079, %v1784
        %v2092 = vmul.f32 %v2070, %v2080
        %v2093 = vmul.f32 %v2071, %v2081
        %v2094 = vadd.f32 %v2090, %v2092
        %v2095 = vadd.f32 %v2091, %v2093
        %v2096 = vtanh.pop %v2094
        %v2097 = vtanh.pop %v2095
        %v2098 = vmul.f32 %v2088, %v2096
        %v2099 = vmul.f32 %v2089, %v2097
        %v2100 = vpack.c.bf16 %v2098, %v2098
        %v2101 = vpack.c.bf16 %v2099, %v2099
        %s2102 = scalar_lea.vmem [#allocation2], 8
        %2103 = vst [vmem:[%s2102] sm:$0xf] %v2100
        %2104 = vst [vmem:[%s2102 + $0x4] sm:$0xf] %v2101
        %s2105 = scalar_lea.vmem [#allocation3], 128
        %v2106 = vld [vmem:[%s2105] sm:$0xff]
        %v2107 = vld [vmem:[%s2105 + $0x8] sm:$0xff]
        %v2108 = vld [vmem:[%s2105 + $0x10] sm:$0xff]
        %v2109 = vld [vmem:[%s2105 + $0x18] sm:$0xff]
        %v2110 = vld [vmem:[%s2105 + $0x20] sm:$0xff]
        %v2111 = vld [vmem:[%s2105 + $0x28] sm:$0xff]
        %v2112 = vld [vmem:[%s2105 + $0x30] sm:$0xff]
        %v2113 = vld [vmem:[%s2105 + $0x38] sm:$0xff]
        %v2114 = vld [vmem:[%s338] sm:$0xff]
        %v2115 = vld [vmem:[%s338 + $0x8] sm:$0xff]
        %v2116 = vld [vmem:[%s338 + $0x10] sm:$0xff]
        %v2117 = vld [vmem:[%s338 + $0x18] sm:$0xff]
        %v2118 = vld [vmem:[%s338 + $0x20] sm:$0xff]
        %v2119 = vld [vmem:[%s338 + $0x28] sm:$0xff]
        %v2120 = vld [vmem:[%s338 + $0x30] sm:$0xff]
        %v2121 = vld [vmem:[%s338 + $0x38] sm:$0xff]
        %v2122 = vld [vmem:[%s338 + $0x40] sm:$0xff]
        %v2123 = vld [vmem:[%s338 + $0x48] sm:$0xff]
        %v2124 = vld [vmem:[%s338 + $0x50] sm:$0xff]
        %v2125 = vld [vmem:[%s338 + $0x58] sm:$0xff]
        %v2126 = vld [vmem:[%s338 + $0x60] sm:$0xff]
        %v2127 = vld [vmem:[%s338 + $0x68] sm:$0xff]
        %v2128 = vld [vmem:[%s338 + $0x70] sm:$0xff]
        %v2129 = vld [vmem:[%s338 + $0x78] sm:$0xff]
        %v2130 = vld [vmem:[%s338 + $0x80] sm:$0xff]
        %v2131 = vld [vmem:[%s338 + $0x88] sm:$0xff]
        %v2132 = vld [vmem:[%s338 + $0x90] sm:$0xff]
        %v2133 = vld [vmem:[%s338 + $0x98] sm:$0xff]
        %v2134 = vld [vmem:[%s338 + $0xa0] sm:$0xff]
        %v2135 = vld [vmem:[%s338 + $0xa8] sm:$0xff]
        %v2136 = vld [vmem:[%s338 + $0xb0] sm:$0xff]
        %v2137 = vld [vmem:[%s338 + $0xb8] sm:$0xff]
        %v2138 = vld [vmem:[%s338 + $0xc0] sm:$0xff]
        %v2139 = vld [vmem:[%s338 + $0xc8] sm:$0xff]
        %v2140 = vld [vmem:[%s338 + $0xd0] sm:$0xff]
        %v2141 = vld [vmem:[%s338 + $0xd8] sm:$0xff]
        %v2142 = vld [vmem:[%s338 + $0xe0] sm:$0xff]
        %v2143 = vld [vmem:[%s338 + $0xe8] sm:$0xff]
        %v2144 = vld [vmem:[%s338 + $0xf0] sm:$0xff]
        %v2145 = vld [vmem:[%s338 + $0xf8] sm:$0xff]
        %v2148 = vunpack.c.l.b16 %v2100
        %v2149 = vunpack.c.l.b16 %v2101
        %v2150 = vpack.c.b16 %v2149, %v2148
        %v2184 = vunpack.c.l.b16 %v2114
        %v2185 = vunpack.c.h.b16 %v2114
        %v2186 = vunpack.c.l.b16 %v2115
        %v2187 = vunpack.c.h.b16 %v2115
        %v2188 = vunpack.c.l.b16 %v2116
        %v2189 = vunpack.c.h.b16 %v2116
        %v2190 = vunpack.c.l.b16 %v2117
        %v2191 = vunpack.c.h.b16 %v2117
        %v2192 = vunpack.c.l.b16 %v2118
        %v2193 = vunpack.c.h.b16 %v2118
        %v2194 = vunpack.c.l.b16 %v2119
        %v2195 = vunpack.c.h.b16 %v2119
        %v2196 = vunpack.c.l.b16 %v2120
        %v2197 = vunpack.c.h.b16 %v2120
        %v2198 = vunpack.c.l.b16 %v2121
        %v2199 = vunpack.c.h.b16 %v2121
        %v2200 = vunpack.c.l.b16 %v2122
        %v2201 = vunpack.c.h.b16 %v2122
        %v2202 = vunpack.c.l.b16 %v2123
        %v2203 = vunpack.c.h.b16 %v2123
        %v2204 = vunpack.c.l.b16 %v2124
        %v2205 = vunpack.c.h.b16 %v2124
        %v2206 = vunpack.c.l.b16 %v2125
        %v2207 = vunpack.c.h.b16 %v2125
        %v2208 = vunpack.c.l.b16 %v2126
        %v2209 = vunpack.c.h.b16 %v2126
        %v2210 = vunpack.c.l.b16 %v2127
        %v2211 = vunpack.c.h.b16 %v2127
        %v2212 = vunpack.c.l.b16 %v2128
        %v2213 = vunpack.c.h.b16 %v2128
        %v2214 = vunpack.c.l.b16 %v2129
        %v2215 = vunpack.c.h.b16 %v2129
        %v2216 = vunpack.c.l.b16 %v2130
        %v2217 = vunpack.c.h.b16 %v2130
        %v2218 = vunpack.c.l.b16 %v2131
        %v2219 = vunpack.c.h.b16 %v2131
        %v2220 = vunpack.c.l.b16 %v2132
        %v2221 = vunpack.c.h.b16 %v2132
        %v2222 = vunpack.c.l.b16 %v2133
        %v2223 = vunpack.c.h.b16 %v2133
        %v2224 = vunpack.c.l.b16 %v2134
        %v2225 = vunpack.c.h.b16 %v2134
        %v2226 = vunpack.c.l.b16 %v2135
        %v2227 = vunpack.c.h.b16 %v2135
        %v2228 = vunpack.c.l.b16 %v2136
        %v2229 = vunpack.c.h.b16 %v2136
        %v2230 = vunpack.c.l.b16 %v2137
        %v2231 = vunpack.c.h.b16 %v2137
        %v2232 = vunpack.c.l.b16 %v2138
        %v2233 = vunpack.c.h.b16 %v2138
        %v2234 = vunpack.c.l.b16 %v2139
        %v2235 = vunpack.c.h.b16 %v2139
        %v2236 = vunpack.c.l.b16 %v2140
        %v2237 = vunpack.c.h.b16 %v2140
        %v2238 = vunpack.c.l.b16 %v2141
        %v2239 = vunpack.c.h.b16 %v2141
        %v2240 = vunpack.c.l.b16 %v2142
        %v2241 = vunpack.c.h.b16 %v2142
        %v2242 = vunpack.c.l.b16 %v2143
        %v2243 = vunpack.c.h.b16 %v2143
        %v2244 = vunpack.c.l.b16 %v2144
        %v2245 = vunpack.c.h.b16 %v2144
        %v2246 = vunpack.c.l.b16 %v2145
        %v2247 = vunpack.c.h.b16 %v2145
        %v2248 = vpack.c.b16 %v2188, %v2184
        %v2249 = vpack.c.b16 %v2189, %v2185
        %v2250 = vpack.c.b16 %v2190, %v2186
        %v2251 = vpack.c.b16 %v2191, %v2187
        %v2252 = vpack.c.b16 %v2196, %v2192
        %v2253 = vpack.c.b16 %v2197, %v2193
        %v2254 = vpack.c.b16 %v2198, %v2194
        %v2255 = vpack.c.b16 %v2199, %v2195
        %v2256 = vpack.c.b16 %v2204, %v2200
        %v2257 = vpack.c.b16 %v2205, %v2201
        %v2258 = vpack.c.b16 %v2206, %v2202
        %v2259 = vpack.c.b16 %v2207, %v2203
        %v2260 = vpack.c.b16 %v2212, %v2208
        %v2261 = vpack.c.b16 %v2213, %v2209
        %v2262 = vpack.c.b16 %v2214, %v2210
        %v2263 = vpack.c.b16 %v2215, %v2211
        %v2264 = vpack.c.b16 %v2220, %v2216
        %v2265 = vpack.c.b16 %v2221, %v2217
        %v2266 = vpack.c.b16 %v2222, %v2218
        %v2267 = vpack.c.b16 %v2223, %v2219
        %v2268 = vpack.c.b16 %v2228, %v2224
        %v2269 = vpack.c.b16 %v2229, %v2225
        %v2270 = vpack.c.b16 %v2230, %v2226
        %v2271 = vpack.c.b16 %v2231, %v2227
        %v2272 = vpack.c.b16 %v2236, %v2232
        %v2273 = vpack.c.b16 %v2237, %v2233
        %v2274 = vpack.c.b16 %v2238, %v2234
        %v2275 = vpack.c.b16 %v2239, %v2235
        %v2276 = vpack.c.b16 %v2244, %v2240
        %v2277 = vpack.c.b16 %v2245, %v2241
        %v2278 = vpack.c.b16 %v2246, %v2242
        %v2279 = vpack.c.b16 %v2247, %v2243
        %2312 = vmatpush.bf16.msra.mxu0 %v2276
        %2313 = vmatpush.bf16.msra.mxu0 %v2272
        %2314 = vmatpush.bf16.msra.mxu0 %v2268
        %2315 = vmatpush.bf16.msra.mxu0 %v2264
        %2316 = vmatpush.bf16.msra.mxu0 %v2260
        %2317 = vmatpush.bf16.msra.mxu0 %v2256
        %2318 = vmatpush.bf16.msra.mxu0 %v2252
        %2319 = vmatpush.bf16.msra.mxu0 %v2248
        %2320 = vmatmul.bf16.gmra.mxu0 %v2150
        %v2321 = vpop.f32.mrf.mxu0
        %v2322 = vadd.f32 0.0, %v2321
        %v2323 = vpop.f32.mrf.mxu0
        %v2324 = vadd.f32 0.0, %v2323
        %2325 = vdwg.mxu0
        %2326 = vmatpush.bf16.msra.mxu0 %v2277
        %2327 = vmatpush.bf16.msra.mxu0 %v2273
        %2328 = vmatpush.bf16.msra.mxu0 %v2269
        %2329 = vmatpush.bf16.msra.mxu0 %v2265
        %2330 = vmatpush.bf16.msra.mxu0 %v2261
        %2331 = vmatpush.bf16.msra.mxu0 %v2257
        %2332 = vmatpush.bf16.msra.mxu0 %v2253
        %2333 = vmatpush.bf16.msra.mxu0 %v2249
        %2334 = vmatmul.bf16.gmra.mxu0 %v2150
        %v2335 = vpop.f32.mrf.mxu0
        %v2336 = vadd.f32 0.0, %v2335
        %v2337 = vpop.f32.mrf.mxu0
        %v2338 = vadd.f32 0.0, %v2337
        %2339 = vdwg.mxu0
        %2340 = vmatpush.bf16.msra.mxu0 %v2278
        %2341 = vmatpush.bf16.msra.mxu0 %v2274
        %2342 = vmatpush.bf16.msra.mxu0 %v2270
        %2343 = vmatpush.bf16.msra.mxu0 %v2266
        %2344 = vmatpush.bf16.msra.mxu0 %v2262
        %2345 = vmatpush.bf16.msra.mxu0 %v2258
        %2346 = vmatpush.bf16.msra.mxu0 %v2254
        %2347 = vmatpush.bf16.msra.mxu0 %v2250
        %2348 = vmatmul.bf16.gmra.mxu0 %v2150
        %v2349 = vpop.f32.mrf.mxu0
        %v2350 = vadd.f32 0.0, %v2349
        %v2351 = vpop.f32.mrf.mxu0
        %v2352 = vadd.f32 0.0, %v2351
        %2353 = vdwg.mxu0
        %2354 = vmatpush.bf16.msra.mxu0 %v2279
        %2355 = vmatpush.bf16.msra.mxu0 %v2275
        %2356 = vmatpush.bf16.msra.mxu0 %v2271
        %2357 = vmatpush.bf16.msra.mxu0 %v2267
        %2358 = vmatpush.bf16.msra.mxu0 %v2263
        %2359 = vmatpush.bf16.msra.mxu0 %v2259
        %2360 = vmatpush.bf16.msra.mxu0 %v2255
        %2361 = vmatpush.bf16.msra.mxu0 %v2251
        %2362 = vmatmul.bf16.gmra.mxu0 %v2150
        %v2363 = vpop.f32.mrf.mxu0
        %v2364 = vadd.f32 0.0, %v2363
        %v2365 = vpop.f32.mrf.mxu0
        %v2366 = vadd.f32 0.0, %v2365
        %2367 = vdwg.mxu0
        %v2368 = vadd.f32 %v2106, %v2322
        %v2369 = vadd.f32 %v2107, %v2336
        %v2370 = vadd.f32 %v2108, %v2350
        %v2371 = vadd.f32 %v2109, %v2364
        %v2372 = vadd.f32 %v2110, %v2324
        %v2373 = vadd.f32 %v2111, %v2338
        %v2374 = vadd.f32 %v2112, %v2352
        %v2375 = vadd.f32 %v2113, %v2366
        %v2376 = vmul.f32 %v2368, 0.5
        %v2377 = vmul.f32 %v2372, 0.5
        %v2378 = vtanh.pop %v2376
        %v2379 = vtanh.pop %v2377
        %v2380 = vadd.f32 %v2378, 1.0
        %v2381 = vadd.f32 %v2379, 1.0
        %v2382 = vmul.f32 %v2380, 0.5
        %v2383 = vmul.f32 %v2381, 0.5
        %v2384 = vmul.f32 %v2369, 0.5
        %v2385 = vmul.f32 %v2373, 0.5
        %v2386 = vtanh.pop %v2384
        %v2387 = vtanh.pop %v2385
        %v2388 = vadd.f32 %v2386, 1.0
        %v2389 = vadd.f32 %v2387, 1.0
        %v2390 = vmul.f32 %v2388, 0.5
        %v2391 = vmul.f32 %v2389, 0.5
        %v2392 = vtanh.pop %v2370
        %v2393 = vtanh.pop %v2374
        %v2394 = vmul.f32 %v2371, 0.5
        %v2395 = vmul.f32 %v2375, 0.5
        %v2396 = vtanh.pop %v2394
        %v2397 = vtanh.pop %v2395
        %v2398 = vadd.f32 %v2396, 1.0
        %v2399 = vadd.f32 %v2397, 1.0
        %v2400 = vmul.f32 %v2398, 0.5
        %v2401 = vmul.f32 %v2399, 0.5
        %v2402 = vmul.f32 %v2390, %v2094
        %v2403 = vmul.f32 %v2391, %v2095
        %v2404 = vmul.f32 %v2382, %v2392
        %v2405 = vmul.f32 %v2383, %v2393
        %v2406 = vadd.f32 %v2402, %v2404
        %v2407 = vadd.f32 %v2403, %v2405
        %v2408 = vtanh.pop %v2406
        %v2409 = vtanh.pop %v2407
        %v2410 = vmul.f32 %v2400, %v2408
        %v2411 = vmul.f32 %v2401, %v2409
        %v2412 = vpack.c.bf16 %v2410, %v2410
        %v2413 = vpack.c.bf16 %v2411, %v2411
        %s2414 = scalar_lea.vmem [#allocation2], 16
        %2415 = vst [vmem:[%s2414] sm:$0xf] %v2412
        %2416 = vst [vmem:[%s2414 + $0x4] sm:$0xf] %v2413
        %s2417 = scalar_lea.vmem [#allocation3], 192
        %v2418 = vld [vmem:[%s2417] sm:$0xff]
        %v2419 = vld [vmem:[%s2417 + $0x8] sm:$0xff]
        %v2420 = vld [vmem:[%s2417 + $0x10] sm:$0xff]
        %v2421 = vld [vmem:[%s2417 + $0x18] sm:$0xff]
        %v2422 = vld [vmem:[%s2417 + $0x20] sm:$0xff]
        %v2423 = vld [vmem:[%s2417 + $0x28] sm:$0xff]
        %v2424 = vld [vmem:[%s2417 + $0x30] sm:$0xff]
        %v2425 = vld [vmem:[%s2417 + $0x38] sm:$0xff]
        %v2426 = vld [vmem:[%s338] sm:$0xff]
        %v2427 = vld [vmem:[%s338 + $0x8] sm:$0xff]
        %v2428 = vld [vmem:[%s338 + $0x10] sm:$0xff]
        %v2429 = vld [vmem:[%s338 + $0x18] sm:$0xff]
        %v2430 = vld [vmem:[%s338 + $0x20] sm:$0xff]
        %v2431 = vld [vmem:[%s338 + $0x28] sm:$0xff]
        %v2432 = vld [vmem:[%s338 + $0x30] sm:$0xff]
        %v2433 = vld [vmem:[%s338 + $0x38] sm:$0xff]
        %v2434 = vld [vmem:[%s338 + $0x40] sm:$0xff]
        %v2435 = vld [vmem:[%s338 + $0x48] sm:$0xff]
        %v2436 = vld [vmem:[%s338 + $0x50] sm:$0xff]
        %v2437 = vld [vmem:[%s338 + $0x58] sm:$0xff]
        %v2438 = vld [vmem:[%s338 + $0x60] sm:$0xff]
        %v2439 = vld [vmem:[%s338 + $0x68] sm:$0xff]
        %v2440 = vld [vmem:[%s338 + $0x70] sm:$0xff]
        %v2441 = vld [vmem:[%s338 + $0x78] sm:$0xff]
        %v2442 = vld [vmem:[%s338 + $0x80] sm:$0xff]
        %v2443 = vld [vmem:[%s338 + $0x88] sm:$0xff]
        %v2444 = vld [vmem:[%s338 + $0x90] sm:$0xff]
        %v2445 = vld [vmem:[%s338 + $0x98] sm:$0xff]
        %v2446 = vld [vmem:[%s338 + $0xa0] sm:$0xff]
        %v2447 = vld [vmem:[%s338 + $0xa8] sm:$0xff]
        %v2448 = vld [vmem:[%s338 + $0xb0] sm:$0xff]
        %v2449 = vld [vmem:[%s338 + $0xb8] sm:$0xff]
        %v2450 = vld [vmem:[%s338 + $0xc0] sm:$0xff]
        %v2451 = vld [vmem:[%s338 + $0xc8] sm:$0xff]
        %v2452 = vld [vmem:[%s338 + $0xd0] sm:$0xff]
        %v2453 = vld [vmem:[%s338 + $0xd8] sm:$0xff]
        %v2454 = vld [vmem:[%s338 + $0xe0] sm:$0xff]
        %v2455 = vld [vmem:[%s338 + $0xe8] sm:$0xff]
        %v2456 = vld [vmem:[%s338 + $0xf0] sm:$0xff]
        %v2457 = vld [vmem:[%s338 + $0xf8] sm:$0xff]
        %v2460 = vunpack.c.l.b16 %v2412
        %v2461 = vunpack.c.l.b16 %v2413
        %v2462 = vpack.c.b16 %v2461, %v2460
        %v2496 = vunpack.c.l.b16 %v2426
        %v2497 = vunpack.c.h.b16 %v2426
        %v2498 = vunpack.c.l.b16 %v2427
        %v2499 = vunpack.c.h.b16 %v2427
        %v2500 = vunpack.c.l.b16 %v2428
        %v2501 = vunpack.c.h.b16 %v2428
        %v2502 = vunpack.c.l.b16 %v2429
        %v2503 = vunpack.c.h.b16 %v2429
        %v2504 = vunpack.c.l.b16 %v2430
        %v2505 = vunpack.c.h.b16 %v2430
        %v2506 = vunpack.c.l.b16 %v2431
        %v2507 = vunpack.c.h.b16 %v2431
        %v2508 = vunpack.c.l.b16 %v2432
        %v2509 = vunpack.c.h.b16 %v2432
        %v2510 = vunpack.c.l.b16 %v2433
        %v2511 = vunpack.c.h.b16 %v2433
        %v2512 = vunpack.c.l.b16 %v2434
        %v2513 = vunpack.c.h.b16 %v2434
        %v2514 = vunpack.c.l.b16 %v2435
        %v2515 = vunpack.c.h.b16 %v2435
        %v2516 = vunpack.c.l.b16 %v2436
        %v2517 = vunpack.c.h.b16 %v2436
        %v2518 = vunpack.c.l.b16 %v2437
        %v2519 = vunpack.c.h.b16 %v2437
        %v2520 = vunpack.c.l.b16 %v2438
        %v2521 = vunpack.c.h.b16 %v2438
        %v2522 = vunpack.c.l.b16 %v2439
        %v2523 = vunpack.c.h.b16 %v2439
        %v2524 = vunpack.c.l.b16 %v2440
        %v2525 = vunpack.c.h.b16 %v2440
        %v2526 = vunpack.c.l.b16 %v2441
        %v2527 = vunpack.c.h.b16 %v2441
        %v2528 = vunpack.c.l.b16 %v2442
        %v2529 = vunpack.c.h.b16 %v2442
        %v2530 = vunpack.c.l.b16 %v2443
        %v2531 = vunpack.c.h.b16 %v2443
        %v2532 = vunpack.c.l.b16 %v2444
        %v2533 = vunpack.c.h.b16 %v2444
        %v2534 = vunpack.c.l.b16 %v2445
        %v2535 = vunpack.c.h.b16 %v2445
        %v2536 = vunpack.c.l.b16 %v2446
        %v2537 = vunpack.c.h.b16 %v2446
        %v2538 = vunpack.c.l.b16 %v2447
        %v2539 = vunpack.c.h.b16 %v2447
        %v2540 = vunpack.c.l.b16 %v2448
        %v2541 = vunpack.c.h.b16 %v2448
        %v2542 = vunpack.c.l.b16 %v2449
        %v2543 = vunpack.c.h.b16 %v2449
        %v2544 = vunpack.c.l.b16 %v2450
        %v2545 = vunpack.c.h.b16 %v2450
        %v2546 = vunpack.c.l.b16 %v2451
        %v2547 = vunpack.c.h.b16 %v2451
        %v2548 = vunpack.c.l.b16 %v2452
        %v2549 = vunpack.c.h.b16 %v2452
        %v2550 = vunpack.c.l.b16 %v2453
        %v2551 = vunpack.c.h.b16 %v2453
        %v2552 = vunpack.c.l.b16 %v2454
        %v2553 = vunpack.c.h.b16 %v2454
        %v2554 = vunpack.c.l.b16 %v2455
        %v2555 = vunpack.c.h.b16 %v2455
        %v2556 = vunpack.c.l.b16 %v2456
        %v2557 = vunpack.c.h.b16 %v2456
        %v2558 = vunpack.c.l.b16 %v2457
        %v2559 = vunpack.c.h.b16 %v2457
        %v2560 = vpack.c.b16 %v2500, %v2496
        %v2561 = vpack.c.b16 %v2501, %v2497
        %v2562 = vpack.c.b16 %v2502, %v2498
        %v2563 = vpack.c.b16 %v2503, %v2499
        %v2564 = vpack.c.b16 %v2508, %v2504
        %v2565 = vpack.c.b16 %v2509, %v2505
        %v2566 = vpack.c.b16 %v2510, %v2506
        %v2567 = vpack.c.b16 %v2511, %v2507
        %v2568 = vpack.c.b16 %v2516, %v2512
        %v2569 = vpack.c.b16 %v2517, %v2513
        %v2570 = vpack.c.b16 %v2518, %v2514
        %v2571 = vpack.c.b16 %v2519, %v2515
        %v2572 = vpack.c.b16 %v2524, %v2520
        %v2573 = vpack.c.b16 %v2525, %v2521
        %v2574 = vpack.c.b16 %v2526, %v2522
        %v2575 = vpack.c.b16 %v2527, %v2523
        %v2576 = vpack.c.b16 %v2532, %v2528
        %v2577 = vpack.c.b16 %v2533, %v2529
        %v2578 = vpack.c.b16 %v2534, %v2530
        %v2579 = vpack.c.b16 %v2535, %v2531
        %v2580 = vpack.c.b16 %v2540, %v2536
        %v2581 = vpack.c.b16 %v2541, %v2537
        %v2582 = vpack.c.b16 %v2542, %v2538
        %v2583 = vpack.c.b16 %v2543, %v2539
        %v2584 = vpack.c.b16 %v2548, %v2544
        %v2585 = vpack.c.b16 %v2549, %v2545
        %v2586 = vpack.c.b16 %v2550, %v2546
        %v2587 = vpack.c.b16 %v2551, %v2547
        %v2588 = vpack.c.b16 %v2556, %v2552
        %v2589 = vpack.c.b16 %v2557, %v2553
        %v2590 = vpack.c.b16 %v2558, %v2554
        %v2591 = vpack.c.b16 %v2559, %v2555
        %2624 = vmatpush.bf16.msra.mxu0 %v2588
        %2625 = vmatpush.bf16.msra.mxu0 %v2584
        %2626 = vmatpush.bf16.msra.mxu0 %v2580
        %2627 = vmatpush.bf16.msra.mxu0 %v2576
        %2628 = vmatpush.bf16.msra.mxu0 %v2572
        %2629 = vmatpush.bf16.msra.mxu0 %v2568
        %2630 = vmatpush.bf16.msra.mxu0 %v2564
        %2631 = vmatpush.bf16.msra.mxu0 %v2560
        %2632 = vmatmul.bf16.gmra.mxu0 %v2462
        %v2633 = vpop.f32.mrf.mxu0
        %v2634 = vadd.f32 0.0, %v2633
        %v2635 = vpop.f32.mrf.mxu0
        %v2636 = vadd.f32 0.0, %v2635
        %2637 = vdwg.mxu0
        %2638 = vmatpush.bf16.msra.mxu0 %v2589
        %2639 = vmatpush.bf16.msra.mxu0 %v2585
        %2640 = vmatpush.bf16.msra.mxu0 %v2581
        %2641 = vmatpush.bf16.msra.mxu0 %v2577
        %2642 = vmatpush.bf16.msra.mxu0 %v2573
        %2643 = vmatpush.bf16.msra.mxu0 %v2569
        %2644 = vmatpush.bf16.msra.mxu0 %v2565
        %2645 = vmatpush.bf16.msra.mxu0 %v2561
        %2646 = vmatmul.bf16.gmra.mxu0 %v2462
        %v2647 = vpop.f32.mrf.mxu0
        %v2648 = vadd.f32 0.0, %v2647
        %v2649 = vpop.f32.mrf.mxu0
        %v2650 = vadd.f32 0.0, %v2649
        %2651 = vdwg.mxu0
        %2652 = vmatpush.bf16.msra.mxu0 %v2590
        %2653 = vmatpush.bf16.msra.mxu0 %v2586
        %2654 = vmatpush.bf16.msra.mxu0 %v2582
        %2655 = vmatpush.bf16.msra.mxu0 %v2578
        %2656 = vmatpush.bf16.msra.mxu0 %v2574
        %2657 = vmatpush.bf16.msra.mxu0 %v2570
        %2658 = vmatpush.bf16.msra.mxu0 %v2566
        %2659 = vmatpush.bf16.msra.mxu0 %v2562
        %2660 = vmatmul.bf16.gmra.mxu0 %v2462
        %v2661 = vpop.f32.mrf.mxu0
        %v2662 = vadd.f32 0.0, %v2661
        %v2663 = vpop.f32.mrf.mxu0
        %v2664 = vadd.f32 0.0, %v2663
        %2665 = vdwg.mxu0
        %2666 = vmatpush.bf16.msra.mxu0 %v2591
        %2667 = vmatpush.bf16.msra.mxu0 %v2587
        %2668 = vmatpush.bf16.msra.mxu0 %v2583
        %2669 = vmatpush.bf16.msra.mxu0 %v2579
        %2670 = vmatpush.bf16.msra.mxu0 %v2575
        %2671 = vmatpush.bf16.msra.mxu0 %v2571
        %2672 = vmatpush.bf16.msra.mxu0 %v2567
        %2673 = vmatpush.bf16.msra.mxu0 %v2563
        %2674 = vmatmul.bf16.gmra.mxu0 %v2462
        %v2675 = vpop.f32.mrf.mxu0
        %v2676 = vadd.f32 0.0, %v2675
        %v2677 = vpop.f32.mrf.mxu0
        %v2678 = vadd.f32 0.0, %v2677
        %2679 = vdwg.mxu0
        %v2680 = vadd.f32 %v2418, %v2634
        %v2681 = vadd.f32 %v2419, %v2648
        %v2682 = vadd.f32 %v2420, %v2662
        %v2683 = vadd.f32 %v2421, %v2676
        %v2684 = vadd.f32 %v2422, %v2636
        %v2685 = vadd.f32 %v2423, %v2650
        %v2686 = vadd.f32 %v2424, %v2664
        %v2687 = vadd.f32 %v2425, %v2678
        %v2688 = vmul.f32 %v2680, 0.5
        %v2689 = vmul.f32 %v2684, 0.5
        %v2690 = vtanh.pop %v2688
        %v2691 = vtanh.pop %v2689
        %v2692 = vadd.f32 %v2690, 1.0
        %v2693 = vadd.f32 %v2691, 1.0
        %v2694 = vmul.f32 %v2692, 0.5
        %v2695 = vmul.f32 %v2693, 0.5
        %v2696 = vmul.f32 %v2681, 0.5
        %v2697 = vmul.f32 %v2685, 0.5
        %v2698 = vtanh.pop %v2696
        %v2699 = vtanh.pop %v2697
        %v2700 = vadd.f32 %v2698, 1.0
        %v2701 = vadd.f32 %v2699, 1.0
        %v2702 = vmul.f32 %v2700, 0.5
        %v2703 = vmul.f32 %v2701, 0.5
        %v2704 = vtanh.pop %v2682
        %v2705 = vtanh.pop %v2686
        %v2706 = vmul.f32 %v2683, 0.5
        %v2707 = vmul.f32 %v2687, 0.5
        %v2708 = vtanh.pop %v2706
        %v2709 = vtanh.pop %v2707
        %v2710 = vadd.f32 %v2708, 1.0
        %v2711 = vadd.f32 %v2709, 1.0
        %v2712 = vmul.f32 %v2710, 0.5
        %v2713 = vmul.f32 %v2711, 0.5
        %v2714 = vmul.f32 %v2702, %v2406
        %v2715 = vmul.f32 %v2703, %v2407
        %v2716 = vmul.f32 %v2694, %v2704
        %v2717 = vmul.f32 %v2695, %v2705
        %v2718 = vadd.f32 %v2714, %v2716
        %v2719 = vadd.f32 %v2715, %v2717
        %v2720 = vtanh.pop %v2718
        %v2721 = vtanh.pop %v2719
        %v2722 = vmul.f32 %v2712, %v2720
        %v2723 = vmul.f32 %v2713, %v2721
        %v2724 = vpack.c.bf16 %v2722, %v2722
        %v2725 = vpack.c.bf16 %v2723, %v2723
        %s2726 = scalar_lea.vmem [#allocation2], 24
        %2727 = vst [vmem:[%s2726] sm:$0xf] %v2724
        %2728 = vst [vmem:[%s2726 + $0x4] sm:$0xf] %v2725
        %s2729 = scalar_lea.vmem [#allocation3], 256
        %v2730 = vld [vmem:[%s2729] sm:$0xff]
        %v2731 = vld [vmem:[%s2729 + $0x8] sm:$0xff]
        %v2732 = vld [vmem:[%s2729 + $0x10] sm:$0xff]
        %v2733 = vld [vmem:[%s2729 + $0x18] sm:$0xff]
        %v2734 = vld [vmem:[%s2729 + $0x20] sm:$0xff]
        %v2735 = vld [vmem:[%s2729 + $0x28] sm:$0xff]
        %v2736 = vld [vmem:[%s2729 + $0x30] sm:$0xff]
        %v2737 = vld [vmem:[%s2729 + $0x38] sm:$0xff]
        %v2738 = vld [vmem:[%s338] sm:$0xff]
        %v2739 = vld [vmem:[%s338 + $0x8] sm:$0xff]
        %v2740 = vld [vmem:[%s338 + $0x10] sm:$0xff]
        %v2741 = vld [vmem:[%s338 + $0x18] sm:$0xff]
        %v2742 = vld [vmem:[%s338 + $0x20] sm:$0xff]
        %v2743 = vld [vmem:[%s338 + $0x28] sm:$0xff]
        %v2744 = vld [vmem:[%s338 + $0x30] sm:$0xff]
        %v2745 = vld [vmem:[%s338 + $0x38] sm:$0xff]
        %v2746 = vld [vmem:[%s338 + $0x40] sm:$0xff]
        %v2747 = vld [vmem:[%s338 + $0x48] sm:$0xff]
        %v2748 = vld [vmem:[%s338 + $0x50] sm:$0xff]
        %v2749 = vld [vmem:[%s338 + $0x58] sm:$0xff]
        %v2750 = vld [vmem:[%s338 + $0x60] sm:$0xff]
        %v2751 = vld [vmem:[%s338 + $0x68] sm:$0xff]
        %v2752 = vld [vmem:[%s338 + $0x70] sm:$0xff]
        %v2753 = vld [vmem:[%s338 + $0x78] sm:$0xff]
        %v2754 = vld [vmem:[%s338 + $0x80] sm:$0xff]
        %v2755 = vld [vmem:[%s338 + $0x88] sm:$0xff]
        %v2756 = vld [vmem:[%s338 + $0x90] sm:$0xff]
        %v2757 = vld [vmem:[%s338 + $0x98] sm:$0xff]
        %v2758 = vld [vmem:[%s338 + $0xa0] sm:$0xff]
        %v2759 = vld [vmem:[%s338 + $0xa8] sm:$0xff]
        %v2760 = vld [vmem:[%s338 + $0xb0] sm:$0xff]
        %v2761 = vld [vmem:[%s338 + $0xb8] sm:$0xff]
        %v2762 = vld [vmem:[%s338 + $0xc0] sm:$0xff]
        %v2763 = vld [vmem:[%s338 + $0xc8] sm:$0xff]
        %v2764 = vld [vmem:[%s338 + $0xd0] sm:$0xff]
        %v2765 = vld [vmem:[%s338 + $0xd8] sm:$0xff]
        %v2766 = vld [vmem:[%s338 + $0xe0] sm:$0xff]
        %v2767 = vld [vmem:[%s338 + $0xe8] sm:$0xff]
        %v2768 = vld [vmem:[%s338 + $0xf0] sm:$0xff]
        %v2769 = vld [vmem:[%s338 + $0xf8] sm:$0xff]
        %v2772 = vunpack.c.l.b16 %v2724
        %v2773 = vunpack.c.l.b16 %v2725
        %v2774 = vpack.c.b16 %v2773, %v2772
        %v2808 = vunpack.c.l.b16 %v2738
        %v2809 = vunpack.c.h.b16 %v2738
        %v2810 = vunpack.c.l.b16 %v2739
        %v2811 = vunpack.c.h.b16 %v2739
        %v2812 = vunpack.c.l.b16 %v2740
        %v2813 = vunpack.c.h.b16 %v2740
        %v2814 = vunpack.c.l.b16 %v2741
        %v2815 = vunpack.c.h.b16 %v2741
        %v2816 = vunpack.c.l.b16 %v2742
        %v2817 = vunpack.c.h.b16 %v2742
        %v2818 = vunpack.c.l.b16 %v2743
        %v2819 = vunpack.c.h.b16 %v2743
        %v2820 = vunpack.c.l.b16 %v2744
        %v2821 = vunpack.c.h.b16 %v2744
        %v2822 = vunpack.c.l.b16 %v2745
        %v2823 = vunpack.c.h.b16 %v2745
        %v2824 = vunpack.c.l.b16 %v2746
        %v2825 = vunpack.c.h.b16 %v2746
        %v2826 = vunpack.c.l.b16 %v2747
        %v2827 = vunpack.c.h.b16 %v2747
        %v2828 = vunpack.c.l.b16 %v2748
        %v2829 = vunpack.c.h.b16 %v2748
        %v2830 = vunpack.c.l.b16 %v2749
        %v2831 = vunpack.c.h.b16 %v2749
        %v2832 = vunpack.c.l.b16 %v2750
        %v2833 = vunpack.c.h.b16 %v2750
        %v2834 = vunpack.c.l.b16 %v2751
        %v2835 = vunpack.c.h.b16 %v2751
        %v2836 = vunpack.c.l.b16 %v2752
        %v2837 = vunpack.c.h.b16 %v2752
        %v2838 = vunpack.c.l.b16 %v2753
        %v2839 = vunpack.c.h.b16 %v2753
        %v2840 = vunpack.c.l.b16 %v2754
        %v2841 = vunpack.c.h.b16 %v2754
        %v2842 = vunpack.c.l.b16 %v2755
        %v2843 = vunpack.c.h.b16 %v2755
        %v2844 = vunpack.c.l.b16 %v2756
        %v2845 = vunpack.c.h.b16 %v2756
        %v2846 = vunpack.c.l.b16 %v2757
        %v2847 = vunpack.c.h.b16 %v2757
        %v2848 = vunpack.c.l.b16 %v2758
        %v2849 = vunpack.c.h.b16 %v2758
        %v2850 = vunpack.c.l.b16 %v2759
        %v2851 = vunpack.c.h.b16 %v2759
        %v2852 = vunpack.c.l.b16 %v2760
        %v2853 = vunpack.c.h.b16 %v2760
        %v2854 = vunpack.c.l.b16 %v2761
        %v2855 = vunpack.c.h.b16 %v2761
        %v2856 = vunpack.c.l.b16 %v2762
        %v2857 = vunpack.c.h.b16 %v2762
        %v2858 = vunpack.c.l.b16 %v2763
        %v2859 = vunpack.c.h.b16 %v2763
        %v2860 = vunpack.c.l.b16 %v2764
        %v2861 = vunpack.c.h.b16 %v2764
        %v2862 = vunpack.c.l.b16 %v2765
        %v2863 = vunpack.c.h.b16 %v2765
        %v2864 = vunpack.c.l.b16 %v2766
        %v2865 = vunpack.c.h.b16 %v2766
        %v2866 = vunpack.c.l.b16 %v2767
        %v2867 = vunpack.c.h.b16 %v2767
        %v2868 = vunpack.c.l.b16 %v2768
        %v2869 = vunpack.c.h.b16 %v2768
        %v2870 = vunpack.c.l.b16 %v2769
        %v2871 = vunpack.c.h.b16 %v2769
        %v2872 = vpack.c.b16 %v2812, %v2808
        %v2873 = vpack.c.b16 %v2813, %v2809
        %v2874 = vpack.c.b16 %v2814, %v2810
        %v2875 = vpack.c.b16 %v2815, %v2811
        %v2876 = vpack.c.b16 %v2820, %v2816
        %v2877 = vpack.c.b16 %v2821, %v2817
        %v2878 = vpack.c.b16 %v2822, %v2818
        %v2879 = vpack.c.b16 %v2823, %v2819
        %v2880 = vpack.c.b16 %v2828, %v2824
        %v2881 = vpack.c.b16 %v2829, %v2825
        %v2882 = vpack.c.b16 %v2830, %v2826
        %v2883 = vpack.c.b16 %v2831, %v2827
        %v2884 = vpack.c.b16 %v2836, %v2832
        %v2885 = vpack.c.b16 %v2837, %v2833
        %v2886 = vpack.c.b16 %v2838, %v2834
        %v2887 = vpack.c.b16 %v2839, %v2835
        %v2888 = vpack.c.b16 %v2844, %v2840
        %v2889 = vpack.c.b16 %v2845, %v2841
        %v2890 = vpack.c.b16 %v2846, %v2842
        %v2891 = vpack.c.b16 %v2847, %v2843
        %v2892 = vpack.c.b16 %v2852, %v2848
        %v2893 = vpack.c.b16 %v2853, %v2849
        %v2894 = vpack.c.b16 %v2854, %v2850
        %v2895 = vpack.c.b16 %v2855, %v2851
        %v2896 = vpack.c.b16 %v2860, %v2856
        %v2897 = vpack.c.b16 %v2861, %v2857
        %v2898 = vpack.c.b16 %v2862, %v2858
        %v2899 = vpack.c.b16 %v2863, %v2859
        %v2900 = vpack.c.b16 %v2868, %v2864
        %v2901 = vpack.c.b16 %v2869, %v2865
        %v2902 = vpack.c.b16 %v2870, %v2866
        %v2903 = vpack.c.b16 %v2871, %v2867
        %2936 = vmatpush.bf16.msra.mxu0 %v2900
        %2937 = vmatpush.bf16.msra.mxu0 %v2896
        %2938 = vmatpush.bf16.msra.mxu0 %v2892
        %2939 = vmatpush.bf16.msra.mxu0 %v2888
        %2940 = vmatpush.bf16.msra.mxu0 %v2884
        %2941 = vmatpush.bf16.msra.mxu0 %v2880
        %2942 = vmatpush.bf16.msra.mxu0 %v2876
        %2943 = vmatpush.bf16.msra.mxu0 %v2872
        %2944 = vmatmul.bf16.gmra.mxu0 %v2774
        %v2945 = vpop.f32.mrf.mxu0
        %v2946 = vadd.f32 0.0, %v2945
        %v2947 = vpop.f32.mrf.mxu0
        %v2948 = vadd.f32 0.0, %v2947
        %2949 = vdwg.mxu0
        %2950 = vmatpush.bf16.msra.mxu0 %v2901
        %2951 = vmatpush.bf16.msra.mxu0 %v2897
        %2952 = vmatpush.bf16.msra.mxu0 %v2893
        %2953 = vmatpush.bf16.msra.mxu0 %v2889
        %2954 = vmatpush.bf16.msra.mxu0 %v2885
        %2955 = vmatpush.bf16.msra.mxu0 %v2881
        %2956 = vmatpush.bf16.msra.mxu0 %v2877
        %2957 = vmatpush.bf16.msra.mxu0 %v2873
        %2958 = vmatmul.bf16.gmra.mxu0 %v2774
        %v2959 = vpop.f32.mrf.mxu0
        %v2960 = vadd.f32 0.0, %v2959
        %v2961 = vpop.f32.mrf.mxu0
        %v2962 = vadd.f32 0.0, %v2961
        %2963 = vdwg.mxu0
        %2964 = vmatpush.bf16.msra.mxu0 %v2902
        %2965 = vmatpush.bf16.msra.mxu0 %v2898
        %2966 = vmatpush.bf16.msra.mxu0 %v2894
        %2967 = vmatpush.bf16.msra.mxu0 %v2890
        %2968 = vmatpush.bf16.msra.mxu0 %v2886
        %2969 = vmatpush.bf16.msra.mxu0 %v2882
        %2970 = vmatpush.bf16.msra.mxu0 %v2878
        %2971 = vmatpush.bf16.msra.mxu0 %v2874
        %2972 = vmatmul.bf16.gmra.mxu0 %v2774
        %v2973 = vpop.f32.mrf.mxu0
        %v2974 = vadd.f32 0.0, %v2973
        %v2975 = vpop.f32.mrf.mxu0
        %v2976 = vadd.f32 0.0, %v2975
        %2977 = vdwg.mxu0
        %2978 = vmatpush.bf16.msra.mxu0 %v2903
        %2979 = vmatpush.bf16.msra.mxu0 %v2899
        %2980 = vmatpush.bf16.msra.mxu0 %v2895
        %2981 = vmatpush.bf16.msra.mxu0 %v2891
        %2982 = vmatpush.bf16.msra.mxu0 %v2887
        %2983 = vmatpush.bf16.msra.mxu0 %v2883
        %2984 = vmatpush.bf16.msra.mxu0 %v2879
        %2985 = vmatpush.bf16.msra.mxu0 %v2875
        %2986 = vmatmul.bf16.gmra.mxu0 %v2774
        %v2987 = vpop.f32.mrf.mxu0
        %v2988 = vadd.f32 0.0, %v2987
        %v2989 = vpop.f32.mrf.mxu0
        %v2990 = vadd.f32 0.0, %v2989
        %2991 = vdwg.mxu0
        %v2992 = vadd.f32 %v2730, %v2946
        %v2993 = vadd.f32 %v2731, %v2960
        %v2994 = vadd.f32 %v2732, %v2974
        %v2995 = vadd.f32 %v2733, %v2988
        %v2996 = vadd.f32 %v2734, %v2948
        %v2997 = vadd.f32 %v2735, %v2962
        %v2998 = vadd.f32 %v2736, %v2976
        %v2999 = vadd.f32 %v2737, %v2990
        %v3000 = vmul.f32 %v2992, 0.5
        %v3001 = vmul.f32 %v2996, 0.5
        %v3002 = vtanh.pop %v3000
        %v3003 = vtanh.pop %v3001
        %v3004 = vadd.f32 %v3002, 1.0
        %v3005 = vadd.f32 %v3003, 1.0
        %v3006 = vmul.f32 %v3004, 0.5
        %v3007 = vmul.f32 %v3005, 0.5
        %v3008 = vmul.f32 %v2993, 0.5
        %v3009 = vmul.f32 %v2997, 0.5
        %v3010 = vtanh.pop %v3008
        %v3011 = vtanh.pop %v3009
        %v3012 = vadd.f32 %v3010, 1.0
        %v3013 = vadd.f32 %v3011, 1.0
        %v3014 = vmul.f32 %v3012, 0.5
        %v3015 = vmul.f32 %v3013, 0.5
        %v3016 = vtanh.pop %v2994
        %v3017 = vtanh.pop %v2998
        %v3018 = vmul.f32 %v2995, 0.5
        %v3019 = vmul.f32 %v2999, 0.5
        %v3020 = vtanh.pop %v3018
        %v3021 = vtanh.pop %v3019
        %v3022 = vadd.f32 %v3020, 1.0
        %v3023 = vadd.f32 %v3021, 1.0
        %v3024 = vmul.f32 %v3022, 0.5
        %v3025 = vmul.f32 %v3023, 0.5
        %v3026 = vmul.f32 %v3014, %v2718
        %v3027 = vmul.f32 %v3015, %v2719
        %v3028 = vmul.f32 %v3006, %v3016
        %v3029 = vmul.f32 %v3007, %v3017
        %v3030 = vadd.f32 %v3026, %v3028
        %v3031 = vadd.f32 %v3027, %v3029
        %v3032 = vtanh.pop %v3030
        %v3033 = vtanh.pop %v3031
        %v3034 = vmul.f32 %v3024, %v3032
        %v3035 = vmul.f32 %v3025, %v3033
        %v3036 = vpack.c.bf16 %v3034, %v3034
        %v3037 = vpack.c.bf16 %v3035, %v3035
        %s3038 = scalar_lea.vmem [#allocation2], 32
        %3039 = vst [vmem:[%s3038] sm:$0xf] %v3036
        %3040 = vst [vmem:[%s3038 + $0x4] sm:$0xf] %v3037
        %s3041 = scalar_lea.vmem [#allocation3], 320
        %v3042 = vld [vmem:[%s3041] sm:$0xff]
        %v3043 = vld [vmem:[%s3041 + $0x8] sm:$0xff]
        %v3044 = vld [vmem:[%s3041 + $0x10] sm:$0xff]
        %v3045 = vld [vmem:[%s3041 + $0x18] sm:$0xff]
        %v3046 = vld [vmem:[%s3041 + $0x20] sm:$0xff]
        %v3047 = vld [vmem:[%s3041 + $0x28] sm:$0xff]
        %v3048 = vld [vmem:[%s3041 + $0x30] sm:$0xff]
        %v3049 = vld [vmem:[%s3041 + $0x38] sm:$0xff]
        %v3050 = vld [vmem:[%s338] sm:$0xff]
        %v3051 = vld [vmem:[%s338 + $0x8] sm:$0xff]
        %v3052 = vld [vmem:[%s338 + $0x10] sm:$0xff]
        %v3053 = vld [vmem:[%s338 + $0x18] sm:$0xff]
        %v3054 = vld [vmem:[%s338 + $0x20] sm:$0xff]
        %v3055 = vld [vmem:[%s338 + $0x28] sm:$0xff]
        %v3056 = vld [vmem:[%s338 + $0x30] sm:$0xff]
        %v3057 = vld [vmem:[%s338 + $0x38] sm:$0xff]
        %v3058 = vld [vmem:[%s338 + $0x40] sm:$0xff]
        %v3059 = vld [vmem:[%s338 + $0x48] sm:$0xff]
        %v3060 = vld [vmem:[%s338 + $0x50] sm:$0xff]
        %v3061 = vld [vmem:[%s338 + $0x58] sm:$0xff]
        %v3062 = vld [vmem:[%s338 + $0x60] sm:$0xff]
        %v3063 = vld [vmem:[%s338 + $0x68] sm:$0xff]
        %v3064 = vld [vmem:[%s338 + $0x70] sm:$0xff]
        %v3065 = vld [vmem:[%s338 + $0x78] sm:$0xff]
        %v3066 = vld [vmem:[%s338 + $0x80] sm:$0xff]
        %v3067 = vld [vmem:[%s338 + $0x88] sm:$0xff]
        %v3068 = vld [vmem:[%s338 + $0x90] sm:$0xff]
        %v3069 = vld [vmem:[%s338 + $0x98] sm:$0xff]
        %v3070 = vld [vmem:[%s338 + $0xa0] sm:$0xff]
        %v3071 = vld [vmem:[%s338 + $0xa8] sm:$0xff]
        %v3072 = vld [vmem:[%s338 + $0xb0] sm:$0xff]
        %v3073 = vld [vmem:[%s338 + $0xb8] sm:$0xff]
        %v3074 = vld [vmem:[%s338 + $0xc0] sm:$0xff]
        %v3075 = vld [vmem:[%s338 + $0xc8] sm:$0xff]
        %v3076 = vld [vmem:[%s338 + $0xd0] sm:$0xff]
        %v3077 = vld [vmem:[%s338 + $0xd8] sm:$0xff]
        %v3078 = vld [vmem:[%s338 + $0xe0] sm:$0xff]
        %v3079 = vld [vmem:[%s338 + $0xe8] sm:$0xff]
        %v3080 = vld [vmem:[%s338 + $0xf0] sm:$0xff]
        %v3081 = vld [vmem:[%s338 + $0xf8] sm:$0xff]
        %v3084 = vunpack.c.l.b16 %v3036
        %v3085 = vunpack.c.l.b16 %v3037
        %v3086 = vpack.c.b16 %v3085, %v3084
        %v3120 = vunpack.c.l.b16 %v3050
        %v3121 = vunpack.c.h.b16 %v3050
        %v3122 = vunpack.c.l.b16 %v3051
        %v3123 = vunpack.c.h.b16 %v3051
        %v3124 = vunpack.c.l.b16 %v3052
        %v3125 = vunpack.c.h.b16 %v3052
        %v3126 = vunpack.c.l.b16 %v3053
        %v3127 = vunpack.c.h.b16 %v3053
        %v3128 = vunpack.c.l.b16 %v3054
        %v3129 = vunpack.c.h.b16 %v3054
        %v3130 = vunpack.c.l.b16 %v3055
        %v3131 = vunpack.c.h.b16 %v3055
        %v3132 = vunpack.c.l.b16 %v3056
        %v3133 = vunpack.c.h.b16 %v3056
        %v3134 = vunpack.c.l.b16 %v3057
        %v3135 = vunpack.c.h.b16 %v3057
        %v3136 = vunpack.c.l.b16 %v3058
        %v3137 = vunpack.c.h.b16 %v3058
        %v3138 = vunpack.c.l.b16 %v3059
        %v3139 = vunpack.c.h.b16 %v3059
        %v3140 = vunpack.c.l.b16 %v3060
        %v3141 = vunpack.c.h.b16 %v3060
        %v3142 = vunpack.c.l.b16 %v3061
        %v3143 = vunpack.c.h.b16 %v3061
        %v3144 = vunpack.c.l.b16 %v3062
        %v3145 = vunpack.c.h.b16 %v3062
        %v3146 = vunpack.c.l.b16 %v3063
        %v3147 = vunpack.c.h.b16 %v3063
        %v3148 = vunpack.c.l.b16 %v3064
        %v3149 = vunpack.c.h.b16 %v3064
        %v3150 = vunpack.c.l.b16 %v3065
        %v3151 = vunpack.c.h.b16 %v3065
        %v3152 = vunpack.c.l.b16 %v3066
        %v3153 = vunpack.c.h.b16 %v3066
        %v3154 = vunpack.c.l.b16 %v3067
        %v3155 = vunpack.c.h.b16 %v3067
        %v3156 = vunpack.c.l.b16 %v3068
        %v3157 = vunpack.c.h.b16 %v3068
        %v3158 = vunpack.c.l.b16 %v3069
        %v3159 = vunpack.c.h.b16 %v3069
        %v3160 = vunpack.c.l.b16 %v3070
        %v3161 = vunpack.c.h.b16 %v3070
        %v3162 = vunpack.c.l.b16 %v3071
        %v3163 = vunpack.c.h.b16 %v3071
        %v3164 = vunpack.c.l.b16 %v3072
        %v3165 = vunpack.c.h.b16 %v3072
        %v3166 = vunpack.c.l.b16 %v3073
        %v3167 = vunpack.c.h.b16 %v3073
        %v3168 = vunpack.c.l.b16 %v3074
        %v3169 = vunpack.c.h.b16 %v3074
        %v3170 = vunpack.c.l.b16 %v3075
        %v3171 = vunpack.c.h.b16 %v3075
        %v3172 = vunpack.c.l.b16 %v3076
        %v3173 = vunpack.c.h.b16 %v3076
        %v3174 = vunpack.c.l.b16 %v3077
        %v3175 = vunpack.c.h.b16 %v3077
        %v3176 = vunpack.c.l.b16 %v3078
        %v3177 = vunpack.c.h.b16 %v3078
        %v3178 = vunpack.c.l.b16 %v3079
        %v3179 = vunpack.c.h.b16 %v3079
        %v3180 = vunpack.c.l.b16 %v3080
        %v3181 = vunpack.c.h.b16 %v3080
        %v3182 = vunpack.c.l.b16 %v3081
        %v3183 = vunpack.c.h.b16 %v3081
        %v3184 = vpack.c.b16 %v3124, %v3120
        %v3185 = vpack.c.b16 %v3125, %v3121
        %v3186 = vpack.c.b16 %v3126, %v3122
        %v3187 = vpack.c.b16 %v3127, %v3123
        %v3188 = vpack.c.b16 %v3132, %v3128
        %v3189 = vpack.c.b16 %v3133, %v3129
        %v3190 = vpack.c.b16 %v3134, %v3130
        %v3191 = vpack.c.b16 %v3135, %v3131
        %v3192 = vpack.c.b16 %v3140, %v3136
        %v3193 = vpack.c.b16 %v3141, %v3137
        %v3194 = vpack.c.b16 %v3142, %v3138
        %v3195 = vpack.c.b16 %v3143, %v3139
        %v3196 = vpack.c.b16 %v3148, %v3144
        %v3197 = vpack.c.b16 %v3149, %v3145
        %v3198 = vpack.c.b16 %v3150, %v3146
        %v3199 = vpack.c.b16 %v3151, %v3147
        %v3200 = vpack.c.b16 %v3156, %v3152
        %v3201 = vpack.c.b16 %v3157, %v3153
        %v3202 = vpack.c.b16 %v3158, %v3154
        %v3203 = vpack.c.b16 %v3159, %v3155
        %v3204 = vpack.c.b16 %v3164, %v3160
        %v3205 = vpack.c.b16 %v3165, %v3161
        %v3206 = vpack.c.b16 %v3166, %v3162
        %v3207 = vpack.c.b16 %v3167, %v3163
        %v3208 = vpack.c.b16 %v3172, %v3168
        %v3209 = vpack.c.b16 %v3173, %v3169
        %v3210 = vpack.c.b16 %v3174, %v3170
        %v3211 = vpack.c.b16 %v3175, %v3171
        %v3212 = vpack.c.b16 %v3180, %v3176
        %v3213 = vpack.c.b16 %v3181, %v3177
        %v3214 = vpack.c.b16 %v3182, %v3178
        %v3215 = vpack.c.b16 %v3183, %v3179
        %3248 = vmatpush.bf16.msra.mxu0 %v3212
        %3249 = vmatpush.bf16.msra.mxu0 %v3208
        %3250 = vmatpush.bf16.msra.mxu0 %v3204
        %3251 = vmatpush.bf16.msra.mxu0 %v3200
        %3252 = vmatpush.bf16.msra.mxu0 %v3196
        %3253 = vmatpush.bf16.msra.mxu0 %v3192
        %3254 = vmatpush.bf16.msra.mxu0 %v3188
        %3255 = vmatpush.bf16.msra.mxu0 %v3184
        %3256 = vmatmul.bf16.gmra.mxu0 %v3086
        %v3257 = vpop.f32.mrf.mxu0
        %v3258 = vadd.f32 0.0, %v3257
        %v3259 = vpop.f32.mrf.mxu0
        %v3260 = vadd.f32 0.0, %v3259
        %3261 = vdwg.mxu0
        %3262 = vmatpush.bf16.msra.mxu0 %v3213
        %3263 = vmatpush.bf16.msra.mxu0 %v3209
        %3264 = vmatpush.bf16.msra.mxu0 %v3205
        %3265 = vmatpush.bf16.msra.mxu0 %v3201
        %3266 = vmatpush.bf16.msra.mxu0 %v3197
        %3267 = vmatpush.bf16.msra.mxu0 %v3193
        %3268 = vmatpush.bf16.msra.mxu0 %v3189
        %3269 = vmatpush.bf16.msra.mxu0 %v3185
        %3270 = vmatmul.bf16.gmra.mxu0 %v3086
        %v3271 = vpop.f32.mrf.mxu0
        %v3272 = vadd.f32 0.0, %v3271
        %v3273 = vpop.f32.mrf.mxu0
        %v3274 = vadd.f32 0.0, %v3273
        %3275 = vdwg.mxu0
        %3276 = vmatpush.bf16.msra.mxu0 %v3214
        %3277 = vmatpush.bf16.msra.mxu0 %v3210
        %3278 = vmatpush.bf16.msra.mxu0 %v3206
        %3279 = vmatpush.bf16.msra.mxu0 %v3202
        %3280 = vmatpush.bf16.msra.mxu0 %v3198
        %3281 = vmatpush.bf16.msra.mxu0 %v3194
        %3282 = vmatpush.bf16.msra.mxu0 %v3190
        %3283 = vmatpush.bf16.msra.mxu0 %v3186
        %3284 = vmatmul.bf16.gmra.mxu0 %v3086
        %v3285 = vpop.f32.mrf.mxu0
        %v3286 = vadd.f32 0.0, %v3285
        %v3287 = vpop.f32.mrf.mxu0
        %v3288 = vadd.f32 0.0, %v3287
        %3289 = vdwg.mxu0
        %3290 = vmatpush.bf16.msra.mxu0 %v3215
        %3291 = vmatpush.bf16.msra.mxu0 %v3211
        %3292 = vmatpush.bf16.msra.mxu0 %v3207
        %3293 = vmatpush.bf16.msra.mxu0 %v3203
        %3294 = vmatpush.bf16.msra.mxu0 %v3199
        %3295 = vmatpush.bf16.msra.mxu0 %v3195
        %3296 = vmatpush.bf16.msra.mxu0 %v3191
        %3297 = vmatpush.bf16.msra.mxu0 %v3187
        %3298 = vmatmul.bf16.gmra.mxu0 %v3086
        %v3299 = vpop.f32.mrf.mxu0
        %v3300 = vadd.f32 0.0, %v3299
        %v3301 = vpop.f32.mrf.mxu0
        %v3302 = vadd.f32 0.0, %v3301
        %3303 = vdwg.mxu0
        %v3304 = vadd.f32 %v3042, %v3258
        %v3305 = vadd.f32 %v3043, %v3272
        %v3306 = vadd.f32 %v3044, %v3286
        %v3307 = vadd.f32 %v3045, %v3300
        %v3308 = vadd.f32 %v3046, %v3260
        %v3309 = vadd.f32 %v3047, %v3274
        %v3310 = vadd.f32 %v3048, %v3288
        %v3311 = vadd.f32 %v3049, %v3302
        %v3312 = vmul.f32 %v3304, 0.5
        %v3313 = vmul.f32 %v3308, 0.5
        %v3314 = vtanh.pop %v3312
        %v3315 = vtanh.pop %v3313
        %v3316 = vadd.f32 %v3314, 1.0
        %v3317 = vadd.f32 %v3315, 1.0
        %v3318 = vmul.f32 %v3316, 0.5
        %v3319 = vmul.f32 %v3317, 0.5
        %v3320 = vmul.f32 %v3305, 0.5
        %v3321 = vmul.f32 %v3309, 0.5
        %v3322 = vtanh.pop %v3320
        %v3323 = vtanh.pop %v3321
        %v3324 = vadd.f32 %v3322, 1.0
        %v3325 = vadd.f32 %v3323, 1.0
        %v3326 = vmul.f32 %v3324, 0.5
        %v3327 = vmul.f32 %v3325, 0.5
        %v3328 = vtanh.pop %v3306
        %v3329 = vtanh.pop %v3310
        %v3330 = vmul.f32 %v3307, 0.5
        %v3331 = vmul.f32 %v3311, 0.5
        %v3332 = vtanh.pop %v3330
        %v3333 = vtanh.pop %v3331
        %v3334 = vadd.f32 %v3332, 1.0
        %v3335 = vadd.f32 %v3333, 1.0
        %v3336 = vmul.f32 %v3334, 0.5
        %v3337 = vmul.f32 %v3335, 0.5
        %v3338 = vmul.f32 %v3326, %v3030
        %v3339 = vmul.f32 %v3327, %v3031
        %v3340 = vmul.f32 %v3318, %v3328
        %v3341 = vmul.f32 %v3319, %v3329
        %v3342 = vadd.f32 %v3338, %v3340
        %v3343 = vadd.f32 %v3339, %v3341
        %v3344 = vtanh.pop %v3342
        %v3345 = vtanh.pop %v3343
        %v3346 = vmul.f32 %v3336, %v3344
        %v3347 = vmul.f32 %v3337, %v3345
        %v3348 = vpack.c.bf16 %v3346, %v3346
        %v3349 = vpack.c.bf16 %v3347, %v3347
        %s3350 = scalar_lea.vmem [#allocation2], 40
        %3351 = vst [vmem:[%s3350] sm:$0xf] %v3348
        %3352 = vst [vmem:[%s3350 + $0x4] sm:$0xf] %v3349
        %s3353 = scalar_lea.vmem [#allocation3], 384
        %v3354 = vld [vmem:[%s3353] sm:$0xff]
        %v3355 = vld [vmem:[%s3353 + $0x8] sm:$0xff]
        %v3356 = vld [vmem:[%s3353 + $0x10] sm:$0xff]
        %v3357 = vld [vmem:[%s3353 + $0x18] sm:$0xff]
        %v3358 = vld [vmem:[%s3353 + $0x20] sm:$0xff]
        %v3359 = vld [vmem:[%s3353 + $0x28] sm:$0xff]
        %v3360 = vld [vmem:[%s3353 + $0x30] sm:$0xff]
        %v3361 = vld [vmem:[%s3353 + $0x38] sm:$0xff]
        %v3362 = vld [vmem:[%s338] sm:$0xff]
        %v3363 = vld [vmem:[%s338 + $0x8] sm:$0xff]
        %v3364 = vld [vmem:[%s338 + $0x10] sm:$0xff]
        %v3365 = vld [vmem:[%s338 + $0x18] sm:$0xff]
        %v3366 = vld [vmem:[%s338 + $0x20] sm:$0xff]
        %v3367 = vld [vmem:[%s338 + $0x28] sm:$0xff]
        %v3368 = vld [vmem:[%s338 + $0x30] sm:$0xff]
        %v3369 = vld [vmem:[%s338 + $0x38] sm:$0xff]
        %v3370 = vld [vmem:[%s338 + $0x40] sm:$0xff]
        %v3371 = vld [vmem:[%s338 + $0x48] sm:$0xff]
        %v3372 = vld [vmem:[%s338 + $0x50] sm:$0xff]
        %v3373 = vld [vmem:[%s338 + $0x58] sm:$0xff]
        %v3374 = vld [vmem:[%s338 + $0x60] sm:$0xff]
        %v3375 = vld [vmem:[%s338 + $0x68] sm:$0xff]
        %v3376 = vld [vmem:[%s338 + $0x70] sm:$0xff]
        %v3377 = vld [vmem:[%s338 + $0x78] sm:$0xff]
        %v3378 = vld [vmem:[%s338 + $0x80] sm:$0xff]
        %v3379 = vld [vmem:[%s338 + $0x88] sm:$0xff]
        %v3380 = vld [vmem:[%s338 + $0x90] sm:$0xff]
        %v3381 = vld [vmem:[%s338 + $0x98] sm:$0xff]
        %v3382 = vld [vmem:[%s338 + $0xa0] sm:$0xff]
        %v3383 = vld [vmem:[%s338 + $0xa8] sm:$0xff]
        %v3384 = vld [vmem:[%s338 + $0xb0] sm:$0xff]
        %v3385 = vld [vmem:[%s338 + $0xb8] sm:$0xff]
        %v3386 = vld [vmem:[%s338 + $0xc0] sm:$0xff]
        %v3387 = vld [vmem:[%s338 + $0xc8] sm:$0xff]
        %v3388 = vld [vmem:[%s338 + $0xd0] sm:$0xff]
        %v3389 = vld [vmem:[%s338 + $0xd8] sm:$0xff]
        %v3390 = vld [vmem:[%s338 + $0xe0] sm:$0xff]
        %v3391 = vld [vmem:[%s338 + $0xe8] sm:$0xff]
        %v3392 = vld [vmem:[%s338 + $0xf0] sm:$0xff]
        %v3393 = vld [vmem:[%s338 + $0xf8] sm:$0xff]
        %v3396 = vunpack.c.l.b16 %v3348
        %v3397 = vunpack.c.l.b16 %v3349
        %v3398 = vpack.c.b16 %v3397, %v3396
        %v3432 = vunpack.c.l.b16 %v3362
        %v3433 = vunpack.c.h.b16 %v3362
        %v3434 = vunpack.c.l.b16 %v3363
        %v3435 = vunpack.c.h.b16 %v3363
        %v3436 = vunpack.c.l.b16 %v3364
        %v3437 = vunpack.c.h.b16 %v3364
        %v3438 = vunpack.c.l.b16 %v3365
        %v3439 = vunpack.c.h.b16 %v3365
        %v3440 = vunpack.c.l.b16 %v3366
        %v3441 = vunpack.c.h.b16 %v3366
        %v3442 = vunpack.c.l.b16 %v3367
        %v3443 = vunpack.c.h.b16 %v3367
        %v3444 = vunpack.c.l.b16 %v3368
        %v3445 = vunpack.c.h.b16 %v3368
        %v3446 = vunpack.c.l.b16 %v3369
        %v3447 = vunpack.c.h.b16 %v3369
        %v3448 = vunpack.c.l.b16 %v3370
        %v3449 = vunpack.c.h.b16 %v3370
        %v3450 = vunpack.c.l.b16 %v3371
        %v3451 = vunpack.c.h.b16 %v3371
        %v3452 = vunpack.c.l.b16 %v3372
        %v3453 = vunpack.c.h.b16 %v3372
        %v3454 = vunpack.c.l.b16 %v3373
        %v3455 = vunpack.c.h.b16 %v3373
        %v3456 = vunpack.c.l.b16 %v3374
        %v3457 = vunpack.c.h.b16 %v3374
        %v3458 = vunpack.c.l.b16 %v3375
        %v3459 = vunpack.c.h.b16 %v3375
        %v3460 = vunpack.c.l.b16 %v3376
        %v3461 = vunpack.c.h.b16 %v3376
        %v3462 = vunpack.c.l.b16 %v3377
        %v3463 = vunpack.c.h.b16 %v3377
        %v3464 = vunpack.c.l.b16 %v3378
        %v3465 = vunpack.c.h.b16 %v3378
        %v3466 = vunpack.c.l.b16 %v3379
        %v3467 = vunpack.c.h.b16 %v3379
        %v3468 = vunpack.c.l.b16 %v3380
        %v3469 = vunpack.c.h.b16 %v3380
        %v3470 = vunpack.c.l.b16 %v3381
        %v3471 = vunpack.c.h.b16 %v3381
        %v3472 = vunpack.c.l.b16 %v3382
        %v3473 = vunpack.c.h.b16 %v3382
        %v3474 = vunpack.c.l.b16 %v3383
        %v3475 = vunpack.c.h.b16 %v3383
        %v3476 = vunpack.c.l.b16 %v3384
        %v3477 = vunpack.c.h.b16 %v3384
        %v3478 = vunpack.c.l.b16 %v3385
        %v3479 = vunpack.c.h.b16 %v3385
        %v3480 = vunpack.c.l.b16 %v3386
        %v3481 = vunpack.c.h.b16 %v3386
        %v3482 = vunpack.c.l.b16 %v3387
        %v3483 = vunpack.c.h.b16 %v3387
        %v3484 = vunpack.c.l.b16 %v3388
        %v3485 = vunpack.c.h.b16 %v3388
        %v3486 = vunpack.c.l.b16 %v3389
        %v3487 = vunpack.c.h.b16 %v3389
        %v3488 = vunpack.c.l.b16 %v3390
        %v3489 = vunpack.c.h.b16 %v3390
        %v3490 = vunpack.c.l.b16 %v3391
        %v3491 = vunpack.c.h.b16 %v3391
        %v3492 = vunpack.c.l.b16 %v3392
        %v3493 = vunpack.c.h.b16 %v3392
        %v3494 = vunpack.c.l.b16 %v3393
        %v3495 = vunpack.c.h.b16 %v3393
        %v3496 = vpack.c.b16 %v3436, %v3432
        %v3497 = vpack.c.b16 %v3437, %v3433
        %v3498 = vpack.c.b16 %v3438, %v3434
        %v3499 = vpack.c.b16 %v3439, %v3435
        %v3500 = vpack.c.b16 %v3444, %v3440
        %v3501 = vpack.c.b16 %v3445, %v3441
        %v3502 = vpack.c.b16 %v3446, %v3442
        %v3503 = vpack.c.b16 %v3447, %v3443
        %v3504 = vpack.c.b16 %v3452, %v3448
        %v3505 = vpack.c.b16 %v3453, %v3449
        %v3506 = vpack.c.b16 %v3454, %v3450
        %v3507 = vpack.c.b16 %v3455, %v3451
        %v3508 = vpack.c.b16 %v3460, %v3456
        %v3509 = vpack.c.b16 %v3461, %v3457
        %v3510 = vpack.c.b16 %v3462, %v3458
        %v3511 = vpack.c.b16 %v3463, %v3459
        %v3512 = vpack.c.b16 %v3468, %v3464
        %v3513 = vpack.c.b16 %v3469, %v3465
        %v3514 = vpack.c.b16 %v3470, %v3466
        %v3515 = vpack.c.b16 %v3471, %v3467
        %v3516 = vpack.c.b16 %v3476, %v3472
        %v3517 = vpack.c.b16 %v3477, %v3473
        %v3518 = vpack.c.b16 %v3478, %v3474
        %v3519 = vpack.c.b16 %v3479, %v3475
        %v3520 = vpack.c.b16 %v3484, %v3480
        %v3521 = vpack.c.b16 %v3485, %v3481
        %v3522 = vpack.c.b16 %v3486, %v3482
        %v3523 = vpack.c.b16 %v3487, %v3483
        %v3524 = vpack.c.b16 %v3492, %v3488
        %v3525 = vpack.c.b16 %v3493, %v3489
        %v3526 = vpack.c.b16 %v3494, %v3490
        %v3527 = vpack.c.b16 %v3495, %v3491
        %3560 = vmatpush.bf16.msra.mxu0 %v3524
        %3561 = vmatpush.bf16.msra.mxu0 %v3520
        %3562 = vmatpush.bf16.msra.mxu0 %v3516
        %3563 = vmatpush.bf16.msra.mxu0 %v3512
        %3564 = vmatpush.bf16.msra.mxu0 %v3508
        %3565 = vmatpush.bf16.msra.mxu0 %v3504
        %3566 = vmatpush.bf16.msra.mxu0 %v3500
        %3567 = vmatpush.bf16.msra.mxu0 %v3496
        %3568 = vmatmul.bf16.gmra.mxu0 %v3398
        %v3569 = vpop.f32.mrf.mxu0
        %v3570 = vadd.f32 0.0, %v3569
        %v3571 = vpop.f32.mrf.mxu0
        %v3572 = vadd.f32 0.0, %v3571
        %3573 = vdwg.mxu0
        %3574 = vmatpush.bf16.msra.mxu0 %v3525
        %3575 = vmatpush.bf16.msra.mxu0 %v3521
        %3576 = vmatpush.bf16.msra.mxu0 %v3517
        %3577 = vmatpush.bf16.msra.mxu0 %v3513
        %3578 = vmatpush.bf16.msra.mxu0 %v3509
        %3579 = vmatpush.bf16.msra.mxu0 %v3505
        %3580 = vmatpush.bf16.msra.mxu0 %v3501
        %3581 = vmatpush.bf16.msra.mxu0 %v3497
        %3582 = vmatmul.bf16.gmra.mxu0 %v3398
        %v3583 = vpop.f32.mrf.mxu0
        %v3584 = vadd.f32 0.0, %v3583
        %v3585 = vpop.f32.mrf.mxu0
        %v3586 = vadd.f32 0.0, %v3585
        %3587 = vdwg.mxu0
        %3588 = vmatpush.bf16.msra.mxu0 %v3526
        %3589 = vmatpush.bf16.msra.mxu0 %v3522
        %3590 = vmatpush.bf16.msra.mxu0 %v3518
        %3591 = vmatpush.bf16.msra.mxu0 %v3514
        %3592 = vmatpush.bf16.msra.mxu0 %v3510
        %3593 = vmatpush.bf16.msra.mxu0 %v3506
        %3594 = vmatpush.bf16.msra.mxu0 %v3502
        %3595 = vmatpush.bf16.msra.mxu0 %v3498
        %3596 = vmatmul.bf16.gmra.mxu0 %v3398
        %v3597 = vpop.f32.mrf.mxu0
        %v3598 = vadd.f32 0.0, %v3597
        %v3599 = vpop.f32.mrf.mxu0
        %v3600 = vadd.f32 0.0, %v3599
        %3601 = vdwg.mxu0
        %3602 = vmatpush.bf16.msra.mxu0 %v3527
        %3603 = vmatpush.bf16.msra.mxu0 %v3523
        %3604 = vmatpush.bf16.msra.mxu0 %v3519
        %3605 = vmatpush.bf16.msra.mxu0 %v3515
        %3606 = vmatpush.bf16.msra.mxu0 %v3511
        %3607 = vmatpush.bf16.msra.mxu0 %v3507
        %3608 = vmatpush.bf16.msra.mxu0 %v3503
        %3609 = vmatpush.bf16.msra.mxu0 %v3499
        %3610 = vmatmul.bf16.gmra.mxu0 %v3398
        %v3611 = vpop.f32.mrf.mxu0
        %v3612 = vadd.f32 0.0, %v3611
        %v3613 = vpop.f32.mrf.mxu0
        %v3614 = vadd.f32 0.0, %v3613
        %3615 = vdwg.mxu0
        %v3616 = vadd.f32 %v3354, %v3570
        %v3617 = vadd.f32 %v3355, %v3584
        %v3618 = vadd.f32 %v3356, %v3598
        %v3619 = vadd.f32 %v3357, %v3612
        %v3620 = vadd.f32 %v3358, %v3572
        %v3621 = vadd.f32 %v3359, %v3586
        %v3622 = vadd.f32 %v3360, %v3600
        %v3623 = vadd.f32 %v3361, %v3614
        %v3624 = vmul.f32 %v3616, 0.5
        %v3625 = vmul.f32 %v3620, 0.5
        %v3626 = vtanh.pop %v3624
        %v3627 = vtanh.pop %v3625
        %v3628 = vadd.f32 %v3626, 1.0
        %v3629 = vadd.f32 %v3627, 1.0
        %v3630 = vmul.f32 %v3628, 0.5
        %v3631 = vmul.f32 %v3629, 0.5
        %v3632 = vmul.f32 %v3617, 0.5
        %v3633 = vmul.f32 %v3621, 0.5
        %v3634 = vtanh.pop %v3632
        %v3635 = vtanh.pop %v3633
        %v3636 = vadd.f32 %v3634, 1.0
        %v3637 = vadd.f32 %v3635, 1.0
        %v3638 = vmul.f32 %v3636, 0.5
        %v3639 = vmul.f32 %v3637, 0.5
        %v3640 = vtanh.pop %v3618
        %v3641 = vtanh.pop %v3622
        %v3642 = vmul.f32 %v3619, 0.5
        %v3643 = vmul.f32 %v3623, 0.5
        %v3644 = vtanh.pop %v3642
        %v3645 = vtanh.pop %v3643
        %v3646 = vadd.f32 %v3644, 1.0
        %v3647 = vadd.f32 %v3645, 1.0
        %v3648 = vmul.f32 %v3646, 0.5
        %v3649 = vmul.f32 %v3647, 0.5
        %v3650 = vmul.f32 %v3638, %v3342
        %v3651 = vmul.f32 %v3639, %v3343
        %v3652 = vmul.f32 %v3630, %v3640
        %v3653 = vmul.f32 %v3631, %v3641
        %v3654 = vadd.f32 %v3650, %v3652
        %v3655 = vadd.f32 %v3651, %v3653
        %v3656 = vtanh.pop %v3654
        %v3657 = vtanh.pop %v3655
        %v3658 = vmul.f32 %v3648, %v3656
        %v3659 = vmul.f32 %v3649, %v3657
        %v3660 = vpack.c.bf16 %v3658, %v3658
        %v3661 = vpack.c.bf16 %v3659, %v3659
        %s3662 = scalar_lea.vmem [#allocation2], 48
        %3663 = vst [vmem:[%s3662] sm:$0xf] %v3660
        %3664 = vst [vmem:[%s3662 + $0x4] sm:$0xf] %v3661
        %s3665 = scalar_lea.vmem [#allocation3], 448
        %v3666 = vld [vmem:[%s3665] sm:$0xff]
        %v3667 = vld [vmem:[%s3665 + $0x8] sm:$0xff]
        %v3668 = vld [vmem:[%s3665 + $0x10] sm:$0xff]
        %v3669 = vld [vmem:[%s3665 + $0x18] sm:$0xff]
        %v3670 = vld [vmem:[%s3665 + $0x20] sm:$0xff]
        %v3671 = vld [vmem:[%s3665 + $0x28] sm:$0xff]
        %v3672 = vld [vmem:[%s3665 + $0x30] sm:$0xff]
        %v3673 = vld [vmem:[%s3665 + $0x38] sm:$0xff]
        %v3674 = vld [vmem:[%s338] sm:$0xff]
        %v3675 = vld [vmem:[%s338 + $0x8] sm:$0xff]
        %v3676 = vld [vmem:[%s338 + $0x10] sm:$0xff]
        %v3677 = vld [vmem:[%s338 + $0x18] sm:$0xff]
        %v3678 = vld [vmem:[%s338 + $0x20] sm:$0xff]
        %v3679 = vld [vmem:[%s338 + $0x28] sm:$0xff]
        %v3680 = vld [vmem:[%s338 + $0x30] sm:$0xff]
        %v3681 = vld [vmem:[%s338 + $0x38] sm:$0xff]
        %v3682 = vld [vmem:[%s338 + $0x40] sm:$0xff]
        %v3683 = vld [vmem:[%s338 + $0x48] sm:$0xff]
        %v3684 = vld [vmem:[%s338 + $0x50] sm:$0xff]
        %v3685 = vld [vmem:[%s338 + $0x58] sm:$0xff]
        %v3686 = vld [vmem:[%s338 + $0x60] sm:$0xff]
        %v3687 = vld [vmem:[%s338 + $0x68] sm:$0xff]
        %v3688 = vld [vmem:[%s338 + $0x70] sm:$0xff]
        %v3689 = vld [vmem:[%s338 + $0x78] sm:$0xff]
        %v3690 = vld [vmem:[%s338 + $0x80] sm:$0xff]
        %v3691 = vld [vmem:[%s338 + $0x88] sm:$0xff]
        %v3692 = vld [vmem:[%s338 + $0x90] sm:$0xff]
        %v3693 = vld [vmem:[%s338 + $0x98] sm:$0xff]
        %v3694 = vld [vmem:[%s338 + $0xa0] sm:$0xff]
        %v3695 = vld [vmem:[%s338 + $0xa8] sm:$0xff]
        %v3696 = vld [vmem:[%s338 + $0xb0] sm:$0xff]
        %v3697 = vld [vmem:[%s338 + $0xb8] sm:$0xff]
        %v3698 = vld [vmem:[%s338 + $0xc0] sm:$0xff]
        %v3699 = vld [vmem:[%s338 + $0xc8] sm:$0xff]
        %v3700 = vld [vmem:[%s338 + $0xd0] sm:$0xff]
        %v3701 = vld [vmem:[%s338 + $0xd8] sm:$0xff]
        %v3702 = vld [vmem:[%s338 + $0xe0] sm:$0xff]
        %v3703 = vld [vmem:[%s338 + $0xe8] sm:$0xff]
        %v3704 = vld [vmem:[%s338 + $0xf0] sm:$0xff]
        %v3705 = vld [vmem:[%s338 + $0xf8] sm:$0xff]
        %v3708 = vunpack.c.l.b16 %v3660
        %v3709 = vunpack.c.l.b16 %v3661
        %v3710 = vpack.c.b16 %v3709, %v3708
        %v3744 = vunpack.c.l.b16 %v3674
        %v3745 = vunpack.c.h.b16 %v3674
        %v3746 = vunpack.c.l.b16 %v3675
        %v3747 = vunpack.c.h.b16 %v3675
        %v3748 = vunpack.c.l.b16 %v3676
        %v3749 = vunpack.c.h.b16 %v3676
        %v3750 = vunpack.c.l.b16 %v3677
        %v3751 = vunpack.c.h.b16 %v3677
        %v3752 = vunpack.c.l.b16 %v3678
        %v3753 = vunpack.c.h.b16 %v3678
        %v3754 = vunpack.c.l.b16 %v3679
        %v3755 = vunpack.c.h.b16 %v3679
        %v3756 = vunpack.c.l.b16 %v3680
        %v3757 = vunpack.c.h.b16 %v3680
        %v3758 = vunpack.c.l.b16 %v3681
        %v3759 = vunpack.c.h.b16 %v3681
        %v3760 = vunpack.c.l.b16 %v3682
        %v3761 = vunpack.c.h.b16 %v3682
        %v3762 = vunpack.c.l.b16 %v3683
        %v3763 = vunpack.c.h.b16 %v3683
        %v3764 = vunpack.c.l.b16 %v3684
        %v3765 = vunpack.c.h.b16 %v3684
        %v3766 = vunpack.c.l.b16 %v3685
        %v3767 = vunpack.c.h.b16 %v3685
        %v3768 = vunpack.c.l.b16 %v3686
        %v3769 = vunpack.c.h.b16 %v3686
        %v3770 = vunpack.c.l.b16 %v3687
        %v3771 = vunpack.c.h.b16 %v3687
        %v3772 = vunpack.c.l.b16 %v3688
        %v3773 = vunpack.c.h.b16 %v3688
        %v3774 = vunpack.c.l.b16 %v3689
        %v3775 = vunpack.c.h.b16 %v3689
        %v3776 = vunpack.c.l.b16 %v3690
        %v3777 = vunpack.c.h.b16 %v3690
        %v3778 = vunpack.c.l.b16 %v3691
        %v3779 = vunpack.c.h.b16 %v3691
        %v3780 = vunpack.c.l.b16 %v3692
        %v3781 = vunpack.c.h.b16 %v3692
        %v3782 = vunpack.c.l.b16 %v3693
        %v3783 = vunpack.c.h.b16 %v3693
        %v3784 = vunpack.c.l.b16 %v3694
        %v3785 = vunpack.c.h.b16 %v3694
        %v3786 = vunpack.c.l.b16 %v3695
        %v3787 = vunpack.c.h.b16 %v3695
        %v3788 = vunpack.c.l.b16 %v3696
        %v3789 = vunpack.c.h.b16 %v3696
        %v3790 = vunpack.c.l.b16 %v3697
        %v3791 = vunpack.c.h.b16 %v3697
        %v3792 = vunpack.c.l.b16 %v3698
        %v3793 = vunpack.c.h.b16 %v3698
        %v3794 = vunpack.c.l.b16 %v3699
        %v3795 = vunpack.c.h.b16 %v3699
        %v3796 = vunpack.c.l.b16 %v3700
        %v3797 = vunpack.c.h.b16 %v3700
        %v3798 = vunpack.c.l.b16 %v3701
        %v3799 = vunpack.c.h.b16 %v3701
        %v3800 = vunpack.c.l.b16 %v3702
        %v3801 = vunpack.c.h.b16 %v3702
        %v3802 = vunpack.c.l.b16 %v3703
        %v3803 = vunpack.c.h.b16 %v3703
        %v3804 = vunpack.c.l.b16 %v3704
        %v3805 = vunpack.c.h.b16 %v3704
        %v3806 = vunpack.c.l.b16 %v3705
        %v3807 = vunpack.c.h.b16 %v3705
        %v3808 = vpack.c.b16 %v3748, %v3744
        %v3809 = vpack.c.b16 %v3749, %v3745
        %v3810 = vpack.c.b16 %v3750, %v3746
        %v3811 = vpack.c.b16 %v3751, %v3747
        %v3812 = vpack.c.b16 %v3756, %v3752
        %v3813 = vpack.c.b16 %v3757, %v3753
        %v3814 = vpack.c.b16 %v3758, %v3754
        %v3815 = vpack.c.b16 %v3759, %v3755
        %v3816 = vpack.c.b16 %v3764, %v3760
        %v3817 = vpack.c.b16 %v3765, %v3761
        %v3818 = vpack.c.b16 %v3766, %v3762
        %v3819 = vpack.c.b16 %v3767, %v3763
        %v3820 = vpack.c.b16 %v3772, %v3768
        %v3821 = vpack.c.b16 %v3773, %v3769
        %v3822 = vpack.c.b16 %v3774, %v3770
        %v3823 = vpack.c.b16 %v3775, %v3771
        %v3824 = vpack.c.b16 %v3780, %v3776
        %v3825 = vpack.c.b16 %v3781, %v3777
        %v3826 = vpack.c.b16 %v3782, %v3778
        %v3827 = vpack.c.b16 %v3783, %v3779
        %v3828 = vpack.c.b16 %v3788, %v3784
        %v3829 = vpack.c.b16 %v3789, %v3785
        %v3830 = vpack.c.b16 %v3790, %v3786
        %v3831 = vpack.c.b16 %v3791, %v3787
        %v3832 = vpack.c.b16 %v3796, %v3792
        %v3833 = vpack.c.b16 %v3797, %v3793
        %v3834 = vpack.c.b16 %v3798, %v3794
        %v3835 = vpack.c.b16 %v3799, %v3795
        %v3836 = vpack.c.b16 %v3804, %v3800
        %v3837 = vpack.c.b16 %v3805, %v3801
        %v3838 = vpack.c.b16 %v3806, %v3802
        %v3839 = vpack.c.b16 %v3807, %v3803
        %3872 = vmatpush.bf16.msra.mxu0 %v3836
        %3873 = vmatpush.bf16.msra.mxu0 %v3832
        %3874 = vmatpush.bf16.msra.mxu0 %v3828
        %3875 = vmatpush.bf16.msra.mxu0 %v3824
        %3876 = vmatpush.bf16.msra.mxu0 %v3820
        %3877 = vmatpush.bf16.msra.mxu0 %v3816
        %3878 = vmatpush.bf16.msra.mxu0 %v3812
        %3879 = vmatpush.bf16.msra.mxu0 %v3808
        %3880 = vmatmul.bf16.gmra.mxu0 %v3710
        %v3881 = vpop.f32.mrf.mxu0
        %v3882 = vadd.f32 0.0, %v3881
        %v3883 = vpop.f32.mrf.mxu0
        %v3884 = vadd.f32 0.0, %v3883
        %3885 = vdwg.mxu0
        %3886 = vmatpush.bf16.msra.mxu0 %v3837
        %3887 = vmatpush.bf16.msra.mxu0 %v3833
        %3888 = vmatpush.bf16.msra.mxu0 %v3829
        %3889 = vmatpush.bf16.msra.mxu0 %v3825
        %3890 = vmatpush.bf16.msra.mxu0 %v3821
        %3891 = vmatpush.bf16.msra.mxu0 %v3817
        %3892 = vmatpush.bf16.msra.mxu0 %v3813
        %3893 = vmatpush.bf16.msra.mxu0 %v3809
        %3894 = vmatmul.bf16.gmra.mxu0 %v3710
        %v3895 = vpop.f32.mrf.mxu0
        %v3896 = vadd.f32 0.0, %v3895
        %v3897 = vpop.f32.mrf.mxu0
        %v3898 = vadd.f32 0.0, %v3897
        %3899 = vdwg.mxu0
        %3900 = vmatpush.bf16.msra.mxu0 %v3838
        %3901 = vmatpush.bf16.msra.mxu0 %v3834
        %3902 = vmatpush.bf16.msra.mxu0 %v3830
        %3903 = vmatpush.bf16.msra.mxu0 %v3826
        %3904 = vmatpush.bf16.msra.mxu0 %v3822
        %3905 = vmatpush.bf16.msra.mxu0 %v3818
        %3906 = vmatpush.bf16.msra.mxu0 %v3814
        %3907 = vmatpush.bf16.msra.mxu0 %v3810
        %3908 = vmatmul.bf16.gmra.mxu0 %v3710
        %v3909 = vpop.f32.mrf.mxu0
        %v3910 = vadd.f32 0.0, %v3909
        %v3911 = vpop.f32.mrf.mxu0
        %v3912 = vadd.f32 0.0, %v3911
        %3913 = vdwg.mxu0
        %3914 = vmatpush.bf16.msra.mxu0 %v3839
        %3915 = vmatpush.bf16.msra.mxu0 %v3835
        %3916 = vmatpush.bf16.msra.mxu0 %v3831
        %3917 = vmatpush.bf16.msra.mxu0 %v3827
        %3918 = vmatpush.bf16.msra.mxu0 %v3823
        %3919 = vmatpush.bf16.msra.mxu0 %v3819
        %3920 = vmatpush.bf16.msra.mxu0 %v3815
        %3921 = vmatpush.bf16.msra.mxu0 %v3811
        %3922 = vmatmul.bf16.gmra.mxu0 %v3710
        %v3923 = vpop.f32.mrf.mxu0
        %v3924 = vadd.f32 0.0, %v3923
        %v3925 = vpop.f32.mrf.mxu0
        %v3926 = vadd.f32 0.0, %v3925
        %3927 = vdwg.mxu0
        %v3928 = vadd.f32 %v3666, %v3882
        %v3929 = vadd.f32 %v3667, %v3896
        %v3930 = vadd.f32 %v3668, %v3910
        %v3931 = vadd.f32 %v3669, %v3924
        %v3932 = vadd.f32 %v3670, %v3884
        %v3933 = vadd.f32 %v3671, %v3898
        %v3934 = vadd.f32 %v3672, %v3912
        %v3935 = vadd.f32 %v3673, %v3926
        %v3936 = vmul.f32 %v3928, 0.5
        %v3937 = vmul.f32 %v3932, 0.5
        %v3938 = vtanh.pop %v3936
        %v3939 = vtanh.pop %v3937
        %v3940 = vadd.f32 %v3938, 1.0
        %v3941 = vadd.f32 %v3939, 1.0
        %v3942 = vmul.f32 %v3940, 0.5
        %v3943 = vmul.f32 %v3941, 0.5
        %v3944 = vmul.f32 %v3929, 0.5
        %v3945 = vmul.f32 %v3933, 0.5
        %v3946 = vtanh.pop %v3944
        %v3947 = vtanh.pop %v3945
        %v3948 = vadd.f32 %v3946, 1.0
        %v3949 = vadd.f32 %v3947, 1.0
        %v3950 = vmul.f32 %v3948, 0.5
        %v3951 = vmul.f32 %v3949, 0.5
        %v3952 = vtanh.pop %v3930
        %v3953 = vtanh.pop %v3934
        %v3954 = vmul.f32 %v3931, 0.5
        %v3955 = vmul.f32 %v3935, 0.5
        %v3956 = vtanh.pop %v3954
        %v3957 = vtanh.pop %v3955
        %v3958 = vadd.f32 %v3956, 1.0
        %v3959 = vadd.f32 %v3957, 1.0
        %v3960 = vmul.f32 %v3958, 0.5
        %v3961 = vmul.f32 %v3959, 0.5
        %v3962 = vmul.f32 %v3950, %v3654
        %v3963 = vmul.f32 %v3951, %v3655
        %v3964 = vmul.f32 %v3942, %v3952
        %v3965 = vmul.f32 %v3943, %v3953
        %v3966 = vadd.f32 %v3962, %v3964
        %v3967 = vadd.f32 %v3963, %v3965
        %v3968 = vtanh.pop %v3966
        %v3969 = vtanh.pop %v3967
        %v3970 = vmul.f32 %v3960, %v3968
        %v3971 = vmul.f32 %v3961, %v3969
        %v3972 = vpack.c.bf16 %v3970, %v3970
        %v3973 = vpack.c.bf16 %v3971, %v3971
        %s3974 = scalar_lea.vmem [#allocation2], 56
        %3975 = vst [vmem:[%s3974] sm:$0xf] %v3972
        %3976 = vst [vmem:[%s3974 + $0x4] sm:$0xf] %v3973
        %3977 = vst [vmem:[%s416] sm:$0xff] %v3970
        %3978 = vst [vmem:[%s416 + $0x8] sm:$0xff] %v3971
        %3979 = vst [vmem:[%s426] sm:$0xff] %v3966
        %3980 = vst [vmem:[%s426 + $0x8] sm:$0xff] %v3967
        %s3981 = smul.u32 2, %s26
        %p3982 = scmp.lt.s32.totalorder %s27, 1
        %s3983 = scalar_select %p3982, %s27, 1
        %p3984 = scmp.lt.s32.totalorder %s3981, 1
        %s3985 = scalar_select %p3984, %s3981, 1
        %s3986 = smul.addr %s3983, 2
        %s3987 = sadd.s32 %s3985, %s3986
        %s3988 = smul.addr %s3987, 8
        %s3989 = scalar_lea.vmem %s5, %s3988
        %s3990 = smul.u32 2, %s26
        %p3991 = scmp.lt.s32.totalorder %s27, 1
        %s3992 = scalar_select %p3991, %s27, 1
        %p3993 = scmp.lt.s32.totalorder %s3990, 1
        %s3994 = scalar_select %p3993, %s3990, 1
        %s3995 = smul.addr %s3992, 2
        %s3996 = sadd.s32 %s3994, %s3995
        %s3997 = smul.addr %s3996, 8
        %s3998 = scalar_lea.vmem %s6, %s3997
        // Predicated region
        $region61: #{encoder_forward.1} parent=39 // pred_check
          %p3999 = pneg %p185
        $region62: #{encoder_forward.1} parent=39 // pred_check_branch
          %4001 = sbr.rel (%p3999) target = $region64
        $region63: #{encoder_forward.1} parent=39 // pred_region
          %s4002 = smul.u32 2, %s26
        $region64: #{encoder_forward.1} parent=39 // pred_fallthru
          _
        // Predicated region
        $region65: #{encoder_forward.1} parent=39 // pred_check
          %p4003 = pneg %p213
        $region66: #{encoder_forward.1} parent=39 // pred_check_branch
          %4005 = sbr.rel (%p4003) target = $region68
        $region67: #{encoder_forward.1} parent=39 // pred_region
          %s4006 = smul.u32 2, %s26
        $region68: #{encoder_forward.1} parent=39 // pred_fallthru
          _
      $region40: #{encoder_forward.1} parent=5 // pred_fallthru
        _
      %p4007 = scmp.le.s32.totalorder 2, %s17
      // Predicated region
      $region69: #{encoder_forward.1} parent=5 // pred_check
        %p4008 = pneg %p4007
      $region70: #{encoder_forward.1} parent=5 // pred_check_branch
        %4010 = sbr.rel (%p4008) target = $region72
      $region71: #{encoder_forward.1} parent=5 // pred_region
        %s4011 = ssub.s32 %s17, 2
        // Predicated region
        $region73: #{encoder_forward.1} parent=71 // pred_check
          %p4012 = pneg %p191
        $region74: #{encoder_forward.1} parent=71 // pred_check_branch
          %4014 = sbr.rel (%p4012) target = $region76
        $region75: #{encoder_forward.1} parent=71 // pred_region
          %s4015 = smul.u32 2, %s28
          %p4016 = scmp.lt.s32.totalorder %s29, 1
          %s4017 = scalar_select %p4016, %s29, 1
          %p4018 = scmp.lt.s32.totalorder %s4015, 1
          %s4019 = scalar_select %p4018, %s4015, 1
          %s4020 = smul.addr %s4017, 2
          %s4021 = sadd.s32 %s4019, %s4020
          %s4022 = smul.addr %s4021, 8
          %s4023 = scalar_lea.vmem %s5, %s4022
        $region76: #{encoder_forward.1} parent=71 // pred_fallthru
          _
        // Predicated region
        $region77: #{encoder_forward.1} parent=71 // pred_check
          %p4024 = pneg %p219
        $region78: #{encoder_forward.1} parent=71 // pred_check_branch
          %4026 = sbr.rel (%p4024) target = $region80
        $region79: #{encoder_forward.1} parent=71 // pred_region
          %s4027 = smul.u32 2, %s28
          %p4028 = scmp.lt.s32.totalorder %s29, 1
          %s4029 = scalar_select %p4028, %s29, 1
          %p4030 = scmp.lt.s32.totalorder %s4027, 1
          %s4031 = scalar_select %p4030, %s4027, 1
          %s4032 = smul.addr %s4029, 2
          %s4033 = sadd.s32 %s4031, %s4032
          %s4034 = smul.addr %s4033, 8
          %s4035 = scalar_lea.vmem %s6, %s4034
        $region80: #{encoder_forward.1} parent=71 // pred_fallthru
          _
      $region72: #{encoder_forward.1} parent=5 // pred_fallthru
        _
    $region6: #{encoder_forward.1} parent=1 // loop_footer
      %s21 = sadd.s32 1, %s17
    $region7: #{encoder_forward.1} parent=1 // loop_footer_branch
      %16 = sbr.rel target = $region3
    $region8: #{encoder_forward.1} parent=1 // loop_exit
      _
    %4036 = vsyncpa [#allocation5], 1
    %s4037 = scalar_lea.sflag [#allocation5], 1
    %4038 = vsyncpa %s4037, 1
    %4039 = vsyncpa [#allocation7], 1
    %s4040 = scalar_lea.sflag [#allocation7], 1
    %4041 = vsyncpa %s4040, 1

</llo_original>
